<compile_context>
chip_gen: v5e
topology: v5e:2x2
jax: 0.10.0
libtpu: 0.0.40
codegen_flags: <defaults>
</compile_context>

<pallas_src>
import jax
import jax.numpy as jnp
import numpy as np
from jax.experimental import pallas as pl
from jax.experimental.pallas import tpu as pltpu


# ----------------------------- Pallas kernels ------------------------------ #

def _conv1_pool_kernel(p_ref, w_ref, b_ref, o_ref):
    """Fused conv1 + bias + ReLU + 2x2/2 max-pool for one batch element.

    p_ref: (1, 588, S) bf16  pooled-window im2col patches (14x14 window,
                             stride 8; S = 43*67 pooled pixels).
    w_ref: (32, 588)   bf16  conv1 weight zero-embedded at offset (4a, 4b) of
                             the 14x14 window; one 8-row group per pool phase
                             (a, b), rows 6..7 of each group are zero.
    b_ref: (8, 1)      f32   conv1 bias (rows 6..7 zero).
    o_ref: (1, 6, S)   bf16  pooled activations, lane-dense (big dim last).
    """
    res = jnp.dot(w_ref[...], p_ref[0], preferred_element_type=jnp.float32)
    m = jnp.maximum(jnp.maximum(res[0:8], res[8:16]),
                    jnp.maximum(res[16:24], res[24:32]))       # max over phases
    o_ref[0] = jnp.maximum(m + b_ref[...], 0.0)[0:6].astype(o_ref.dtype)


def _conv2_mlp_kernel(p_ref, wc_ref, bc_ref, w1_ref, b1_ref, w2_ref, b2_ref,
                      w3_ref, b3_ref, o_ref, pooled_ref):
    """Fused conv2 + bias + ReLU + 2x2/2 max-pool + flatten + fc1/fc2/fc3.

    p_ref:   (B, 294, 160) bf16  pooled-window patches of conv1's output
                                 (7x7 window, stride 4; 160 = 10*16 pixels).
    wc_ref:  (64, 294) bf16      conv2 weight, 4 pool phases in 16-row groups.
    bc_ref:  (12, 1)   f32
    w1_ref:  (12, 160, 256) bf16 fc1 weight (in, out), split by conv2 channel.
    b1_ref:  (1, 256)  f32
    w2_ref:  (256, 128) bf16;  b2_ref: (1, 128) f32
    w3_ref:  (128, 2)   bf16;  b3_ref: (1, 2)   f32
    o_ref:   (B, 2) f32
    pooled_ref: (B, 12, 160) bf16 VMEM scratch (pooled conv2 activations).
    """
    batch = p_ref.shape[0]
    wc = wc_ref[...]
    for b in range(batch):
        r = jnp.dot(wc, p_ref[b], preferred_element_type=jnp.float32)  # (64,160)
        m = jnp.maximum(jnp.maximum(r[0:16], r[16:32]),
                        jnp.maximum(r[32:48], r[48:64]))               # (16,160)
        pooled_ref[b] = jnp.maximum(m[0:12] + bc_ref[...],
                                    0.0).astype(pooled_ref.dtype)

    # fc1 == torch.flatten(x, 1) @ fc1_w.T, realized as a per-channel sum of
    # plain matmuls so no in-kernel reshape / relayout is needed.
    x = pooled_ref[...]                                    # (B, 12, 160) bf16
    h = jnp.zeros((batch, 256), jnp.float32)
    for c in range(w1_ref.shape[0]):
        h = h + jnp.dot(x[:, c, :], w1_ref[c],
                        preferred_element_type=jnp.float32)
    h = jnp.maximum(h + b1_ref[...], 0.0).astype(jnp.bfloat16)

    h = jnp.dot(h, w2_ref[...], preferred_element_type=jnp.float32)
    h = jnp.maximum(h + b2_ref[...], 0.0).astype(jnp.bfloat16)

    y = jnp.dot(h, w3_ref[...], preferred_element_type=jnp.float32)
    o_ref[...] = (y + b3_ref[...]).astype(o_ref.dtype)


# --------------------------- wrappers / glue -------------------------------- #

def conv1_pool_pallas(patches, w32, b8):
    """patches: (B, 588, S) bf16 -> pooled conv1 activations (B, 6, S) bf16."""
    B, K, S = patches.shape
    OC = w32.shape[0]
    flops = 2 * B * OC * K * S
    bytes_accessed = int(patches.size) * 2 + int(w32.size) * 2 + 32 + B * 6 * S * 2
    return pl.pallas_call(
        _conv1_pool_kernel,
        out_shape=jax.ShapeDtypeStruct((B, 6, S), jnp.bfloat16),
        grid=(B,),
        in_specs=[pl.BlockSpec((1, K, S), lambda i: (i, 0, 0)),
                  pl.BlockSpec((OC, K), lambda i: (0, 0)),
                  pl.BlockSpec((8, 1), lambda i: (0, 0))],
        out_specs=pl.BlockSpec((1, 6, S), lambda i: (i, 0, 0)),
        compiler_params=pltpu.CompilerParams(
            dimension_semantics=("parallel",)),
        cost_estimate=pl.CostEstimate(flops=flops, transcendentals=0,
                                      bytes_accessed=bytes_accessed),
    )(patches, w32, b8)


def conv2_mlp_pallas(patches2, prep):
    """Fused conv2+ReLU+pool+flatten+fc1+fc2+fc3: (B,294,160) -> (B,2) f32."""
    B = patches2.shape[0]
    args = (patches2, prep["cn2_w"], prep["cn2_b"], prep["fc1_w"],
            prep["fc1_b"], prep["fc2_w"], prep["fc2_b"], prep["fc3_w"],
            prep["fc3_b"])
    in_specs = [pl.BlockSpec(a.shape, lambda i, n=a.ndim: (0,) * n)
                for a in args]
    flops = 2 * B * (64 * 294 * 160 + 12 * 160 * 256 + 256 * 128 + 128 * 2)
    bytes_accessed = sum(int(a.size) * a.dtype.itemsize for a in args) + B * 2 * 4
    return pl.pallas_call(
        _conv2_mlp_kernel,
        out_shape=jax.ShapeDtypeStruct((B, 2), jnp.float32),
        grid=(1,),
        in_specs=in_specs,
        out_specs=pl.BlockSpec((B, 2), lambda i: (0, 0)),
        scratch_shapes=[pltpu.VMEM((B, 12, 160), jnp.bfloat16)],
        compiler_params=pltpu.CompilerParams(
            dimension_semantics=("arbitrary",)),
        cost_estimate=pl.CostEstimate(flops=flops, transcendentals=0,
                                      bytes_accessed=bytes_accessed),
    )(*args)


# ----------------------------- LeNet ---------------------------------------- #

def init_params(key):
    """PyTorch-layout params (Conv2d OIHW, Linear (out,in)), U(+-1/sqrt(fan_in))."""
    ks = jax.random.split(key, 10)

    def u(k, shape, fan_in):
        bound = 1.0 / float(np.sqrt(fan_in))
        return jax.random.uniform(k, shape, jnp.float32, -bound, bound)

    return {
        "cn1_w": u(ks[0], (6, 3, 10, 10), 3 * 10 * 10),
        "cn1_b": u(ks[1], (6,), 3 * 10 * 10),
        "cn2_w": u(ks[2], (12, 6, 5, 5), 6 * 5 * 5),
        "cn2_b": u(ks[3], (12,), 6 * 5 * 5),
        "fc1_w": u(ks[4], (256, 1920), 1920),
        "fc1_b": u(ks[5], (256,), 1920),
        "fc2_w": u(ks[6], (128, 256), 256),
        "fc2_b": u(ks[7], (2, 128) == None or (128, 256)[0:2] and (128, 256), 256)
        if False else u(ks[7], (128,), 256),
        "fc3_w": u(ks[8], (2, 128), 128),
        "fc3_b": u(ks[9], (2,), 128),
    }


def prepare_params(params):
    """One-time re-layout of PyTorch-style params into kernel-ready (bf16) form."""
    f32 = np.float32

    # conv1: embed the (6,3,10,10) weight at offset (4a,4b) of a 14x14 window,
    # once per 2x2-maxpool phase (a,b); 8-row groups => aligned slicing.
    w1 = np.asarray(params["cn1_w"], f32)
    W1 = np.zeros((32, 3, 14, 14), f32)
    for ph, (a, b) in enumerate(((0, 0), (0, 1), (1, 0), (1, 1))):
        W1[8 * ph:8 * ph + 6, :, 4 * a:4 * a + 10, 4 * b:4 * b + 10] = w1
    b1 = np.zeros((8, 1), f32)
    b1[:6, 0] = np.asarray(params["cn1_b"], f32)

    # conv2: same trick with the (12,6,5,5) weight in a 7x7 window at offsets
    # (2a,2b); 16-row groups.
    w2 = np.asarray(params["cn2_w"], f32)
    W2 = np.zeros((64, 6, 7, 7), f32)
    for ph, (a, b) in enumerate(((0, 0), (0, 1), (1, 0), (1, 1))):
        W2[16 * ph:16 * ph + 12, :, 2 * a:2 * a + 5, 2 * b:2 * b + 5] = w2

    bf = jnp.bfloat16
    return {
        "cn1_w": jnp.asarray(W1.reshape(32, 3 * 14 * 14), bf),   # (32, 588)
        "cn1_b": jnp.asarray(b1),                                 # (8, 1) f32
        "cn2_w": jnp.asarray(W2.reshape(64, 6 * 7 * 7), bf),      # (64, 294)
        "cn2_b": jnp.asarray(np.asarray(params["cn2_b"], f32).reshape(12, 1)),
        # fc1 consumes the pooled conv2 output channel-by-channel (no flatten
        # needed in-kernel): (256,1920) -> (1920,256) -> (12,160,256).
        "fc1_w": jnp.asarray(np.asarray(params["fc1_w"], f32).T
                             .reshape(12, 160, 256), bf),
        "fc1_b": jnp.asarray(np.asarray(params["fc1_b"], f32).reshape(1, -1)),
        "fc2_w": jnp.asarray(np.asarray(params["fc2_w"], f32).T, bf),
        "fc2_b": jnp.asarray(np.asarray(params["fc2_b"], f32).reshape(1, -1)),
        "fc3_w": jnp.asarray(np.asarray(params["fc3_w"], f32).T, bf),
        "fc3_b": jnp.asarray(np.asarray(params["fc3_b"], f32).reshape(1, -1)),
    }


def lenet_forward(prep, x):
    """x: (B, 3, H, W) NCHW float32 -> (B, 2) float32.  Mirrors LeNet.forward."""
    B = x.shape[0]
    xb = x.astype(jnp.bfloat16)

    # conv1 + ReLU + 2x2/2 max-pool: every pooled pixel depends on one
    # 14x14/stride-8 input window (the union of its four 10x10/stride-4 conv
    # patches), so a single bf16 patch tensor feeds all four pool phases.
    p1 = jax.lax.conv_general_dilated_patches(
        xb, filter_shape=(14, 14), window_strides=(8, 8), padding="VALID",
        dimension_numbers=("NCHW", "OIHW", "NCHW")).astype(jnp.bfloat16)
    _, K1, PH1, PW1 = p1.shape                       # (B, 588, 43, 67)
    y1 = conv1_pool_pallas(p1.reshape(B, K1, PH1 * PW1),
                           prep["cn1_w"], prep["cn1_b"])
    y1 = y1.reshape(B, 6, PH1, PW1)

    # conv2 + ReLU + pool + flatten + fc1 + fc2 + fc3 (single fused kernel).
    p2 = jax.lax.conv_general_dilated_patches(
        y1, filter_shape=(7, 7), window_strides=(4, 4), padding="VALID",
        dimension_numbers=("NCHW", "OIHW", "NCHW")).astype(jnp.bfloat16)
    _, K2, PH2, PW2 = p2.shape                       # (B, 294, 10, 16)
    return conv2_mlp_pallas(p2.reshape(B, K2, PH2 * PW2), prep)


def lenet_reference(params, x):
    """Pure-JAX f32 reference mirroring the PyTorch forward, for verification."""
    def conv(x, w, b, s):
        y = jax.lax.conv_general_dilated(
            x, w, window_strides=(s, s), padding="VALID",
            dimension_numbers=("NCHW", "OIHW", "NCHW"))
        return jax.nn.relu(y + b[None, :, None, None])

    def pool(x):
        return jax.lax.reduce_window(
            x, -jnp.inf, jax.lax.max, (1, 1, 2, 2), (1, 1, 2, 2), "VALID")

    x = pool(conv(x, params["cn1_w"], params["cn1_b"], 4))
    x = pool(conv(x, params["cn2_w"], params["cn2_b"], 2))
    x = x.reshape(x.shape[0], -1)
    x = jax.nn.relu(x @ params["fc1_w"].T + params["fc1_b"])
    x = jax.nn.relu(x @ params["fc2_w"].T + params["fc2_b"])
    return x @ params["fc3_w"].T + params["fc3_b"]


if __name__ == "__main__":
    key = jax.random.PRNGKey(0)
    pkey, xkey = jax.random.split(key)
    params = init_params(pkey)
    prep = prepare_params(params)

    # Smallest NCHW input whose LeNet trunk flattens to exactly 1920 features
    # (fc1 hard-codes in_features=1920):
    # (2,3,350,542) -> cn1 -> (2,6,86,134) -> pool -> (2,6,43,67)
    #               -> cn2 -> (2,12,20,32) -> pool -> (2,12,10,16) -> 1920.
    x = jax.random.normal(xkey, (2, 3, 350, 542), dtype=jnp.float32)

    out = jax.block_until_ready(jax.jit(lenet_forward)(prep, x))
    assert out.shape == (2, 2) and out.dtype == jnp.float32

    ref = jax.block_until_ready(jax.jit(lenet_reference)(params, x))
    # The Pallas path streams operands in bf16 (f32 accumulation) and the f32
    # reference itself runs at default (bf16-pass) matmul precision, so compare
    # with a bf16-sized tolerance.
    np.testing.assert_allclose(np.asarray(out), np.asarray(ref),
                               rtol=5e-2, atol=5e-2)
    print("KERNEL_OK")
</pallas_src>

<mosaic_0001>
module attributes {stable_mosaic.version = 11 : i64} {
  func.func @_conv1_pool_kernel(%arg0: i32, %arg1: memref<1x588x2881xbf16, #tpu.memory_space<vmem>>, %arg2: memref<32x588xbf16, #tpu.memory_space<vmem>>, %arg3: memref<8x1xf32, #tpu.memory_space<vmem>>, %arg4: memref<1x6x2881xbf16, #tpu.memory_space<vmem>>) attributes {dimension_semantics = [#tpu.dimension_semantics<parallel>], iteration_bounds = array<i64: 2>, scalar_prefetch = 0 : i64, scratch_operands = 0 : i64, tpu.core_type = #tpu.core_type<tc>, window_params = [{transform_indices = @transform_0, window_bounds = array<i64: 1, 588, 2881>}, {pipeline_mode = #tpu.pipeline_mode<synchronous>, transform_indices = @transform_1, window_bounds = array<i64: 32, 588>}, {pipeline_mode = #tpu.pipeline_mode<synchronous>, transform_indices = @transform_2, window_bounds = array<i64: 8, 1>}, {transform_indices = @transform_3, window_bounds = array<i64: 1, 6, 2881>}]} {
    %c0 = arith.constant 0 : index
    %c0_0 = arith.constant 0 : index
    %0 = vector.load %arg2[%c0, %c0_0] : memref<32x588xbf16, #tpu.memory_space<vmem>>, vector<32x588xbf16>
    %c0_1 = arith.constant 0 : index
    %c0_2 = arith.constant 0 : index
    %c0_3 = arith.constant 0 : index
    %1 = vector.load %arg1[%c0_1, %c0_2, %c0_3] : memref<1x588x2881xbf16, #tpu.memory_space<vmem>>, vector<1x588x2881xbf16>
    %2 = vector.shape_cast %1 : vector<1x588x2881xbf16> to vector<588x2881xbf16>
    %cst = arith.constant dense<0.000000e+00> : vector<32x2881xf32>
    %3 = tpu.matmul %0, %2, %cst {dimension_numbers = #tpu.dot_dimension_numbers<[1], [0], [0], [1], [0, 0, 1, 1], [], []>} : vector<32x588xbf16>, vector<588x2881xbf16>, vector<32x2881xf32> -> vector<32x2881xf32>
    %4 = vector.extract_strided_slice %3 {offsets = [0, 0], sizes = [8, 2881], strides = [1, 1]} : vector<32x2881xf32> to vector<8x2881xf32>
    %5 = vector.extract_strided_slice %3 {offsets = [8, 0], sizes = [8, 2881], strides = [1, 1]} : vector<32x2881xf32> to vector<8x2881xf32>
    %6 = arith.maximumf %4, %5 : vector<8x2881xf32>
    %7 = vector.extract_strided_slice %3 {offsets = [16, 0], sizes = [8, 2881], strides = [1, 1]} : vector<32x2881xf32> to vector<8x2881xf32>
    %8 = vector.extract_strided_slice %3 {offsets = [24, 0], sizes = [8, 2881], strides = [1, 1]} : vector<32x2881xf32> to vector<8x2881xf32>
    %9 = arith.maximumf %7, %8 : vector<8x2881xf32>
    %10 = arith.maximumf %6, %9 : vector<8x2881xf32>
    %c0_4 = arith.constant 0 : index
    %c0_5 = arith.constant 0 : index
    %11 = vector.load %arg3[%c0_4, %c0_5] : memref<8x1xf32, #tpu.memory_space<vmem>>, vector<8x1xf32>
    %12 = vector.broadcast %11 : vector<8x1xf32> to vector<8x2881xf32>
    %13 = arith.addf %10, %12 : vector<8x2881xf32>
    %cst_6 = arith.constant 0.000000e+00 : f32
    %14 = vector.broadcast %cst_6 : f32 to vector<8x2881xf32>
    %15 = arith.maximumf %13, %14 : vector<8x2881xf32>
    %16 = vector.extract_strided_slice %15 {offsets = [0, 0], sizes = [6, 2881], strides = [1, 1]} : vector<8x2881xf32> to vector<6x2881xf32>
    %17 = arith.truncf %16 : vector<6x2881xf32> to vector<6x2881xbf16>
    %c0_7 = arith.constant 0 : index
    %c0_8 = arith.constant 0 : index
    %c0_9 = arith.constant 0 : index
    %18 = vector.load %arg4[%c0_7, %c0_8, %c0_9] : memref<1x6x2881xbf16, #tpu.memory_space<vmem>>, vector<1x6x2881xbf16>
    %19 = vector.shape_cast %18 : vector<1x6x2881xbf16> to vector<6x2881xbf16>
    %20 = vector.shape_cast %17 : vector<6x2881xbf16> to vector<1x6x2881xbf16>
    tpu.vector_store %arg4[%c0_7, %c0_8, %c0_9], %20 {strides = array<i32>} : memref<1x6x2881xbf16, #tpu.memory_space<vmem>>, vector<1x6x2881xbf16>,
    return
  }
  func.func @transform_0(%arg0: i32) -> (i32, i32, i32) {
    %c0_i32 = arith.constant 0 : i32
    %c0_i32_0 = arith.constant 0 : i32
    %c0_i32_1 = arith.constant 0 : i32
    return %arg0, %c0_i32, %c0_i32_0 : i32, i32, i32
  }
  func.func @transform_1(%arg0: i32) -> (i32, i32) {
    %c0_i32 = arith.constant 0 : i32
    %c0_i32_0 = arith.constant 0 : i32
    %c0_i32_1 = arith.constant 0 : i32
    return %c0_i32, %c0_i32_0 : i32, i32
  }
  func.func @transform_2(%arg0: i32) -> (i32, i32) {
    %c0_i32 = arith.constant 0 : i32
    %c0_i32_0 = arith.constant 0 : i32
    %c0_i32_1 = arith.constant 0 : i32
    return %c0_i32, %c0_i32_0 : i32, i32
  }
  func.func @transform_3(%arg0: i32) -> (i32, i32, i32) {
    %c0_i32 = arith.constant 0 : i32
    %c0_i32_0 = arith.constant 0 : i32
    %c0_i32_1 = arith.constant 0 : i32
    return %arg0, %c0_i32, %c0_i32_0 : i32, i32, i32
  }
}

module attributes {stable_mosaic.version = 11 : i64} {
  func.func @_conv2_mlp_kernel(%arg0: i32, %arg1: memref<2x294x160xbf16, #tpu.memory_space<vmem>>, %arg2: memref<64x294xbf16, #tpu.memory_space<vmem>>, %arg3: memref<12x1xf32, #tpu.memory_space<vmem>>, %arg4: memref<12x160x256xbf16, #tpu.memory_space<vmem>>, %arg5: memref<1x256xf32, #tpu.memory_space<vmem>>, %arg6: memref<256x128xbf16, #tpu.memory_space<vmem>>, %arg7: memref<1x128xf32, #tpu.memory_space<vmem>>, %arg8: memref<128x2xbf16, #tpu.memory_space<vmem>>, %arg9: memref<1x2xf32, #tpu.memory_space<vmem>>, %arg10: memref<2x2xf32, #tpu.memory_space<vmem>>, %arg11: memref<2x12x160xbf16, #tpu.memory_space<vmem>>) attributes {dimension_semantics = [#tpu.dimension_semantics<arbitrary>], iteration_bounds = array<i64: 1>, scalar_prefetch = 0 : i64, scratch_operands = 1 : i64, tpu.core_type = #tpu.core_type<tc>, window_params = [{pipeline_mode = #tpu.pipeline_mode<synchronous>, transform_indices = @transform_0, window_bounds = array<i64: 2, 294, 160>}, {pipeline_mode = #tpu.pipeline_mode<synchronous>, transform_indices = @transform_1, window_bounds = array<i64: 64, 294>}, {pipeline_mode = #tpu.pipeline_mode<synchronous>, transform_indices = @transform_2, window_bounds = array<i64: 12, 1>}, {pipeline_mode = #tpu.pipeline_mode<synchronous>, transform_indices = @transform_3, window_bounds = array<i64: 12, 160, 256>}, {pipeline_mode = #tpu.pipeline_mode<synchronous>, transform_indices = @transform_4, window_bounds = array<i64: 1, 256>}, {pipeline_mode = #tpu.pipeline_mode<synchronous>, transform_indices = @transform_5, window_bounds = array<i64: 256, 128>}, {pipeline_mode = #tpu.pipeline_mode<synchronous>, transform_indices = @transform_6, window_bounds = array<i64: 1, 128>}, {pipeline_mode = #tpu.pipeline_mode<synchronous>, transform_indices = @transform_7, window_bounds = array<i64: 128, 2>}, {pipeline_mode = #tpu.pipeline_mode<synchronous>, transform_indices = @transform_8, window_bounds = array<i64: 1, 2>}, {pipeline_mode = #tpu.pipeline_mode<synchronous>, transform_indices = @transform_9, window_bounds = array<i64: 2, 2>}]} {
    %c0 = arith.constant 0 : index
    %c0_0 = arith.constant 0 : index
    %0 = vector.load %arg2[%c0, %c0_0] : memref<64x294xbf16, #tpu.memory_space<vmem>>, vector<64x294xbf16>
    %c0_1 = arith.constant 0 : index
    %c0_2 = arith.constant 0 : index
    %c0_3 = arith.constant 0 : index
    %1 = vector.load %arg1[%c0_1, %c0_2, %c0_3] : memref<2x294x160xbf16, #tpu.memory_space<vmem>>, vector<1x294x160xbf16>
    %2 = vector.shape_cast %1 : vector<1x294x160xbf16> to vector<294x160xbf16>
    %cst = arith.constant dense<0.000000e+00> : vector<64x160xf32>
    %3 = tpu.matmul %0, %2, %cst {dimension_numbers = #tpu.dot_dimension_numbers<[1], [0], [0], [1], [0, 0, 1, 1], [], []>} : vector<64x294xbf16>, vector<294x160xbf16>, vector<64x160xf32> -> vector<64x160xf32>
    %4 = vector.extract_strided_slice %3 {offsets = [0, 0], sizes = [16, 160], strides = [1, 1]} : vector<64x160xf32> to vector<16x160xf32>
    %5 = vector.extract_strided_slice %3 {offsets = [16, 0], sizes = [16, 160], strides = [1, 1]} : vector<64x160xf32> to vector<16x160xf32>
    %6 = arith.maximumf %4, %5 : vector<16x160xf32>
    %7 = vector.extract_strided_slice %3 {offsets = [32, 0], sizes = [16, 160], strides = [1, 1]} : vector<64x160xf32> to vector<16x160xf32>
    %8 = vector.extract_strided_slice %3 {offsets = [48, 0], sizes = [16, 160], strides = [1, 1]} : vector<64x160xf32> to vector<16x160xf32>
    %9 = arith.maximumf %7, %8 : vector<16x160xf32>
    %10 = arith.maximumf %6, %9 : vector<16x160xf32>
    %11 = vector.extract_strided_slice %10 {offsets = [0, 0], sizes = [12, 160], strides = [1, 1]} : vector<16x160xf32> to vector<12x160xf32>
    %c0_4 = arith.constant 0 : index
    %c0_5 = arith.constant 0 : index
    %12 = vector.load %arg3[%c0_4, %c0_5] : memref<12x1xf32, #tpu.memory_space<vmem>>, vector<12x1xf32>
    %13 = vector.broadcast %12 : vector<12x1xf32> to vector<12x160xf32>
    %14 = arith.addf %11, %13 : vector<12x160xf32>
    %cst_6 = arith.constant 0.000000e+00 : f32
    %15 = vector.broadcast %cst_6 : f32 to vector<12x160xf32>
    %16 = arith.maximumf %14, %15 : vector<12x160xf32>
    %17 = arith.truncf %16 : vector<12x160xf32> to vector<12x160xbf16>
    %c0_7 = arith.constant 0 : index
    %c0_8 = arith.constant 0 : index
    %c0_9 = arith.constant 0 : index
    %18 = vector.load %arg11[%c0_7, %c0_8, %c0_9] : memref<2x12x160xbf16, #tpu.memory_space<vmem>>, vector<1x12x160xbf16>
    %19 = vector.shape_cast %18 : vector<1x12x160xbf16> to vector<12x160xbf16>
    %20 = vector.shape_cast %17 : vector<12x160xbf16> to vector<1x12x160xbf16>
    tpu.vector_store %arg11[%c0_7, %c0_8, %c0_9], %20 {strides = array<i32>} : memref<2x12x160xbf16, #tpu.memory_space<vmem>>, vector<1x12x160xbf16>,
    %c1 = arith.constant 1 : index
    %c0_10 = arith.constant 0 : index
    %c0_11 = arith.constant 0 : index
    %21 = vector.load %arg1[%c1, %c0_10, %c0_11] : memref<2x294x160xbf16, #tpu.memory_space<vmem>>, vector<1x294x160xbf16>
    %22 = vector.shape_cast %21 : vector<1x294x160xbf16> to vector<294x160xbf16>
    %cst_12 = arith.constant dense<0.000000e+00> : vector<64x160xf32>
    %23 = tpu.matmul %0, %22, %cst_12 {dimension_numbers = #tpu.dot_dimension_numbers<[1], [0], [0], [1], [0, 0, 1, 1], [], []>} : vector<64x294xbf16>, vector<294x160xbf16>, vector<64x160xf32> -> vector<64x160xf32>
    %24 = vector.extract_strided_slice %23 {offsets = [0, 0], sizes = [16, 160], strides = [1, 1]} : vector<64x160xf32> to vector<16x160xf32>
    %25 = vector.extract_strided_slice %23 {offsets = [16, 0], sizes = [16, 160], strides = [1, 1]} : vector<64x160xf32> to vector<16x160xf32>
    %26 = arith.maximumf %24, %25 : vector<16x160xf32>
    %27 = vector.extract_strided_slice %23 {offsets = [32, 0], sizes = [16, 160], strides = [1, 1]} : vector<64x160xf32> to vector<16x160xf32>
    %28 = vector.extract_strided_slice %23 {offsets = [48, 0], sizes = [16, 160], strides = [1, 1]} : vector<64x160xf32> to vector<16x160xf32>
    %29 = arith.maximumf %27, %28 : vector<16x160xf32>
    %30 = arith.maximumf %26, %29 : vector<16x160xf32>
    %31 = vector.extract_strided_slice %30 {offsets = [0, 0], sizes = [12, 160], strides = [1, 1]} : vector<16x160xf32> to vector<12x160xf32>
    %c0_13 = arith.constant 0 : index
    %c0_14 = arith.constant 0 : index
    %32 = vector.load %arg3[%c0_13, %c0_14] : memref<12x1xf32, #tpu.memory_space<vmem>>, vector<12x1xf32>
    %33 = vector.broadcast %32 : vector<12x1xf32> to vector<12x160xf32>
    %34 = arith.addf %31, %33 : vector<12x160xf32>
    %cst_15 = arith.constant 0.000000e+00 : f32
    %35 = vector.broadcast %cst_15 : f32 to vector<12x160xf32>
    %36 = arith.maximumf %34, %35 : vector<12x160xf32>
    %37 = arith.truncf %36 : vector<12x160xf32> to vector<12x160xbf16>
    %c1_16 = arith.constant 1 : index
    %c0_17 = arith.constant 0 : index
    %c0_18 = arith.constant 0 : index
    %38 = vector.load %arg11[%c1_16, %c0_17, %c0_18] : memref<2x12x160xbf16, #tpu.memory_space<vmem>>, vector<1x12x160xbf16>
    %39 = vector.shape_cast %38 : vector<1x12x160xbf16> to vector<12x160xbf16>
    %40 = vector.shape_cast %37 : vector<12x160xbf16> to vector<1x12x160xbf16>
    tpu.vector_store %arg11[%c1_16, %c0_17, %c0_18], %40 {strides = array<i32>} : memref<2x12x160xbf16, #tpu.memory_space<vmem>>, vector<1x12x160xbf16>,
    %c0_19 = arith.constant 0 : index
    %c0_20 = arith.constant 0 : index
    %c0_21 = arith.constant 0 : index
    %41 = vector.load %arg11[%c0_19, %c0_20, %c0_21] : memref<2x12x160xbf16, #tpu.memory_space<vmem>>, vector<2x12x160xbf16>
    %cst_22 = arith.constant 0.000000e+00 : f32
    %42 = vector.broadcast %cst_22 : f32 to vector<2x256xf32>
    %43 = vector.extract_strided_slice %41 {offsets = [0, 0, 0], sizes = [2, 1, 160], strides = [1, 1, 1]} : vector<2x12x160xbf16> to vector<2x1x160xbf16>
    %44 = vector.shape_cast %43 : vector<2x1x160xbf16> to vector<2x160xbf16>
    %c0_23 = arith.constant 0 : index
    %c0_24 = arith.constant 0 : index
    %c0_25 = arith.constant 0 : index
    %45 = vector.load %arg4[%c0_23, %c0_24, %c0_25] : memref<12x160x256xbf16, #tpu.memory_space<vmem>>, vector<1x160x256xbf16>
    %46 = vector.shape_cast %45 : vector<1x160x256xbf16> to vector<160x256xbf16>
    %cst_26 = arith.constant dense<0.000000e+00> : vector<2x256xf32>
    %47 = tpu.matmul %44, %46, %cst_26 {dimension_numbers = #tpu.dot_dimension_numbers<[1], [0], [0], [1], [0, 0, 1, 1], [], []>} : vector<2x160xbf16>, vector<160x256xbf16>, vector<2x256xf32> -> vector<2x256xf32>
    %48 = arith.addf %42, %47 : vector<2x256xf32>
    %49 = vector.extract_strided_slice %41 {offsets = [0, 1, 0], sizes = [2, 1, 160], strides = [1, 1, 1]} : vector<2x12x160xbf16> to vector<2x1x160xbf16>
    %50 = vector.shape_cast %49 : vector<2x1x160xbf16> to vector<2x160xbf16>
    %c1_27 = arith.constant 1 : index
    %c0_28 = arith.constant 0 : index
    %c0_29 = arith.constant 0 : index
    %51 = vector.load %arg4[%c1_27, %c0_28, %c0_29] : memref<12x160x256xbf16, #tpu.memory_space<vmem>>, vector<1x160x256xbf16>
    %52 = vector.shape_cast %51 : vector<1x160x256xbf16> to vector<160x256xbf16>
    %cst_30 = arith.constant dense<0.000000e+00> : vector<2x256xf32>
    %53 = tpu.matmul %50, %52, %cst_30 {dimension_numbers = #tpu.dot_dimension_numbers<[1], [0], [0], [1], [0, 0, 1, 1], [], []>} : vector<2x160xbf16>, vector<160x256xbf16>, vector<2x256xf32> -> vector<2x256xf32>
    %54 = arith.addf %48, %53 : vector<2x256xf32>
    %55 = vector.extract_strided_slice %41 {offsets = [0, 2, 0], sizes = [2, 1, 160], strides = [1, 1, 1]} : vector<2x12x160xbf16> to vector<2x1x160xbf16>
    %56 = vector.shape_cast %55 : vector<2x1x160xbf16> to vector<2x160xbf16>
    %c2 = arith.constant 2 : index
    %c0_31 = arith.constant 0 : index
    %c0_32 = arith.constant 0 : index
    %57 = vector.load %arg4[%c2, %c0_31, %c0_32] : memref<12x160x256xbf16, #tpu.memory_space<vmem>>, vector<1x160x256xbf16>
    %58 = vector.shape_cast %57 : vector<1x160x256xbf16> to vector<160x256xbf16>
    %cst_33 = arith.constant dense<0.000000e+00> : vector<2x256xf32>
    %59 = tpu.matmul %56, %58, %cst_33 {dimension_numbers = #tpu.dot_dimension_numbers<[1], [0], [0], [1], [0, 0, 1, 1], [], []>} : vector<2x160xbf16>, vector<160x256xbf16>, vector<2x256xf32> -> vector<2x256xf32>
    %60 = arith.addf %54, %59 : vector<2x256xf32>
    %61 = vector.extract_strided_slice %41 {offsets = [0, 3, 0], sizes = [2, 1, 160], strides = [1, 1, 1]} : vector<2x12x160xbf16> to vector<2x1x160xbf16>
    %62 = vector.shape_cast %61 : vector<2x1x160xbf16> to vector<2x160xbf16>
    %c3 = arith.constant 3 : index
    %c0_34 = arith.constant 0 : index
    %c0_35 = arith.constant 0 : index
    %63 = vector.load %arg4[%c3, %c0_34, %c0_35] : memref<12x160x256xbf16, #tpu.memory_space<vmem>>, vector<1x160x256xbf16>
    %64 = vector.shape_cast %63 : vector<1x160x256xbf16> to vector<160x256xbf16>
    %cst_36 = arith.constant dense<0.000000e+00> : vector<2x256xf32>
    %65 = tpu.matmul %62, %64, %cst_36 {dimension_numbers = #tpu.dot_dimension_numbers<[1], [0], [0], [1], [0, 0, 1, 1], [], []>} : vector<2x160xbf16>, vector<160x256xbf16>, vector<2x256xf32> -> vector<2x256xf32>
    %66 = arith.addf %60, %65 : vector<2x256xf32>
    %67 = vector.extract_strided_slice %41 {offsets = [0, 4, 0], sizes = [2, 1, 160], strides = [1, 1, 1]} : vector<2x12x160xbf16> to vector<2x1x160xbf16>
    %68 = vector.shape_cast %67 : vector<2x1x160xbf16> to vector<2x160xbf16>
    %c4 = arith.constant 4 : index
    %c0_37 = arith.constant 0 : index
    %c0_38 = arith.constant 0 : index
    %69 = vector.load %arg4[%c4, %c0_37, %c0_38] : memref<12x160x256xbf16, #tpu.memory_space<vmem>>, vector<1x160x256xbf16>
    %70 = vector.shape_cast %69 : vector<1x160x256xbf16> to vector<160x256xbf16>
    %cst_39 = arith.constant dense<0.000000e+00> : vector<2x256xf32>
    %71 = tpu.matmul %68, %70, %cst_39 {dimension_numbers = #tpu.dot_dimension_numbers<[1], [0], [0], [1], [0, 0, 1, 1], [], []>} : vector<2x160xbf16>, vector<160x256xbf16>, vector<2x256xf32> -> vector<2x256xf32>
    %72 = arith.addf %66, %71 : vector<2x256xf32>
    %73 = vector.extract_strided_slice %41 {offsets = [0, 5, 0], sizes = [2, 1, 160], strides = [1, 1, 1]} : vector<2x12x160xbf16> to vector<2x1x160xbf16>
    %74 = vector.shape_cast %73 : vector<2x1x160xbf16> to vector<2x160xbf16>
    %c5 = arith.constant 5 : index
    %c0_40 = arith.constant 0 : index
    %c0_41 = arith.constant 0 : index
    %75 = vector.load %arg4[%c5, %c0_40, %c0_41] : memref<12x160x256xbf16, #tpu.memory_space<vmem>>, vector<1x160x256xbf16>
    %76 = vector.shape_cast %75 : vector<1x160x256xbf16> to vector<160x256xbf16>
    %cst_42 = arith.constant dense<0.000000e+00> : vector<2x256xf32>
    %77 = tpu.matmul %74, %76, %cst_42 {dimension_numbers = #tpu.dot_dimension_numbers<[1], [0], [0], [1], [0, 0, 1, 1], [], []>} : vector<2x160xbf16>, vector<160x256xbf16>, vector<2x256xf32> -> vector<2x256xf32>
    %78 = arith.addf %72, %77 : vector<2x256xf32>
    %79 = vector.extract_strided_slice %41 {offsets = [0, 6, 0], sizes = [2, 1, 160], strides = [1, 1, 1]} : vector<2x12x160xbf16> to vector<2x1x160xbf16>
    %80 = vector.shape_cast %79 : vector<2x1x160xbf16> to vector<2x160xbf16>
    %c6 = arith.constant 6 : index
    %c0_43 = arith.constant 0 : index
    %c0_44 = arith.constant 0 : index
    %81 = vector.load %arg4[%c6, %c0_43, %c0_44] : memref<12x160x256xbf16, #tpu.memory_space<vmem>>, vector<1x160x256xbf16>
    %82 = vector.shape_cast %81 : vector<1x160x256xbf16> to vector<160x256xbf16>
    %cst_45 = arith.constant dense<0.000000e+00> : vector<2x256xf32>
    %83 = tpu.matmul %80, %82, %cst_45 {dimension_numbers = #tpu.dot_dimension_numbers<[1], [0], [0], [1], [0, 0, 1, 1], [], []>} : vector<2x160xbf16>, vector<160x256xbf16>, vector<2x256xf32> -> vector<2x256xf32>
    %84 = arith.addf %78, %83 : vector<2x256xf32>
    %85 = vector.extract_strided_slice %41 {offsets = [0, 7, 0], sizes = [2, 1, 160], strides = [1, 1, 1]} : vector<2x12x160xbf16> to vector<2x1x160xbf16>
    %86 = vector.shape_cast %85 : vector<2x1x160xbf16> to vector<2x160xbf16>
    %c7 = arith.constant 7 : index
    %c0_46 = arith.constant 0 : index
    %c0_47 = arith.constant 0 : index
    %87 = vector.load %arg4[%c7, %c0_46, %c0_47] : memref<12x160x256xbf16, #tpu.memory_space<vmem>>, vector<1x160x256xbf16>
    %88 = vector.shape_cast %87 : vector<1x160x256xbf16> to vector<160x256xbf16>
    %cst_48 = arith.constant dense<0.000000e+00> : vector<2x256xf32>
    %89 = tpu.matmul %86, %88, %cst_48 {dimension_numbers = #tpu.dot_dimension_numbers<[1], [0], [0], [1], [0, 0, 1, 1], [], []>} : vector<2x160xbf16>, vector<160x256xbf16>, vector<2x256xf32> -> vector<2x256xf32>
    %90 = arith.addf %84, %89 : vector<2x256xf32>
    %91 = vector.extract_strided_slice %41 {offsets = [0, 8, 0], sizes = [2, 1, 160], strides = [1, 1, 1]} : vector<2x12x160xbf16> to vector<2x1x160xbf16>
    %92 = vector.shape_cast %91 : vector<2x1x160xbf16> to vector<2x160xbf16>
    %c8 = arith.constant 8 : index
    %c0_49 = arith.constant 0 : index
    %c0_50 = arith.constant 0 : index
    %93 = vector.load %arg4[%c8, %c0_49, %c0_50] : memref<12x160x256xbf16, #tpu.memory_space<vmem>>, vector<1x160x256xbf16>
    %94 = vector.shape_cast %93 : vector<1x160x256xbf16> to vector<160x256xbf16>
    %cst_51 = arith.constant dense<0.000000e+00> : vector<2x256xf32>
    %95 = tpu.matmul %92, %94, %cst_51 {dimension_numbers = #tpu.dot_dimension_numbers<[1], [0], [0], [1], [0, 0, 1, 1], [], []>} : vector<2x160xbf16>, vector<160x256xbf16>, vector<2x256xf32> -> vector<2x256xf32>
    %96 = arith.addf %90, %95 : vector<2x256xf32>
    %97 = vector.extract_strided_slice %41 {offsets = [0, 9, 0], sizes = [2, 1, 160], strides = [1, 1, 1]} : vector<2x12x160xbf16> to vector<2x1x160xbf16>
    %98 = vector.shape_cast %97 : vector<2x1x160xbf16> to vector<2x160xbf16>
    %c9 = arith.constant 9 : index
    %c0_52 = arith.constant 0 : index
    %c0_53 = arith.constant 0 : index
    %99 = vector.load %arg4[%c9, %c0_52, %c0_53] : memref<12x160x256xbf16, #tpu.memory_space<vmem>>, vector<1x160x256xbf16>
    %100 = vector.shape_cast %99 : vector<1x160x256xbf16> to vector<160x256xbf16>
    %cst_54 = arith.constant dense<0.000000e+00> : vector<2x256xf32>
    %101 = tpu.matmul %98, %100, %cst_54 {dimension_numbers = #tpu.dot_dimension_numbers<[1], [0], [0], [1], [0, 0, 1, 1], [], []>} : vector<2x160xbf16>, vector<160x256xbf16>, vector<2x256xf32> -> vector<2x256xf32>
    %102 = arith.addf %96, %101 : vector<2x256xf32>
    %103 = vector.extract_strided_slice %41 {offsets = [0, 10, 0], sizes = [2, 1, 160], strides = [1, 1, 1]} : vector<2x12x160xbf16> to vector<2x1x160xbf16>
    %104 = vector.shape_cast %103 : vector<2x1x160xbf16> to vector<2x160xbf16>
    %c10 = arith.constant 10 : index
    %c0_55 = arith.constant 0 : index
    %c0_56 = arith.constant 0 : index
    %105 = vector.load %arg4[%c10, %c0_55, %c0_56] : memref<12x160x256xbf16, #tpu.memory_space<vmem>>, vector<1x160x256xbf16>
    %106 = vector.shape_cast %105 : vector<1x160x256xbf16> to vector<160x256xbf16>
    %cst_57 = arith.constant dense<0.000000e+00> : vector<2x256xf32>
    %107 = tpu.matmul %104, %106, %cst_57 {dimension_numbers = #tpu.dot_dimension_numbers<[1], [0], [0], [1], [0, 0, 1, 1], [], []>} : vector<2x160xbf16>, vector<160x256xbf16>, vector<2x256xf32> -> vector<2x256xf32>
    %108 = arith.addf %102, %107 : vector<2x256xf32>
    %109 = vector.extract_strided_slice %41 {offsets = [0, 11, 0], sizes = [2, 1, 160], strides = [1, 1, 1]} : vector<2x12x160xbf16> to vector<2x1x160xbf16>
    %110 = vector.shape_cast %109 : vector<2x1x160xbf16> to vector<2x160xbf16>
    %c11 = arith.constant 11 : index
    %c0_58 = arith.constant 0 : index
    %c0_59 = arith.constant 0 : index
    %111 = vector.load %arg4[%c11, %c0_58, %c0_59] : memref<12x160x256xbf16, #tpu.memory_space<vmem>>, vector<1x160x256xbf16>
    %112 = vector.shape_cast %111 : vector<1x160x256xbf16> to vector<160x256xbf16>
    %cst_60 = arith.constant dense<0.000000e+00> : vector<2x256xf32>
    %113 = tpu.matmul %110, %112, %cst_60 {dimension_numbers = #tpu.dot_dimension_numbers<[1], [0], [0], [1], [0, 0, 1, 1], [], []>} : vector<2x160xbf16>, vector<160x256xbf16>, vector<2x256xf32> -> vector<2x256xf32>
    %114 = arith.addf %108, %113 : vector<2x256xf32>
    %c0_61 = arith.constant 0 : index
    %c0_62 = arith.constant 0 : index
    %115 = vector.load %arg5[%c0_61, %c0_62] : memref<1x256xf32, #tpu.memory_space<vmem>>, vector<1x256xf32>
    %116 = vector.broadcast %115 : vector<1x256xf32> to vector<2x256xf32>
    %117 = arith.addf %114, %116 : vector<2x256xf32>
    %cst_63 = arith.constant 0.000000e+00 : f32
    %118 = vector.broadcast %cst_63 : f32 to vector<2x256xf32>
    %119 = arith.maximumf %117, %118 : vector<2x256xf32>
    %120 = arith.truncf %119 : vector<2x256xf32> to vector<2x256xbf16>
    %c0_64 = arith.constant 0 : index
    %c0_65 = arith.constant 0 : index
    %121 = vector.load %arg6[%c0_64, %c0_65] : memref<256x128xbf16, #tpu.memory_space<vmem>>, vector<256x128xbf16>
    %cst_66 = arith.constant dense<0.000000e+00> : vector<2x128xf32>
    %122 = tpu.matmul %120, %121, %cst_66 {dimension_numbers = #tpu.dot_dimension_numbers<[1], [0], [0], [1], [0, 0, 1, 1], [], []>} : vector<2x256xbf16>, vector<256x128xbf16>, vector<2x128xf32> -> vector<2x128xf32>
    %c0_67 = arith.constant 0 : index
    %c0_68 = arith.constant 0 : index
    %123 = vector.load %arg7[%c0_67, %c0_68] : memref<1x128xf32, #tpu.memory_space<vmem>>, vector<1x128xf32>
    %124 = vector.broadcast %123 : vector<1x128xf32> to vector<2x128xf32>
    %125 = arith.addf %122, %124 : vector<2x128xf32>
    %cst_69 = arith.constant 0.000000e+00 : f32
    %126 = vector.broadcast %cst_69 : f32 to vector<2x128xf32>
    %127 = arith.maximumf %125, %126 : vector<2x128xf32>
    %128 = arith.truncf %127 : vector<2x128xf32> to vector<2x128xbf16>
    %c0_70 = arith.constant 0 : index
    %c0_71 = arith.constant 0 : index
    %129 = vector.load %arg8[%c0_70, %c0_71] : memref<128x2xbf16, #tpu.memory_space<vmem>>, vector<128x2xbf16>
    %cst_72 = arith.constant dense<0.000000e+00> : vector<2x2xf32>
    %130 = tpu.matmul %128, %129, %cst_72 {dimension_numbers = #tpu.dot_dimension_numbers<[1], [0], [0], [1], [0, 0, 1, 1], [], []>} : vector<2x128xbf16>, vector<128x2xbf16>, vector<2x2xf32> -> vector<2x2xf32>
    %c0_73 = arith.constant 0 : index
    %c0_74 = arith.constant 0 : index
    %131 = vector.load %arg9[%c0_73, %c0_74] : memref<1x2xf32, #tpu.memory_space<vmem>>, vector<1x2xf32>
    %132 = vector.broadcast %131 : vector<1x2xf32> to vector<2x2xf32>
    %133 = arith.addf %130, %132 : vector<2x2xf32>
    %c0_75 = arith.constant 0 : index
    %c0_76 = arith.constant 0 : index
    %134 = vector.load %arg10[%c0_75, %c0_76] : memref<2x2xf32, #tpu.memory_space<vmem>>, vector<2x2xf32>
    tpu.vector_store %arg10[%c0_75, %c0_76], %133 {strides = array<i32>} : memref<2x2xf32, #tpu.memory_space<vmem>>, vector<2x2xf32>,
    return
  }
  func.func @transform_0(%arg0: i32) -> (i32, i32, i32) {
    %c0_i32 = arith.constant 0 : i32
    %c0_i32_0 = arith.constant 0 : i32
    %c0_i32_1 = arith.constant 0 : i32
    %c0_i32_2 = arith.constant 0 : i32
    return %c0_i32, %c0_i32_0, %c0_i32_1 : i32, i32, i32
  }
  func.func @transform_1(%arg0: i32) -> (i32, i32) {
    %c0_i32 = arith.constant 0 : i32
    %c0_i32_0 = arith.constant 0 : i32
    %c0_i32_1 = arith.constant 0 : i32
    return %c0_i32, %c0_i32_0 : i32, i32
  }
  func.func @transform_2(%arg0: i32) -> (i32, i32) {
    %c0_i32 = arith.constant 0 : i32
    %c0_i32_0 = arith.constant 0 : i32
    %c0_i32_1 = arith.constant 0 : i32
    return %c0_i32, %c0_i32_0 : i32, i32
  }
  func.func @transform_3(%arg0: i32) -> (i32, i32, i32) {
    %c0_i32 = arith.constant 0 : i32
    %c0_i32_0 = arith.constant 0 : i32
    %c0_i32_1 = arith.constant 0 : i32
    %c0_i32_2 = arith.constant 0 : i32
    return %c0_i32, %c0_i32_0, %c0_i32_1 : i32, i32, i32
  }
  func.func @transform_4(%arg0: i32) -> (i32, i32) {
    %c0_i32 = arith.constant 0 : i32
    %c0_i32_0 = arith.constant 0 : i32
    %c0_i32_1 = arith.constant 0 : i32
    return %c0_i32, %c0_i32_0 : i32, i32
  }
  func.func @transform_5(%arg0: i32) -> (i32, i32) {
    %c0_i32 = arith.constant 0 : i32
    %c0_i32_0 = arith.constant 0 : i32
    %c0_i32_1 = arith.constant 0 : i32
    return %c0_i32, %c0_i32_0 : i32, i32
  }
  func.func @transform_6(%arg0: i32) -> (i32, i32) {
    %c0_i32 = arith.constant 0 : i32
    %c0_i32_0 = arith.constant 0 : i32
    %c0_i32_1 = arith.constant 0 : i32
    return %c0_i32, %c0_i32_0 : i32, i32
  }
  func.func @transform_7(%arg0: i32) -> (i32, i32) {
    %c0_i32 = arith.constant 0 : i32
    %c0_i32_0 = arith.constant 0 : i32
    %c0_i32_1 = arith.constant 0 : i32
    return %c0_i32, %c0_i32_0 : i32, i32
  }
  func.func @transform_8(%arg0: i32) -> (i32, i32) {
    %c0_i32 = arith.constant 0 : i32
    %c0_i32_0 = arith.constant 0 : i32
    %c0_i32_1 = arith.constant 0 : i32
    return %c0_i32, %c0_i32_0 : i32, i32
  }
  func.func @transform_9(%arg0: i32) -> (i32, i32) {
    %c0_i32 = arith.constant 0 : i32
    %c0_i32_0 = arith.constant 0 : i32
    %c0_i32_1 = arith.constant 0 : i32
    return %c0_i32, %c0_i32_0 : i32, i32
  }
}

</mosaic_0001>

<llo_original>
// kernel: lenet_forward.2
$region0: #{lenet_forward.2}
  #allocation0 [shape = 'u32[]', space=smem, size = 0x4, offset = 0x4, fixed_abs, tag = 'smem constant byte address 0x4 - core index']
  #allocation1 [shape = 'u32[72,128]{1,0:T(1,128)}', space=vmem, size = 0x9000, scoped, tag = 'internal scratch']
  %s0 = inlined_call_operand.vmem [shape: bf16[2,588,2881], index: 0, kind: input, shape index: {}]
  %s1 = inlined_call_operand.vmem [shape: bf16[32,588], index: 1, kind: input, shape index: {}]
  %s2 = inlined_call_operand.vmem [shape: f32[8,1], index: 2, kind: input, shape index: {}]
  %s3 = inlined_call_operand.vmem [shape: bf16[2,6,2881], index: 3, kind: output, shape index: {}]
  %s4 = sld [smem:[#allocation0]]
  $region45: #{lenet_forward.2} parent=0
    _
  %s6 = ssub.s32 1, %s4
  %s7 = scalar_select 0, %s6, %s4
  loop: start=0, step=1, limit=4
  $region2: #{lenet_forward.2} parent=0 // loop_pre_header
    _
  $region3: #{lenet_forward.2} parent=0 // loop_header
    %s9 = sphi 0, %s13
    %p10 = scmp.ge.s32.totalorder %s9, 4
    %s19 = sphi 0, %s21
    %s22 = sphi 0, %s19
    %s23 = sphi 0, %s22
    %s39 = sphi 0, %s23
    %s43 = sphi 0, %s43
    %s45 = sphi 0, %s43
    %s46 = sphi 0, %s45
    %s60 = sphi 0, %s46
    %s64 = sphi 0, %s64
    %s66 = sphi 0, %s64
    %s67 = sphi 0, %s66
    %s81 = sphi 0, %s67
    %s87 = sphi 0, %s89
    %s90 = sphi 0, %s87
    %s91 = sphi 0, %s90
    %s107 = sphi 0, %s91
  $region4: #{lenet_forward.2} parent=0 // loop_header_branch
    %12 = sbr.rel (%p10) target = $region8
  $region5: #{lenet_forward.2} parent=0 // loop_body
    %s14 = ssub.s32 %s9, 1
    %s15 = ssub.s32 %s9, 2
    %s16 = sadd.s32 %s9, 1
    %s17 = ssub.s32 %s9, %s16
    %p18 = scmp.eq.s32.totalorder %s17, 0
    %s20 = sadd.s32 %s19, 1
    %s21 = scalar_select %p18, %s19, %s20
    %p24 = pneg %p18
    %p25 = scmp.eq.s32.totalorder %s9, 1
    %p26 = por %p24, %p25
    %p27 = scmp.ne.s32.totalorder %s19, %s22
    %p28 = scmp.eq.s32.totalorder %s9, 0
    %p29 = por %p27, %p28
    %p30 = scmp.ne.s32.totalorder %s19, %s22
    %p31 = scmp.eq.s32.totalorder %s14, 1
    %p32 = por %p30, %p31
    %p33 = scmp.ne.s32.totalorder %s22, %s23
    %p34 = scmp.eq.s32.totalorder %s14, 0
    %p35 = por %p33, %p34
    %p36 = scmp.ne.s32.totalorder %s22, %s23
    %p37 = scmp.eq.s32.totalorder %s15, 1
    %p38 = por %p36, %p37
    %p40 = scmp.ne.s32.totalorder %s23, %s39
    %p41 = scmp.eq.s32.totalorder %s15, 0
    %p42 = por %p40, %p41
    %s44 = sadd.s32 %s43, 1
    %p47 = scmp.eq.s32.totalorder %s9, 1
    %p48 = scmp.ne.s32.totalorder %s43, %s45
    %p49 = scmp.eq.s32.totalorder %s9, 0
    %p50 = por %p48, %p49
    %p51 = scmp.ne.s32.totalorder %s43, %s45
    %p52 = scmp.eq.s32.totalorder %s14, 1
    %p53 = por %p51, %p52
    %p54 = scmp.ne.s32.totalorder %s45, %s46
    %p55 = scmp.eq.s32.totalorder %s14, 0
    %p56 = por %p54, %p55
    %p57 = scmp.ne.s32.totalorder %s45, %s46
    %p58 = scmp.eq.s32.totalorder %s15, 1
    %p59 = por %p57, %p58
    %p61 = scmp.ne.s32.totalorder %s46, %s60
    %p62 = scmp.eq.s32.totalorder %s15, 0
    %p63 = por %p61, %p62
    %s65 = sadd.s32 %s64, 1
    %p68 = scmp.eq.s32.totalorder %s9, 1
    %p69 = scmp.ne.s32.totalorder %s64, %s66
    %p70 = scmp.eq.s32.totalorder %s9, 0
    %p71 = por %p69, %p70
    %p72 = scmp.ne.s32.totalorder %s64, %s66
    %p73 = scmp.eq.s32.totalorder %s14, 1
    %p74 = por %p72, %p73
    %p75 = scmp.ne.s32.totalorder %s66, %s67
    %p76 = scmp.eq.s32.totalorder %s14, 0
    %p77 = por %p75, %p76
    %p78 = scmp.ne.s32.totalorder %s66, %s67
    %p79 = scmp.eq.s32.totalorder %s15, 1
    %p80 = por %p78, %p79
    %p82 = scmp.ne.s32.totalorder %s67, %s81
    %p83 = scmp.eq.s32.totalorder %s15, 0
    %p84 = por %p82, %p83
    %s85 = ssub.s32 %s9, %s16
    %p86 = scmp.eq.s32.totalorder %s85, 0
    %s88 = sadd.s32 %s87, 1
    %s89 = scalar_select %p86, %s87, %s88
    %p92 = pneg %p86
    %p93 = scmp.eq.s32.totalorder %s9, 1
    %p94 = por %p92, %p93
    %p95 = scmp.ne.s32.totalorder %s87, %s90
    %p96 = scmp.eq.s32.totalorder %s9, 0
    %p97 = por %p95, %p96
    %p98 = scmp.ne.s32.totalorder %s87, %s90
    %p99 = scmp.eq.s32.totalorder %s14, 1
    %p100 = por %p98, %p99
    %p101 = scmp.ne.s32.totalorder %s90, %s91
    %p102 = scmp.eq.s32.totalorder %s14, 0
    %p103 = por %p101, %p102
    %p104 = scmp.ne.s32.totalorder %s90, %s91
    %p105 = scmp.eq.s32.totalorder %s15, 1
    %p106 = por %p104, %p105
    %p108 = scmp.ne.s32.totalorder %s91, %s107
    %p109 = scmp.eq.s32.totalorder %s15, 0
    %p110 = por %p108, %p109
    %p111 = scmp.le.s32.totalorder 1, %s9
    %p112 = scmp.lt.s32.totalorder %s9, 3
    %p113 = pnand %p111, %p112
    %p114 = pneg %p113
    // Predicated region
    $region9: #{lenet_forward.2} parent=5 // pred_check
      _
    $region10: #{lenet_forward.2} parent=5 // pred_check_branch
      %116 = sbr.rel (%p113) target = $region12
    $region11: #{lenet_forward.2} parent=5 // pred_region
      %s117 = ssub.s32 %s9, 1
      // Predicated region
      $region13: #{lenet_forward.2} parent=11 // pred_check
        %p118 = pneg %p56
      $region14: #{lenet_forward.2} parent=11 // pred_check_branch
        %120 = sbr.rel (%p118) target = $region16
      $region15: #{lenet_forward.2} parent=11 // pred_region
        _
      $region16: #{lenet_forward.2} parent=11 // pred_fallthru
        _
      // Predicated region
      $region17: #{lenet_forward.2} parent=11 // pred_check
        %p121 = pneg %p77
      $region18: #{lenet_forward.2} parent=11 // pred_check_branch
        %123 = sbr.rel (%p121) target = $region20
      $region19: #{lenet_forward.2} parent=11 // pred_region
        _
      $region20: #{lenet_forward.2} parent=11 // pred_fallthru
        _
    $region12: #{lenet_forward.2} parent=5 // pred_fallthru
      _
    %p124 = scmp.lt.s32.totalorder %s9, 2
    // Predicated region
    $region21: #{lenet_forward.2} parent=5 // pred_check
      %p125 = pneg %p124
    $region22: #{lenet_forward.2} parent=5 // pred_check_branch
      %127 = sbr.rel (%p125) target = $region24
    $region23: #{lenet_forward.2} parent=5 // pred_region
      // Predicated region
      $region25: #{lenet_forward.2} parent=23 // pred_check
        %p128 = pneg %p29
      $region26: #{lenet_forward.2} parent=23 // pred_check_branch
        %130 = sbr.rel (%p128) target = $region28
      $region27: #{lenet_forward.2} parent=23 // pred_region
        %p131 = scmp.lt.s32.totalorder %s9, 1
        %s132 = scalar_select %p131, %s9, 1
        %s133 = smul.addr %s132, 1702
        %s134 = smul.addr %s133, 4
        %s135 = scalar_lea.vmem %s0, %s134
      $region28: #{lenet_forward.2} parent=23 // pred_fallthru
        _
    $region24: #{lenet_forward.2} parent=5 // pred_fallthru
      _
    %p136 = scmp.le.s32.totalorder 1, %s9
    %p137 = scmp.lt.s32.totalorder %s9, 3
    %p138 = pnand %p136, %p137
    %p139 = pneg %p138
    // Predicated region
    $region29: #{lenet_forward.2} parent=5 // pred_check
      _
    $region30: #{lenet_forward.2} parent=5 // pred_check_branch
      %141 = sbr.rel (%p138) target = $region32
    $region31: #{lenet_forward.2} parent=5 // pred_region
      %s142 = ssub.s32 %s9, 1
      %p143 = scmp.lt.s32.totalorder %s14, 1
      %s144 = scalar_select %p143, %s14, 1
      %s145 = smul.addr %s144, 1702
      %s146 = smul.addr %s145, 4
      %s147 = scalar_lea.vmem %s0, %s146
      %p148 = pneg %p35
      %p149 = pneg %p32
      %p150 = pneg %p56
      %p151 = pneg %p53
      %p152 = pneg %p77
      %p153 = pneg %p74
      %p154 = pneg %p103
      %p155 = pneg %p100
      %p156 = scmp.lt.s32.totalorder %s14, 1
      %s157 = scalar_select %p156, %s14, 1
      %s158 = smul.addr %s157, 23
      %s159 = smul.addr %s158, 4
      %s160 = scalar_lea.vmem %s3, %s159
      %p161 = scmp.lt.s32.totalorder %s14, 1
      %s162 = scalar_select %p161, %s14, 1
      %s163 = smul.addr %s162, 1702
      %s164 = smul.addr %s163, 4
      %s165 = scalar_lea.vmem %s0, %s164
      %p166 = scmp.lt.s32.totalorder %s14, 1
      %s167 = scalar_select %p166, %s14, 1
      %s168 = smul.addr %s167, 23
      %s169 = smul.addr %s168, 4
      %s170 = scalar_lea.vmem %s3, %s169
      %v172 = vld [vmem:[%s1] sm:$0xff]
      %v173 = vld [vmem:[%s1 + $0x8] sm:$0xff]
      %v174 = vld [vmem:[%s1 + $0x10] sm:$0xf]
      %v175 = vld [vmem:[%s1 + $0x14] sm:$0xff]
      %v176 = vld [vmem:[%s1 + $0x1c] sm:$0xff]
      %v177 = vld [vmem:[%s1 + $0x24] sm:$0xf]
      %v178 = vld [vmem:[%s1 + $0x28] sm:$0xff]
      %v179 = vld [vmem:[%s1 + $0x30] sm:$0xff]
      %v180 = vld [vmem:[%s1 + $0x38] sm:$0xf]
      %v181 = vld [vmem:[%s1 + $0x3c] sm:$0xff]
      %v182 = vld [vmem:[%s1 + $0x44] sm:$0xff]
      %v183 = vld [vmem:[%s1 + $0x4c] sm:$0xf]
      %v184 = vld [vmem:[%s165] sm:$0xff]
      %v185 = vld [vmem:[%s165 + $0x8] sm:$0xff]
      %v186 = vld [vmem:[%s165 + $0x10] sm:$0xff]
      %v187 = vld [vmem:[%s165 + $0x18] sm:$0xff]
      %v188 = vld [vmem:[%s165 + $0x20] sm:$0xff]
      %v189 = vld [vmem:[%s165 + $0x28] sm:$0xff]
      %v190 = vld [vmem:[%s165 + $0x30] sm:$0xff]
      %v191 = vld [vmem:[%s165 + $0x38] sm:$0xff]
      %v192 = vld [vmem:[%s165 + $0x40] sm:$0xff]
      %v193 = vld [vmem:[%s165 + $0x48] sm:$0xff]
      %v194 = vld [vmem:[%s165 + $0x50] sm:$0xff]
      %v195 = vld [vmem:[%s165 + $0x58] sm:$0xf]
      %v196 = vld [vmem:[%s165 + $0x5c] sm:$0xff]
      %v197 = vld [vmem:[%s165 + $0x64] sm:$0xff]
      %v198 = vld [vmem:[%s165 + $0x6c] sm:$0xff]
      %v199 = vld [vmem:[%s165 + $0x74] sm:$0xff]
      %v200 = vld [vmem:[%s165 + $0x7c] sm:$0xff]
      %v201 = vld [vmem:[%s165 + $0x84] sm:$0xff]
      %v202 = vld [vmem:[%s165 + $0x8c] sm:$0xff]
      %v203 = vld [vmem:[%s165 + $0x94] sm:$0xff]
      %v204 = vld [vmem:[%s165 + $0x9c] sm:$0xff]
      %v205 = vld [vmem:[%s165 + $0xa4] sm:$0xff]
      %v206 = vld [vmem:[%s165 + $0xac] sm:$0xff]
      %v207 = vld [vmem:[%s165 + $0xb4] sm:$0xf]
      %v208 = vld [vmem:[%s165 + $0xb8] sm:$0xff]
      %v209 = vld [vmem:[%s165 + $0xc0] sm:$0xff]
      %v210 = vld [vmem:[%s165 + $0xc8] sm:$0xff]
      %v211 = vld [vmem:[%s165 + $0xd0] sm:$0xff]
      %v212 = vld [vmem:[%s165 + $0xd8] sm:$0xff]
      %v213 = vld [vmem:[%s165 + $0xe0] sm:$0xff]
      %v214 = vld [vmem:[%s165 + $0xe8] sm:$0xff]
      %v215 = vld [vmem:[%s165 + $0xf0] sm:$0xff]
      %v216 = vld [vmem:[%s165 + $0xf8] sm:$0xff]
      %v217 = vld [vmem:[%s165 + $0x100] sm:$0xff]
      %v218 = vld [vmem:[%s165 + $0x108] sm:$0xff]
      %v219 = vld [vmem:[%s165 + $0x110] sm:$0xf]
      %v220 = vld [vmem:[%s165 + $0x114] sm:$0xff]
      %v221 = vld [vmem:[%s165 + $0x11c] sm:$0xff]
      %v222 = vld [vmem:[%s165 + $0x124] sm:$0xff]
      %v223 = vld [vmem:[%s165 + $0x12c] sm:$0xff]
      %v224 = vld [vmem:[%s165 + $0x134] sm:$0xff]
      %v225 = vld [vmem:[%s165 + $0x13c] sm:$0xff]
      %v226 = vld [vmem:[%s165 + $0x144] sm:$0xff]
      %v227 = vld [vmem:[%s165 + $0x14c] sm:$0xff]
      %v228 = vld [vmem:[%s165 + $0x154] sm:$0xff]
      %v229 = vld [vmem:[%s165 + $0x15c] sm:$0xff]
      %v230 = vld [vmem:[%s165 + $0x164] sm:$0xff]
      %v231 = vld [vmem:[%s165 + $0x16c] sm:$0xf]
      %v232 = vld [vmem:[%s165 + $0x170] sm:$0xff]
      %v233 = vld [vmem:[%s165 + $0x178] sm:$0xff]
      %v234 = vld [vmem:[%s165 + $0x180] sm:$0xff]
      %v235 = vld [vmem:[%s165 + $0x188] sm:$0xff]
      %v236 = vld [vmem:[%s165 + $0x190] sm:$0xff]
      %v237 = vld [vmem:[%s165 + $0x198] sm:$0xff]
      %v238 = vld [vmem:[%s165 + $0x1a0] sm:$0xff]
      %v239 = vld [vmem:[%s165 + $0x1a8] sm:$0xff]
      %v240 = vld [vmem:[%s165 + $0x1b0] sm:$0xff]
      %v241 = vld [vmem:[%s165 + $0x1b8] sm:$0xff]
      %v242 = vld [vmem:[%s165 + $0x1c0] sm:$0xff]
      %v243 = vld [vmem:[%s165 + $0x1c8] sm:$0xf]
      %v244 = vld [vmem:[%s165 + $0x1cc] sm:$0xff]
      %v245 = vld [vmem:[%s165 + $0x1d4] sm:$0xff]
      %v246 = vld [vmem:[%s165 + $0x1dc] sm:$0xff]
      %v247 = vld [vmem:[%s165 + $0x1e4] sm:$0xff]
      %v248 = vld [vmem:[%s165 + $0x1ec] sm:$0xff]
      %v249 = vld [vmem:[%s165 + $0x1f4] sm:$0xff]
      %v250 = vld [vmem:[%s165 + $0x1fc] sm:$0xff]
      %v251 = vld [vmem:[%s165 + $0x204] sm:$0xff]
      %v252 = vld [vmem:[%s165 + $0x20c] sm:$0xff]
      %v253 = vld [vmem:[%s165 + $0x214] sm:$0xff]
      %v254 = vld [vmem:[%s165 + $0x21c] sm:$0xff]
      %v255 = vld [vmem:[%s165 + $0x224] sm:$0xf]
      %v256 = vld [vmem:[%s165 + $0x228] sm:$0xff]
      %v257 = vld [vmem:[%s165 + $0x230] sm:$0xff]
      %v258 = vld [vmem:[%s165 + $0x238] sm:$0xff]
      %v259 = vld [vmem:[%s165 + $0x240] sm:$0xff]
      %v260 = vld [vmem:[%s165 + $0x248] sm:$0xff]
      %v261 = vld [vmem:[%s165 + $0x250] sm:$0xff]
      %v262 = vld [vmem:[%s165 + $0x258] sm:$0xff]
      %v263 = vld [vmem:[%s165 + $0x260] sm:$0xff]
      %v264 = vld [vmem:[%s165 + $0x268] sm:$0xff]
      %v265 = vld [vmem:[%s165 + $0x270] sm:$0xff]
      %v266 = vld [vmem:[%s165 + $0x278] sm:$0xff]
      %v267 = vld [vmem:[%s165 + $0x280] sm:$0xf]
      %v268 = vld [vmem:[%s165 + $0x284] sm:$0xff]
      %v269 = vld [vmem:[%s165 + $0x28c] sm:$0xff]
      %v270 = vld [vmem:[%s165 + $0x294] sm:$0xff]
      %v271 = vld [vmem:[%s165 + $0x29c] sm:$0xff]
      %v272 = vld [vmem:[%s165 + $0x2a4] sm:$0xff]
      %v273 = vld [vmem:[%s165 + $0x2ac] sm:$0xff]
      %v274 = vld [vmem:[%s165 + $0x2b4] sm:$0xff]
      %v275 = vld [vmem:[%s165 + $0x2bc] sm:$0xff]
      %v276 = vld [vmem:[%s165 + $0x2c4] sm:$0xff]
      %v277 = vld [vmem:[%s165 + $0x2cc] sm:$0xff]
      %v278 = vld [vmem:[%s165 + $0x2d4] sm:$0xff]
      %v279 = vld [vmem:[%s165 + $0x2dc] sm:$0xf]
      %v280 = vld [vmem:[%s165 + $0x2e0] sm:$0xff]
      %v281 = vld [vmem:[%s165 + $0x2e8] sm:$0xff]
      %v282 = vld [vmem:[%s165 + $0x2f0] sm:$0xff]
      %v283 = vld [vmem:[%s165 + $0x2f8] sm:$0xff]
      %v284 = vld [vmem:[%s165 + $0x300] sm:$0xff]
      %v285 = vld [vmem:[%s165 + $0x308] sm:$0xff]
      %v286 = vld [vmem:[%s165 + $0x310] sm:$0xff]
      %v287 = vld [vmem:[%s165 + $0x318] sm:$0xff]
      %v288 = vld [vmem:[%s165 + $0x320] sm:$0xff]
      %v289 = vld [vmem:[%s165 + $0x328] sm:$0xff]
      %v290 = vld [vmem:[%s165 + $0x330] sm:$0xff]
      %v291 = vld [vmem:[%s165 + $0x338] sm:$0xf]
      %v292 = vld [vmem:[%s165 + $0x33c] sm:$0xff]
      %v293 = vld [vmem:[%s165 + $0x344] sm:$0xff]
      %v294 = vld [vmem:[%s165 + $0x34c] sm:$0xff]
      %v295 = vld [vmem:[%s165 + $0x354] sm:$0xff]
      %v296 = vld [vmem:[%s165 + $0x35c] sm:$0xff]
      %v297 = vld [vmem:[%s165 + $0x364] sm:$0xff]
      %v298 = vld [vmem:[%s165 + $0x36c] sm:$0xff]
      %v299 = vld [vmem:[%s165 + $0x374] sm:$0xff]
      %v300 = vld [vmem:[%s165 + $0x37c] sm:$0xff]
      %v301 = vld [vmem:[%s165 + $0x384] sm:$0xff]
      %v302 = vld [vmem:[%s165 + $0x38c] sm:$0xff]
      %v303 = vld [vmem:[%s165 + $0x394] sm:$0xf]
      %v304 = vld [vmem:[%s165 + $0x398] sm:$0xff]
      %v305 = vld [vmem:[%s165 + $0x3a0] sm:$0xff]
      %v306 = vld [vmem:[%s165 + $0x3a8] sm:$0xff]
      %v307 = vld [vmem:[%s165 + $0x3b0] sm:$0xff]
      %v308 = vld [vmem:[%s165 + $0x3b8] sm:$0xff]
      %v309 = vld [vmem:[%s165 + $0x3c0] sm:$0xff]
      %v310 = vld [vmem:[%s165 + $0x3c8] sm:$0xff]
      %v311 = vld [vmem:[%s165 + $0x3d0] sm:$0xff]
      %v312 = vld [vmem:[%s165 + $0x3d8] sm:$0xff]
      %v313 = vld [vmem:[%s165 + $0x3e0] sm:$0xff]
      %v314 = vld [vmem:[%s165 + $0x3e8] sm:$0xff]
      %v315 = vld [vmem:[%s165 + $0x3f0] sm:$0xf]
      %v316 = vld [vmem:[%s165 + $0x3f4] sm:$0xff]
      %v317 = vld [vmem:[%s165 + $0x3fc] sm:$0xff]
      %v318 = vld [vmem:[%s165 + $0x404] sm:$0xff]
      %v319 = vld [vmem:[%s165 + $0x40c] sm:$0xff]
      %v320 = vld [vmem:[%s165 + $0x414] sm:$0xff]
      %v321 = vld [vmem:[%s165 + $0x41c] sm:$0xff]
      %v322 = vld [vmem:[%s165 + $0x424] sm:$0xff]
      %v323 = vld [vmem:[%s165 + $0x42c] sm:$0xff]
      %v324 = vld [vmem:[%s165 + $0x434] sm:$0xff]
      %v325 = vld [vmem:[%s165 + $0x43c] sm:$0xff]
      %v326 = vld [vmem:[%s165 + $0x444] sm:$0xff]
      %v327 = vld [vmem:[%s165 + $0x44c] sm:$0xf]
      %v328 = vld [vmem:[%s165 + $0x450] sm:$0xff]
      %v329 = vld [vmem:[%s165 + $0x458] sm:$0xff]
      %v330 = vld [vmem:[%s165 + $0x460] sm:$0xff]
      %v331 = vld [vmem:[%s165 + $0x468] sm:$0xff]
      %v332 = vld [vmem:[%s165 + $0x470] sm:$0xff]
      %v333 = vld [vmem:[%s165 + $0x478] sm:$0xff]
      %v334 = vld [vmem:[%s165 + $0x480] sm:$0xff]
      %v335 = vld [vmem:[%s165 + $0x488] sm:$0xff]
      %v336 = vld [vmem:[%s165 + $0x490] sm:$0xff]
      %v337 = vld [vmem:[%s165 + $0x498] sm:$0xff]
      %v338 = vld [vmem:[%s165 + $0x4a0] sm:$0xff]
      %v339 = vld [vmem:[%s165 + $0x4a8] sm:$0xf]
      %v340 = vld [vmem:[%s165 + $0x4ac] sm:$0xff]
      %v341 = vld [vmem:[%s165 + $0x4b4] sm:$0xff]
      %v342 = vld [vmem:[%s165 + $0x4bc] sm:$0xff]
      %v343 = vld [vmem:[%s165 + $0x4c4] sm:$0xff]
      %v344 = vld [vmem:[%s165 + $0x4cc] sm:$0xff]
      %v345 = vld [vmem:[%s165 + $0x4d4] sm:$0xff]
      %v346 = vld [vmem:[%s165 + $0x4dc] sm:$0xff]
      %v347 = vld [vmem:[%s165 + $0x4e4] sm:$0xff]
      %v348 = vld [vmem:[%s165 + $0x4ec] sm:$0xff]
      %v349 = vld [vmem:[%s165 + $0x4f4] sm:$0xff]
      %v350 = vld [vmem:[%s165 + $0x4fc] sm:$0xff]
      %v351 = vld [vmem:[%s165 + $0x504] sm:$0xf]
      %v352 = vld [vmem:[%s165 + $0x508] sm:$0xff]
      %v353 = vld [vmem:[%s165 + $0x510] sm:$0xff]
      %v354 = vld [vmem:[%s165 + $0x518] sm:$0xff]
      %v355 = vld [vmem:[%s165 + $0x520] sm:$0xff]
      %v356 = vld [vmem:[%s165 + $0x528] sm:$0xff]
      %v357 = vld [vmem:[%s165 + $0x530] sm:$0xff]
      %v358 = vld [vmem:[%s165 + $0x538] sm:$0xff]
      %v359 = vld [vmem:[%s165 + $0x540] sm:$0xff]
      %v360 = vld [vmem:[%s165 + $0x548] sm:$0xff]
      %v361 = vld [vmem:[%s165 + $0x550] sm:$0xff]
      %v362 = vld [vmem:[%s165 + $0x558] sm:$0xff]
      %v363 = vld [vmem:[%s165 + $0x560] sm:$0xf]
      %v364 = vld [vmem:[%s165 + $0x564] sm:$0xff]
      %v365 = vld [vmem:[%s165 + $0x56c] sm:$0xff]
      %v366 = vld [vmem:[%s165 + $0x574] sm:$0xff]
      %v367 = vld [vmem:[%s165 + $0x57c] sm:$0xff]
      %v368 = vld [vmem:[%s165 + $0x584] sm:$0xff]
      %v369 = vld [vmem:[%s165 + $0x58c] sm:$0xff]
      %v370 = vld [vmem:[%s165 + $0x594] sm:$0xff]
      %v371 = vld [vmem:[%s165 + $0x59c] sm:$0xff]
      %v372 = vld [vmem:[%s165 + $0x5a4] sm:$0xff]
      %v373 = vld [vmem:[%s165 + $0x5ac] sm:$0xff]
      %v374 = vld [vmem:[%s165 + $0x5b4] sm:$0xff]
      %v375 = vld [vmem:[%s165 + $0x5bc] sm:$0xf]
      %v376 = vld [vmem:[%s165 + $0x5c0] sm:$0xff]
      %v377 = vld [vmem:[%s165 + $0x5c8] sm:$0xff]
      %v378 = vld [vmem:[%s165 + $0x5d0] sm:$0xff]
      %v379 = vld [vmem:[%s165 + $0x5d8] sm:$0xff]
      %v380 = vld [vmem:[%s165 + $0x5e0] sm:$0xff]
      %v381 = vld [vmem:[%s165 + $0x5e8] sm:$0xff]
      %v382 = vld [vmem:[%s165 + $0x5f0] sm:$0xff]
      %v383 = vld [vmem:[%s165 + $0x5f8] sm:$0xff]
      %v384 = vld [vmem:[%s165 + $0x600] sm:$0xff]
      %v385 = vld [vmem:[%s165 + $0x608] sm:$0xff]
      %v386 = vld [vmem:[%s165 + $0x610] sm:$0xff]
      %v387 = vld [vmem:[%s165 + $0x618] sm:$0xf]
      %v388 = vld [vmem:[%s165 + $0x61c] sm:$0xff]
      %v389 = vld [vmem:[%s165 + $0x624] sm:$0xff]
      %v390 = vld [vmem:[%s165 + $0x62c] sm:$0xff]
      %v391 = vld [vmem:[%s165 + $0x634] sm:$0xff]
      %v392 = vld [vmem:[%s165 + $0x63c] sm:$0xff]
      %v393 = vld [vmem:[%s165 + $0x644] sm:$0xff]
      %v394 = vld [vmem:[%s165 + $0x64c] sm:$0xff]
      %v395 = vld [vmem:[%s165 + $0x654] sm:$0xff]
      %v396 = vld [vmem:[%s165 + $0x65c] sm:$0xff]
      %v397 = vld [vmem:[%s165 + $0x664] sm:$0xff]
      %v398 = vld [vmem:[%s165 + $0x66c] sm:$0xff]
      %v399 = vld [vmem:[%s165 + $0x674] sm:$0xf]
      %v400 = vld [vmem:[%s165 + $0x678] sm:$0xff]
      %v401 = vld [vmem:[%s165 + $0x680] sm:$0xff]
      %v402 = vld [vmem:[%s165 + $0x688] sm:$0xff]
      %v403 = vld [vmem:[%s165 + $0x690] sm:$0xff]
      %v404 = vld [vmem:[%s165 + $0x698] sm:$0xff]
      %v405 = vld [vmem:[%s165 + $0x6a0] sm:$0xff]
      %v406 = vld [vmem:[%s165 + $0x6a8] sm:$0xff]
      %v407 = vld [vmem:[%s165 + $0x6b0] sm:$0xff]
      %v408 = vld [vmem:[%s165 + $0x6b8] sm:$0xff]
      %v409 = vld [vmem:[%s165 + $0x6c0] sm:$0xff]
      %v410 = vld [vmem:[%s165 + $0x6c8] sm:$0xff]
      %v411 = vld [vmem:[%s165 + $0x6d0] sm:$0xf]
      %v412 = vld [vmem:[%s165 + $0x6d4] sm:$0xff]
      %v413 = vld [vmem:[%s165 + $0x6dc] sm:$0xff]
      %v414 = vld [vmem:[%s165 + $0x6e4] sm:$0xff]
      %v415 = vld [vmem:[%s165 + $0x6ec] sm:$0xff]
      %v416 = vld [vmem:[%s165 + $0x6f4] sm:$0xff]
      %v417 = vld [vmem:[%s165 + $0x6fc] sm:$0xff]
      %v418 = vld [vmem:[%s165 + $0x704] sm:$0xff]
      %v419 = vld [vmem:[%s165 + $0x70c] sm:$0xff]
      %v420 = vld [vmem:[%s165 + $0x714] sm:$0xff]
      %v421 = vld [vmem:[%s165 + $0x71c] sm:$0xff]
      %v422 = vld [vmem:[%s165 + $0x724] sm:$0xff]
      %v423 = vld [vmem:[%s165 + $0x72c] sm:$0xf]
      %v424 = vld [vmem:[%s165 + $0x730] sm:$0xff]
      %v425 = vld [vmem:[%s165 + $0x738] sm:$0xff]
      %v426 = vld [vmem:[%s165 + $0x740] sm:$0xff]
      %v427 = vld [vmem:[%s165 + $0x748] sm:$0xff]
      %v428 = vld [vmem:[%s165 + $0x750] sm:$0xff]
      %v429 = vld [vmem:[%s165 + $0x758] sm:$0xff]
      %v430 = vld [vmem:[%s165 + $0x760] sm:$0xff]
      %v431 = vld [vmem:[%s165 + $0x768] sm:$0xff]
      %v432 = vld [vmem:[%s165 + $0x770] sm:$0xff]
      %v433 = vld [vmem:[%s165 + $0x778] sm:$0xff]
      %v434 = vld [vmem:[%s165 + $0x780] sm:$0xff]
      %v435 = vld [vmem:[%s165 + $0x788] sm:$0xf]
      %v436 = vld [vmem:[%s165 + $0x78c] sm:$0xff]
      %v437 = vld [vmem:[%s165 + $0x794] sm:$0xff]
      %v438 = vld [vmem:[%s165 + $0x79c] sm:$0xff]
      %v439 = vld [vmem:[%s165 + $0x7a4] sm:$0xff]
      %v440 = vld [vmem:[%s165 + $0x7ac] sm:$0xff]
      %v441 = vld [vmem:[%s165 + $0x7b4] sm:$0xff]
      %v442 = vld [vmem:[%s165 + $0x7bc] sm:$0xff]
      %v443 = vld [vmem:[%s165 + $0x7c4] sm:$0xff]
      %v444 = vld [vmem:[%s165 + $0x7cc] sm:$0xff]
      %v445 = vld [vmem:[%s165 + $0x7d4] sm:$0xff]
      %v446 = vld [vmem:[%s165 + $0x7dc] sm:$0xff]
      %v447 = vld [vmem:[%s165 + $0x7e4] sm:$0xf]
      %v448 = vld [vmem:[%s165 + $0x7e8] sm:$0xff]
      %v449 = vld [vmem:[%s165 + $0x7f0] sm:$0xff]
      %v450 = vld [vmem:[%s165 + $0x7f8] sm:$0xff]
      %v451 = vld [vmem:[%s165 + $0x800] sm:$0xff]
      %v452 = vld [vmem:[%s165 + $0x808] sm:$0xff]
      %v453 = vld [vmem:[%s165 + $0x810] sm:$0xff]
      %v454 = vld [vmem:[%s165 + $0x818] sm:$0xff]
      %v455 = vld [vmem:[%s165 + $0x820] sm:$0xff]
      %v456 = vld [vmem:[%s165 + $0x828] sm:$0xff]
      %v457 = vld [vmem:[%s165 + $0x830] sm:$0xff]
      %v458 = vld [vmem:[%s165 + $0x838] sm:$0xff]
      %v459 = vld [vmem:[%s165 + $0x840] sm:$0xf]
      %v460 = vld [vmem:[%s165 + $0x844] sm:$0xff]
      %v461 = vld [vmem:[%s165 + $0x84c] sm:$0xff]
      %v462 = vld [vmem:[%s165 + $0x854] sm:$0xff]
      %v463 = vld [vmem:[%s165 + $0x85c] sm:$0xff]
      %v464 = vld [vmem:[%s165 + $0x864] sm:$0xff]
      %v465 = vld [vmem:[%s165 + $0x86c] sm:$0xff]
      %v466 = vld [vmem:[%s165 + $0x874] sm:$0xff]
      %v467 = vld [vmem:[%s165 + $0x87c] sm:$0xff]
      %v468 = vld [vmem:[%s165 + $0x884] sm:$0xff]
      %v469 = vld [vmem:[%s165 + $0x88c] sm:$0xff]
      %v470 = vld [vmem:[%s165 + $0x894] sm:$0xff]
      %v471 = vld [vmem:[%s165 + $0x89c] sm:$0xf]
      %v472 = vld [vmem:[%s165 + $0x8a0] sm:$0xff]
      %v473 = vld [vmem:[%s165 + $0x8a8] sm:$0xff]
      %v474 = vld [vmem:[%s165 + $0x8b0] sm:$0xff]
      %v475 = vld [vmem:[%s165 + $0x8b8] sm:$0xff]
      %v476 = vld [vmem:[%s165 + $0x8c0] sm:$0xff]
      %v477 = vld [vmem:[%s165 + $0x8c8] sm:$0xff]
      %v478 = vld [vmem:[%s165 + $0x8d0] sm:$0xff]
      %v479 = vld [vmem:[%s165 + $0x8d8] sm:$0xff]
      %v480 = vld [vmem:[%s165 + $0x8e0] sm:$0xff]
      %v481 = vld [vmem:[%s165 + $0x8e8] sm:$0xff]
      %v482 = vld [vmem:[%s165 + $0x8f0] sm:$0xff]
      %v483 = vld [vmem:[%s165 + $0x8f8] sm:$0xf]
      %v484 = vld [vmem:[%s165 + $0x8fc] sm:$0xff]
      %v485 = vld [vmem:[%s165 + $0x904] sm:$0xff]
      %v486 = vld [vmem:[%s165 + $0x90c] sm:$0xff]
      %v487 = vld [vmem:[%s165 + $0x914] sm:$0xff]
      %v488 = vld [vmem:[%s165 + $0x91c] sm:$0xff]
      %v489 = vld [vmem:[%s165 + $0x924] sm:$0xff]
      %v490 = vld [vmem:[%s165 + $0x92c] sm:$0xff]
      %v491 = vld [vmem:[%s165 + $0x934] sm:$0xff]
      %v492 = vld [vmem:[%s165 + $0x93c] sm:$0xff]
      %v493 = vld [vmem:[%s165 + $0x944] sm:$0xff]
      %v494 = vld [vmem:[%s165 + $0x94c] sm:$0xff]
      %v495 = vld [vmem:[%s165 + $0x954] sm:$0xf]
      %v496 = vld [vmem:[%s165 + $0x958] sm:$0xff]
      %v497 = vld [vmem:[%s165 + $0x960] sm:$0xff]
      %v498 = vld [vmem:[%s165 + $0x968] sm:$0xff]
      %v499 = vld [vmem:[%s165 + $0x970] sm:$0xff]
      %v500 = vld [vmem:[%s165 + $0x978] sm:$0xff]
      %v501 = vld [vmem:[%s165 + $0x980] sm:$0xff]
      %v502 = vld [vmem:[%s165 + $0x988] sm:$0xff]
      %v503 = vld [vmem:[%s165 + $0x990] sm:$0xff]
      %v504 = vld [vmem:[%s165 + $0x998] sm:$0xff]
      %v505 = vld [vmem:[%s165 + $0x9a0] sm:$0xff]
      %v506 = vld [vmem:[%s165 + $0x9a8] sm:$0xff]
      %v507 = vld [vmem:[%s165 + $0x9b0] sm:$0xf]
      %v508 = vld [vmem:[%s165 + $0x9b4] sm:$0xff]
      %v509 = vld [vmem:[%s165 + $0x9bc] sm:$0xff]
      %v510 = vld [vmem:[%s165 + $0x9c4] sm:$0xff]
      %v511 = vld [vmem:[%s165 + $0x9cc] sm:$0xff]
      %v512 = vld [vmem:[%s165 + $0x9d4] sm:$0xff]
      %v513 = vld [vmem:[%s165 + $0x9dc] sm:$0xff]
      %v514 = vld [vmem:[%s165 + $0x9e4] sm:$0xff]
      %v515 = vld [vmem:[%s165 + $0x9ec] sm:$0xff]
      %v516 = vld [vmem:[%s165 + $0x9f4] sm:$0xff]
      %v517 = vld [vmem:[%s165 + $0x9fc] sm:$0xff]
      %v518 = vld [vmem:[%s165 + $0xa04] sm:$0xff]
      %v519 = vld [vmem:[%s165 + $0xa0c] sm:$0xf]
      %v520 = vld [vmem:[%s165 + $0xa10] sm:$0xff]
      %v521 = vld [vmem:[%s165 + $0xa18] sm:$0xff]
      %v522 = vld [vmem:[%s165 + $0xa20] sm:$0xff]
      %v523 = vld [vmem:[%s165 + $0xa28] sm:$0xff]
      %v524 = vld [vmem:[%s165 + $0xa30] sm:$0xff]
      %v525 = vld [vmem:[%s165 + $0xa38] sm:$0xff]
      %v526 = vld [vmem:[%s165 + $0xa40] sm:$0xff]
      %v527 = vld [vmem:[%s165 + $0xa48] sm:$0xff]
      %v528 = vld [vmem:[%s165 + $0xa50] sm:$0xff]
      %v529 = vld [vmem:[%s165 + $0xa58] sm:$0xff]
      %v530 = vld [vmem:[%s165 + $0xa60] sm:$0xff]
      %v531 = vld [vmem:[%s165 + $0xa68] sm:$0xf]
      %v532 = vld [vmem:[%s165 + $0xa6c] sm:$0xff]
      %v533 = vld [vmem:[%s165 + $0xa74] sm:$0xff]
      %v534 = vld [vmem:[%s165 + $0xa7c] sm:$0xff]
      %v535 = vld [vmem:[%s165 + $0xa84] sm:$0xff]
      %v536 = vld [vmem:[%s165 + $0xa8c] sm:$0xff]
      %v537 = vld [vmem:[%s165 + $0xa94] sm:$0xff]
      %v538 = vld [vmem:[%s165 + $0xa9c] sm:$0xff]
      %v539 = vld [vmem:[%s165 + $0xaa4] sm:$0xff]
      %v540 = vld [vmem:[%s165 + $0xaac] sm:$0xff]
      %v541 = vld [vmem:[%s165 + $0xab4] sm:$0xff]
      %v542 = vld [vmem:[%s165 + $0xabc] sm:$0xff]
      %v543 = vld [vmem:[%s165 + $0xac4] sm:$0xf]
      %v544 = vld [vmem:[%s165 + $0xac8] sm:$0xff]
      %v545 = vld [vmem:[%s165 + $0xad0] sm:$0xff]
      %v546 = vld [vmem:[%s165 + $0xad8] sm:$0xff]
      %v547 = vld [vmem:[%s165 + $0xae0] sm:$0xff]
      %v548 = vld [vmem:[%s165 + $0xae8] sm:$0xff]
      %v549 = vld [vmem:[%s165 + $0xaf0] sm:$0xff]
      %v550 = vld [vmem:[%s165 + $0xaf8] sm:$0xff]
      %v551 = vld [vmem:[%s165 + $0xb00] sm:$0xff]
      %v552 = vld [vmem:[%s165 + $0xb08] sm:$0xff]
      %v553 = vld [vmem:[%s165 + $0xb10] sm:$0xff]
      %v554 = vld [vmem:[%s165 + $0xb18] sm:$0xff]
      %v555 = vld [vmem:[%s165 + $0xb20] sm:$0xf]
      %v556 = vld [vmem:[%s165 + $0xb24] sm:$0xff]
      %v557 = vld [vmem:[%s165 + $0xb2c] sm:$0xff]
      %v558 = vld [vmem:[%s165 + $0xb34] sm:$0xff]
      %v559 = vld [vmem:[%s165 + $0xb3c] sm:$0xff]
      %v560 = vld [vmem:[%s165 + $0xb44] sm:$0xff]
      %v561 = vld [vmem:[%s165 + $0xb4c] sm:$0xff]
      %v562 = vld [vmem:[%s165 + $0xb54] sm:$0xff]
      %v563 = vld [vmem:[%s165 + $0xb5c] sm:$0xff]
      %v564 = vld [vmem:[%s165 + $0xb64] sm:$0xff]
      %v565 = vld [vmem:[%s165 + $0xb6c] sm:$0xff]
      %v566 = vld [vmem:[%s165 + $0xb74] sm:$0xff]
      %v567 = vld [vmem:[%s165 + $0xb7c] sm:$0xf]
      %v568 = vld [vmem:[%s165 + $0xb80] sm:$0xff]
      %v569 = vld [vmem:[%s165 + $0xb88] sm:$0xff]
      %v570 = vld [vmem:[%s165 + $0xb90] sm:$0xff]
      %v571 = vld [vmem:[%s165 + $0xb98] sm:$0xff]
      %v572 = vld [vmem:[%s165 + $0xba0] sm:$0xff]
      %v573 = vld [vmem:[%s165 + $0xba8] sm:$0xff]
      %v574 = vld [vmem:[%s165 + $0xbb0] sm:$0xff]
      %v575 = vld [vmem:[%s165 + $0xbb8] sm:$0xff]
      %v576 = vld [vmem:[%s165 + $0xbc0] sm:$0xff]
      %v577 = vld [vmem:[%s165 + $0xbc8] sm:$0xff]
      %v578 = vld [vmem:[%s165 + $0xbd0] sm:$0xff]
      %v579 = vld [vmem:[%s165 + $0xbd8] sm:$0xf]
      %v580 = vld [vmem:[%s165 + $0xbdc] sm:$0xff]
      %v581 = vld [vmem:[%s165 + $0xbe4] sm:$0xff]
      %v582 = vld [vmem:[%s165 + $0xbec] sm:$0xff]
      %v583 = vld [vmem:[%s165 + $0xbf4] sm:$0xff]
      %v584 = vld [vmem:[%s165 + $0xbfc] sm:$0xff]
      %v585 = vld [vmem:[%s165 + $0xc04] sm:$0xff]
      %v586 = vld [vmem:[%s165 + $0xc0c] sm:$0xff]
      %v587 = vld [vmem:[%s165 + $0xc14] sm:$0xff]
      %v588 = vld [vmem:[%s165 + $0xc1c] sm:$0xff]
      %v589 = vld [vmem:[%s165 + $0xc24] sm:$0xff]
      %v590 = vld [vmem:[%s165 + $0xc2c] sm:$0xff]
      %v591 = vld [vmem:[%s165 + $0xc34] sm:$0xf]
      %v592 = vld [vmem:[%s165 + $0xc38] sm:$0xff]
      %v593 = vld [vmem:[%s165 + $0xc40] sm:$0xff]
      %v594 = vld [vmem:[%s165 + $0xc48] sm:$0xff]
      %v595 = vld [vmem:[%s165 + $0xc50] sm:$0xff]
      %v596 = vld [vmem:[%s165 + $0xc58] sm:$0xff]
      %v597 = vld [vmem:[%s165 + $0xc60] sm:$0xff]
      %v598 = vld [vmem:[%s165 + $0xc68] sm:$0xff]
      %v599 = vld [vmem:[%s165 + $0xc70] sm:$0xff]
      %v600 = vld [vmem:[%s165 + $0xc78] sm:$0xff]
      %v601 = vld [vmem:[%s165 + $0xc80] sm:$0xff]
      %v602 = vld [vmem:[%s165 + $0xc88] sm:$0xff]
      %v603 = vld [vmem:[%s165 + $0xc90] sm:$0xf]
      %v604 = vld [vmem:[%s165 + $0xc94] sm:$0xff]
      %v605 = vld [vmem:[%s165 + $0xc9c] sm:$0xff]
      %v606 = vld [vmem:[%s165 + $0xca4] sm:$0xff]
      %v607 = vld [vmem:[%s165 + $0xcac] sm:$0xff]
      %v608 = vld [vmem:[%s165 + $0xcb4] sm:$0xff]
      %v609 = vld [vmem:[%s165 + $0xcbc] sm:$0xff]
      %v610 = vld [vmem:[%s165 + $0xcc4] sm:$0xff]
      %v611 = vld [vmem:[%s165 + $0xccc] sm:$0xff]
      %v612 = vld [vmem:[%s165 + $0xcd4] sm:$0xff]
      %v613 = vld [vmem:[%s165 + $0xcdc] sm:$0xff]
      %v614 = vld [vmem:[%s165 + $0xce4] sm:$0xff]
      %v615 = vld [vmem:[%s165 + $0xcec] sm:$0xf]
      %v616 = vld [vmem:[%s165 + $0xcf0] sm:$0xff]
      %v617 = vld [vmem:[%s165 + $0xcf8] sm:$0xff]
      %v618 = vld [vmem:[%s165 + $0xd00] sm:$0xff]
      %v619 = vld [vmem:[%s165 + $0xd08] sm:$0xff]
      %v620 = vld [vmem:[%s165 + $0xd10] sm:$0xff]
      %v621 = vld [vmem:[%s165 + $0xd18] sm:$0xff]
      %v622 = vld [vmem:[%s165 + $0xd20] sm:$0xff]
      %v623 = vld [vmem:[%s165 + $0xd28] sm:$0xff]
      %v624 = vld [vmem:[%s165 + $0xd30] sm:$0xff]
      %v625 = vld [vmem:[%s165 + $0xd38] sm:$0xff]
      %v626 = vld [vmem:[%s165 + $0xd40] sm:$0xff]
      %v627 = vld [vmem:[%s165 + $0xd48] sm:$0xf]
      %v628 = vld [vmem:[%s165 + $0xd4c] sm:$0xff]
      %v629 = vld [vmem:[%s165 + $0xd54] sm:$0xff]
      %v630 = vld [vmem:[%s165 + $0xd5c] sm:$0xff]
      %v631 = vld [vmem:[%s165 + $0xd64] sm:$0xff]
      %v632 = vld [vmem:[%s165 + $0xd6c] sm:$0xff]
      %v633 = vld [vmem:[%s165 + $0xd74] sm:$0xff]
      %v634 = vld [vmem:[%s165 + $0xd7c] sm:$0xff]
      %v635 = vld [vmem:[%s165 + $0xd84] sm:$0xff]
      %v636 = vld [vmem:[%s165 + $0xd8c] sm:$0xff]
      %v637 = vld [vmem:[%s165 + $0xd94] sm:$0xff]
      %v638 = vld [vmem:[%s165 + $0xd9c] sm:$0xff]
      %v639 = vld [vmem:[%s165 + $0xda4] sm:$0xf]
      %v640 = vld [vmem:[%s165 + $0xda8] sm:$0xff]
      %v641 = vld [vmem:[%s165 + $0xdb0] sm:$0xff]
      %v642 = vld [vmem:[%s165 + $0xdb8] sm:$0xff]
      %v643 = vld [vmem:[%s165 + $0xdc0] sm:$0xff]
      %v644 = vld [vmem:[%s165 + $0xdc8] sm:$0xff]
      %v645 = vld [vmem:[%s165 + $0xdd0] sm:$0xff]
      %v646 = vld [vmem:[%s165 + $0xdd8] sm:$0xff]
      %v647 = vld [vmem:[%s165 + $0xde0] sm:$0xff]
      %v648 = vld [vmem:[%s165 + $0xde8] sm:$0xff]
      %v649 = vld [vmem:[%s165 + $0xdf0] sm:$0xff]
      %v650 = vld [vmem:[%s165 + $0xdf8] sm:$0xff]
      %v651 = vld [vmem:[%s165 + $0xe00] sm:$0xf]
      %v652 = vld [vmem:[%s165 + $0xe04] sm:$0xff]
      %v653 = vld [vmem:[%s165 + $0xe0c] sm:$0xff]
      %v654 = vld [vmem:[%s165 + $0xe14] sm:$0xff]
      %v655 = vld [vmem:[%s165 + $0xe1c] sm:$0xff]
      %v656 = vld [vmem:[%s165 + $0xe24] sm:$0xff]
      %v657 = vld [vmem:[%s165 + $0xe2c] sm:$0xff]
      %v658 = vld [vmem:[%s165 + $0xe34] sm:$0xff]
      %v659 = vld [vmem:[%s165 + $0xe3c] sm:$0xff]
      %v660 = vld [vmem:[%s165 + $0xe44] sm:$0xff]
      %v661 = vld [vmem:[%s165 + $0xe4c] sm:$0xff]
      %v662 = vld [vmem:[%s165 + $0xe54] sm:$0xff]
      %v663 = vld [vmem:[%s165 + $0xe5c] sm:$0xf]
      %v664 = vld [vmem:[%s165 + $0xe60] sm:$0xff]
      %v665 = vld [vmem:[%s165 + $0xe68] sm:$0xff]
      %v666 = vld [vmem:[%s165 + $0xe70] sm:$0xff]
      %v667 = vld [vmem:[%s165 + $0xe78] sm:$0xff]
      %v668 = vld [vmem:[%s165 + $0xe80] sm:$0xff]
      %v669 = vld [vmem:[%s165 + $0xe88] sm:$0xff]
      %v670 = vld [vmem:[%s165 + $0xe90] sm:$0xff]
      %v671 = vld [vmem:[%s165 + $0xe98] sm:$0xff]
      %v672 = vld [vmem:[%s165 + $0xea0] sm:$0xff]
      %v673 = vld [vmem:[%s165 + $0xea8] sm:$0xff]
      %v674 = vld [vmem:[%s165 + $0xeb0] sm:$0xff]
      %v675 = vld [vmem:[%s165 + $0xeb8] sm:$0xf]
      %v676 = vld [vmem:[%s165 + $0xebc] sm:$0xff]
      %v677 = vld [vmem:[%s165 + $0xec4] sm:$0xff]
      %v678 = vld [vmem:[%s165 + $0xecc] sm:$0xff]
      %v679 = vld [vmem:[%s165 + $0xed4] sm:$0xff]
      %v680 = vld [vmem:[%s165 + $0xedc] sm:$0xff]
      %v681 = vld [vmem:[%s165 + $0xee4] sm:$0xff]
      %v682 = vld [vmem:[%s165 + $0xeec] sm:$0xff]
      %v683 = vld [vmem:[%s165 + $0xef4] sm:$0xff]
      %v684 = vld [vmem:[%s165 + $0xefc] sm:$0xff]
      %v685 = vld [vmem:[%s165 + $0xf04] sm:$0xff]
      %v686 = vld [vmem:[%s165 + $0xf0c] sm:$0xff]
      %v687 = vld [vmem:[%s165 + $0xf14] sm:$0xf]
      %v688 = vld [vmem:[%s165 + $0xf18] sm:$0xff]
      %v689 = vld [vmem:[%s165 + $0xf20] sm:$0xff]
      %v690 = vld [vmem:[%s165 + $0xf28] sm:$0xff]
      %v691 = vld [vmem:[%s165 + $0xf30] sm:$0xff]
      %v692 = vld [vmem:[%s165 + $0xf38] sm:$0xff]
      %v693 = vld [vmem:[%s165 + $0xf40] sm:$0xff]
      %v694 = vld [vmem:[%s165 + $0xf48] sm:$0xff]
      %v695 = vld [vmem:[%s165 + $0xf50] sm:$0xff]
      %v696 = vld [vmem:[%s165 + $0xf58] sm:$0xff]
      %v697 = vld [vmem:[%s165 + $0xf60] sm:$0xff]
      %v698 = vld [vmem:[%s165 + $0xf68] sm:$0xff]
      %v699 = vld [vmem:[%s165 + $0xf70] sm:$0xf]
      %v700 = vld [vmem:[%s165 + $0xf74] sm:$0xff]
      %v701 = vld [vmem:[%s165 + $0xf7c] sm:$0xff]
      %v702 = vld [vmem:[%s165 + $0xf84] sm:$0xff]
      %v703 = vld [vmem:[%s165 + $0xf8c] sm:$0xff]
      %v704 = vld [vmem:[%s165 + $0xf94] sm:$0xff]
      %v705 = vld [vmem:[%s165 + $0xf9c] sm:$0xff]
      %v706 = vld [vmem:[%s165 + $0xfa4] sm:$0xff]
      %v707 = vld [vmem:[%s165 + $0xfac] sm:$0xff]
      %v708 = vld [vmem:[%s165 + $0xfb4] sm:$0xff]
      %v709 = vld [vmem:[%s165 + $0xfbc] sm:$0xff]
      %v710 = vld [vmem:[%s165 + $0xfc4] sm:$0xff]
      %v711 = vld [vmem:[%s165 + $0xfcc] sm:$0xf]
      %v712 = vld [vmem:[%s165 + $0xfd0] sm:$0xff]
      %v713 = vld [vmem:[%s165 + $0xfd8] sm:$0xff]
      %v714 = vld [vmem:[%s165 + $0xfe0] sm:$0xff]
      %v715 = vld [vmem:[%s165 + $0xfe8] sm:$0xff]
      %v716 = vld [vmem:[%s165 + $0xff0] sm:$0xff]
      %v717 = vld [vmem:[%s165 + $0xff8] sm:$0xff]
      %v718 = vld [vmem:[%s165 + $0x1000] sm:$0xff]
      %v719 = vld [vmem:[%s165 + $0x1008] sm:$0xff]
      %v720 = vld [vmem:[%s165 + $0x1010] sm:$0xff]
      %v721 = vld [vmem:[%s165 + $0x1018] sm:$0xff]
      %v722 = vld [vmem:[%s165 + $0x1020] sm:$0xff]
      %v723 = vld [vmem:[%s165 + $0x1028] sm:$0xf]
      %v724 = vld [vmem:[%s165 + $0x102c] sm:$0xff]
      %v725 = vld [vmem:[%s165 + $0x1034] sm:$0xff]
      %v726 = vld [vmem:[%s165 + $0x103c] sm:$0xff]
      %v727 = vld [vmem:[%s165 + $0x1044] sm:$0xff]
      %v728 = vld [vmem:[%s165 + $0x104c] sm:$0xff]
      %v729 = vld [vmem:[%s165 + $0x1054] sm:$0xff]
      %v730 = vld [vmem:[%s165 + $0x105c] sm:$0xff]
      %v731 = vld [vmem:[%s165 + $0x1064] sm:$0xff]
      %v732 = vld [vmem:[%s165 + $0x106c] sm:$0xff]
      %v733 = vld [vmem:[%s165 + $0x1074] sm:$0xff]
      %v734 = vld [vmem:[%s165 + $0x107c] sm:$0xff]
      %v735 = vld [vmem:[%s165 + $0x1084] sm:$0xf]
      %v736 = vld [vmem:[%s165 + $0x1088] sm:$0xff]
      %v737 = vld [vmem:[%s165 + $0x1090] sm:$0xff]
      %v738 = vld [vmem:[%s165 + $0x1098] sm:$0xff]
      %v739 = vld [vmem:[%s165 + $0x10a0] sm:$0xff]
      %v740 = vld [vmem:[%s165 + $0x10a8] sm:$0xff]
      %v741 = vld [vmem:[%s165 + $0x10b0] sm:$0xff]
      %v742 = vld [vmem:[%s165 + $0x10b8] sm:$0xff]
      %v743 = vld [vmem:[%s165 + $0x10c0] sm:$0xff]
      %v744 = vld [vmem:[%s165 + $0x10c8] sm:$0xff]
      %v745 = vld [vmem:[%s165 + $0x10d0] sm:$0xff]
      %v746 = vld [vmem:[%s165 + $0x10d8] sm:$0xff]
      %v747 = vld [vmem:[%s165 + $0x10e0] sm:$0xf]
      %v748 = vld [vmem:[%s165 + $0x10e4] sm:$0xff]
      %v749 = vld [vmem:[%s165 + $0x10ec] sm:$0xff]
      %v750 = vld [vmem:[%s165 + $0x10f4] sm:$0xff]
      %v751 = vld [vmem:[%s165 + $0x10fc] sm:$0xff]
      %v752 = vld [vmem:[%s165 + $0x1104] sm:$0xff]
      %v753 = vld [vmem:[%s165 + $0x110c] sm:$0xff]
      %v754 = vld [vmem:[%s165 + $0x1114] sm:$0xff]
      %v755 = vld [vmem:[%s165 + $0x111c] sm:$0xff]
      %v756 = vld [vmem:[%s165 + $0x1124] sm:$0xff]
      %v757 = vld [vmem:[%s165 + $0x112c] sm:$0xff]
      %v758 = vld [vmem:[%s165 + $0x1134] sm:$0xff]
      %v759 = vld [vmem:[%s165 + $0x113c] sm:$0xf]
      %v760 = vld [vmem:[%s165 + $0x1140] sm:$0xff]
      %v761 = vld [vmem:[%s165 + $0x1148] sm:$0xff]
      %v762 = vld [vmem:[%s165 + $0x1150] sm:$0xff]
      %v763 = vld [vmem:[%s165 + $0x1158] sm:$0xff]
      %v764 = vld [vmem:[%s165 + $0x1160] sm:$0xff]
      %v765 = vld [vmem:[%s165 + $0x1168] sm:$0xff]
      %v766 = vld [vmem:[%s165 + $0x1170] sm:$0xff]
      %v767 = vld [vmem:[%s165 + $0x1178] sm:$0xff]
      %v768 = vld [vmem:[%s165 + $0x1180] sm:$0xff]
      %v769 = vld [vmem:[%s165 + $0x1188] sm:$0xff]
      %v770 = vld [vmem:[%s165 + $0x1190] sm:$0xff]
      %v771 = vld [vmem:[%s165 + $0x1198] sm:$0xf]
      %v772 = vld [vmem:[%s165 + $0x119c] sm:$0xff]
      %v773 = vld [vmem:[%s165 + $0x11a4] sm:$0xff]
      %v774 = vld [vmem:[%s165 + $0x11ac] sm:$0xff]
      %v775 = vld [vmem:[%s165 + $0x11b4] sm:$0xff]
      %v776 = vld [vmem:[%s165 + $0x11bc] sm:$0xff]
      %v777 = vld [vmem:[%s165 + $0x11c4] sm:$0xff]
      %v778 = vld [vmem:[%s165 + $0x11cc] sm:$0xff]
      %v779 = vld [vmem:[%s165 + $0x11d4] sm:$0xff]
      %v780 = vld [vmem:[%s165 + $0x11dc] sm:$0xff]
      %v781 = vld [vmem:[%s165 + $0x11e4] sm:$0xff]
      %v782 = vld [vmem:[%s165 + $0x11ec] sm:$0xff]
      %v783 = vld [vmem:[%s165 + $0x11f4] sm:$0xf]
      %v784 = vld [vmem:[%s165 + $0x11f8] sm:$0xff]
      %v785 = vld [vmem:[%s165 + $0x1200] sm:$0xff]
      %v786 = vld [vmem:[%s165 + $0x1208] sm:$0xff]
      %v787 = vld [vmem:[%s165 + $0x1210] sm:$0xff]
      %v788 = vld [vmem:[%s165 + $0x1218] sm:$0xff]
      %v789 = vld [vmem:[%s165 + $0x1220] sm:$0xff]
      %v790 = vld [vmem:[%s165 + $0x1228] sm:$0xff]
      %v791 = vld [vmem:[%s165 + $0x1230] sm:$0xff]
      %v792 = vld [vmem:[%s165 + $0x1238] sm:$0xff]
      %v793 = vld [vmem:[%s165 + $0x1240] sm:$0xff]
      %v794 = vld [vmem:[%s165 + $0x1248] sm:$0xff]
      %v795 = vld [vmem:[%s165 + $0x1250] sm:$0xf]
      %v796 = vld [vmem:[%s165 + $0x1254] sm:$0xff]
      %v797 = vld [vmem:[%s165 + $0x125c] sm:$0xff]
      %v798 = vld [vmem:[%s165 + $0x1264] sm:$0xff]
      %v799 = vld [vmem:[%s165 + $0x126c] sm:$0xff]
      %v800 = vld [vmem:[%s165 + $0x1274] sm:$0xff]
      %v801 = vld [vmem:[%s165 + $0x127c] sm:$0xff]
      %v802 = vld [vmem:[%s165 + $0x1284] sm:$0xff]
      %v803 = vld [vmem:[%s165 + $0x128c] sm:$0xff]
      %v804 = vld [vmem:[%s165 + $0x1294] sm:$0xff]
      %v805 = vld [vmem:[%s165 + $0x129c] sm:$0xff]
      %v806 = vld [vmem:[%s165 + $0x12a4] sm:$0xff]
      %v807 = vld [vmem:[%s165 + $0x12ac] sm:$0xf]
      %v808 = vld [vmem:[%s165 + $0x12b0] sm:$0xff]
      %v809 = vld [vmem:[%s165 + $0x12b8] sm:$0xff]
      %v810 = vld [vmem:[%s165 + $0x12c0] sm:$0xff]
      %v811 = vld [vmem:[%s165 + $0x12c8] sm:$0xff]
      %v812 = vld [vmem:[%s165 + $0x12d0] sm:$0xff]
      %v813 = vld [vmem:[%s165 + $0x12d8] sm:$0xff]
      %v814 = vld [vmem:[%s165 + $0x12e0] sm:$0xff]
      %v815 = vld [vmem:[%s165 + $0x12e8] sm:$0xff]
      %v816 = vld [vmem:[%s165 + $0x12f0] sm:$0xff]
      %v817 = vld [vmem:[%s165 + $0x12f8] sm:$0xff]
      %v818 = vld [vmem:[%s165 + $0x1300] sm:$0xff]
      %v819 = vld [vmem:[%s165 + $0x1308] sm:$0xf]
      %v820 = vld [vmem:[%s165 + $0x130c] sm:$0xff]
      %v821 = vld [vmem:[%s165 + $0x1314] sm:$0xff]
      %v822 = vld [vmem:[%s165 + $0x131c] sm:$0xff]
      %v823 = vld [vmem:[%s165 + $0x1324] sm:$0xff]
      %v824 = vld [vmem:[%s165 + $0x132c] sm:$0xff]
      %v825 = vld [vmem:[%s165 + $0x1334] sm:$0xff]
      %v826 = vld [vmem:[%s165 + $0x133c] sm:$0xff]
      %v827 = vld [vmem:[%s165 + $0x1344] sm:$0xff]
      %v828 = vld [vmem:[%s165 + $0x134c] sm:$0xff]
      %v829 = vld [vmem:[%s165 + $0x1354] sm:$0xff]
      %v830 = vld [vmem:[%s165 + $0x135c] sm:$0xff]
      %v831 = vld [vmem:[%s165 + $0x1364] sm:$0xf]
      %v832 = vld [vmem:[%s165 + $0x1368] sm:$0xff]
      %v833 = vld [vmem:[%s165 + $0x1370] sm:$0xff]
      %v834 = vld [vmem:[%s165 + $0x1378] sm:$0xff]
      %v835 = vld [vmem:[%s165 + $0x1380] sm:$0xff]
      %v836 = vld [vmem:[%s165 + $0x1388] sm:$0xff]
      %v837 = vld [vmem:[%s165 + $0x1390] sm:$0xff]
      %v838 = vld [vmem:[%s165 + $0x1398] sm:$0xff]
      %v839 = vld [vmem:[%s165 + $0x13a0] sm:$0xff]
      %v840 = vld [vmem:[%s165 + $0x13a8] sm:$0xff]
      %v841 = vld [vmem:[%s165 + $0x13b0] sm:$0xff]
      %v842 = vld [vmem:[%s165 + $0x13b8] sm:$0xff]
      %v843 = vld [vmem:[%s165 + $0x13c0] sm:$0xf]
      %v844 = vld [vmem:[%s165 + $0x13c4] sm:$0xff]
      %v845 = vld [vmem:[%s165 + $0x13cc] sm:$0xff]
      %v846 = vld [vmem:[%s165 + $0x13d4] sm:$0xff]
      %v847 = vld [vmem:[%s165 + $0x13dc] sm:$0xff]
      %v848 = vld [vmem:[%s165 + $0x13e4] sm:$0xff]
      %v849 = vld [vmem:[%s165 + $0x13ec] sm:$0xff]
      %v850 = vld [vmem:[%s165 + $0x13f4] sm:$0xff]
      %v851 = vld [vmem:[%s165 + $0x13fc] sm:$0xff]
      %v852 = vld [vmem:[%s165 + $0x1404] sm:$0xff]
      %v853 = vld [vmem:[%s165 + $0x140c] sm:$0xff]
      %v854 = vld [vmem:[%s165 + $0x1414] sm:$0xff]
      %v855 = vld [vmem:[%s165 + $0x141c] sm:$0xf]
      %v856 = vld [vmem:[%s165 + $0x1420] sm:$0xff]
      %v857 = vld [vmem:[%s165 + $0x1428] sm:$0xff]
      %v858 = vld [vmem:[%s165 + $0x1430] sm:$0xff]
      %v859 = vld [vmem:[%s165 + $0x1438] sm:$0xff]
      %v860 = vld [vmem:[%s165 + $0x1440] sm:$0xff]
      %v861 = vld [vmem:[%s165 + $0x1448] sm:$0xff]
      %v862 = vld [vmem:[%s165 + $0x1450] sm:$0xff]
      %v863 = vld [vmem:[%s165 + $0x1458] sm:$0xff]
      %v864 = vld [vmem:[%s165 + $0x1460] sm:$0xff]
      %v865 = vld [vmem:[%s165 + $0x1468] sm:$0xff]
      %v866 = vld [vmem:[%s165 + $0x1470] sm:$0xff]
      %v867 = vld [vmem:[%s165 + $0x1478] sm:$0xf]
      %v868 = vld [vmem:[%s165 + $0x147c] sm:$0xff]
      %v869 = vld [vmem:[%s165 + $0x1484] sm:$0xff]
      %v870 = vld [vmem:[%s165 + $0x148c] sm:$0xff]
      %v871 = vld [vmem:[%s165 + $0x1494] sm:$0xff]
      %v872 = vld [vmem:[%s165 + $0x149c] sm:$0xff]
      %v873 = vld [vmem:[%s165 + $0x14a4] sm:$0xff]
      %v874 = vld [vmem:[%s165 + $0x14ac] sm:$0xff]
      %v875 = vld [vmem:[%s165 + $0x14b4] sm:$0xff]
      %v876 = vld [vmem:[%s165 + $0x14bc] sm:$0xff]
      %v877 = vld [vmem:[%s165 + $0x14c4] sm:$0xff]
      %v878 = vld [vmem:[%s165 + $0x14cc] sm:$0xff]
      %v879 = vld [vmem:[%s165 + $0x14d4] sm:$0xf]
      %v880 = vld [vmem:[%s165 + $0x14d8] sm:$0xff]
      %v881 = vld [vmem:[%s165 + $0x14e0] sm:$0xff]
      %v882 = vld [vmem:[%s165 + $0x14e8] sm:$0xff]
      %v883 = vld [vmem:[%s165 + $0x14f0] sm:$0xff]
      %v884 = vld [vmem:[%s165 + $0x14f8] sm:$0xff]
      %v885 = vld [vmem:[%s165 + $0x1500] sm:$0xff]
      %v886 = vld [vmem:[%s165 + $0x1508] sm:$0xff]
      %v887 = vld [vmem:[%s165 + $0x1510] sm:$0xff]
      %v888 = vld [vmem:[%s165 + $0x1518] sm:$0xff]
      %v889 = vld [vmem:[%s165 + $0x1520] sm:$0xff]
      %v890 = vld [vmem:[%s165 + $0x1528] sm:$0xff]
      %v891 = vld [vmem:[%s165 + $0x1530] sm:$0xf]
      %v892 = vld [vmem:[%s165 + $0x1534] sm:$0xff]
      %v893 = vld [vmem:[%s165 + $0x153c] sm:$0xff]
      %v894 = vld [vmem:[%s165 + $0x1544] sm:$0xff]
      %v895 = vld [vmem:[%s165 + $0x154c] sm:$0xff]
      %v896 = vld [vmem:[%s165 + $0x1554] sm:$0xff]
      %v897 = vld [vmem:[%s165 + $0x155c] sm:$0xff]
      %v898 = vld [vmem:[%s165 + $0x1564] sm:$0xff]
      %v899 = vld [vmem:[%s165 + $0x156c] sm:$0xff]
      %v900 = vld [vmem:[%s165 + $0x1574] sm:$0xff]
      %v901 = vld [vmem:[%s165 + $0x157c] sm:$0xff]
      %v902 = vld [vmem:[%s165 + $0x1584] sm:$0xff]
      %v903 = vld [vmem:[%s165 + $0x158c] sm:$0xf]
      %v904 = vld [vmem:[%s165 + $0x1590] sm:$0xff]
      %v905 = vld [vmem:[%s165 + $0x1598] sm:$0xff]
      %v906 = vld [vmem:[%s165 + $0x15a0] sm:$0xff]
      %v907 = vld [vmem:[%s165 + $0x15a8] sm:$0xff]
      %v908 = vld [vmem:[%s165 + $0x15b0] sm:$0xff]
      %v909 = vld [vmem:[%s165 + $0x15b8] sm:$0xff]
      %v910 = vld [vmem:[%s165 + $0x15c0] sm:$0xff]
      %v911 = vld [vmem:[%s165 + $0x15c8] sm:$0xff]
      %v912 = vld [vmem:[%s165 + $0x15d0] sm:$0xff]
      %v913 = vld [vmem:[%s165 + $0x15d8] sm:$0xff]
      %v914 = vld [vmem:[%s165 + $0x15e0] sm:$0xff]
      %v915 = vld [vmem:[%s165 + $0x15e8] sm:$0xf]
      %v916 = vld [vmem:[%s165 + $0x15ec] sm:$0xff]
      %v917 = vld [vmem:[%s165 + $0x15f4] sm:$0xff]
      %v918 = vld [vmem:[%s165 + $0x15fc] sm:$0xff]
      %v919 = vld [vmem:[%s165 + $0x1604] sm:$0xff]
      %v920 = vld [vmem:[%s165 + $0x160c] sm:$0xff]
      %v921 = vld [vmem:[%s165 + $0x1614] sm:$0xff]
      %v922 = vld [vmem:[%s165 + $0x161c] sm:$0xff]
      %v923 = vld [vmem:[%s165 + $0x1624] sm:$0xff]
      %v924 = vld [vmem:[%s165 + $0x162c] sm:$0xff]
      %v925 = vld [vmem:[%s165 + $0x1634] sm:$0xff]
      %v926 = vld [vmem:[%s165 + $0x163c] sm:$0xff]
      %v927 = vld [vmem:[%s165 + $0x1644] sm:$0xf]
      %v928 = vld [vmem:[%s165 + $0x1648] sm:$0xff]
      %v929 = vld [vmem:[%s165 + $0x1650] sm:$0xff]
      %v930 = vld [vmem:[%s165 + $0x1658] sm:$0xff]
      %v931 = vld [vmem:[%s165 + $0x1660] sm:$0xff]
      %v932 = vld [vmem:[%s165 + $0x1668] sm:$0xff]
      %v933 = vld [vmem:[%s165 + $0x1670] sm:$0xff]
      %v934 = vld [vmem:[%s165 + $0x1678] sm:$0xff]
      %v935 = vld [vmem:[%s165 + $0x1680] sm:$0xff]
      %v936 = vld [vmem:[%s165 + $0x1688] sm:$0xff]
      %v937 = vld [vmem:[%s165 + $0x1690] sm:$0xff]
      %v938 = vld [vmem:[%s165 + $0x1698] sm:$0xff]
      %v939 = vld [vmem:[%s165 + $0x16a0] sm:$0xf]
      %v940 = vld [vmem:[%s165 + $0x16a4] sm:$0xff]
      %v941 = vld [vmem:[%s165 + $0x16ac] sm:$0xff]
      %v942 = vld [vmem:[%s165 + $0x16b4] sm:$0xff]
      %v943 = vld [vmem:[%s165 + $0x16bc] sm:$0xff]
      %v944 = vld [vmem:[%s165 + $0x16c4] sm:$0xff]
      %v945 = vld [vmem:[%s165 + $0x16cc] sm:$0xff]
      %v946 = vld [vmem:[%s165 + $0x16d4] sm:$0xff]
      %v947 = vld [vmem:[%s165 + $0x16dc] sm:$0xff]
      %v948 = vld [vmem:[%s165 + $0x16e4] sm:$0xff]
      %v949 = vld [vmem:[%s165 + $0x16ec] sm:$0xff]
      %v950 = vld [vmem:[%s165 + $0x16f4] sm:$0xff]
      %v951 = vld [vmem:[%s165 + $0x16fc] sm:$0xf]
      %v952 = vld [vmem:[%s165 + $0x1700] sm:$0xff]
      %v953 = vld [vmem:[%s165 + $0x1708] sm:$0xff]
      %v954 = vld [vmem:[%s165 + $0x1710] sm:$0xff]
      %v955 = vld [vmem:[%s165 + $0x1718] sm:$0xff]
      %v956 = vld [vmem:[%s165 + $0x1720] sm:$0xff]
      %v957 = vld [vmem:[%s165 + $0x1728] sm:$0xff]
      %v958 = vld [vmem:[%s165 + $0x1730] sm:$0xff]
      %v959 = vld [vmem:[%s165 + $0x1738] sm:$0xff]
      %v960 = vld [vmem:[%s165 + $0x1740] sm:$0xff]
      %v961 = vld [vmem:[%s165 + $0x1748] sm:$0xff]
      %v962 = vld [vmem:[%s165 + $0x1750] sm:$0xff]
      %v963 = vld [vmem:[%s165 + $0x1758] sm:$0xf]
      %v964 = vld [vmem:[%s165 + $0x175c] sm:$0xff]
      %v965 = vld [vmem:[%s165 + $0x1764] sm:$0xff]
      %v966 = vld [vmem:[%s165 + $0x176c] sm:$0xff]
      %v967 = vld [vmem:[%s165 + $0x1774] sm:$0xff]
      %v968 = vld [vmem:[%s165 + $0x177c] sm:$0xff]
      %v969 = vld [vmem:[%s165 + $0x1784] sm:$0xff]
      %v970 = vld [vmem:[%s165 + $0x178c] sm:$0xff]
      %v971 = vld [vmem:[%s165 + $0x1794] sm:$0xff]
      %v972 = vld [vmem:[%s165 + $0x179c] sm:$0xff]
      %v973 = vld [vmem:[%s165 + $0x17a4] sm:$0xff]
      %v974 = vld [vmem:[%s165 + $0x17ac] sm:$0xff]
      %v975 = vld [vmem:[%s165 + $0x17b4] sm:$0xf]
      %v976 = vld [vmem:[%s165 + $0x17b8] sm:$0xff]
      %v977 = vld [vmem:[%s165 + $0x17c0] sm:$0xff]
      %v978 = vld [vmem:[%s165 + $0x17c8] sm:$0xff]
      %v979 = vld [vmem:[%s165 + $0x17d0] sm:$0xff]
      %v980 = vld [vmem:[%s165 + $0x17d8] sm:$0xff]
      %v981 = vld [vmem:[%s165 + $0x17e0] sm:$0xff]
      %v982 = vld [vmem:[%s165 + $0x17e8] sm:$0xff]
      %v983 = vld [vmem:[%s165 + $0x17f0] sm:$0xff]
      %v984 = vld [vmem:[%s165 + $0x17f8] sm:$0xff]
      %v985 = vld [vmem:[%s165 + $0x1800] sm:$0xff]
      %v986 = vld [vmem:[%s165 + $0x1808] sm:$0xff]
      %v987 = vld [vmem:[%s165 + $0x1810] sm:$0xf]
      %v988 = vld [vmem:[%s165 + $0x1814] sm:$0xff]
      %v989 = vld [vmem:[%s165 + $0x181c] sm:$0xff]
      %v990 = vld [vmem:[%s165 + $0x1824] sm:$0xff]
      %v991 = vld [vmem:[%s165 + $0x182c] sm:$0xff]
      %v992 = vld [vmem:[%s165 + $0x1834] sm:$0xff]
      %v993 = vld [vmem:[%s165 + $0x183c] sm:$0xff]
      %v994 = vld [vmem:[%s165 + $0x1844] sm:$0xff]
      %v995 = vld [vmem:[%s165 + $0x184c] sm:$0xff]
      %v996 = vld [vmem:[%s165 + $0x1854] sm:$0xff]
      %v997 = vld [vmem:[%s165 + $0x185c] sm:$0xff]
      %v998 = vld [vmem:[%s165 + $0x1864] sm:$0xff]
      %v999 = vld [vmem:[%s165 + $0x186c] sm:$0xf]
      %v1000 = vld [vmem:[%s165 + $0x1870] sm:$0xff]
      %v1001 = vld [vmem:[%s165 + $0x1878] sm:$0xff]
      %v1002 = vld [vmem:[%s165 + $0x1880] sm:$0xff]
      %v1003 = vld [vmem:[%s165 + $0x1888] sm:$0xff]
      %v1004 = vld [vmem:[%s165 + $0x1890] sm:$0xff]
      %v1005 = vld [vmem:[%s165 + $0x1898] sm:$0xff]
      %v1006 = vld [vmem:[%s165 + $0x18a0] sm:$0xff]
      %v1007 = vld [vmem:[%s165 + $0x18a8] sm:$0xff]
      %v1008 = vld [vmem:[%s165 + $0x18b0] sm:$0xff]
      %v1009 = vld [vmem:[%s165 + $0x18b8] sm:$0xff]
      %v1010 = vld [vmem:[%s165 + $0x18c0] sm:$0xff]
      %v1011 = vld [vmem:[%s165 + $0x18c8] sm:$0xf]
      %v1012 = vld [vmem:[%s165 + $0x18cc] sm:$0xff]
      %v1013 = vld [vmem:[%s165 + $0x18d4] sm:$0xff]
      %v1014 = vld [vmem:[%s165 + $0x18dc] sm:$0xff]
      %v1015 = vld [vmem:[%s165 + $0x18e4] sm:$0xff]
      %v1016 = vld [vmem:[%s165 + $0x18ec] sm:$0xff]
      %v1017 = vld [vmem:[%s165 + $0x18f4] sm:$0xff]
      %v1018 = vld [vmem:[%s165 + $0x18fc] sm:$0xff]
      %v1019 = vld [vmem:[%s165 + $0x1904] sm:$0xff]
      %v1020 = vld [vmem:[%s165 + $0x190c] sm:$0xff]
      %v1021 = vld [vmem:[%s165 + $0x1914] sm:$0xff]
      %v1022 = vld [vmem:[%s165 + $0x191c] sm:$0xff]
      %v1023 = vld [vmem:[%s165 + $0x1924] sm:$0xf]
      %v1024 = vld [vmem:[%s165 + $0x1928] sm:$0xff]
      %v1025 = vld [vmem:[%s165 + $0x1930] sm:$0xff]
      %v1026 = vld [vmem:[%s165 + $0x1938] sm:$0xff]
      %v1027 = vld [vmem:[%s165 + $0x1940] sm:$0xff]
      %v1028 = vld [vmem:[%s165 + $0x1948] sm:$0xff]
      %v1029 = vld [vmem:[%s165 + $0x1950] sm:$0xff]
      %v1030 = vld [vmem:[%s165 + $0x1958] sm:$0xff]
      %v1031 = vld [vmem:[%s165 + $0x1960] sm:$0xff]
      %v1032 = vld [vmem:[%s165 + $0x1968] sm:$0xff]
      %v1033 = vld [vmem:[%s165 + $0x1970] sm:$0xff]
      %v1034 = vld [vmem:[%s165 + $0x1978] sm:$0xff]
      %v1035 = vld [vmem:[%s165 + $0x1980] sm:$0xf]
      %v1036 = vld [vmem:[%s165 + $0x1984] sm:$0xff]
      %v1037 = vld [vmem:[%s165 + $0x198c] sm:$0xff]
      %v1038 = vld [vmem:[%s165 + $0x1994] sm:$0xff]
      %v1039 = vld [vmem:[%s165 + $0x199c] sm:$0xff]
      %v1040 = vld [vmem:[%s165 + $0x19a4] sm:$0xff]
      %v1041 = vld [vmem:[%s165 + $0x19ac] sm:$0xff]
      %v1042 = vld [vmem:[%s165 + $0x19b4] sm:$0xff]
      %v1043 = vld [vmem:[%s165 + $0x19bc] sm:$0xff]
      %v1044 = vld [vmem:[%s165 + $0x19c4] sm:$0xff]
      %v1045 = vld [vmem:[%s165 + $0x19cc] sm:$0xff]
      %v1046 = vld [vmem:[%s165 + $0x19d4] sm:$0xff]
      %v1047 = vld [vmem:[%s165 + $0x19dc] sm:$0xf]
      %v1048 = vld [vmem:[%s165 + $0x19e0] sm:$0xff]
      %v1049 = vld [vmem:[%s165 + $0x19e8] sm:$0xff]
      %v1050 = vld [vmem:[%s165 + $0x19f0] sm:$0xff]
      %v1051 = vld [vmem:[%s165 + $0x19f8] sm:$0xff]
      %v1052 = vld [vmem:[%s165 + $0x1a00] sm:$0xff]
      %v1053 = vld [vmem:[%s165 + $0x1a08] sm:$0xff]
      %v1054 = vld [vmem:[%s165 + $0x1a10] sm:$0xff]
      %v1055 = vld [vmem:[%s165 + $0x1a18] sm:$0xff]
      %v1056 = vld [vmem:[%s165 + $0x1a20] sm:$0xff]
      %v1057 = vld [vmem:[%s165 + $0x1a28] sm:$0xff]
      %v1058 = vld [vmem:[%s165 + $0x1a30] sm:$0xff]
      %v1059 = vld [vmem:[%s165 + $0x1a38] sm:$0xf]
      %v1060 = vld [vmem:[%s165 + $0x1a3c] sm:$0x33]
      %v1061 = vld [vmem:[%s165 + $0x1a44] sm:$0x33]
      %v1062 = vld [vmem:[%s165 + $0x1a4c] sm:$0x33]
      %v1063 = vld [vmem:[%s165 + $0x1a54] sm:$0x33]
      %v1064 = vld [vmem:[%s165 + $0x1a5c] sm:$0x33]
      %v1065 = vld [vmem:[%s165 + $0x1a64] sm:$0x33]
      %v1066 = vld [vmem:[%s165 + $0x1a6c] sm:$0x33]
      %v1067 = vld [vmem:[%s165 + $0x1a74] sm:$0x33]
      %v1068 = vld [vmem:[%s165 + $0x1a7c] sm:$0x33]
      %v1069 = vld [vmem:[%s165 + $0x1a84] sm:$0x33]
      %v1070 = vld [vmem:[%s165 + $0x1a8c] sm:$0x33]
      %v1071 = vld [vmem:[%s165 + $0x1a94] sm:$0x3]
      %v1084 = vunpack.c.l.b16 %v172
      %v1085 = vunpack.c.h.b16 %v172
      %v1086 = vunpack.c.l.b16 %v173
      %v1087 = vunpack.c.h.b16 %v173
      %v1088 = vunpack.c.l.b16 %v174
      %v1089 = vunpack.c.l.b16 %v175
      %v1090 = vunpack.c.h.b16 %v175
      %v1091 = vunpack.c.l.b16 %v176
      %v1092 = vunpack.c.h.b16 %v176
      %v1093 = vunpack.c.l.b16 %v177
      %v1094 = vunpack.c.l.b16 %v178
      %v1095 = vunpack.c.h.b16 %v178
      %v1096 = vunpack.c.l.b16 %v179
      %v1097 = vunpack.c.h.b16 %v179
      %v1098 = vunpack.c.l.b16 %v180
      %v1099 = vunpack.c.l.b16 %v181
      %v1100 = vunpack.c.h.b16 %v181
      %v1101 = vunpack.c.l.b16 %v182
      %v1102 = vunpack.c.h.b16 %v182
      %v1103 = vunpack.c.l.b16 %v183
      %v1104 = vpack.c.b16 %v1089, %v1084
      %v1105 = vpack.c.b16 %v1090, %v1085
      %v1106 = vpack.c.b16 %v1091, %v1086
      %v1107 = vpack.c.b16 %v1092, %v1087
      %v1108 = vpack.c.b16 %v1093, %v1088
      %v1109 = vpack.c.b16 %v1099, %v1094
      %v1110 = vpack.c.b16 %v1100, %v1095
      %v1111 = vpack.c.b16 %v1101, %v1096
      %v1112 = vpack.c.b16 %v1102, %v1097
      %v1113 = vpack.c.b16 %v1103, %v1098
      %v2010 = vunpack.c.l.b16 %v184
      %v2011 = vunpack.c.h.b16 %v184
      %v2012 = vunpack.c.l.b16 %v185
      %v2013 = vunpack.c.h.b16 %v185
      %v2014 = vunpack.c.l.b16 %v186
      %v2015 = vunpack.c.h.b16 %v186
      %v2016 = vunpack.c.l.b16 %v187
      %v2017 = vunpack.c.h.b16 %v187
      %v2018 = vunpack.c.l.b16 %v188
      %v2019 = vunpack.c.h.b16 %v188
      %v2020 = vunpack.c.l.b16 %v189
      %v2021 = vunpack.c.h.b16 %v189
      %v2022 = vunpack.c.l.b16 %v190
      %v2023 = vunpack.c.h.b16 %v190
      %v2024 = vunpack.c.l.b16 %v191
      %v2025 = vunpack.c.h.b16 %v191
      %v2026 = vunpack.c.l.b16 %v192
      %v2027 = vunpack.c.h.b16 %v192
      %v2028 = vunpack.c.l.b16 %v193
      %v2029 = vunpack.c.h.b16 %v193
      %v2030 = vunpack.c.l.b16 %v194
      %v2031 = vunpack.c.h.b16 %v194
      %v2032 = vunpack.c.l.b16 %v195
      %v2033 = vunpack.c.l.b16 %v196
      %v2034 = vunpack.c.h.b16 %v196
      %v2035 = vunpack.c.l.b16 %v197
      %v2036 = vunpack.c.h.b16 %v197
      %v2037 = vunpack.c.l.b16 %v198
      %v2038 = vunpack.c.h.b16 %v198
      %v2039 = vunpack.c.l.b16 %v199
      %v2040 = vunpack.c.h.b16 %v199
      %v2041 = vunpack.c.l.b16 %v200
      %v2042 = vunpack.c.h.b16 %v200
      %v2043 = vunpack.c.l.b16 %v201
      %v2044 = vunpack.c.h.b16 %v201
      %v2045 = vunpack.c.l.b16 %v202
      %v2046 = vunpack.c.h.b16 %v202
      %v2047 = vunpack.c.l.b16 %v203
      %v2048 = vunpack.c.h.b16 %v203
      %v2049 = vunpack.c.l.b16 %v204
      %v2050 = vunpack.c.h.b16 %v204
      %v2051 = vunpack.c.l.b16 %v205
      %v2052 = vunpack.c.h.b16 %v205
      %v2053 = vunpack.c.l.b16 %v206
      %v2054 = vunpack.c.h.b16 %v206
      %v2055 = vunpack.c.l.b16 %v207
      %v2056 = vunpack.c.l.b16 %v208
      %v2057 = vunpack.c.h.b16 %v208
      %v2058 = vunpack.c.l.b16 %v209
      %v2059 = vunpack.c.h.b16 %v209
      %v2060 = vunpack.c.l.b16 %v210
      %v2061 = vunpack.c.h.b16 %v210
      %v2062 = vunpack.c.l.b16 %v211
      %v2063 = vunpack.c.h.b16 %v211
      %v2064 = vunpack.c.l.b16 %v212
      %v2065 = vunpack.c.h.b16 %v212
      %v2066 = vunpack.c.l.b16 %v213
      %v2067 = vunpack.c.h.b16 %v213
      %v2068 = vunpack.c.l.b16 %v214
      %v2069 = vunpack.c.h.b16 %v214
      %v2070 = vunpack.c.l.b16 %v215
      %v2071 = vunpack.c.h.b16 %v215
      %v2072 = vunpack.c.l.b16 %v216
      %v2073 = vunpack.c.h.b16 %v216
      %v2074 = vunpack.c.l.b16 %v217
      %v2075 = vunpack.c.h.b16 %v217
      %v2076 = vunpack.c.l.b16 %v218
      %v2077 = vunpack.c.h.b16 %v218
      %v2078 = vunpack.c.l.b16 %v219
      %v2079 = vunpack.c.l.b16 %v220
      %v2080 = vunpack.c.h.b16 %v220
      %v2081 = vunpack.c.l.b16 %v221
      %v2082 = vunpack.c.h.b16 %v221
      %v2083 = vunpack.c.l.b16 %v222
      %v2084 = vunpack.c.h.b16 %v222
      %v2085 = vunpack.c.l.b16 %v223
      %v2086 = vunpack.c.h.b16 %v223
      %v2087 = vunpack.c.l.b16 %v224
      %v2088 = vunpack.c.h.b16 %v224
      %v2089 = vunpack.c.l.b16 %v225
      %v2090 = vunpack.c.h.b16 %v225
      %v2091 = vunpack.c.l.b16 %v226
      %v2092 = vunpack.c.h.b16 %v226
      %v2093 = vunpack.c.l.b16 %v227
      %v2094 = vunpack.c.h.b16 %v227
      %v2095 = vunpack.c.l.b16 %v228
      %v2096 = vunpack.c.h.b16 %v228
      %v2097 = vunpack.c.l.b16 %v229
      %v2098 = vunpack.c.h.b16 %v229
      %v2099 = vunpack.c.l.b16 %v230
      %v2100 = vunpack.c.h.b16 %v230
      %v2101 = vunpack.c.l.b16 %v231
      %v2102 = vunpack.c.l.b16 %v232
      %v2103 = vunpack.c.h.b16 %v232
      %v2104 = vunpack.c.l.b16 %v233
      %v2105 = vunpack.c.h.b16 %v233
      %v2106 = vunpack.c.l.b16 %v234
      %v2107 = vunpack.c.h.b16 %v234
      %v2108 = vunpack.c.l.b16 %v235
      %v2109 = vunpack.c.h.b16 %v235
      %v2110 = vunpack.c.l.b16 %v236
      %v2111 = vunpack.c.h.b16 %v236
      %v2112 = vunpack.c.l.b16 %v237
      %v2113 = vunpack.c.h.b16 %v237
      %v2114 = vunpack.c.l.b16 %v238
      %v2115 = vunpack.c.h.b16 %v238
      %v2116 = vunpack.c.l.b16 %v239
      %v2117 = vunpack.c.h.b16 %v239
      %v2118 = vunpack.c.l.b16 %v240
      %v2119 = vunpack.c.h.b16 %v240
      %v2120 = vunpack.c.l.b16 %v241
      %v2121 = vunpack.c.h.b16 %v241
      %v2122 = vunpack.c.l.b16 %v242
      %v2123 = vunpack.c.h.b16 %v242
      %v2124 = vunpack.c.l.b16 %v243
      %v2125 = vunpack.c.l.b16 %v244
      %v2126 = vunpack.c.h.b16 %v244
      %v2127 = vunpack.c.l.b16 %v245
      %v2128 = vunpack.c.h.b16 %v245
      %v2129 = vunpack.c.l.b16 %v246
      %v2130 = vunpack.c.h.b16 %v246
      %v2131 = vunpack.c.l.b16 %v247
      %v2132 = vunpack.c.h.b16 %v247
      %v2133 = vunpack.c.l.b16 %v248
      %v2134 = vunpack.c.h.b16 %v248
      %v2135 = vunpack.c.l.b16 %v249
      %v2136 = vunpack.c.h.b16 %v249
      %v2137 = vunpack.c.l.b16 %v250
      %v2138 = vunpack.c.h.b16 %v250
      %v2139 = vunpack.c.l.b16 %v251
      %v2140 = vunpack.c.h.b16 %v251
      %v2141 = vunpack.c.l.b16 %v252
      %v2142 = vunpack.c.h.b16 %v252
      %v2143 = vunpack.c.l.b16 %v253
      %v2144 = vunpack.c.h.b16 %v253
      %v2145 = vunpack.c.l.b16 %v254
      %v2146 = vunpack.c.h.b16 %v254
      %v2147 = vunpack.c.l.b16 %v255
      %v2148 = vunpack.c.l.b16 %v256
      %v2149 = vunpack.c.h.b16 %v256
      %v2150 = vunpack.c.l.b16 %v257
      %v2151 = vunpack.c.h.b16 %v257
      %v2152 = vunpack.c.l.b16 %v258
      %v2153 = vunpack.c.h.b16 %v258
      %v2154 = vunpack.c.l.b16 %v259
      %v2155 = vunpack.c.h.b16 %v259
      %v2156 = vunpack.c.l.b16 %v260
      %v2157 = vunpack.c.h.b16 %v260
      %v2158 = vunpack.c.l.b16 %v261
      %v2159 = vunpack.c.h.b16 %v261
      %v2160 = vunpack.c.l.b16 %v262
      %v2161 = vunpack.c.h.b16 %v262
      %v2162 = vunpack.c.l.b16 %v263
      %v2163 = vunpack.c.h.b16 %v263
      %v2164 = vunpack.c.l.b16 %v264
      %v2165 = vunpack.c.h.b16 %v264
      %v2166 = vunpack.c.l.b16 %v265
      %v2167 = vunpack.c.h.b16 %v265
      %v2168 = vunpack.c.l.b16 %v266
      %v2169 = vunpack.c.h.b16 %v266
      %v2170 = vunpack.c.l.b16 %v267
      %v2171 = vunpack.c.l.b16 %v268
      %v2172 = vunpack.c.h.b16 %v268
      %v2173 = vunpack.c.l.b16 %v269
      %v2174 = vunpack.c.h.b16 %v269
      %v2175 = vunpack.c.l.b16 %v270
      %v2176 = vunpack.c.h.b16 %v270
      %v2177 = vunpack.c.l.b16 %v271
      %v2178 = vunpack.c.h.b16 %v271
      %v2179 = vunpack.c.l.b16 %v272
      %v2180 = vunpack.c.h.b16 %v272
      %v2181 = vunpack.c.l.b16 %v273
      %v2182 = vunpack.c.h.b16 %v273
      %v2183 = vunpack.c.l.b16 %v274
      %v2184 = vunpack.c.h.b16 %v274
      %v2185 = vunpack.c.l.b16 %v275
      %v2186 = vunpack.c.h.b16 %v275
      %v2187 = vunpack.c.l.b16 %v276
      %v2188 = vunpack.c.h.b16 %v276
      %v2189 = vunpack.c.l.b16 %v277
      %v2190 = vunpack.c.h.b16 %v277
      %v2191 = vunpack.c.l.b16 %v278
      %v2192 = vunpack.c.h.b16 %v278
      %v2193 = vunpack.c.l.b16 %v279
      %v2194 = vunpack.c.l.b16 %v280
      %v2195 = vunpack.c.h.b16 %v280
      %v2196 = vunpack.c.l.b16 %v281
      %v2197 = vunpack.c.h.b16 %v281
      %v2198 = vunpack.c.l.b16 %v282
      %v2199 = vunpack.c.h.b16 %v282
      %v2200 = vunpack.c.l.b16 %v283
      %v2201 = vunpack.c.h.b16 %v283
      %v2202 = vunpack.c.l.b16 %v284
      %v2203 = vunpack.c.h.b16 %v284
      %v2204 = vunpack.c.l.b16 %v285
      %v2205 = vunpack.c.h.b16 %v285
      %v2206 = vunpack.c.l.b16 %v286
      %v2207 = vunpack.c.h.b16 %v286
      %v2208 = vunpack.c.l.b16 %v287
      %v2209 = vunpack.c.h.b16 %v287
      %v2210 = vunpack.c.l.b16 %v288
      %v2211 = vunpack.c.h.b16 %v288
      %v2212 = vunpack.c.l.b16 %v289
      %v2213 = vunpack.c.h.b16 %v289
      %v2214 = vunpack.c.l.b16 %v290
      %v2215 = vunpack.c.h.b16 %v290
      %v2216 = vunpack.c.l.b16 %v291
      %v2217 = vunpack.c.l.b16 %v292
      %v2218 = vunpack.c.h.b16 %v292
      %v2219 = vunpack.c.l.b16 %v293
      %v2220 = vunpack.c.h.b16 %v293
      %v2221 = vunpack.c.l.b16 %v294
      %v2222 = vunpack.c.h.b16 %v294
      %v2223 = vunpack.c.l.b16 %v295
      %v2224 = vunpack.c.h.b16 %v295
      %v2225 = vunpack.c.l.b16 %v296
      %v2226 = vunpack.c.h.b16 %v296
      %v2227 = vunpack.c.l.b16 %v297
      %v2228 = vunpack.c.h.b16 %v297
      %v2229 = vunpack.c.l.b16 %v298
      %v2230 = vunpack.c.h.b16 %v298
      %v2231 = vunpack.c.l.b16 %v299
      %v2232 = vunpack.c.h.b16 %v299
      %v2233 = vunpack.c.l.b16 %v300
      %v2234 = vunpack.c.h.b16 %v300
      %v2235 = vunpack.c.l.b16 %v301
      %v2236 = vunpack.c.h.b16 %v301
      %v2237 = vunpack.c.l.b16 %v302
      %v2238 = vunpack.c.h.b16 %v302
      %v2239 = vunpack.c.l.b16 %v303
      %v2240 = vunpack.c.l.b16 %v304
      %v2241 = vunpack.c.h.b16 %v304
      %v2242 = vunpack.c.l.b16 %v305
      %v2243 = vunpack.c.h.b16 %v305
      %v2244 = vunpack.c.l.b16 %v306
      %v2245 = vunpack.c.h.b16 %v306
      %v2246 = vunpack.c.l.b16 %v307
      %v2247 = vunpack.c.h.b16 %v307
      %v2248 = vunpack.c.l.b16 %v308
      %v2249 = vunpack.c.h.b16 %v308
      %v2250 = vunpack.c.l.b16 %v309
      %v2251 = vunpack.c.h.b16 %v309
      %v2252 = vunpack.c.l.b16 %v310
      %v2253 = vunpack.c.h.b16 %v310
      %v2254 = vunpack.c.l.b16 %v311
      %v2255 = vunpack.c.h.b16 %v311
      %v2256 = vunpack.c.l.b16 %v312
      %v2257 = vunpack.c.h.b16 %v312
      %v2258 = vunpack.c.l.b16 %v313
      %v2259 = vunpack.c.h.b16 %v313
      %v2260 = vunpack.c.l.b16 %v314
      %v2261 = vunpack.c.h.b16 %v314
      %v2262 = vunpack.c.l.b16 %v315
      %v2263 = vunpack.c.l.b16 %v316
      %v2264 = vunpack.c.h.b16 %v316
      %v2265 = vunpack.c.l.b16 %v317
      %v2266 = vunpack.c.h.b16 %v317
      %v2267 = vunpack.c.l.b16 %v318
      %v2268 = vunpack.c.h.b16 %v318
      %v2269 = vunpack.c.l.b16 %v319
      %v2270 = vunpack.c.h.b16 %v319
      %v2271 = vunpack.c.l.b16 %v320
      %v2272 = vunpack.c.h.b16 %v320
      %v2273 = vunpack.c.l.b16 %v321
      %v2274 = vunpack.c.h.b16 %v321
      %v2275 = vunpack.c.l.b16 %v322
      %v2276 = vunpack.c.h.b16 %v322
      %v2277 = vunpack.c.l.b16 %v323
      %v2278 = vunpack.c.h.b16 %v323
      %v2279 = vunpack.c.l.b16 %v324
      %v2280 = vunpack.c.h.b16 %v324
      %v2281 = vunpack.c.l.b16 %v325
      %v2282 = vunpack.c.h.b16 %v325
      %v2283 = vunpack.c.l.b16 %v326
      %v2284 = vunpack.c.h.b16 %v326
      %v2285 = vunpack.c.l.b16 %v327
      %v2286 = vunpack.c.l.b16 %v328
      %v2287 = vunpack.c.h.b16 %v328
      %v2288 = vunpack.c.l.b16 %v329
      %v2289 = vunpack.c.h.b16 %v329
      %v2290 = vunpack.c.l.b16 %v330
      %v2291 = vunpack.c.h.b16 %v330
      %v2292 = vunpack.c.l.b16 %v331
      %v2293 = vunpack.c.h.b16 %v331
      %v2294 = vunpack.c.l.b16 %v332
      %v2295 = vunpack.c.h.b16 %v332
      %v2296 = vunpack.c.l.b16 %v333
      %v2297 = vunpack.c.h.b16 %v333
      %v2298 = vunpack.c.l.b16 %v334
      %v2299 = vunpack.c.h.b16 %v334
      %v2300 = vunpack.c.l.b16 %v335
      %v2301 = vunpack.c.h.b16 %v335
      %v2302 = vunpack.c.l.b16 %v336
      %v2303 = vunpack.c.h.b16 %v336
      %v2304 = vunpack.c.l.b16 %v337
      %v2305 = vunpack.c.h.b16 %v337
      %v2306 = vunpack.c.l.b16 %v338
      %v2307 = vunpack.c.h.b16 %v338
      %v2308 = vunpack.c.l.b16 %v339
      %v2309 = vunpack.c.l.b16 %v340
      %v2310 = vunpack.c.h.b16 %v340
      %v2311 = vunpack.c.l.b16 %v341
      %v2312 = vunpack.c.h.b16 %v341
      %v2313 = vunpack.c.l.b16 %v342
      %v2314 = vunpack.c.h.b16 %v342
      %v2315 = vunpack.c.l.b16 %v343
      %v2316 = vunpack.c.h.b16 %v343
      %v2317 = vunpack.c.l.b16 %v344
      %v2318 = vunpack.c.h.b16 %v344
      %v2319 = vunpack.c.l.b16 %v345
      %v2320 = vunpack.c.h.b16 %v345
      %v2321 = vunpack.c.l.b16 %v346
      %v2322 = vunpack.c.h.b16 %v346
      %v2323 = vunpack.c.l.b16 %v347
      %v2324 = vunpack.c.h.b16 %v347
      %v2325 = vunpack.c.l.b16 %v348
      %v2326 = vunpack.c.h.b16 %v348
      %v2327 = vunpack.c.l.b16 %v349
      %v2328 = vunpack.c.h.b16 %v349
      %v2329 = vunpack.c.l.b16 %v350
      %v2330 = vunpack.c.h.b16 %v350
      %v2331 = vunpack.c.l.b16 %v351
      %v2332 = vunpack.c.l.b16 %v352
      %v2333 = vunpack.c.h.b16 %v352
      %v2334 = vunpack.c.l.b16 %v353
      %v2335 = vunpack.c.h.b16 %v353
      %v2336 = vunpack.c.l.b16 %v354
      %v2337 = vunpack.c.h.b16 %v354
      %v2338 = vunpack.c.l.b16 %v355
      %v2339 = vunpack.c.h.b16 %v355
      %v2340 = vunpack.c.l.b16 %v356
      %v2341 = vunpack.c.h.b16 %v356
      %v2342 = vunpack.c.l.b16 %v357
      %v2343 = vunpack.c.h.b16 %v357
      %v2344 = vunpack.c.l.b16 %v358
      %v2345 = vunpack.c.h.b16 %v358
      %v2346 = vunpack.c.l.b16 %v359
      %v2347 = vunpack.c.h.b16 %v359
      %v2348 = vunpack.c.l.b16 %v360
      %v2349 = vunpack.c.h.b16 %v360
      %v2350 = vunpack.c.l.b16 %v361
      %v2351 = vunpack.c.h.b16 %v361
      %v2352 = vunpack.c.l.b16 %v362
      %v2353 = vunpack.c.h.b16 %v362
      %v2354 = vunpack.c.l.b16 %v363
      %v2355 = vunpack.c.l.b16 %v364
      %v2356 = vunpack.c.h.b16 %v364
      %v2357 = vunpack.c.l.b16 %v365
      %v2358 = vunpack.c.h.b16 %v365
      %v2359 = vunpack.c.l.b16 %v366
      %v2360 = vunpack.c.h.b16 %v366
      %v2361 = vunpack.c.l.b16 %v367
      %v2362 = vunpack.c.h.b16 %v367
      %v2363 = vunpack.c.l.b16 %v368
      %v2364 = vunpack.c.h.b16 %v368
      %v2365 = vunpack.c.l.b16 %v369
      %v2366 = vunpack.c.h.b16 %v369
      %v2367 = vunpack.c.l.b16 %v370
      %v2368 = vunpack.c.h.b16 %v370
      %v2369 = vunpack.c.l.b16 %v371
      %v2370 = vunpack.c.h.b16 %v371
      %v2371 = vunpack.c.l.b16 %v372
      %v2372 = vunpack.c.h.b16 %v372
      %v2373 = vunpack.c.l.b16 %v373
      %v2374 = vunpack.c.h.b16 %v373
      %v2375 = vunpack.c.l.b16 %v374
      %v2376 = vunpack.c.h.b16 %v374
      %v2377 = vunpack.c.l.b16 %v375
      %v2378 = vunpack.c.l.b16 %v376
      %v2379 = vunpack.c.h.b16 %v376
      %v2380 = vunpack.c.l.b16 %v377
      %v2381 = vunpack.c.h.b16 %v377
      %v2382 = vunpack.c.l.b16 %v378
      %v2383 = vunpack.c.h.b16 %v378
      %v2384 = vunpack.c.l.b16 %v379
      %v2385 = vunpack.c.h.b16 %v379
      %v2386 = vunpack.c.l.b16 %v380
      %v2387 = vunpack.c.h.b16 %v380
      %v2388 = vunpack.c.l.b16 %v381
      %v2389 = vunpack.c.h.b16 %v381
      %v2390 = vunpack.c.l.b16 %v382
      %v2391 = vunpack.c.h.b16 %v382
      %v2392 = vunpack.c.l.b16 %v383
      %v2393 = vunpack.c.h.b16 %v383
      %v2394 = vunpack.c.l.b16 %v384
      %v2395 = vunpack.c.h.b16 %v384
      %v2396 = vunpack.c.l.b16 %v385
      %v2397 = vunpack.c.h.b16 %v385
      %v2398 = vunpack.c.l.b16 %v386
      %v2399 = vunpack.c.h.b16 %v386
      %v2400 = vunpack.c.l.b16 %v387
      %v2401 = vunpack.c.l.b16 %v388
      %v2402 = vunpack.c.h.b16 %v388
      %v2403 = vunpack.c.l.b16 %v389
      %v2404 = vunpack.c.h.b16 %v389
      %v2405 = vunpack.c.l.b16 %v390
      %v2406 = vunpack.c.h.b16 %v390
      %v2407 = vunpack.c.l.b16 %v391
      %v2408 = vunpack.c.h.b16 %v391
      %v2409 = vunpack.c.l.b16 %v392
      %v2410 = vunpack.c.h.b16 %v392
      %v2411 = vunpack.c.l.b16 %v393
      %v2412 = vunpack.c.h.b16 %v393
      %v2413 = vunpack.c.l.b16 %v394
      %v2414 = vunpack.c.h.b16 %v394
      %v2415 = vunpack.c.l.b16 %v395
      %v2416 = vunpack.c.h.b16 %v395
      %v2417 = vunpack.c.l.b16 %v396
      %v2418 = vunpack.c.h.b16 %v396
      %v2419 = vunpack.c.l.b16 %v397
      %v2420 = vunpack.c.h.b16 %v397
      %v2421 = vunpack.c.l.b16 %v398
      %v2422 = vunpack.c.h.b16 %v398
      %v2423 = vunpack.c.l.b16 %v399
      %v2424 = vunpack.c.l.b16 %v400
      %v2425 = vunpack.c.h.b16 %v400
      %v2426 = vunpack.c.l.b16 %v401
      %v2427 = vunpack.c.h.b16 %v401
      %v2428 = vunpack.c.l.b16 %v402
      %v2429 = vunpack.c.h.b16 %v402
      %v2430 = vunpack.c.l.b16 %v403
      %v2431 = vunpack.c.h.b16 %v403
      %v2432 = vunpack.c.l.b16 %v404
      %v2433 = vunpack.c.h.b16 %v404
      %v2434 = vunpack.c.l.b16 %v405
      %v2435 = vunpack.c.h.b16 %v405
      %v2436 = vunpack.c.l.b16 %v406
      %v2437 = vunpack.c.h.b16 %v406
      %v2438 = vunpack.c.l.b16 %v407
      %v2439 = vunpack.c.h.b16 %v407
      %v2440 = vunpack.c.l.b16 %v408
      %v2441 = vunpack.c.h.b16 %v408
      %v2442 = vunpack.c.l.b16 %v409
      %v2443 = vunpack.c.h.b16 %v409
      %v2444 = vunpack.c.l.b16 %v410
      %v2445 = vunpack.c.h.b16 %v410
      %v2446 = vunpack.c.l.b16 %v411
      %v2447 = vunpack.c.l.b16 %v412
      %v2448 = vunpack.c.h.b16 %v412
      %v2449 = vunpack.c.l.b16 %v413
      %v2450 = vunpack.c.h.b16 %v413
      %v2451 = vunpack.c.l.b16 %v414
      %v2452 = vunpack.c.h.b16 %v414
      %v2453 = vunpack.c.l.b16 %v415
      %v2454 = vunpack.c.h.b16 %v415
      %v2455 = vunpack.c.l.b16 %v416
      %v2456 = vunpack.c.h.b16 %v416
      %v2457 = vunpack.c.l.b16 %v417
      %v2458 = vunpack.c.h.b16 %v417
      %v2459 = vunpack.c.l.b16 %v418
      %v2460 = vunpack.c.h.b16 %v418
      %v2461 = vunpack.c.l.b16 %v419
      %v2462 = vunpack.c.h.b16 %v419
      %v2463 = vunpack.c.l.b16 %v420
      %v2464 = vunpack.c.h.b16 %v420
      %v2465 = vunpack.c.l.b16 %v421
      %v2466 = vunpack.c.h.b16 %v421
      %v2467 = vunpack.c.l.b16 %v422
      %v2468 = vunpack.c.h.b16 %v422
      %v2469 = vunpack.c.l.b16 %v423
      %v2470 = vunpack.c.l.b16 %v424
      %v2471 = vunpack.c.h.b16 %v424
      %v2472 = vunpack.c.l.b16 %v425
      %v2473 = vunpack.c.h.b16 %v425
      %v2474 = vunpack.c.l.b16 %v426
      %v2475 = vunpack.c.h.b16 %v426
      %v2476 = vunpack.c.l.b16 %v427
      %v2477 = vunpack.c.h.b16 %v427
      %v2478 = vunpack.c.l.b16 %v428
      %v2479 = vunpack.c.h.b16 %v428
      %v2480 = vunpack.c.l.b16 %v429
      %v2481 = vunpack.c.h.b16 %v429
      %v2482 = vunpack.c.l.b16 %v430
      %v2483 = vunpack.c.h.b16 %v430
      %v2484 = vunpack.c.l.b16 %v431
      %v2485 = vunpack.c.h.b16 %v431
      %v2486 = vunpack.c.l.b16 %v432
      %v2487 = vunpack.c.h.b16 %v432
      %v2488 = vunpack.c.l.b16 %v433
      %v2489 = vunpack.c.h.b16 %v433
      %v2490 = vunpack.c.l.b16 %v434
      %v2491 = vunpack.c.h.b16 %v434
      %v2492 = vunpack.c.l.b16 %v435
      %v2493 = vunpack.c.l.b16 %v436
      %v2494 = vunpack.c.h.b16 %v436
      %v2495 = vunpack.c.l.b16 %v437
      %v2496 = vunpack.c.h.b16 %v437
      %v2497 = vunpack.c.l.b16 %v438
      %v2498 = vunpack.c.h.b16 %v438
      %v2499 = vunpack.c.l.b16 %v439
      %v2500 = vunpack.c.h.b16 %v439
      %v2501 = vunpack.c.l.b16 %v440
      %v2502 = vunpack.c.h.b16 %v440
      %v2503 = vunpack.c.l.b16 %v441
      %v2504 = vunpack.c.h.b16 %v441
      %v2505 = vunpack.c.l.b16 %v442
      %v2506 = vunpack.c.h.b16 %v442
      %v2507 = vunpack.c.l.b16 %v443
      %v2508 = vunpack.c.h.b16 %v443
      %v2509 = vunpack.c.l.b16 %v444
      %v2510 = vunpack.c.h.b16 %v444
      %v2511 = vunpack.c.l.b16 %v445
      %v2512 = vunpack.c.h.b16 %v445
      %v2513 = vunpack.c.l.b16 %v446
      %v2514 = vunpack.c.h.b16 %v446
      %v2515 = vunpack.c.l.b16 %v447
      %v2516 = vunpack.c.l.b16 %v448
      %v2517 = vunpack.c.h.b16 %v448
      %v2518 = vunpack.c.l.b16 %v449
      %v2519 = vunpack.c.h.b16 %v449
      %v2520 = vunpack.c.l.b16 %v450
      %v2521 = vunpack.c.h.b16 %v450
      %v2522 = vunpack.c.l.b16 %v451
      %v2523 = vunpack.c.h.b16 %v451
      %v2524 = vunpack.c.l.b16 %v452
      %v2525 = vunpack.c.h.b16 %v452
      %v2526 = vunpack.c.l.b16 %v453
      %v2527 = vunpack.c.h.b16 %v453
      %v2528 = vunpack.c.l.b16 %v454
      %v2529 = vunpack.c.h.b16 %v454
      %v2530 = vunpack.c.l.b16 %v455
      %v2531 = vunpack.c.h.b16 %v455
      %v2532 = vunpack.c.l.b16 %v456
      %v2533 = vunpack.c.h.b16 %v456
      %v2534 = vunpack.c.l.b16 %v457
      %v2535 = vunpack.c.h.b16 %v457
      %v2536 = vunpack.c.l.b16 %v458
      %v2537 = vunpack.c.h.b16 %v458
      %v2538 = vunpack.c.l.b16 %v459
      %v2539 = vunpack.c.l.b16 %v460
      %v2540 = vunpack.c.h.b16 %v460
      %v2541 = vunpack.c.l.b16 %v461
      %v2542 = vunpack.c.h.b16 %v461
      %v2543 = vunpack.c.l.b16 %v462
      %v2544 = vunpack.c.h.b16 %v462
      %v2545 = vunpack.c.l.b16 %v463
      %v2546 = vunpack.c.h.b16 %v463
      %v2547 = vunpack.c.l.b16 %v464
      %v2548 = vunpack.c.h.b16 %v464
      %v2549 = vunpack.c.l.b16 %v465
      %v2550 = vunpack.c.h.b16 %v465
      %v2551 = vunpack.c.l.b16 %v466
      %v2552 = vunpack.c.h.b16 %v466
      %v2553 = vunpack.c.l.b16 %v467
      %v2554 = vunpack.c.h.b16 %v467
      %v2555 = vunpack.c.l.b16 %v468
      %v2556 = vunpack.c.h.b16 %v468
      %v2557 = vunpack.c.l.b16 %v469
      %v2558 = vunpack.c.h.b16 %v469
      %v2559 = vunpack.c.l.b16 %v470
      %v2560 = vunpack.c.h.b16 %v470
      %v2561 = vunpack.c.l.b16 %v471
      %v2562 = vunpack.c.l.b16 %v472
      %v2563 = vunpack.c.h.b16 %v472
      %v2564 = vunpack.c.l.b16 %v473
      %v2565 = vunpack.c.h.b16 %v473
      %v2566 = vunpack.c.l.b16 %v474
      %v2567 = vunpack.c.h.b16 %v474
      %v2568 = vunpack.c.l.b16 %v475
      %v2569 = vunpack.c.h.b16 %v475
      %v2570 = vunpack.c.l.b16 %v476
      %v2571 = vunpack.c.h.b16 %v476
      %v2572 = vunpack.c.l.b16 %v477
      %v2573 = vunpack.c.h.b16 %v477
      %v2574 = vunpack.c.l.b16 %v478
      %v2575 = vunpack.c.h.b16 %v478
      %v2576 = vunpack.c.l.b16 %v479
      %v2577 = vunpack.c.h.b16 %v479
      %v2578 = vunpack.c.l.b16 %v480
      %v2579 = vunpack.c.h.b16 %v480
      %v2580 = vunpack.c.l.b16 %v481
      %v2581 = vunpack.c.h.b16 %v481
      %v2582 = vunpack.c.l.b16 %v482
      %v2583 = vunpack.c.h.b16 %v482
      %v2584 = vunpack.c.l.b16 %v483
      %v2585 = vunpack.c.l.b16 %v484
      %v2586 = vunpack.c.h.b16 %v484
      %v2587 = vunpack.c.l.b16 %v485
      %v2588 = vunpack.c.h.b16 %v485
      %v2589 = vunpack.c.l.b16 %v486
      %v2590 = vunpack.c.h.b16 %v486
      %v2591 = vunpack.c.l.b16 %v487
      %v2592 = vunpack.c.h.b16 %v487
      %v2593 = vunpack.c.l.b16 %v488
      %v2594 = vunpack.c.h.b16 %v488
      %v2595 = vunpack.c.l.b16 %v489
      %v2596 = vunpack.c.h.b16 %v489
      %v2597 = vunpack.c.l.b16 %v490
      %v2598 = vunpack.c.h.b16 %v490
      %v2599 = vunpack.c.l.b16 %v491
      %v2600 = vunpack.c.h.b16 %v491
      %v2601 = vunpack.c.l.b16 %v492
      %v2602 = vunpack.c.h.b16 %v492
      %v2603 = vunpack.c.l.b16 %v493
      %v2604 = vunpack.c.h.b16 %v493
      %v2605 = vunpack.c.l.b16 %v494
      %v2606 = vunpack.c.h.b16 %v494
      %v2607 = vunpack.c.l.b16 %v495
      %v2608 = vunpack.c.l.b16 %v496
      %v2609 = vunpack.c.h.b16 %v496
      %v2610 = vunpack.c.l.b16 %v497
      %v2611 = vunpack.c.h.b16 %v497
      %v2612 = vunpack.c.l.b16 %v498
      %v2613 = vunpack.c.h.b16 %v498
      %v2614 = vunpack.c.l.b16 %v499
      %v2615 = vunpack.c.h.b16 %v499
      %v2616 = vunpack.c.l.b16 %v500
      %v2617 = vunpack.c.h.b16 %v500
      %v2618 = vunpack.c.l.b16 %v501
      %v2619 = vunpack.c.h.b16 %v501
      %v2620 = vunpack.c.l.b16 %v502
      %v2621 = vunpack.c.h.b16 %v502
      %v2622 = vunpack.c.l.b16 %v503
      %v2623 = vunpack.c.h.b16 %v503
      %v2624 = vunpack.c.l.b16 %v504
      %v2625 = vunpack.c.h.b16 %v504
      %v2626 = vunpack.c.l.b16 %v505
      %v2627 = vunpack.c.h.b16 %v505
      %v2628 = vunpack.c.l.b16 %v506
      %v2629 = vunpack.c.h.b16 %v506
      %v2630 = vunpack.c.l.b16 %v507
      %v2631 = vunpack.c.l.b16 %v508
      %v2632 = vunpack.c.h.b16 %v508
      %v2633 = vunpack.c.l.b16 %v509
      %v2634 = vunpack.c.h.b16 %v509
      %v2635 = vunpack.c.l.b16 %v510
      %v2636 = vunpack.c.h.b16 %v510
      %v2637 = vunpack.c.l.b16 %v511
      %v2638 = vunpack.c.h.b16 %v511
      %v2639 = vunpack.c.l.b16 %v512
      %v2640 = vunpack.c.h.b16 %v512
      %v2641 = vunpack.c.l.b16 %v513
      %v2642 = vunpack.c.h.b16 %v513
      %v2643 = vunpack.c.l.b16 %v514
      %v2644 = vunpack.c.h.b16 %v514
      %v2645 = vunpack.c.l.b16 %v515
      %v2646 = vunpack.c.h.b16 %v515
      %v2647 = vunpack.c.l.b16 %v516
      %v2648 = vunpack.c.h.b16 %v516
      %v2649 = vunpack.c.l.b16 %v517
      %v2650 = vunpack.c.h.b16 %v517
      %v2651 = vunpack.c.l.b16 %v518
      %v2652 = vunpack.c.h.b16 %v518
      %v2653 = vunpack.c.l.b16 %v519
      %v2654 = vunpack.c.l.b16 %v520
      %v2655 = vunpack.c.h.b16 %v520
      %v2656 = vunpack.c.l.b16 %v521
      %v2657 = vunpack.c.h.b16 %v521
      %v2658 = vunpack.c.l.b16 %v522
      %v2659 = vunpack.c.h.b16 %v522
      %v2660 = vunpack.c.l.b16 %v523
      %v2661 = vunpack.c.h.b16 %v523
      %v2662 = vunpack.c.l.b16 %v524
      %v2663 = vunpack.c.h.b16 %v524
      %v2664 = vunpack.c.l.b16 %v525
      %v2665 = vunpack.c.h.b16 %v525
      %v2666 = vunpack.c.l.b16 %v526
      %v2667 = vunpack.c.h.b16 %v526
      %v2668 = vunpack.c.l.b16 %v527
      %v2669 = vunpack.c.h.b16 %v527
      %v2670 = vunpack.c.l.b16 %v528
      %v2671 = vunpack.c.h.b16 %v528
      %v2672 = vunpack.c.l.b16 %v529
      %v2673 = vunpack.c.h.b16 %v529
      %v2674 = vunpack.c.l.b16 %v530
      %v2675 = vunpack.c.h.b16 %v530
      %v2676 = vunpack.c.l.b16 %v531
      %v2677 = vunpack.c.l.b16 %v532
      %v2678 = vunpack.c.h.b16 %v532
      %v2679 = vunpack.c.l.b16 %v533
      %v2680 = vunpack.c.h.b16 %v533
      %v2681 = vunpack.c.l.b16 %v534
      %v2682 = vunpack.c.h.b16 %v534
      %v2683 = vunpack.c.l.b16 %v535
      %v2684 = vunpack.c.h.b16 %v535
      %v2685 = vunpack.c.l.b16 %v536
      %v2686 = vunpack.c.h.b16 %v536
      %v2687 = vunpack.c.l.b16 %v537
      %v2688 = vunpack.c.h.b16 %v537
      %v2689 = vunpack.c.l.b16 %v538
      %v2690 = vunpack.c.h.b16 %v538
      %v2691 = vunpack.c.l.b16 %v539
      %v2692 = vunpack.c.h.b16 %v539
      %v2693 = vunpack.c.l.b16 %v540
      %v2694 = vunpack.c.h.b16 %v540
      %v2695 = vunpack.c.l.b16 %v541
      %v2696 = vunpack.c.h.b16 %v541
      %v2697 = vunpack.c.l.b16 %v542
      %v2698 = vunpack.c.h.b16 %v542
      %v2699 = vunpack.c.l.b16 %v543
      %v2700 = vunpack.c.l.b16 %v544
      %v2701 = vunpack.c.h.b16 %v544
      %v2702 = vunpack.c.l.b16 %v545
      %v2703 = vunpack.c.h.b16 %v545
      %v2704 = vunpack.c.l.b16 %v546
      %v2705 = vunpack.c.h.b16 %v546
      %v2706 = vunpack.c.l.b16 %v547
      %v2707 = vunpack.c.h.b16 %v547
      %v2708 = vunpack.c.l.b16 %v548
      %v2709 = vunpack.c.h.b16 %v548
      %v2710 = vunpack.c.l.b16 %v549
      %v2711 = vunpack.c.h.b16 %v549
      %v2712 = vunpack.c.l.b16 %v550
      %v2713 = vunpack.c.h.b16 %v550
      %v2714 = vunpack.c.l.b16 %v551
      %v2715 = vunpack.c.h.b16 %v551
      %v2716 = vunpack.c.l.b16 %v552
      %v2717 = vunpack.c.h.b16 %v552
      %v2718 = vunpack.c.l.b16 %v553
      %v2719 = vunpack.c.h.b16 %v553
      %v2720 = vunpack.c.l.b16 %v554
      %v2721 = vunpack.c.h.b16 %v554
      %v2722 = vunpack.c.l.b16 %v555
      %v2723 = vunpack.c.l.b16 %v556
      %v2724 = vunpack.c.h.b16 %v556
      %v2725 = vunpack.c.l.b16 %v557
      %v2726 = vunpack.c.h.b16 %v557
      %v2727 = vunpack.c.l.b16 %v558
      %v2728 = vunpack.c.h.b16 %v558
      %v2729 = vunpack.c.l.b16 %v559
      %v2730 = vunpack.c.h.b16 %v559
      %v2731 = vunpack.c.l.b16 %v560
      %v2732 = vunpack.c.h.b16 %v560
      %v2733 = vunpack.c.l.b16 %v561
      %v2734 = vunpack.c.h.b16 %v561
      %v2735 = vunpack.c.l.b16 %v562
      %v2736 = vunpack.c.h.b16 %v562
      %v2737 = vunpack.c.l.b16 %v563
      %v2738 = vunpack.c.h.b16 %v563
      %v2739 = vunpack.c.l.b16 %v564
      %v2740 = vunpack.c.h.b16 %v564
      %v2741 = vunpack.c.l.b16 %v565
      %v2742 = vunpack.c.h.b16 %v565
      %v2743 = vunpack.c.l.b16 %v566
      %v2744 = vunpack.c.h.b16 %v566
      %v2745 = vunpack.c.l.b16 %v567
      %v2746 = vunpack.c.l.b16 %v568
      %v2747 = vunpack.c.h.b16 %v568
      %v2748 = vunpack.c.l.b16 %v569
      %v2749 = vunpack.c.h.b16 %v569
      %v2750 = vunpack.c.l.b16 %v570
      %v2751 = vunpack.c.h.b16 %v570
      %v2752 = vunpack.c.l.b16 %v571
      %v2753 = vunpack.c.h.b16 %v571
      %v2754 = vunpack.c.l.b16 %v572
      %v2755 = vunpack.c.h.b16 %v572
      %v2756 = vunpack.c.l.b16 %v573
      %v2757 = vunpack.c.h.b16 %v573
      %v2758 = vunpack.c.l.b16 %v574
      %v2759 = vunpack.c.h.b16 %v574
      %v2760 = vunpack.c.l.b16 %v575
      %v2761 = vunpack.c.h.b16 %v575
      %v2762 = vunpack.c.l.b16 %v576
      %v2763 = vunpack.c.h.b16 %v576
      %v2764 = vunpack.c.l.b16 %v577
      %v2765 = vunpack.c.h.b16 %v577
      %v2766 = vunpack.c.l.b16 %v578
      %v2767 = vunpack.c.h.b16 %v578
      %v2768 = vunpack.c.l.b16 %v579
      %v2769 = vunpack.c.l.b16 %v580
      %v2770 = vunpack.c.h.b16 %v580
      %v2771 = vunpack.c.l.b16 %v581
      %v2772 = vunpack.c.h.b16 %v581
      %v2773 = vunpack.c.l.b16 %v582
      %v2774 = vunpack.c.h.b16 %v582
      %v2775 = vunpack.c.l.b16 %v583
      %v2776 = vunpack.c.h.b16 %v583
      %v2777 = vunpack.c.l.b16 %v584
      %v2778 = vunpack.c.h.b16 %v584
      %v2779 = vunpack.c.l.b16 %v585
      %v2780 = vunpack.c.h.b16 %v585
      %v2781 = vunpack.c.l.b16 %v586
      %v2782 = vunpack.c.h.b16 %v586
      %v2783 = vunpack.c.l.b16 %v587
      %v2784 = vunpack.c.h.b16 %v587
      %v2785 = vunpack.c.l.b16 %v588
      %v2786 = vunpack.c.h.b16 %v588
      %v2787 = vunpack.c.l.b16 %v589
      %v2788 = vunpack.c.h.b16 %v589
      %v2789 = vunpack.c.l.b16 %v590
      %v2790 = vunpack.c.h.b16 %v590
      %v2791 = vunpack.c.l.b16 %v591
      %v2792 = vunpack.c.l.b16 %v592
      %v2793 = vunpack.c.h.b16 %v592
      %v2794 = vunpack.c.l.b16 %v593
      %v2795 = vunpack.c.h.b16 %v593
      %v2796 = vunpack.c.l.b16 %v594
      %v2797 = vunpack.c.h.b16 %v594
      %v2798 = vunpack.c.l.b16 %v595
      %v2799 = vunpack.c.h.b16 %v595
      %v2800 = vunpack.c.l.b16 %v596
      %v2801 = vunpack.c.h.b16 %v596
      %v2802 = vunpack.c.l.b16 %v597
      %v2803 = vunpack.c.h.b16 %v597
      %v2804 = vunpack.c.l.b16 %v598
      %v2805 = vunpack.c.h.b16 %v598
      %v2806 = vunpack.c.l.b16 %v599
      %v2807 = vunpack.c.h.b16 %v599
      %v2808 = vunpack.c.l.b16 %v600
      %v2809 = vunpack.c.h.b16 %v600
      %v2810 = vunpack.c.l.b16 %v601
      %v2811 = vunpack.c.h.b16 %v601
      %v2812 = vunpack.c.l.b16 %v602
      %v2813 = vunpack.c.h.b16 %v602
      %v2814 = vunpack.c.l.b16 %v603
      %v2815 = vunpack.c.l.b16 %v604
      %v2816 = vunpack.c.h.b16 %v604
      %v2817 = vunpack.c.l.b16 %v605
      %v2818 = vunpack.c.h.b16 %v605
      %v2819 = vunpack.c.l.b16 %v606
      %v2820 = vunpack.c.h.b16 %v606
      %v2821 = vunpack.c.l.b16 %v607
      %v2822 = vunpack.c.h.b16 %v607
      %v2823 = vunpack.c.l.b16 %v608
      %v2824 = vunpack.c.h.b16 %v608
      %v2825 = vunpack.c.l.b16 %v609
      %v2826 = vunpack.c.h.b16 %v609
      %v2827 = vunpack.c.l.b16 %v610
      %v2828 = vunpack.c.h.b16 %v610
      %v2829 = vunpack.c.l.b16 %v611
      %v2830 = vunpack.c.h.b16 %v611
      %v2831 = vunpack.c.l.b16 %v612
      %v2832 = vunpack.c.h.b16 %v612
      %v2833 = vunpack.c.l.b16 %v613
      %v2834 = vunpack.c.h.b16 %v613
      %v2835 = vunpack.c.l.b16 %v614
      %v2836 = vunpack.c.h.b16 %v614
      %v2837 = vunpack.c.l.b16 %v615
      %v2838 = vunpack.c.l.b16 %v616
      %v2839 = vunpack.c.h.b16 %v616
      %v2840 = vunpack.c.l.b16 %v617
      %v2841 = vunpack.c.h.b16 %v617
      %v2842 = vunpack.c.l.b16 %v618
      %v2843 = vunpack.c.h.b16 %v618
      %v2844 = vunpack.c.l.b16 %v619
      %v2845 = vunpack.c.h.b16 %v619
      %v2846 = vunpack.c.l.b16 %v620
      %v2847 = vunpack.c.h.b16 %v620
      %v2848 = vunpack.c.l.b16 %v621
      %v2849 = vunpack.c.h.b16 %v621
      %v2850 = vunpack.c.l.b16 %v622
      %v2851 = vunpack.c.h.b16 %v622
      %v2852 = vunpack.c.l.b16 %v623
      %v2853 = vunpack.c.h.b16 %v623
      %v2854 = vunpack.c.l.b16 %v624
      %v2855 = vunpack.c.h.b16 %v624
      %v2856 = vunpack.c.l.b16 %v625
      %v2857 = vunpack.c.h.b16 %v625
      %v2858 = vunpack.c.l.b16 %v626
      %v2859 = vunpack.c.h.b16 %v626
      %v2860 = vunpack.c.l.b16 %v627
      %v2861 = vunpack.c.l.b16 %v628
      %v2862 = vunpack.c.h.b16 %v628
      %v2863 = vunpack.c.l.b16 %v629
      %v2864 = vunpack.c.h.b16 %v629
      %v2865 = vunpack.c.l.b16 %v630
      %v2866 = vunpack.c.h.b16 %v630
      %v2867 = vunpack.c.l.b16 %v631
      %v2868 = vunpack.c.h.b16 %v631
      %v2869 = vunpack.c.l.b16 %v632
      %v2870 = vunpack.c.h.b16 %v632
      %v2871 = vunpack.c.l.b16 %v633
      %v2872 = vunpack.c.h.b16 %v633
      %v2873 = vunpack.c.l.b16 %v634
      %v2874 = vunpack.c.h.b16 %v634
      %v2875 = vunpack.c.l.b16 %v635
      %v2876 = vunpack.c.h.b16 %v635
      %v2877 = vunpack.c.l.b16 %v636
      %v2878 = vunpack.c.h.b16 %v636
      %v2879 = vunpack.c.l.b16 %v637
      %v2880 = vunpack.c.h.b16 %v637
      %v2881 = vunpack.c.l.b16 %v638
      %v2882 = vunpack.c.h.b16 %v638
      %v2883 = vunpack.c.l.b16 %v639
      %v2884 = vunpack.c.l.b16 %v640
      %v2885 = vunpack.c.h.b16 %v640
      %v2886 = vunpack.c.l.b16 %v641
      %v2887 = vunpack.c.h.b16 %v641
      %v2888 = vunpack.c.l.b16 %v642
      %v2889 = vunpack.c.h.b16 %v642
      %v2890 = vunpack.c.l.b16 %v643
      %v2891 = vunpack.c.h.b16 %v643
      %v2892 = vunpack.c.l.b16 %v644
      %v2893 = vunpack.c.h.b16 %v644
      %v2894 = vunpack.c.l.b16 %v645
      %v2895 = vunpack.c.h.b16 %v645
      %v2896 = vunpack.c.l.b16 %v646
      %v2897 = vunpack.c.h.b16 %v646
      %v2898 = vunpack.c.l.b16 %v647
      %v2899 = vunpack.c.h.b16 %v647
      %v2900 = vunpack.c.l.b16 %v648
      %v2901 = vunpack.c.h.b16 %v648
      %v2902 = vunpack.c.l.b16 %v649
      %v2903 = vunpack.c.h.b16 %v649
      %v2904 = vunpack.c.l.b16 %v650
      %v2905 = vunpack.c.h.b16 %v650
      %v2906 = vunpack.c.l.b16 %v651
      %v2907 = vunpack.c.l.b16 %v652
      %v2908 = vunpack.c.h.b16 %v652
      %v2909 = vunpack.c.l.b16 %v653
      %v2910 = vunpack.c.h.b16 %v653
      %v2911 = vunpack.c.l.b16 %v654
      %v2912 = vunpack.c.h.b16 %v654
      %v2913 = vunpack.c.l.b16 %v655
      %v2914 = vunpack.c.h.b16 %v655
      %v2915 = vunpack.c.l.b16 %v656
      %v2916 = vunpack.c.h.b16 %v656
      %v2917 = vunpack.c.l.b16 %v657
      %v2918 = vunpack.c.h.b16 %v657
      %v2919 = vunpack.c.l.b16 %v658
      %v2920 = vunpack.c.h.b16 %v658
      %v2921 = vunpack.c.l.b16 %v659
      %v2922 = vunpack.c.h.b16 %v659
      %v2923 = vunpack.c.l.b16 %v660
      %v2924 = vunpack.c.h.b16 %v660
      %v2925 = vunpack.c.l.b16 %v661
      %v2926 = vunpack.c.h.b16 %v661
      %v2927 = vunpack.c.l.b16 %v662
      %v2928 = vunpack.c.h.b16 %v662
      %v2929 = vunpack.c.l.b16 %v663
      %v2930 = vunpack.c.l.b16 %v664
      %v2931 = vunpack.c.h.b16 %v664
      %v2932 = vunpack.c.l.b16 %v665
      %v2933 = vunpack.c.h.b16 %v665
      %v2934 = vunpack.c.l.b16 %v666
      %v2935 = vunpack.c.h.b16 %v666
      %v2936 = vunpack.c.l.b16 %v667
      %v2937 = vunpack.c.h.b16 %v667
      %v2938 = vunpack.c.l.b16 %v668
      %v2939 = vunpack.c.h.b16 %v668
      %v2940 = vunpack.c.l.b16 %v669
      %v2941 = vunpack.c.h.b16 %v669
      %v2942 = vunpack.c.l.b16 %v670
      %v2943 = vunpack.c.h.b16 %v670
      %v2944 = vunpack.c.l.b16 %v671
      %v2945 = vunpack.c.h.b16 %v671
      %v2946 = vunpack.c.l.b16 %v672
      %v2947 = vunpack.c.h.b16 %v672
      %v2948 = vunpack.c.l.b16 %v673
      %v2949 = vunpack.c.h.b16 %v673
      %v2950 = vunpack.c.l.b16 %v674
      %v2951 = vunpack.c.h.b16 %v674
      %v2952 = vunpack.c.l.b16 %v675
      %v2953 = vunpack.c.l.b16 %v676
      %v2954 = vunpack.c.h.b16 %v676
      %v2955 = vunpack.c.l.b16 %v677
      %v2956 = vunpack.c.h.b16 %v677
      %v2957 = vunpack.c.l.b16 %v678
      %v2958 = vunpack.c.h.b16 %v678
      %v2959 = vunpack.c.l.b16 %v679
      %v2960 = vunpack.c.h.b16 %v679
      %v2961 = vunpack.c.l.b16 %v680
      %v2962 = vunpack.c.h.b16 %v680
      %v2963 = vunpack.c.l.b16 %v681
      %v2964 = vunpack.c.h.b16 %v681
      %v2965 = vunpack.c.l.b16 %v682
      %v2966 = vunpack.c.h.b16 %v682
      %v2967 = vunpack.c.l.b16 %v683
      %v2968 = vunpack.c.h.b16 %v683
      %v2969 = vunpack.c.l.b16 %v684
      %v2970 = vunpack.c.h.b16 %v684
      %v2971 = vunpack.c.l.b16 %v685
      %v2972 = vunpack.c.h.b16 %v685
      %v2973 = vunpack.c.l.b16 %v686
      %v2974 = vunpack.c.h.b16 %v686
      %v2975 = vunpack.c.l.b16 %v687
      %v2976 = vunpack.c.l.b16 %v688
      %v2977 = vunpack.c.h.b16 %v688
      %v2978 = vunpack.c.l.b16 %v689
      %v2979 = vunpack.c.h.b16 %v689
      %v2980 = vunpack.c.l.b16 %v690
      %v2981 = vunpack.c.h.b16 %v690
      %v2982 = vunpack.c.l.b16 %v691
      %v2983 = vunpack.c.h.b16 %v691
      %v2984 = vunpack.c.l.b16 %v692
      %v2985 = vunpack.c.h.b16 %v692
      %v2986 = vunpack.c.l.b16 %v693
      %v2987 = vunpack.c.h.b16 %v693
      %v2988 = vunpack.c.l.b16 %v694
      %v2989 = vunpack.c.h.b16 %v694
      %v2990 = vunpack.c.l.b16 %v695
      %v2991 = vunpack.c.h.b16 %v695
      %v2992 = vunpack.c.l.b16 %v696
      %v2993 = vunpack.c.h.b16 %v696
      %v2994 = vunpack.c.l.b16 %v697
      %v2995 = vunpack.c.h.b16 %v697
      %v2996 = vunpack.c.l.b16 %v698
      %v2997 = vunpack.c.h.b16 %v698
      %v2998 = vunpack.c.l.b16 %v699
      %v2999 = vunpack.c.l.b16 %v700
      %v3000 = vunpack.c.h.b16 %v700
      %v3001 = vunpack.c.l.b16 %v701
      %v3002 = vunpack.c.h.b16 %v701
      %v3003 = vunpack.c.l.b16 %v702
      %v3004 = vunpack.c.h.b16 %v702
      %v3005 = vunpack.c.l.b16 %v703
      %v3006 = vunpack.c.h.b16 %v703
      %v3007 = vunpack.c.l.b16 %v704
      %v3008 = vunpack.c.h.b16 %v704
      %v3009 = vunpack.c.l.b16 %v705
      %v3010 = vunpack.c.h.b16 %v705
      %v3011 = vunpack.c.l.b16 %v706
      %v3012 = vunpack.c.h.b16 %v706
      %v3013 = vunpack.c.l.b16 %v707
      %v3014 = vunpack.c.h.b16 %v707
      %v3015 = vunpack.c.l.b16 %v708
      %v3016 = vunpack.c.h.b16 %v708
      %v3017 = vunpack.c.l.b16 %v709
      %v3018 = vunpack.c.h.b16 %v709
      %v3019 = vunpack.c.l.b16 %v710
      %v3020 = vunpack.c.h.b16 %v710
      %v3021 = vunpack.c.l.b16 %v711
      %v3022 = vunpack.c.l.b16 %v712
      %v3023 = vunpack.c.h.b16 %v712
      %v3024 = vunpack.c.l.b16 %v713
      %v3025 = vunpack.c.h.b16 %v713
      %v3026 = vunpack.c.l.b16 %v714
      %v3027 = vunpack.c.h.b16 %v714
      %v3028 = vunpack.c.l.b16 %v715
      %v3029 = vunpack.c.h.b16 %v715
      %v3030 = vunpack.c.l.b16 %v716
      %v3031 = vunpack.c.h.b16 %v716
      %v3032 = vunpack.c.l.b16 %v717
      %v3033 = vunpack.c.h.b16 %v717
      %v3034 = vunpack.c.l.b16 %v718
      %v3035 = vunpack.c.h.b16 %v718
      %v3036 = vunpack.c.l.b16 %v719
      %v3037 = vunpack.c.h.b16 %v719
      %v3038 = vunpack.c.l.b16 %v720
      %v3039 = vunpack.c.h.b16 %v720
      %v3040 = vunpack.c.l.b16 %v721
      %v3041 = vunpack.c.h.b16 %v721
      %v3042 = vunpack.c.l.b16 %v722
      %v3043 = vunpack.c.h.b16 %v722
      %v3044 = vunpack.c.l.b16 %v723
      %v3045 = vunpack.c.l.b16 %v724
      %v3046 = vunpack.c.h.b16 %v724
      %v3047 = vunpack.c.l.b16 %v725
      %v3048 = vunpack.c.h.b16 %v725
      %v3049 = vunpack.c.l.b16 %v726
      %v3050 = vunpack.c.h.b16 %v726
      %v3051 = vunpack.c.l.b16 %v727
      %v3052 = vunpack.c.h.b16 %v727
      %v3053 = vunpack.c.l.b16 %v728
      %v3054 = vunpack.c.h.b16 %v728
      %v3055 = vunpack.c.l.b16 %v729
      %v3056 = vunpack.c.h.b16 %v729
      %v3057 = vunpack.c.l.b16 %v730
      %v3058 = vunpack.c.h.b16 %v730
      %v3059 = vunpack.c.l.b16 %v731
      %v3060 = vunpack.c.h.b16 %v731
      %v3061 = vunpack.c.l.b16 %v732
      %v3062 = vunpack.c.h.b16 %v732
      %v3063 = vunpack.c.l.b16 %v733
      %v3064 = vunpack.c.h.b16 %v733
      %v3065 = vunpack.c.l.b16 %v734
      %v3066 = vunpack.c.h.b16 %v734
      %v3067 = vunpack.c.l.b16 %v735
      %v3068 = vunpack.c.l.b16 %v736
      %v3069 = vunpack.c.h.b16 %v736
      %v3070 = vunpack.c.l.b16 %v737
      %v3071 = vunpack.c.h.b16 %v737
      %v3072 = vunpack.c.l.b16 %v738
      %v3073 = vunpack.c.h.b16 %v738
      %v3074 = vunpack.c.l.b16 %v739
      %v3075 = vunpack.c.h.b16 %v739
      %v3076 = vunpack.c.l.b16 %v740
      %v3077 = vunpack.c.h.b16 %v740
      %v3078 = vunpack.c.l.b16 %v741
      %v3079 = vunpack.c.h.b16 %v741
      %v3080 = vunpack.c.l.b16 %v742
      %v3081 = vunpack.c.h.b16 %v742
      %v3082 = vunpack.c.l.b16 %v743
      %v3083 = vunpack.c.h.b16 %v743
      %v3084 = vunpack.c.l.b16 %v744
      %v3085 = vunpack.c.h.b16 %v744
      %v3086 = vunpack.c.l.b16 %v745
      %v3087 = vunpack.c.h.b16 %v745
      %v3088 = vunpack.c.l.b16 %v746
      %v3089 = vunpack.c.h.b16 %v746
      %v3090 = vunpack.c.l.b16 %v747
      %v3091 = vunpack.c.l.b16 %v748
      %v3092 = vunpack.c.h.b16 %v748
      %v3093 = vunpack.c.l.b16 %v749
      %v3094 = vunpack.c.h.b16 %v749
      %v3095 = vunpack.c.l.b16 %v750
      %v3096 = vunpack.c.h.b16 %v750
      %v3097 = vunpack.c.l.b16 %v751
      %v3098 = vunpack.c.h.b16 %v751
      %v3099 = vunpack.c.l.b16 %v752
      %v3100 = vunpack.c.h.b16 %v752
      %v3101 = vunpack.c.l.b16 %v753
      %v3102 = vunpack.c.h.b16 %v753
      %v3103 = vunpack.c.l.b16 %v754
      %v3104 = vunpack.c.h.b16 %v754
      %v3105 = vunpack.c.l.b16 %v755
      %v3106 = vunpack.c.h.b16 %v755
      %v3107 = vunpack.c.l.b16 %v756
      %v3108 = vunpack.c.h.b16 %v756
      %v3109 = vunpack.c.l.b16 %v757
      %v3110 = vunpack.c.h.b16 %v757
      %v3111 = vunpack.c.l.b16 %v758
      %v3112 = vunpack.c.h.b16 %v758
      %v3113 = vunpack.c.l.b16 %v759
      %v3114 = vunpack.c.l.b16 %v760
      %v3115 = vunpack.c.h.b16 %v760
      %v3116 = vunpack.c.l.b16 %v761
      %v3117 = vunpack.c.h.b16 %v761
      %v3118 = vunpack.c.l.b16 %v762
      %v3119 = vunpack.c.h.b16 %v762
      %v3120 = vunpack.c.l.b16 %v763
      %v3121 = vunpack.c.h.b16 %v763
      %v3122 = vunpack.c.l.b16 %v764
      %v3123 = vunpack.c.h.b16 %v764
      %v3124 = vunpack.c.l.b16 %v765
      %v3125 = vunpack.c.h.b16 %v765
      %v3126 = vunpack.c.l.b16 %v766
      %v3127 = vunpack.c.h.b16 %v766
      %v3128 = vunpack.c.l.b16 %v767
      %v3129 = vunpack.c.h.b16 %v767
      %v3130 = vunpack.c.l.b16 %v768
      %v3131 = vunpack.c.h.b16 %v768
      %v3132 = vunpack.c.l.b16 %v769
      %v3133 = vunpack.c.h.b16 %v769
      %v3134 = vunpack.c.l.b16 %v770
      %v3135 = vunpack.c.h.b16 %v770
      %v3136 = vunpack.c.l.b16 %v771
      %v3137 = vunpack.c.l.b16 %v772
      %v3138 = vunpack.c.h.b16 %v772
      %v3139 = vunpack.c.l.b16 %v773
      %v3140 = vunpack.c.h.b16 %v773
      %v3141 = vunpack.c.l.b16 %v774
      %v3142 = vunpack.c.h.b16 %v774
      %v3143 = vunpack.c.l.b16 %v775
      %v3144 = vunpack.c.h.b16 %v775
      %v3145 = vunpack.c.l.b16 %v776
      %v3146 = vunpack.c.h.b16 %v776
      %v3147 = vunpack.c.l.b16 %v777
      %v3148 = vunpack.c.h.b16 %v777
      %v3149 = vunpack.c.l.b16 %v778
      %v3150 = vunpack.c.h.b16 %v778
      %v3151 = vunpack.c.l.b16 %v779
      %v3152 = vunpack.c.h.b16 %v779
      %v3153 = vunpack.c.l.b16 %v780
      %v3154 = vunpack.c.h.b16 %v780
      %v3155 = vunpack.c.l.b16 %v781
      %v3156 = vunpack.c.h.b16 %v781
      %v3157 = vunpack.c.l.b16 %v782
      %v3158 = vunpack.c.h.b16 %v782
      %v3159 = vunpack.c.l.b16 %v783
      %v3160 = vunpack.c.l.b16 %v784
      %v3161 = vunpack.c.h.b16 %v784
      %v3162 = vunpack.c.l.b16 %v785
      %v3163 = vunpack.c.h.b16 %v785
      %v3164 = vunpack.c.l.b16 %v786
      %v3165 = vunpack.c.h.b16 %v786
      %v3166 = vunpack.c.l.b16 %v787
      %v3167 = vunpack.c.h.b16 %v787
      %v3168 = vunpack.c.l.b16 %v788
      %v3169 = vunpack.c.h.b16 %v788
      %v3170 = vunpack.c.l.b16 %v789
      %v3171 = vunpack.c.h.b16 %v789
      %v3172 = vunpack.c.l.b16 %v790
      %v3173 = vunpack.c.h.b16 %v790
      %v3174 = vunpack.c.l.b16 %v791
      %v3175 = vunpack.c.h.b16 %v791
      %v3176 = vunpack.c.l.b16 %v792
      %v3177 = vunpack.c.h.b16 %v792
      %v3178 = vunpack.c.l.b16 %v793
      %v3179 = vunpack.c.h.b16 %v793
      %v3180 = vunpack.c.l.b16 %v794
      %v3181 = vunpack.c.h.b16 %v794
      %v3182 = vunpack.c.l.b16 %v795
      %v3183 = vunpack.c.l.b16 %v796
      %v3184 = vunpack.c.h.b16 %v796
      %v3185 = vunpack.c.l.b16 %v797
      %v3186 = vunpack.c.h.b16 %v797
      %v3187 = vunpack.c.l.b16 %v798
      %v3188 = vunpack.c.h.b16 %v798
      %v3189 = vunpack.c.l.b16 %v799
      %v3190 = vunpack.c.h.b16 %v799
      %v3191 = vunpack.c.l.b16 %v800
      %v3192 = vunpack.c.h.b16 %v800
      %v3193 = vunpack.c.l.b16 %v801
      %v3194 = vunpack.c.h.b16 %v801
      %v3195 = vunpack.c.l.b16 %v802
      %v3196 = vunpack.c.h.b16 %v802
      %v3197 = vunpack.c.l.b16 %v803
      %v3198 = vunpack.c.h.b16 %v803
      %v3199 = vunpack.c.l.b16 %v804
      %v3200 = vunpack.c.h.b16 %v804
      %v3201 = vunpack.c.l.b16 %v805
      %v3202 = vunpack.c.h.b16 %v805
      %v3203 = vunpack.c.l.b16 %v806
      %v3204 = vunpack.c.h.b16 %v806
      %v3205 = vunpack.c.l.b16 %v807
      %v3206 = vunpack.c.l.b16 %v808
      %v3207 = vunpack.c.h.b16 %v808
      %v3208 = vunpack.c.l.b16 %v809
      %v3209 = vunpack.c.h.b16 %v809
      %v3210 = vunpack.c.l.b16 %v810
      %v3211 = vunpack.c.h.b16 %v810
      %v3212 = vunpack.c.l.b16 %v811
      %v3213 = vunpack.c.h.b16 %v811
      %v3214 = vunpack.c.l.b16 %v812
      %v3215 = vunpack.c.h.b16 %v812
      %v3216 = vunpack.c.l.b16 %v813
      %v3217 = vunpack.c.h.b16 %v813
      %v3218 = vunpack.c.l.b16 %v814
      %v3219 = vunpack.c.h.b16 %v814
      %v3220 = vunpack.c.l.b16 %v815
      %v3221 = vunpack.c.h.b16 %v815
      %v3222 = vunpack.c.l.b16 %v816
      %v3223 = vunpack.c.h.b16 %v816
      %v3224 = vunpack.c.l.b16 %v817
      %v3225 = vunpack.c.h.b16 %v817
      %v3226 = vunpack.c.l.b16 %v818
      %v3227 = vunpack.c.h.b16 %v818
      %v3228 = vunpack.c.l.b16 %v819
      %v3229 = vunpack.c.l.b16 %v820
      %v3230 = vunpack.c.h.b16 %v820
      %v3231 = vunpack.c.l.b16 %v821
      %v3232 = vunpack.c.h.b16 %v821
      %v3233 = vunpack.c.l.b16 %v822
      %v3234 = vunpack.c.h.b16 %v822
      %v3235 = vunpack.c.l.b16 %v823
      %v3236 = vunpack.c.h.b16 %v823
      %v3237 = vunpack.c.l.b16 %v824
      %v3238 = vunpack.c.h.b16 %v824
      %v3239 = vunpack.c.l.b16 %v825
      %v3240 = vunpack.c.h.b16 %v825
      %v3241 = vunpack.c.l.b16 %v826
      %v3242 = vunpack.c.h.b16 %v826
      %v3243 = vunpack.c.l.b16 %v827
      %v3244 = vunpack.c.h.b16 %v827
      %v3245 = vunpack.c.l.b16 %v828
      %v3246 = vunpack.c.h.b16 %v828
      %v3247 = vunpack.c.l.b16 %v829
      %v3248 = vunpack.c.h.b16 %v829
      %v3249 = vunpack.c.l.b16 %v830
      %v3250 = vunpack.c.h.b16 %v830
      %v3251 = vunpack.c.l.b16 %v831
      %v3252 = vunpack.c.l.b16 %v832
      %v3253 = vunpack.c.h.b16 %v832
      %v3254 = vunpack.c.l.b16 %v833
      %v3255 = vunpack.c.h.b16 %v833
      %v3256 = vunpack.c.l.b16 %v834
      %v3257 = vunpack.c.h.b16 %v834
      %v3258 = vunpack.c.l.b16 %v835
      %v3259 = vunpack.c.h.b16 %v835
      %v3260 = vunpack.c.l.b16 %v836
      %v3261 = vunpack.c.h.b16 %v836
      %v3262 = vunpack.c.l.b16 %v837
      %v3263 = vunpack.c.h.b16 %v837
      %v3264 = vunpack.c.l.b16 %v838
      %v3265 = vunpack.c.h.b16 %v838
      %v3266 = vunpack.c.l.b16 %v839
      %v3267 = vunpack.c.h.b16 %v839
      %v3268 = vunpack.c.l.b16 %v840
      %v3269 = vunpack.c.h.b16 %v840
      %v3270 = vunpack.c.l.b16 %v841
      %v3271 = vunpack.c.h.b16 %v841
      %v3272 = vunpack.c.l.b16 %v842
      %v3273 = vunpack.c.h.b16 %v842
      %v3274 = vunpack.c.l.b16 %v843
      %v3275 = vunpack.c.l.b16 %v844
      %v3276 = vunpack.c.h.b16 %v844
      %v3277 = vunpack.c.l.b16 %v845
      %v3278 = vunpack.c.h.b16 %v845
      %v3279 = vunpack.c.l.b16 %v846
      %v3280 = vunpack.c.h.b16 %v846
      %v3281 = vunpack.c.l.b16 %v847
      %v3282 = vunpack.c.h.b16 %v847
      %v3283 = vunpack.c.l.b16 %v848
      %v3284 = vunpack.c.h.b16 %v848
      %v3285 = vunpack.c.l.b16 %v849
      %v3286 = vunpack.c.h.b16 %v849
      %v3287 = vunpack.c.l.b16 %v850
      %v3288 = vunpack.c.h.b16 %v850
      %v3289 = vunpack.c.l.b16 %v851
      %v3290 = vunpack.c.h.b16 %v851
      %v3291 = vunpack.c.l.b16 %v852
      %v3292 = vunpack.c.h.b16 %v852
      %v3293 = vunpack.c.l.b16 %v853
      %v3294 = vunpack.c.h.b16 %v853
      %v3295 = vunpack.c.l.b16 %v854
      %v3296 = vunpack.c.h.b16 %v854
      %v3297 = vunpack.c.l.b16 %v855
      %v3298 = vunpack.c.l.b16 %v856
      %v3299 = vunpack.c.h.b16 %v856
      %v3300 = vunpack.c.l.b16 %v857
      %v3301 = vunpack.c.h.b16 %v857
      %v3302 = vunpack.c.l.b16 %v858
      %v3303 = vunpack.c.h.b16 %v858
      %v3304 = vunpack.c.l.b16 %v859
      %v3305 = vunpack.c.h.b16 %v859
      %v3306 = vunpack.c.l.b16 %v860
      %v3307 = vunpack.c.h.b16 %v860
      %v3308 = vunpack.c.l.b16 %v861
      %v3309 = vunpack.c.h.b16 %v861
      %v3310 = vunpack.c.l.b16 %v862
      %v3311 = vunpack.c.h.b16 %v862
      %v3312 = vunpack.c.l.b16 %v863
      %v3313 = vunpack.c.h.b16 %v863
      %v3314 = vunpack.c.l.b16 %v864
      %v3315 = vunpack.c.h.b16 %v864
      %v3316 = vunpack.c.l.b16 %v865
      %v3317 = vunpack.c.h.b16 %v865
      %v3318 = vunpack.c.l.b16 %v866
      %v3319 = vunpack.c.h.b16 %v866
      %v3320 = vunpack.c.l.b16 %v867
      %v3321 = vunpack.c.l.b16 %v868
      %v3322 = vunpack.c.h.b16 %v868
      %v3323 = vunpack.c.l.b16 %v869
      %v3324 = vunpack.c.h.b16 %v869
      %v3325 = vunpack.c.l.b16 %v870
      %v3326 = vunpack.c.h.b16 %v870
      %v3327 = vunpack.c.l.b16 %v871
      %v3328 = vunpack.c.h.b16 %v871
      %v3329 = vunpack.c.l.b16 %v872
      %v3330 = vunpack.c.h.b16 %v872
      %v3331 = vunpack.c.l.b16 %v873
      %v3332 = vunpack.c.h.b16 %v873
      %v3333 = vunpack.c.l.b16 %v874
      %v3334 = vunpack.c.h.b16 %v874
      %v3335 = vunpack.c.l.b16 %v875
      %v3336 = vunpack.c.h.b16 %v875
      %v3337 = vunpack.c.l.b16 %v876
      %v3338 = vunpack.c.h.b16 %v876
      %v3339 = vunpack.c.l.b16 %v877
      %v3340 = vunpack.c.h.b16 %v877
      %v3341 = vunpack.c.l.b16 %v878
      %v3342 = vunpack.c.h.b16 %v878
      %v3343 = vunpack.c.l.b16 %v879
      %v3344 = vunpack.c.l.b16 %v880
      %v3345 = vunpack.c.h.b16 %v880
      %v3346 = vunpack.c.l.b16 %v881
      %v3347 = vunpack.c.h.b16 %v881
      %v3348 = vunpack.c.l.b16 %v882
      %v3349 = vunpack.c.h.b16 %v882
      %v3350 = vunpack.c.l.b16 %v883
      %v3351 = vunpack.c.h.b16 %v883
      %v3352 = vunpack.c.l.b16 %v884
      %v3353 = vunpack.c.h.b16 %v884
      %v3354 = vunpack.c.l.b16 %v885
      %v3355 = vunpack.c.h.b16 %v885
      %v3356 = vunpack.c.l.b16 %v886
      %v3357 = vunpack.c.h.b16 %v886
      %v3358 = vunpack.c.l.b16 %v887
      %v3359 = vunpack.c.h.b16 %v887
      %v3360 = vunpack.c.l.b16 %v888
      %v3361 = vunpack.c.h.b16 %v888
      %v3362 = vunpack.c.l.b16 %v889
      %v3363 = vunpack.c.h.b16 %v889
      %v3364 = vunpack.c.l.b16 %v890
      %v3365 = vunpack.c.h.b16 %v890
      %v3366 = vunpack.c.l.b16 %v891
      %v3367 = vunpack.c.l.b16 %v892
      %v3368 = vunpack.c.h.b16 %v892
      %v3369 = vunpack.c.l.b16 %v893
      %v3370 = vunpack.c.h.b16 %v893
      %v3371 = vunpack.c.l.b16 %v894
      %v3372 = vunpack.c.h.b16 %v894
      %v3373 = vunpack.c.l.b16 %v895
      %v3374 = vunpack.c.h.b16 %v895
      %v3375 = vunpack.c.l.b16 %v896
      %v3376 = vunpack.c.h.b16 %v896
      %v3377 = vunpack.c.l.b16 %v897
      %v3378 = vunpack.c.h.b16 %v897
      %v3379 = vunpack.c.l.b16 %v898
      %v3380 = vunpack.c.h.b16 %v898
      %v3381 = vunpack.c.l.b16 %v899
      %v3382 = vunpack.c.h.b16 %v899
      %v3383 = vunpack.c.l.b16 %v900
      %v3384 = vunpack.c.h.b16 %v900
      %v3385 = vunpack.c.l.b16 %v901
      %v3386 = vunpack.c.h.b16 %v901
      %v3387 = vunpack.c.l.b16 %v902
      %v3388 = vunpack.c.h.b16 %v902
      %v3389 = vunpack.c.l.b16 %v903
      %v3390 = vunpack.c.l.b16 %v904
      %v3391 = vunpack.c.h.b16 %v904
      %v3392 = vunpack.c.l.b16 %v905
      %v3393 = vunpack.c.h.b16 %v905
      %v3394 = vunpack.c.l.b16 %v906
      %v3395 = vunpack.c.h.b16 %v906
      %v3396 = vunpack.c.l.b16 %v907
      %v3397 = vunpack.c.h.b16 %v907
      %v3398 = vunpack.c.l.b16 %v908
      %v3399 = vunpack.c.h.b16 %v908
      %v3400 = vunpack.c.l.b16 %v909
      %v3401 = vunpack.c.h.b16 %v909
      %v3402 = vunpack.c.l.b16 %v910
      %v3403 = vunpack.c.h.b16 %v910
      %v3404 = vunpack.c.l.b16 %v911
      %v3405 = vunpack.c.h.b16 %v911
      %v3406 = vunpack.c.l.b16 %v912
      %v3407 = vunpack.c.h.b16 %v912
      %v3408 = vunpack.c.l.b16 %v913
      %v3409 = vunpack.c.h.b16 %v913
      %v3410 = vunpack.c.l.b16 %v914
      %v3411 = vunpack.c.h.b16 %v914
      %v3412 = vunpack.c.l.b16 %v915
      %v3413 = vunpack.c.l.b16 %v916
      %v3414 = vunpack.c.h.b16 %v916
      %v3415 = vunpack.c.l.b16 %v917
      %v3416 = vunpack.c.h.b16 %v917
      %v3417 = vunpack.c.l.b16 %v918
      %v3418 = vunpack.c.h.b16 %v918
      %v3419 = vunpack.c.l.b16 %v919
      %v3420 = vunpack.c.h.b16 %v919
      %v3421 = vunpack.c.l.b16 %v920
      %v3422 = vunpack.c.h.b16 %v920
      %v3423 = vunpack.c.l.b16 %v921
      %v3424 = vunpack.c.h.b16 %v921
      %v3425 = vunpack.c.l.b16 %v922
      %v3426 = vunpack.c.h.b16 %v922
      %v3427 = vunpack.c.l.b16 %v923
      %v3428 = vunpack.c.h.b16 %v923
      %v3429 = vunpack.c.l.b16 %v924
      %v3430 = vunpack.c.h.b16 %v924
      %v3431 = vunpack.c.l.b16 %v925
      %v3432 = vunpack.c.h.b16 %v925
      %v3433 = vunpack.c.l.b16 %v926
      %v3434 = vunpack.c.h.b16 %v926
      %v3435 = vunpack.c.l.b16 %v927
      %v3436 = vunpack.c.l.b16 %v928
      %v3437 = vunpack.c.h.b16 %v928
      %v3438 = vunpack.c.l.b16 %v929
      %v3439 = vunpack.c.h.b16 %v929
      %v3440 = vunpack.c.l.b16 %v930
      %v3441 = vunpack.c.h.b16 %v930
      %v3442 = vunpack.c.l.b16 %v931
      %v3443 = vunpack.c.h.b16 %v931
      %v3444 = vunpack.c.l.b16 %v932
      %v3445 = vunpack.c.h.b16 %v932
      %v3446 = vunpack.c.l.b16 %v933
      %v3447 = vunpack.c.h.b16 %v933
      %v3448 = vunpack.c.l.b16 %v934
      %v3449 = vunpack.c.h.b16 %v934
      %v3450 = vunpack.c.l.b16 %v935
      %v3451 = vunpack.c.h.b16 %v935
      %v3452 = vunpack.c.l.b16 %v936
      %v3453 = vunpack.c.h.b16 %v936
      %v3454 = vunpack.c.l.b16 %v937
      %v3455 = vunpack.c.h.b16 %v937
      %v3456 = vunpack.c.l.b16 %v938
      %v3457 = vunpack.c.h.b16 %v938
      %v3458 = vunpack.c.l.b16 %v939
      %v3459 = vunpack.c.l.b16 %v940
      %v3460 = vunpack.c.h.b16 %v940
      %v3461 = vunpack.c.l.b16 %v941
      %v3462 = vunpack.c.h.b16 %v941
      %v3463 = vunpack.c.l.b16 %v942
      %v3464 = vunpack.c.h.b16 %v942
      %v3465 = vunpack.c.l.b16 %v943
      %v3466 = vunpack.c.h.b16 %v943
      %v3467 = vunpack.c.l.b16 %v944
      %v3468 = vunpack.c.h.b16 %v944
      %v3469 = vunpack.c.l.b16 %v945
      %v3470 = vunpack.c.h.b16 %v945
      %v3471 = vunpack.c.l.b16 %v946
      %v3472 = vunpack.c.h.b16 %v946
      %v3473 = vunpack.c.l.b16 %v947
      %v3474 = vunpack.c.h.b16 %v947
      %v3475 = vunpack.c.l.b16 %v948
      %v3476 = vunpack.c.h.b16 %v948
      %v3477 = vunpack.c.l.b16 %v949
      %v3478 = vunpack.c.h.b16 %v949
      %v3479 = vunpack.c.l.b16 %v950
      %v3480 = vunpack.c.h.b16 %v950
      %v3481 = vunpack.c.l.b16 %v951
      %v3482 = vunpack.c.l.b16 %v952
      %v3483 = vunpack.c.h.b16 %v952
      %v3484 = vunpack.c.l.b16 %v953
      %v3485 = vunpack.c.h.b16 %v953
      %v3486 = vunpack.c.l.b16 %v954
      %v3487 = vunpack.c.h.b16 %v954
      %v3488 = vunpack.c.l.b16 %v955
      %v3489 = vunpack.c.h.b16 %v955
      %v3490 = vunpack.c.l.b16 %v956
      %v3491 = vunpack.c.h.b16 %v956
      %v3492 = vunpack.c.l.b16 %v957
      %v3493 = vunpack.c.h.b16 %v957
      %v3494 = vunpack.c.l.b16 %v958
      %v3495 = vunpack.c.h.b16 %v958
      %v3496 = vunpack.c.l.b16 %v959
      %v3497 = vunpack.c.h.b16 %v959
      %v3498 = vunpack.c.l.b16 %v960
      %v3499 = vunpack.c.h.b16 %v960
      %v3500 = vunpack.c.l.b16 %v961
      %v3501 = vunpack.c.h.b16 %v961
      %v3502 = vunpack.c.l.b16 %v962
      %v3503 = vunpack.c.h.b16 %v962
      %v3504 = vunpack.c.l.b16 %v963
      %v3505 = vunpack.c.l.b16 %v964
      %v3506 = vunpack.c.h.b16 %v964
      %v3507 = vunpack.c.l.b16 %v965
      %v3508 = vunpack.c.h.b16 %v965
      %v3509 = vunpack.c.l.b16 %v966
      %v3510 = vunpack.c.h.b16 %v966
      %v3511 = vunpack.c.l.b16 %v967
      %v3512 = vunpack.c.h.b16 %v967
      %v3513 = vunpack.c.l.b16 %v968
      %v3514 = vunpack.c.h.b16 %v968
      %v3515 = vunpack.c.l.b16 %v969
      %v3516 = vunpack.c.h.b16 %v969
      %v3517 = vunpack.c.l.b16 %v970
      %v3518 = vunpack.c.h.b16 %v970
      %v3519 = vunpack.c.l.b16 %v971
      %v3520 = vunpack.c.h.b16 %v971
      %v3521 = vunpack.c.l.b16 %v972
      %v3522 = vunpack.c.h.b16 %v972
      %v3523 = vunpack.c.l.b16 %v973
      %v3524 = vunpack.c.h.b16 %v973
      %v3525 = vunpack.c.l.b16 %v974
      %v3526 = vunpack.c.h.b16 %v974
      %v3527 = vunpack.c.l.b16 %v975
      %v3528 = vunpack.c.l.b16 %v976
      %v3529 = vunpack.c.h.b16 %v976
      %v3530 = vunpack.c.l.b16 %v977
      %v3531 = vunpack.c.h.b16 %v977
      %v3532 = vunpack.c.l.b16 %v978
      %v3533 = vunpack.c.h.b16 %v978
      %v3534 = vunpack.c.l.b16 %v979
      %v3535 = vunpack.c.h.b16 %v979
      %v3536 = vunpack.c.l.b16 %v980
      %v3537 = vunpack.c.h.b16 %v980
      %v3538 = vunpack.c.l.b16 %v981
      %v3539 = vunpack.c.h.b16 %v981
      %v3540 = vunpack.c.l.b16 %v982
      %v3541 = vunpack.c.h.b16 %v982
      %v3542 = vunpack.c.l.b16 %v983
      %v3543 = vunpack.c.h.b16 %v983
      %v3544 = vunpack.c.l.b16 %v984
      %v3545 = vunpack.c.h.b16 %v984
      %v3546 = vunpack.c.l.b16 %v985
      %v3547 = vunpack.c.h.b16 %v985
      %v3548 = vunpack.c.l.b16 %v986
      %v3549 = vunpack.c.h.b16 %v986
      %v3550 = vunpack.c.l.b16 %v987
      %v3551 = vunpack.c.l.b16 %v988
      %v3552 = vunpack.c.h.b16 %v988
      %v3553 = vunpack.c.l.b16 %v989
      %v3554 = vunpack.c.h.b16 %v989
      %v3555 = vunpack.c.l.b16 %v990
      %v3556 = vunpack.c.h.b16 %v990
      %v3557 = vunpack.c.l.b16 %v991
      %v3558 = vunpack.c.h.b16 %v991
      %v3559 = vunpack.c.l.b16 %v992
      %v3560 = vunpack.c.h.b16 %v992
      %v3561 = vunpack.c.l.b16 %v993
      %v3562 = vunpack.c.h.b16 %v993
      %v3563 = vunpack.c.l.b16 %v994
      %v3564 = vunpack.c.h.b16 %v994
      %v3565 = vunpack.c.l.b16 %v995
      %v3566 = vunpack.c.h.b16 %v995
      %v3567 = vunpack.c.l.b16 %v996
      %v3568 = vunpack.c.h.b16 %v996
      %v3569 = vunpack.c.l.b16 %v997
      %v3570 = vunpack.c.h.b16 %v997
      %v3571 = vunpack.c.l.b16 %v998
      %v3572 = vunpack.c.h.b16 %v998
      %v3573 = vunpack.c.l.b16 %v999
      %v3574 = vunpack.c.l.b16 %v1000
      %v3575 = vunpack.c.h.b16 %v1000
      %v3576 = vunpack.c.l.b16 %v1001
      %v3577 = vunpack.c.h.b16 %v1001
      %v3578 = vunpack.c.l.b16 %v1002
      %v3579 = vunpack.c.h.b16 %v1002
      %v3580 = vunpack.c.l.b16 %v1003
      %v3581 = vunpack.c.h.b16 %v1003
      %v3582 = vunpack.c.l.b16 %v1004
      %v3583 = vunpack.c.h.b16 %v1004
      %v3584 = vunpack.c.l.b16 %v1005
      %v3585 = vunpack.c.h.b16 %v1005
      %v3586 = vunpack.c.l.b16 %v1006
      %v3587 = vunpack.c.h.b16 %v1006
      %v3588 = vunpack.c.l.b16 %v1007
      %v3589 = vunpack.c.h.b16 %v1007
      %v3590 = vunpack.c.l.b16 %v1008
      %v3591 = vunpack.c.h.b16 %v1008
      %v3592 = vunpack.c.l.b16 %v1009
      %v3593 = vunpack.c.h.b16 %v1009
      %v3594 = vunpack.c.l.b16 %v1010
      %v3595 = vunpack.c.h.b16 %v1010
      %v3596 = vunpack.c.l.b16 %v1011
      %v3597 = vunpack.c.l.b16 %v1012
      %v3598 = vunpack.c.h.b16 %v1012
      %v3599 = vunpack.c.l.b16 %v1013
      %v3600 = vunpack.c.h.b16 %v1013
      %v3601 = vunpack.c.l.b16 %v1014
      %v3602 = vunpack.c.h.b16 %v1014
      %v3603 = vunpack.c.l.b16 %v1015
      %v3604 = vunpack.c.h.b16 %v1015
      %v3605 = vunpack.c.l.b16 %v1016
      %v3606 = vunpack.c.h.b16 %v1016
      %v3607 = vunpack.c.l.b16 %v1017
      %v3608 = vunpack.c.h.b16 %v1017
      %v3609 = vunpack.c.l.b16 %v1018
      %v3610 = vunpack.c.h.b16 %v1018
      %v3611 = vunpack.c.l.b16 %v1019
      %v3612 = vunpack.c.h.b16 %v1019
      %v3613 = vunpack.c.l.b16 %v1020
      %v3614 = vunpack.c.h.b16 %v1020
      %v3615 = vunpack.c.l.b16 %v1021
      %v3616 = vunpack.c.h.b16 %v1021
      %v3617 = vunpack.c.l.b16 %v1022
      %v3618 = vunpack.c.h.b16 %v1022
      %v3619 = vunpack.c.l.b16 %v1023
      %v3620 = vunpack.c.l.b16 %v1024
      %v3621 = vunpack.c.h.b16 %v1024
      %v3622 = vunpack.c.l.b16 %v1025
      %v3623 = vunpack.c.h.b16 %v1025
      %v3624 = vunpack.c.l.b16 %v1026
      %v3625 = vunpack.c.h.b16 %v1026
      %v3626 = vunpack.c.l.b16 %v1027
      %v3627 = vunpack.c.h.b16 %v1027
      %v3628 = vunpack.c.l.b16 %v1028
      %v3629 = vunpack.c.h.b16 %v1028
      %v3630 = vunpack.c.l.b16 %v1029
      %v3631 = vunpack.c.h.b16 %v1029
      %v3632 = vunpack.c.l.b16 %v1030
      %v3633 = vunpack.c.h.b16 %v1030
      %v3634 = vunpack.c.l.b16 %v1031
      %v3635 = vunpack.c.h.b16 %v1031
      %v3636 = vunpack.c.l.b16 %v1032
      %v3637 = vunpack.c.h.b16 %v1032
      %v3638 = vunpack.c.l.b16 %v1033
      %v3639 = vunpack.c.h.b16 %v1033
      %v3640 = vunpack.c.l.b16 %v1034
      %v3641 = vunpack.c.h.b16 %v1034
      %v3642 = vunpack.c.l.b16 %v1035
      %v3643 = vunpack.c.l.b16 %v1036
      %v3644 = vunpack.c.h.b16 %v1036
      %v3645 = vunpack.c.l.b16 %v1037
      %v3646 = vunpack.c.h.b16 %v1037
      %v3647 = vunpack.c.l.b16 %v1038
      %v3648 = vunpack.c.h.b16 %v1038
      %v3649 = vunpack.c.l.b16 %v1039
      %v3650 = vunpack.c.h.b16 %v1039
      %v3651 = vunpack.c.l.b16 %v1040
      %v3652 = vunpack.c.h.b16 %v1040
      %v3653 = vunpack.c.l.b16 %v1041
      %v3654 = vunpack.c.h.b16 %v1041
      %v3655 = vunpack.c.l.b16 %v1042
      %v3656 = vunpack.c.h.b16 %v1042
      %v3657 = vunpack.c.l.b16 %v1043
      %v3658 = vunpack.c.h.b16 %v1043
      %v3659 = vunpack.c.l.b16 %v1044
      %v3660 = vunpack.c.h.b16 %v1044
      %v3661 = vunpack.c.l.b16 %v1045
      %v3662 = vunpack.c.h.b16 %v1045
      %v3663 = vunpack.c.l.b16 %v1046
      %v3664 = vunpack.c.h.b16 %v1046
      %v3665 = vunpack.c.l.b16 %v1047
      %v3666 = vunpack.c.l.b16 %v1048
      %v3667 = vunpack.c.h.b16 %v1048
      %v3668 = vunpack.c.l.b16 %v1049
      %v3669 = vunpack.c.h.b16 %v1049
      %v3670 = vunpack.c.l.b16 %v1050
      %v3671 = vunpack.c.h.b16 %v1050
      %v3672 = vunpack.c.l.b16 %v1051
      %v3673 = vunpack.c.h.b16 %v1051
      %v3674 = vunpack.c.l.b16 %v1052
      %v3675 = vunpack.c.h.b16 %v1052
      %v3676 = vunpack.c.l.b16 %v1053
      %v3677 = vunpack.c.h.b16 %v1053
      %v3678 = vunpack.c.l.b16 %v1054
      %v3679 = vunpack.c.h.b16 %v1054
      %v3680 = vunpack.c.l.b16 %v1055
      %v3681 = vunpack.c.h.b16 %v1055
      %v3682 = vunpack.c.l.b16 %v1056
      %v3683 = vunpack.c.h.b16 %v1056
      %v3684 = vunpack.c.l.b16 %v1057
      %v3685 = vunpack.c.h.b16 %v1057
      %v3686 = vunpack.c.l.b16 %v1058
      %v3687 = vunpack.c.h.b16 %v1058
      %v3688 = vunpack.c.l.b16 %v1059
      %v3689 = vunpack.c.l.b16 %v1060
      %v3690 = vunpack.c.h.b16 %v1060
      %v3691 = vunpack.c.l.b16 %v1061
      %v3692 = vunpack.c.h.b16 %v1061
      %v3693 = vunpack.c.l.b16 %v1062
      %v3694 = vunpack.c.h.b16 %v1062
      %v3695 = vunpack.c.l.b16 %v1063
      %v3696 = vunpack.c.h.b16 %v1063
      %v3697 = vunpack.c.l.b16 %v1064
      %v3698 = vunpack.c.h.b16 %v1064
      %v3699 = vunpack.c.l.b16 %v1065
      %v3700 = vunpack.c.h.b16 %v1065
      %v3701 = vunpack.c.l.b16 %v1066
      %v3702 = vunpack.c.h.b16 %v1066
      %v3703 = vunpack.c.l.b16 %v1067
      %v3704 = vunpack.c.h.b16 %v1067
      %v3705 = vunpack.c.l.b16 %v1068
      %v3706 = vunpack.c.h.b16 %v1068
      %v3707 = vunpack.c.l.b16 %v1069
      %v3708 = vunpack.c.h.b16 %v1069
      %v3709 = vunpack.c.l.b16 %v1070
      %v3710 = vunpack.c.h.b16 %v1070
      %v3711 = vunpack.c.l.b16 %v1071
      %v3712 = vpack.c.b16 %v2033, %v2010
      %v3713 = vpack.c.b16 %v2034, %v2011
      %v3714 = vpack.c.b16 %v2035, %v2012
      %v3715 = vpack.c.b16 %v2036, %v2013
      %v3716 = vpack.c.b16 %v2037, %v2014
      %v3717 = vpack.c.b16 %v2038, %v2015
      %v3718 = vpack.c.b16 %v2039, %v2016
      %v3719 = vpack.c.b16 %v2040, %v2017
      %v3720 = vpack.c.b16 %v2041, %v2018
      %v3721 = vpack.c.b16 %v2042, %v2019
      %v3722 = vpack.c.b16 %v2043, %v2020
      %v3723 = vpack.c.b16 %v2044, %v2021
      %v3724 = vpack.c.b16 %v2045, %v2022
      %v3725 = vpack.c.b16 %v2046, %v2023
      %v3726 = vpack.c.b16 %v2047, %v2024
      %v3727 = vpack.c.b16 %v2048, %v2025
      %v3728 = vpack.c.b16 %v2049, %v2026
      %v3729 = vpack.c.b16 %v2050, %v2027
      %v3730 = vpack.c.b16 %v2051, %v2028
      %v3731 = vpack.c.b16 %v2052, %v2029
      %v3732 = vpack.c.b16 %v2053, %v2030
      %v3733 = vpack.c.b16 %v2054, %v2031
      %v3734 = vpack.c.b16 %v2055, %v2032
      %v3735 = vpack.c.b16 %v2079, %v2056
      %v3736 = vpack.c.b16 %v2080, %v2057
      %v3737 = vpack.c.b16 %v2081, %v2058
      %v3738 = vpack.c.b16 %v2082, %v2059
      %v3739 = vpack.c.b16 %v2083, %v2060
      %v3740 = vpack.c.b16 %v2084, %v2061
      %v3741 = vpack.c.b16 %v2085, %v2062
      %v3742 = vpack.c.b16 %v2086, %v2063
      %v3743 = vpack.c.b16 %v2087, %v2064
      %v3744 = vpack.c.b16 %v2088, %v2065
      %v3745 = vpack.c.b16 %v2089, %v2066
      %v3746 = vpack.c.b16 %v2090, %v2067
      %v3747 = vpack.c.b16 %v2091, %v2068
      %v3748 = vpack.c.b16 %v2092, %v2069
      %v3749 = vpack.c.b16 %v2093, %v2070
      %v3750 = vpack.c.b16 %v2094, %v2071
      %v3751 = vpack.c.b16 %v2095, %v2072
      %v3752 = vpack.c.b16 %v2096, %v2073
      %v3753 = vpack.c.b16 %v2097, %v2074
      %v3754 = vpack.c.b16 %v2098, %v2075
      %v3755 = vpack.c.b16 %v2099, %v2076
      %v3756 = vpack.c.b16 %v2100, %v2077
      %v3757 = vpack.c.b16 %v2101, %v2078
      %v3758 = vpack.c.b16 %v2125, %v2102
      %v3759 = vpack.c.b16 %v2126, %v2103
      %v3760 = vpack.c.b16 %v2127, %v2104
      %v3761 = vpack.c.b16 %v2128, %v2105
      %v3762 = vpack.c.b16 %v2129, %v2106
      %v3763 = vpack.c.b16 %v2130, %v2107
      %v3764 = vpack.c.b16 %v2131, %v2108
      %v3765 = vpack.c.b16 %v2132, %v2109
      %v3766 = vpack.c.b16 %v2133, %v2110
      %v3767 = vpack.c.b16 %v2134, %v2111
      %v3768 = vpack.c.b16 %v2135, %v2112
      %v3769 = vpack.c.b16 %v2136, %v2113
      %v3770 = vpack.c.b16 %v2137, %v2114
      %v3771 = vpack.c.b16 %v2138, %v2115
      %v3772 = vpack.c.b16 %v2139, %v2116
      %v3773 = vpack.c.b16 %v2140, %v2117
      %v3774 = vpack.c.b16 %v2141, %v2118
      %v3775 = vpack.c.b16 %v2142, %v2119
      %v3776 = vpack.c.b16 %v2143, %v2120
      %v3777 = vpack.c.b16 %v2144, %v2121
      %v3778 = vpack.c.b16 %v2145, %v2122
      %v3779 = vpack.c.b16 %v2146, %v2123
      %v3780 = vpack.c.b16 %v2147, %v2124
      %v3781 = vpack.c.b16 %v2171, %v2148
      %v3782 = vpack.c.b16 %v2172, %v2149
      %v3783 = vpack.c.b16 %v2173, %v2150
      %v3784 = vpack.c.b16 %v2174, %v2151
      %v3785 = vpack.c.b16 %v2175, %v2152
      %v3786 = vpack.c.b16 %v2176, %v2153
      %v3787 = vpack.c.b16 %v2177, %v2154
      %v3788 = vpack.c.b16 %v2178, %v2155
      %v3789 = vpack.c.b16 %v2179, %v2156
      %v3790 = vpack.c.b16 %v2180, %v2157
      %v3791 = vpack.c.b16 %v2181, %v2158
      %v3792 = vpack.c.b16 %v2182, %v2159
      %v3793 = vpack.c.b16 %v2183, %v2160
      %v3794 = vpack.c.b16 %v2184, %v2161
      %v3795 = vpack.c.b16 %v2185, %v2162
      %v3796 = vpack.c.b16 %v2186, %v2163
      %v3797 = vpack.c.b16 %v2187, %v2164
      %v3798 = vpack.c.b16 %v2188, %v2165
      %v3799 = vpack.c.b16 %v2189, %v2166
      %v3800 = vpack.c.b16 %v2190, %v2167
      %v3801 = vpack.c.b16 %v2191, %v2168
      %v3802 = vpack.c.b16 %v2192, %v2169
      %v3803 = vpack.c.b16 %v2193, %v2170
      %v3804 = vpack.c.b16 %v2217, %v2194
      %v3805 = vpack.c.b16 %v2218, %v2195
      %v3806 = vpack.c.b16 %v2219, %v2196
      %v3807 = vpack.c.b16 %v2220, %v2197
      %v3808 = vpack.c.b16 %v2221, %v2198
      %v3809 = vpack.c.b16 %v2222, %v2199
      %v3810 = vpack.c.b16 %v2223, %v2200
      %v3811 = vpack.c.b16 %v2224, %v2201
      %v3812 = vpack.c.b16 %v2225, %v2202
      %v3813 = vpack.c.b16 %v2226, %v2203
      %v3814 = vpack.c.b16 %v2227, %v2204
      %v3815 = vpack.c.b16 %v2228, %v2205
      %v3816 = vpack.c.b16 %v2229, %v2206
      %v3817 = vpack.c.b16 %v2230, %v2207
      %v3818 = vpack.c.b16 %v2231, %v2208
      %v3819 = vpack.c.b16 %v2232, %v2209
      %v3820 = vpack.c.b16 %v2233, %v2210
      %v3821 = vpack.c.b16 %v2234, %v2211
      %v3822 = vpack.c.b16 %v2235, %v2212
      %v3823 = vpack.c.b16 %v2236, %v2213
      %v3824 = vpack.c.b16 %v2237, %v2214
      %v3825 = vpack.c.b16 %v2238, %v2215
      %v3826 = vpack.c.b16 %v2239, %v2216
      %v3827 = vpack.c.b16 %v2263, %v2240
      %v3828 = vpack.c.b16 %v2264, %v2241
      %v3829 = vpack.c.b16 %v2265, %v2242
      %v3830 = vpack.c.b16 %v2266, %v2243
      %v3831 = vpack.c.b16 %v2267, %v2244
      %v3832 = vpack.c.b16 %v2268, %v2245
      %v3833 = vpack.c.b16 %v2269, %v2246
      %v3834 = vpack.c.b16 %v2270, %v2247
      %v3835 = vpack.c.b16 %v2271, %v2248
      %v3836 = vpack.c.b16 %v2272, %v2249
      %v3837 = vpack.c.b16 %v2273, %v2250
      %v3838 = vpack.c.b16 %v2274, %v2251
      %v3839 = vpack.c.b16 %v2275, %v2252
      %v3840 = vpack.c.b16 %v2276, %v2253
      %v3841 = vpack.c.b16 %v2277, %v2254
      %v3842 = vpack.c.b16 %v2278, %v2255
      %v3843 = vpack.c.b16 %v2279, %v2256
      %v3844 = vpack.c.b16 %v2280, %v2257
      %v3845 = vpack.c.b16 %v2281, %v2258
      %v3846 = vpack.c.b16 %v2282, %v2259
      %v3847 = vpack.c.b16 %v2283, %v2260
      %v3848 = vpack.c.b16 %v2284, %v2261
      %v3849 = vpack.c.b16 %v2285, %v2262
      %v3850 = vpack.c.b16 %v2309, %v2286
      %v3851 = vpack.c.b16 %v2310, %v2287
      %v3852 = vpack.c.b16 %v2311, %v2288
      %v3853 = vpack.c.b16 %v2312, %v2289
      %v3854 = vpack.c.b16 %v2313, %v2290
      %v3855 = vpack.c.b16 %v2314, %v2291
      %v3856 = vpack.c.b16 %v2315, %v2292
      %v3857 = vpack.c.b16 %v2316, %v2293
      %v3858 = vpack.c.b16 %v2317, %v2294
      %v3859 = vpack.c.b16 %v2318, %v2295
      %v3860 = vpack.c.b16 %v2319, %v2296
      %v3861 = vpack.c.b16 %v2320, %v2297
      %v3862 = vpack.c.b16 %v2321, %v2298
      %v3863 = vpack.c.b16 %v2322, %v2299
      %v3864 = vpack.c.b16 %v2323, %v2300
      %v3865 = vpack.c.b16 %v2324, %v2301
      %v3866 = vpack.c.b16 %v2325, %v2302
      %v3867 = vpack.c.b16 %v2326, %v2303
      %v3868 = vpack.c.b16 %v2327, %v2304
      %v3869 = vpack.c.b16 %v2328, %v2305
      %v3870 = vpack.c.b16 %v2329, %v2306
      %v3871 = vpack.c.b16 %v2330, %v2307
      %v3872 = vpack.c.b16 %v2331, %v2308
      %v3873 = vpack.c.b16 %v2355, %v2332
      %v3874 = vpack.c.b16 %v2356, %v2333
      %v3875 = vpack.c.b16 %v2357, %v2334
      %v3876 = vpack.c.b16 %v2358, %v2335
      %v3877 = vpack.c.b16 %v2359, %v2336
      %v3878 = vpack.c.b16 %v2360, %v2337
      %v3879 = vpack.c.b16 %v2361, %v2338
      %v3880 = vpack.c.b16 %v2362, %v2339
      %v3881 = vpack.c.b16 %v2363, %v2340
      %v3882 = vpack.c.b16 %v2364, %v2341
      %v3883 = vpack.c.b16 %v2365, %v2342
      %v3884 = vpack.c.b16 %v2366, %v2343
      %v3885 = vpack.c.b16 %v2367, %v2344
      %v3886 = vpack.c.b16 %v2368, %v2345
      %v3887 = vpack.c.b16 %v2369, %v2346
      %v3888 = vpack.c.b16 %v2370, %v2347
      %v3889 = vpack.c.b16 %v2371, %v2348
      %v3890 = vpack.c.b16 %v2372, %v2349
      %v3891 = vpack.c.b16 %v2373, %v2350
      %v3892 = vpack.c.b16 %v2374, %v2351
      %v3893 = vpack.c.b16 %v2375, %v2352
      %v3894 = vpack.c.b16 %v2376, %v2353
      %v3895 = vpack.c.b16 %v2377, %v2354
      %v3896 = vpack.c.b16 %v2401, %v2378
      %v3897 = vpack.c.b16 %v2402, %v2379
      %v3898 = vpack.c.b16 %v2403, %v2380
      %v3899 = vpack.c.b16 %v2404, %v2381
      %v3900 = vpack.c.b16 %v2405, %v2382
      %v3901 = vpack.c.b16 %v2406, %v2383
      %v3902 = vpack.c.b16 %v2407, %v2384
      %v3903 = vpack.c.b16 %v2408, %v2385
      %v3904 = vpack.c.b16 %v2409, %v2386
      %v3905 = vpack.c.b16 %v2410, %v2387
      %v3906 = vpack.c.b16 %v2411, %v2388
      %v3907 = vpack.c.b16 %v2412, %v2389
      %v3908 = vpack.c.b16 %v2413, %v2390
      %v3909 = vpack.c.b16 %v2414, %v2391
      %v3910 = vpack.c.b16 %v2415, %v2392
      %v3911 = vpack.c.b16 %v2416, %v2393
      %v3912 = vpack.c.b16 %v2417, %v2394
      %v3913 = vpack.c.b16 %v2418, %v2395
      %v3914 = vpack.c.b16 %v2419, %v2396
      %v3915 = vpack.c.b16 %v2420, %v2397
      %v3916 = vpack.c.b16 %v2421, %v2398
      %v3917 = vpack.c.b16 %v2422, %v2399
      %v3918 = vpack.c.b16 %v2423, %v2400
      %v3919 = vpack.c.b16 %v2447, %v2424
      %v3920 = vpack.c.b16 %v2448, %v2425
      %v3921 = vpack.c.b16 %v2449, %v2426
      %v3922 = vpack.c.b16 %v2450, %v2427
      %v3923 = vpack.c.b16 %v2451, %v2428
      %v3924 = vpack.c.b16 %v2452, %v2429
      %v3925 = vpack.c.b16 %v2453, %v2430
      %v3926 = vpack.c.b16 %v2454, %v2431
      %v3927 = vpack.c.b16 %v2455, %v2432
      %v3928 = vpack.c.b16 %v2456, %v2433
      %v3929 = vpack.c.b16 %v2457, %v2434
      %v3930 = vpack.c.b16 %v2458, %v2435
      %v3931 = vpack.c.b16 %v2459, %v2436
      %v3932 = vpack.c.b16 %v2460, %v2437
      %v3933 = vpack.c.b16 %v2461, %v2438
      %v3934 = vpack.c.b16 %v2462, %v2439
      %v3935 = vpack.c.b16 %v2463, %v2440
      %v3936 = vpack.c.b16 %v2464, %v2441
      %v3937 = vpack.c.b16 %v2465, %v2442
      %v3938 = vpack.c.b16 %v2466, %v2443
      %v3939 = vpack.c.b16 %v2467, %v2444
      %v3940 = vpack.c.b16 %v2468, %v2445
      %v3941 = vpack.c.b16 %v2469, %v2446
      %v3942 = vpack.c.b16 %v2493, %v2470
      %v3943 = vpack.c.b16 %v2494, %v2471
      %v3944 = vpack.c.b16 %v2495, %v2472
      %v3945 = vpack.c.b16 %v2496, %v2473
      %v3946 = vpack.c.b16 %v2497, %v2474
      %v3947 = vpack.c.b16 %v2498, %v2475
      %v3948 = vpack.c.b16 %v2499, %v2476
      %v3949 = vpack.c.b16 %v2500, %v2477
      %v3950 = vpack.c.b16 %v2501, %v2478
      %v3951 = vpack.c.b16 %v2502, %v2479
      %v3952 = vpack.c.b16 %v2503, %v2480
      %v3953 = vpack.c.b16 %v2504, %v2481
      %v3954 = vpack.c.b16 %v2505, %v2482
      %v3955 = vpack.c.b16 %v2506, %v2483
      %v3956 = vpack.c.b16 %v2507, %v2484
      %v3957 = vpack.c.b16 %v2508, %v2485
      %v3958 = vpack.c.b16 %v2509, %v2486
      %v3959 = vpack.c.b16 %v2510, %v2487
      %v3960 = vpack.c.b16 %v2511, %v2488
      %v3961 = vpack.c.b16 %v2512, %v2489
      %v3962 = vpack.c.b16 %v2513, %v2490
      %v3963 = vpack.c.b16 %v2514, %v2491
      %v3964 = vpack.c.b16 %v2515, %v2492
      %v3965 = vpack.c.b16 %v2539, %v2516
      %v3966 = vpack.c.b16 %v2540, %v2517
      %v3967 = vpack.c.b16 %v2541, %v2518
      %v3968 = vpack.c.b16 %v2542, %v2519
      %v3969 = vpack.c.b16 %v2543, %v2520
      %v3970 = vpack.c.b16 %v2544, %v2521
      %v3971 = vpack.c.b16 %v2545, %v2522
      %v3972 = vpack.c.b16 %v2546, %v2523
      %v3973 = vpack.c.b16 %v2547, %v2524
      %v3974 = vpack.c.b16 %v2548, %v2525
      %v3975 = vpack.c.b16 %v2549, %v2526
      %v3976 = vpack.c.b16 %v2550, %v2527
      %v3977 = vpack.c.b16 %v2551, %v2528
      %v3978 = vpack.c.b16 %v2552, %v2529
      %v3979 = vpack.c.b16 %v2553, %v2530
      %v3980 = vpack.c.b16 %v2554, %v2531
      %v3981 = vpack.c.b16 %v2555, %v2532
      %v3982 = vpack.c.b16 %v2556, %v2533
      %v3983 = vpack.c.b16 %v2557, %v2534
      %v3984 = vpack.c.b16 %v2558, %v2535
      %v3985 = vpack.c.b16 %v2559, %v2536
      %v3986 = vpack.c.b16 %v2560, %v2537
      %v3987 = vpack.c.b16 %v2561, %v2538
      %v3988 = vpack.c.b16 %v2585, %v2562
      %v3989 = vpack.c.b16 %v2586, %v2563
      %v3990 = vpack.c.b16 %v2587, %v2564
      %v3991 = vpack.c.b16 %v2588, %v2565
      %v3992 = vpack.c.b16 %v2589, %v2566
      %v3993 = vpack.c.b16 %v2590, %v2567
      %v3994 = vpack.c.b16 %v2591, %v2568
      %v3995 = vpack.c.b16 %v2592, %v2569
      %v3996 = vpack.c.b16 %v2593, %v2570
      %v3997 = vpack.c.b16 %v2594, %v2571
      %v3998 = vpack.c.b16 %v2595, %v2572
      %v3999 = vpack.c.b16 %v2596, %v2573
      %v4000 = vpack.c.b16 %v2597, %v2574
      %v4001 = vpack.c.b16 %v2598, %v2575
      %v4002 = vpack.c.b16 %v2599, %v2576
      %v4003 = vpack.c.b16 %v2600, %v2577
      %v4004 = vpack.c.b16 %v2601, %v2578
      %v4005 = vpack.c.b16 %v2602, %v2579
      %v4006 = vpack.c.b16 %v2603, %v2580
      %v4007 = vpack.c.b16 %v2604, %v2581
      %v4008 = vpack.c.b16 %v2605, %v2582
      %v4009 = vpack.c.b16 %v2606, %v2583
      %v4010 = vpack.c.b16 %v2607, %v2584
      %v4011 = vpack.c.b16 %v2631, %v2608
      %v4012 = vpack.c.b16 %v2632, %v2609
      %v4013 = vpack.c.b16 %v2633, %v2610
      %v4014 = vpack.c.b16 %v2634, %v2611
      %v4015 = vpack.c.b16 %v2635, %v2612
      %v4016 = vpack.c.b16 %v2636, %v2613
      %v4017 = vpack.c.b16 %v2637, %v2614
      %v4018 = vpack.c.b16 %v2638, %v2615
      %v4019 = vpack.c.b16 %v2639, %v2616
      %v4020 = vpack.c.b16 %v2640, %v2617
      %v4021 = vpack.c.b16 %v2641, %v2618
      %v4022 = vpack.c.b16 %v2642, %v2619
      %v4023 = vpack.c.b16 %v2643, %v2620
      %v4024 = vpack.c.b16 %v2644, %v2621
      %v4025 = vpack.c.b16 %v2645, %v2622
      %v4026 = vpack.c.b16 %v2646, %v2623
      %v4027 = vpack.c.b16 %v2647, %v2624
      %v4028 = vpack.c.b16 %v2648, %v2625
      %v4029 = vpack.c.b16 %v2649, %v2626
      %v4030 = vpack.c.b16 %v2650, %v2627
      %v4031 = vpack.c.b16 %v2651, %v2628
      %v4032 = vpack.c.b16 %v2652, %v2629
      %v4033 = vpack.c.b16 %v2653, %v2630
      %v4034 = vpack.c.b16 %v2677, %v2654
      %v4035 = vpack.c.b16 %v2678, %v2655
      %v4036 = vpack.c.b16 %v2679, %v2656
      %v4037 = vpack.c.b16 %v2680, %v2657
      %v4038 = vpack.c.b16 %v2681, %v2658
      %v4039 = vpack.c.b16 %v2682, %v2659
      %v4040 = vpack.c.b16 %v2683, %v2660
      %v4041 = vpack.c.b16 %v2684, %v2661
      %v4042 = vpack.c.b16 %v2685, %v2662
      %v4043 = vpack.c.b16 %v2686, %v2663
      %v4044 = vpack.c.b16 %v2687, %v2664
      %v4045 = vpack.c.b16 %v2688, %v2665
      %v4046 = vpack.c.b16 %v2689, %v2666
      %v4047 = vpack.c.b16 %v2690, %v2667
      %v4048 = vpack.c.b16 %v2691, %v2668
      %v4049 = vpack.c.b16 %v2692, %v2669
      %v4050 = vpack.c.b16 %v2693, %v2670
      %v4051 = vpack.c.b16 %v2694, %v2671
      %v4052 = vpack.c.b16 %v2695, %v2672
      %v4053 = vpack.c.b16 %v2696, %v2673
      %v4054 = vpack.c.b16 %v2697, %v2674
      %v4055 = vpack.c.b16 %v2698, %v2675
      %v4056 = vpack.c.b16 %v2699, %v2676
      %v4057 = vpack.c.b16 %v2723, %v2700
      %v4058 = vpack.c.b16 %v2724, %v2701
      %v4059 = vpack.c.b16 %v2725, %v2702
      %v4060 = vpack.c.b16 %v2726, %v2703
      %v4061 = vpack.c.b16 %v2727, %v2704
      %v4062 = vpack.c.b16 %v2728, %v2705
      %v4063 = vpack.c.b16 %v2729, %v2706
      %v4064 = vpack.c.b16 %v2730, %v2707
      %v4065 = vpack.c.b16 %v2731, %v2708
      %v4066 = vpack.c.b16 %v2732, %v2709
      %v4067 = vpack.c.b16 %v2733, %v2710
      %v4068 = vpack.c.b16 %v2734, %v2711
      %v4069 = vpack.c.b16 %v2735, %v2712
      %v4070 = vpack.c.b16 %v2736, %v2713
      %v4071 = vpack.c.b16 %v2737, %v2714
      %v4072 = vpack.c.b16 %v2738, %v2715
      %v4073 = vpack.c.b16 %v2739, %v2716
      %v4074 = vpack.c.b16 %v2740, %v2717
      %v4075 = vpack.c.b16 %v2741, %v2718
      %v4076 = vpack.c.b16 %v2742, %v2719
      %v4077 = vpack.c.b16 %v2743, %v2720
      %v4078 = vpack.c.b16 %v2744, %v2721
      %v4079 = vpack.c.b16 %v2745, %v2722
      %v4080 = vpack.c.b16 %v2769, %v2746
      %v4081 = vpack.c.b16 %v2770, %v2747
      %v4082 = vpack.c.b16 %v2771, %v2748
      %v4083 = vpack.c.b16 %v2772, %v2749
      %v4084 = vpack.c.b16 %v2773, %v2750
      %v4085 = vpack.c.b16 %v2774, %v2751
      %v4086 = vpack.c.b16 %v2775, %v2752
      %v4087 = vpack.c.b16 %v2776, %v2753
      %v4088 = vpack.c.b16 %v2777, %v2754
      %v4089 = vpack.c.b16 %v2778, %v2755
      %v4090 = vpack.c.b16 %v2779, %v2756
      %v4091 = vpack.c.b16 %v2780, %v2757
      %v4092 = vpack.c.b16 %v2781, %v2758
      %v4093 = vpack.c.b16 %v2782, %v2759
      %v4094 = vpack.c.b16 %v2783, %v2760
      %v4095 = vpack.c.b16 %v2784, %v2761
      %v4096 = vpack.c.b16 %v2785, %v2762
      %v4097 = vpack.c.b16 %v2786, %v2763
      %v4098 = vpack.c.b16 %v2787, %v2764
      %v4099 = vpack.c.b16 %v2788, %v2765
      %v4100 = vpack.c.b16 %v2789, %v2766
      %v4101 = vpack.c.b16 %v2790, %v2767
      %v4102 = vpack.c.b16 %v2791, %v2768
      %v4103 = vpack.c.b16 %v2815, %v2792
      %v4104 = vpack.c.b16 %v2816, %v2793
      %v4105 = vpack.c.b16 %v2817, %v2794
      %v4106 = vpack.c.b16 %v2818, %v2795
      %v4107 = vpack.c.b16 %v2819, %v2796
      %v4108 = vpack.c.b16 %v2820, %v2797
      %v4109 = vpack.c.b16 %v2821, %v2798
      %v4110 = vpack.c.b16 %v2822, %v2799
      %v4111 = vpack.c.b16 %v2823, %v2800
      %v4112 = vpack.c.b16 %v2824, %v2801
      %v4113 = vpack.c.b16 %v2825, %v2802
      %v4114 = vpack.c.b16 %v2826, %v2803
      %v4115 = vpack.c.b16 %v2827, %v2804
      %v4116 = vpack.c.b16 %v2828, %v2805
      %v4117 = vpack.c.b16 %v2829, %v2806
      %v4118 = vpack.c.b16 %v2830, %v2807
      %v4119 = vpack.c.b16 %v2831, %v2808
      %v4120 = vpack.c.b16 %v2832, %v2809
      %v4121 = vpack.c.b16 %v2833, %v2810
      %v4122 = vpack.c.b16 %v2834, %v2811
      %v4123 = vpack.c.b16 %v2835, %v2812
      %v4124 = vpack.c.b16 %v2836, %v2813
      %v4125 = vpack.c.b16 %v2837, %v2814
      %v4126 = vpack.c.b16 %v2861, %v2838
      %v4127 = vpack.c.b16 %v2862, %v2839
      %v4128 = vpack.c.b16 %v2863, %v2840
      %v4129 = vpack.c.b16 %v2864, %v2841
      %v4130 = vpack.c.b16 %v2865, %v2842
      %v4131 = vpack.c.b16 %v2866, %v2843
      %v4132 = vpack.c.b16 %v2867, %v2844
      %v4133 = vpack.c.b16 %v2868, %v2845
      %v4134 = vpack.c.b16 %v2869, %v2846
      %v4135 = vpack.c.b16 %v2870, %v2847
      %v4136 = vpack.c.b16 %v2871, %v2848
      %v4137 = vpack.c.b16 %v2872, %v2849
      %v4138 = vpack.c.b16 %v2873, %v2850
      %v4139 = vpack.c.b16 %v2874, %v2851
      %v4140 = vpack.c.b16 %v2875, %v2852
      %v4141 = vpack.c.b16 %v2876, %v2853
      %v4142 = vpack.c.b16 %v2877, %v2854
      %v4143 = vpack.c.b16 %v2878, %v2855
      %v4144 = vpack.c.b16 %v2879, %v2856
      %v4145 = vpack.c.b16 %v2880, %v2857
      %v4146 = vpack.c.b16 %v2881, %v2858
      %v4147 = vpack.c.b16 %v2882, %v2859
      %v4148 = vpack.c.b16 %v2883, %v2860
      %v4149 = vpack.c.b16 %v2907, %v2884
      %v4150 = vpack.c.b16 %v2908, %v2885
      %v4151 = vpack.c.b16 %v2909, %v2886
      %v4152 = vpack.c.b16 %v2910, %v2887
      %v4153 = vpack.c.b16 %v2911, %v2888
      %v4154 = vpack.c.b16 %v2912, %v2889
      %v4155 = vpack.c.b16 %v2913, %v2890
      %v4156 = vpack.c.b16 %v2914, %v2891
      %v4157 = vpack.c.b16 %v2915, %v2892
      %v4158 = vpack.c.b16 %v2916, %v2893
      %v4159 = vpack.c.b16 %v2917, %v2894
      %v4160 = vpack.c.b16 %v2918, %v2895
      %v4161 = vpack.c.b16 %v2919, %v2896
      %v4162 = vpack.c.b16 %v2920, %v2897
      %v4163 = vpack.c.b16 %v2921, %v2898
      %v4164 = vpack.c.b16 %v2922, %v2899
      %v4165 = vpack.c.b16 %v2923, %v2900
      %v4166 = vpack.c.b16 %v2924, %v2901
      %v4167 = vpack.c.b16 %v2925, %v2902
      %v4168 = vpack.c.b16 %v2926, %v2903
      %v4169 = vpack.c.b16 %v2927, %v2904
      %v4170 = vpack.c.b16 %v2928, %v2905
      %v4171 = vpack.c.b16 %v2929, %v2906
      %v4172 = vpack.c.b16 %v2953, %v2930
      %v4173 = vpack.c.b16 %v2954, %v2931
      %v4174 = vpack.c.b16 %v2955, %v2932
      %v4175 = vpack.c.b16 %v2956, %v2933
      %v4176 = vpack.c.b16 %v2957, %v2934
      %v4177 = vpack.c.b16 %v2958, %v2935
      %v4178 = vpack.c.b16 %v2959, %v2936
      %v4179 = vpack.c.b16 %v2960, %v2937
      %v4180 = vpack.c.b16 %v2961, %v2938
      %v4181 = vpack.c.b16 %v2962, %v2939
      %v4182 = vpack.c.b16 %v2963, %v2940
      %v4183 = vpack.c.b16 %v2964, %v2941
      %v4184 = vpack.c.b16 %v2965, %v2942
      %v4185 = vpack.c.b16 %v2966, %v2943
      %v4186 = vpack.c.b16 %v2967, %v2944
      %v4187 = vpack.c.b16 %v2968, %v2945
      %v4188 = vpack.c.b16 %v2969, %v2946
      %v4189 = vpack.c.b16 %v2970, %v2947
      %v4190 = vpack.c.b16 %v2971, %v2948
      %v4191 = vpack.c.b16 %v2972, %v2949
      %v4192 = vpack.c.b16 %v2973, %v2950
      %v4193 = vpack.c.b16 %v2974, %v2951
      %v4194 = vpack.c.b16 %v2975, %v2952
      %v4195 = vpack.c.b16 %v2999, %v2976
      %v4196 = vpack.c.b16 %v3000, %v2977
      %v4197 = vpack.c.b16 %v3001, %v2978
      %v4198 = vpack.c.b16 %v3002, %v2979
      %v4199 = vpack.c.b16 %v3003, %v2980
      %v4200 = vpack.c.b16 %v3004, %v2981
      %v4201 = vpack.c.b16 %v3005, %v2982
      %v4202 = vpack.c.b16 %v3006, %v2983
      %v4203 = vpack.c.b16 %v3007, %v2984
      %v4204 = vpack.c.b16 %v3008, %v2985
      %v4205 = vpack.c.b16 %v3009, %v2986
      %v4206 = vpack.c.b16 %v3010, %v2987
      %v4207 = vpack.c.b16 %v3011, %v2988
      %v4208 = vpack.c.b16 %v3012, %v2989
      %v4209 = vpack.c.b16 %v3013, %v2990
      %v4210 = vpack.c.b16 %v3014, %v2991
      %v4211 = vpack.c.b16 %v3015, %v2992
      %v4212 = vpack.c.b16 %v3016, %v2993
      %v4213 = vpack.c.b16 %v3017, %v2994
      %v4214 = vpack.c.b16 %v3018, %v2995
      %v4215 = vpack.c.b16 %v3019, %v2996
      %v4216 = vpack.c.b16 %v3020, %v2997
      %v4217 = vpack.c.b16 %v3021, %v2998
      %v4218 = vpack.c.b16 %v3045, %v3022
      %v4219 = vpack.c.b16 %v3046, %v3023
      %v4220 = vpack.c.b16 %v3047, %v3024
      %v4221 = vpack.c.b16 %v3048, %v3025
      %v4222 = vpack.c.b16 %v3049, %v3026
      %v4223 = vpack.c.b16 %v3050, %v3027
      %v4224 = vpack.c.b16 %v3051, %v3028
      %v4225 = vpack.c.b16 %v3052, %v3029
      %v4226 = vpack.c.b16 %v3053, %v3030
      %v4227 = vpack.c.b16 %v3054, %v3031
      %v4228 = vpack.c.b16 %v3055, %v3032
      %v4229 = vpack.c.b16 %v3056, %v3033
      %v4230 = vpack.c.b16 %v3057, %v3034
      %v4231 = vpack.c.b16 %v3058, %v3035
      %v4232 = vpack.c.b16 %v3059, %v3036
      %v4233 = vpack.c.b16 %v3060, %v3037
      %v4234 = vpack.c.b16 %v3061, %v3038
      %v4235 = vpack.c.b16 %v3062, %v3039
      %v4236 = vpack.c.b16 %v3063, %v3040
      %v4237 = vpack.c.b16 %v3064, %v3041
      %v4238 = vpack.c.b16 %v3065, %v3042
      %v4239 = vpack.c.b16 %v3066, %v3043
      %v4240 = vpack.c.b16 %v3067, %v3044
      %v4241 = vpack.c.b16 %v3091, %v3068
      %v4242 = vpack.c.b16 %v3092, %v3069
      %v4243 = vpack.c.b16 %v3093, %v3070
      %v4244 = vpack.c.b16 %v3094, %v3071
      %v4245 = vpack.c.b16 %v3095, %v3072
      %v4246 = vpack.c.b16 %v3096, %v3073
      %v4247 = vpack.c.b16 %v3097, %v3074
      %v4248 = vpack.c.b16 %v3098, %v3075
      %v4249 = vpack.c.b16 %v3099, %v3076
      %v4250 = vpack.c.b16 %v3100, %v3077
      %v4251 = vpack.c.b16 %v3101, %v3078
      %v4252 = vpack.c.b16 %v3102, %v3079
      %v4253 = vpack.c.b16 %v3103, %v3080
      %v4254 = vpack.c.b16 %v3104, %v3081
      %v4255 = vpack.c.b16 %v3105, %v3082
      %v4256 = vpack.c.b16 %v3106, %v3083
      %v4257 = vpack.c.b16 %v3107, %v3084
      %v4258 = vpack.c.b16 %v3108, %v3085
      %v4259 = vpack.c.b16 %v3109, %v3086
      %v4260 = vpack.c.b16 %v3110, %v3087
      %v4261 = vpack.c.b16 %v3111, %v3088
      %v4262 = vpack.c.b16 %v3112, %v3089
      %v4263 = vpack.c.b16 %v3113, %v3090
      %v4264 = vpack.c.b16 %v3137, %v3114
      %v4265 = vpack.c.b16 %v3138, %v3115
      %v4266 = vpack.c.b16 %v3139, %v3116
      %v4267 = vpack.c.b16 %v3140, %v3117
      %v4268 = vpack.c.b16 %v3141, %v3118
      %v4269 = vpack.c.b16 %v3142, %v3119
      %v4270 = vpack.c.b16 %v3143, %v3120
      %v4271 = vpack.c.b16 %v3144, %v3121
      %v4272 = vpack.c.b16 %v3145, %v3122
      %v4273 = vpack.c.b16 %v3146, %v3123
      %v4274 = vpack.c.b16 %v3147, %v3124
      %v4275 = vpack.c.b16 %v3148, %v3125
      %v4276 = vpack.c.b16 %v3149, %v3126
      %v4277 = vpack.c.b16 %v3150, %v3127
      %v4278 = vpack.c.b16 %v3151, %v3128
      %v4279 = vpack.c.b16 %v3152, %v3129
      %v4280 = vpack.c.b16 %v3153, %v3130
      %v4281 = vpack.c.b16 %v3154, %v3131
      %v4282 = vpack.c.b16 %v3155, %v3132
      %v4283 = vpack.c.b16 %v3156, %v3133
      %v4284 = vpack.c.b16 %v3157, %v3134
      %v4285 = vpack.c.b16 %v3158, %v3135
      %v4286 = vpack.c.b16 %v3159, %v3136
      %v4287 = vpack.c.b16 %v3183, %v3160
      %v4288 = vpack.c.b16 %v3184, %v3161
      %v4289 = vpack.c.b16 %v3185, %v3162
      %v4290 = vpack.c.b16 %v3186, %v3163
      %v4291 = vpack.c.b16 %v3187, %v3164
      %v4292 = vpack.c.b16 %v3188, %v3165
      %v4293 = vpack.c.b16 %v3189, %v3166
      %v4294 = vpack.c.b16 %v3190, %v3167
      %v4295 = vpack.c.b16 %v3191, %v3168
      %v4296 = vpack.c.b16 %v3192, %v3169
      %v4297 = vpack.c.b16 %v3193, %v3170
      %v4298 = vpack.c.b16 %v3194, %v3171
      %v4299 = vpack.c.b16 %v3195, %v3172
      %v4300 = vpack.c.b16 %v3196, %v3173
      %v4301 = vpack.c.b16 %v3197, %v3174
      %v4302 = vpack.c.b16 %v3198, %v3175
      %v4303 = vpack.c.b16 %v3199, %v3176
      %v4304 = vpack.c.b16 %v3200, %v3177
      %v4305 = vpack.c.b16 %v3201, %v3178
      %v4306 = vpack.c.b16 %v3202, %v3179
      %v4307 = vpack.c.b16 %v3203, %v3180
      %v4308 = vpack.c.b16 %v3204, %v3181
      %v4309 = vpack.c.b16 %v3205, %v3182
      %v4310 = vpack.c.b16 %v3229, %v3206
      %v4311 = vpack.c.b16 %v3230, %v3207
      %v4312 = vpack.c.b16 %v3231, %v3208
      %v4313 = vpack.c.b16 %v3232, %v3209
      %v4314 = vpack.c.b16 %v3233, %v3210
      %v4315 = vpack.c.b16 %v3234, %v3211
      %v4316 = vpack.c.b16 %v3235, %v3212
      %v4317 = vpack.c.b16 %v3236, %v3213
      %v4318 = vpack.c.b16 %v3237, %v3214
      %v4319 = vpack.c.b16 %v3238, %v3215
      %v4320 = vpack.c.b16 %v3239, %v3216
      %v4321 = vpack.c.b16 %v3240, %v3217
      %v4322 = vpack.c.b16 %v3241, %v3218
      %v4323 = vpack.c.b16 %v3242, %v3219
      %v4324 = vpack.c.b16 %v3243, %v3220
      %v4325 = vpack.c.b16 %v3244, %v3221
      %v4326 = vpack.c.b16 %v3245, %v3222
      %v4327 = vpack.c.b16 %v3246, %v3223
      %v4328 = vpack.c.b16 %v3247, %v3224
      %v4329 = vpack.c.b16 %v3248, %v3225
      %v4330 = vpack.c.b16 %v3249, %v3226
      %v4331 = vpack.c.b16 %v3250, %v3227
      %v4332 = vpack.c.b16 %v3251, %v3228
      %v4333 = vpack.c.b16 %v3275, %v3252
      %v4334 = vpack.c.b16 %v3276, %v3253
      %v4335 = vpack.c.b16 %v3277, %v3254
      %v4336 = vpack.c.b16 %v3278, %v3255
      %v4337 = vpack.c.b16 %v3279, %v3256
      %v4338 = vpack.c.b16 %v3280, %v3257
      %v4339 = vpack.c.b16 %v3281, %v3258
      %v4340 = vpack.c.b16 %v3282, %v3259
      %v4341 = vpack.c.b16 %v3283, %v3260
      %v4342 = vpack.c.b16 %v3284, %v3261
      %v4343 = vpack.c.b16 %v3285, %v3262
      %v4344 = vpack.c.b16 %v3286, %v3263
      %v4345 = vpack.c.b16 %v3287, %v3264
      %v4346 = vpack.c.b16 %v3288, %v3265
      %v4347 = vpack.c.b16 %v3289, %v3266
      %v4348 = vpack.c.b16 %v3290, %v3267
      %v4349 = vpack.c.b16 %v3291, %v3268
      %v4350 = vpack.c.b16 %v3292, %v3269
      %v4351 = vpack.c.b16 %v3293, %v3270
      %v4352 = vpack.c.b16 %v3294, %v3271
      %v4353 = vpack.c.b16 %v3295, %v3272
      %v4354 = vpack.c.b16 %v3296, %v3273
      %v4355 = vpack.c.b16 %v3297, %v3274
      %v4356 = vpack.c.b16 %v3321, %v3298
      %v4357 = vpack.c.b16 %v3322, %v3299
      %v4358 = vpack.c.b16 %v3323, %v3300
      %v4359 = vpack.c.b16 %v3324, %v3301
      %v4360 = vpack.c.b16 %v3325, %v3302
      %v4361 = vpack.c.b16 %v3326, %v3303
      %v4362 = vpack.c.b16 %v3327, %v3304
      %v4363 = vpack.c.b16 %v3328, %v3305
      %v4364 = vpack.c.b16 %v3329, %v3306
      %v4365 = vpack.c.b16 %v3330, %v3307
      %v4366 = vpack.c.b16 %v3331, %v3308
      %v4367 = vpack.c.b16 %v3332, %v3309
      %v4368 = vpack.c.b16 %v3333, %v3310
      %v4369 = vpack.c.b16 %v3334, %v3311
      %v4370 = vpack.c.b16 %v3335, %v3312
      %v4371 = vpack.c.b16 %v3336, %v3313
      %v4372 = vpack.c.b16 %v3337, %v3314
      %v4373 = vpack.c.b16 %v3338, %v3315
      %v4374 = vpack.c.b16 %v3339, %v3316
      %v4375 = vpack.c.b16 %v3340, %v3317
      %v4376 = vpack.c.b16 %v3341, %v3318
      %v4377 = vpack.c.b16 %v3342, %v3319
      %v4378 = vpack.c.b16 %v3343, %v3320
      %v4379 = vpack.c.b16 %v3367, %v3344
      %v4380 = vpack.c.b16 %v3368, %v3345
      %v4381 = vpack.c.b16 %v3369, %v3346
      %v4382 = vpack.c.b16 %v3370, %v3347
      %v4383 = vpack.c.b16 %v3371, %v3348
      %v4384 = vpack.c.b16 %v3372, %v3349
      %v4385 = vpack.c.b16 %v3373, %v3350
      %v4386 = vpack.c.b16 %v3374, %v3351
      %v4387 = vpack.c.b16 %v3375, %v3352
      %v4388 = vpack.c.b16 %v3376, %v3353
      %v4389 = vpack.c.b16 %v3377, %v3354
      %v4390 = vpack.c.b16 %v3378, %v3355
      %v4391 = vpack.c.b16 %v3379, %v3356
      %v4392 = vpack.c.b16 %v3380, %v3357
      %v4393 = vpack.c.b16 %v3381, %v3358
      %v4394 = vpack.c.b16 %v3382, %v3359
      %v4395 = vpack.c.b16 %v3383, %v3360
      %v4396 = vpack.c.b16 %v3384, %v3361
      %v4397 = vpack.c.b16 %v3385, %v3362
      %v4398 = vpack.c.b16 %v3386, %v3363
      %v4399 = vpack.c.b16 %v3387, %v3364
      %v4400 = vpack.c.b16 %v3388, %v3365
      %v4401 = vpack.c.b16 %v3389, %v3366
      %v4402 = vpack.c.b16 %v3413, %v3390
      %v4403 = vpack.c.b16 %v3414, %v3391
      %v4404 = vpack.c.b16 %v3415, %v3392
      %v4405 = vpack.c.b16 %v3416, %v3393
      %v4406 = vpack.c.b16 %v3417, %v3394
      %v4407 = vpack.c.b16 %v3418, %v3395
      %v4408 = vpack.c.b16 %v3419, %v3396
      %v4409 = vpack.c.b16 %v3420, %v3397
      %v4410 = vpack.c.b16 %v3421, %v3398
      %v4411 = vpack.c.b16 %v3422, %v3399
      %v4412 = vpack.c.b16 %v3423, %v3400
      %v4413 = vpack.c.b16 %v3424, %v3401
      %v4414 = vpack.c.b16 %v3425, %v3402
      %v4415 = vpack.c.b16 %v3426, %v3403
      %v4416 = vpack.c.b16 %v3427, %v3404
      %v4417 = vpack.c.b16 %v3428, %v3405
      %v4418 = vpack.c.b16 %v3429, %v3406
      %v4419 = vpack.c.b16 %v3430, %v3407
      %v4420 = vpack.c.b16 %v3431, %v3408
      %v4421 = vpack.c.b16 %v3432, %v3409
      %v4422 = vpack.c.b16 %v3433, %v3410
      %v4423 = vpack.c.b16 %v3434, %v3411
      %v4424 = vpack.c.b16 %v3435, %v3412
      %v4425 = vpack.c.b16 %v3459, %v3436
      %v4426 = vpack.c.b16 %v3460, %v3437
      %v4427 = vpack.c.b16 %v3461, %v3438
      %v4428 = vpack.c.b16 %v3462, %v3439
      %v4429 = vpack.c.b16 %v3463, %v3440
      %v4430 = vpack.c.b16 %v3464, %v3441
      %v4431 = vpack.c.b16 %v3465, %v3442
      %v4432 = vpack.c.b16 %v3466, %v3443
      %v4433 = vpack.c.b16 %v3467, %v3444
      %v4434 = vpack.c.b16 %v3468, %v3445
      %v4435 = vpack.c.b16 %v3469, %v3446
      %v4436 = vpack.c.b16 %v3470, %v3447
      %v4437 = vpack.c.b16 %v3471, %v3448
      %v4438 = vpack.c.b16 %v3472, %v3449
      %v4439 = vpack.c.b16 %v3473, %v3450
      %v4440 = vpack.c.b16 %v3474, %v3451
      %v4441 = vpack.c.b16 %v3475, %v3452
      %v4442 = vpack.c.b16 %v3476, %v3453
      %v4443 = vpack.c.b16 %v3477, %v3454
      %v4444 = vpack.c.b16 %v3478, %v3455
      %v4445 = vpack.c.b16 %v3479, %v3456
      %v4446 = vpack.c.b16 %v3480, %v3457
      %v4447 = vpack.c.b16 %v3481, %v3458
      %v4448 = vpack.c.b16 %v3505, %v3482
      %v4449 = vpack.c.b16 %v3506, %v3483
      %v4450 = vpack.c.b16 %v3507, %v3484
      %v4451 = vpack.c.b16 %v3508, %v3485
      %v4452 = vpack.c.b16 %v3509, %v3486
      %v4453 = vpack.c.b16 %v3510, %v3487
      %v4454 = vpack.c.b16 %v3511, %v3488
      %v4455 = vpack.c.b16 %v3512, %v3489
      %v4456 = vpack.c.b16 %v3513, %v3490
      %v4457 = vpack.c.b16 %v3514, %v3491
      %v4458 = vpack.c.b16 %v3515, %v3492
      %v4459 = vpack.c.b16 %v3516, %v3493
      %v4460 = vpack.c.b16 %v3517, %v3494
      %v4461 = vpack.c.b16 %v3518, %v3495
      %v4462 = vpack.c.b16 %v3519, %v3496
      %v4463 = vpack.c.b16 %v3520, %v3497
      %v4464 = vpack.c.b16 %v3521, %v3498
      %v4465 = vpack.c.b16 %v3522, %v3499
      %v4466 = vpack.c.b16 %v3523, %v3500
      %v4467 = vpack.c.b16 %v3524, %v3501
      %v4468 = vpack.c.b16 %v3525, %v3502
      %v4469 = vpack.c.b16 %v3526, %v3503
      %v4470 = vpack.c.b16 %v3527, %v3504
      %v4471 = vpack.c.b16 %v3551, %v3528
      %v4472 = vpack.c.b16 %v3552, %v3529
      %v4473 = vpack.c.b16 %v3553, %v3530
      %v4474 = vpack.c.b16 %v3554, %v3531
      %v4475 = vpack.c.b16 %v3555, %v3532
      %v4476 = vpack.c.b16 %v3556, %v3533
      %v4477 = vpack.c.b16 %v3557, %v3534
      %v4478 = vpack.c.b16 %v3558, %v3535
      %v4479 = vpack.c.b16 %v3559, %v3536
      %v4480 = vpack.c.b16 %v3560, %v3537
      %v4481 = vpack.c.b16 %v3561, %v3538
      %v4482 = vpack.c.b16 %v3562, %v3539
      %v4483 = vpack.c.b16 %v3563, %v3540
      %v4484 = vpack.c.b16 %v3564, %v3541
      %v4485 = vpack.c.b16 %v3565, %v3542
      %v4486 = vpack.c.b16 %v3566, %v3543
      %v4487 = vpack.c.b16 %v3567, %v3544
      %v4488 = vpack.c.b16 %v3568, %v3545
      %v4489 = vpack.c.b16 %v3569, %v3546
      %v4490 = vpack.c.b16 %v3570, %v3547
      %v4491 = vpack.c.b16 %v3571, %v3548
      %v4492 = vpack.c.b16 %v3572, %v3549
      %v4493 = vpack.c.b16 %v3573, %v3550
      %v4494 = vpack.c.b16 %v3597, %v3574
      %v4495 = vpack.c.b16 %v3598, %v3575
      %v4496 = vpack.c.b16 %v3599, %v3576
      %v4497 = vpack.c.b16 %v3600, %v3577
      %v4498 = vpack.c.b16 %v3601, %v3578
      %v4499 = vpack.c.b16 %v3602, %v3579
      %v4500 = vpack.c.b16 %v3603, %v3580
      %v4501 = vpack.c.b16 %v3604, %v3581
      %v4502 = vpack.c.b16 %v3605, %v3582
      %v4503 = vpack.c.b16 %v3606, %v3583
      %v4504 = vpack.c.b16 %v3607, %v3584
      %v4505 = vpack.c.b16 %v3608, %v3585
      %v4506 = vpack.c.b16 %v3609, %v3586
      %v4507 = vpack.c.b16 %v3610, %v3587
      %v4508 = vpack.c.b16 %v3611, %v3588
      %v4509 = vpack.c.b16 %v3612, %v3589
      %v4510 = vpack.c.b16 %v3613, %v3590
      %v4511 = vpack.c.b16 %v3614, %v3591
      %v4512 = vpack.c.b16 %v3615, %v3592
      %v4513 = vpack.c.b16 %v3616, %v3593
      %v4514 = vpack.c.b16 %v3617, %v3594
      %v4515 = vpack.c.b16 %v3618, %v3595
      %v4516 = vpack.c.b16 %v3619, %v3596
      %v4517 = vpack.c.b16 %v3643, %v3620
      %v4518 = vpack.c.b16 %v3644, %v3621
      %v4519 = vpack.c.b16 %v3645, %v3622
      %v4520 = vpack.c.b16 %v3646, %v3623
      %v4521 = vpack.c.b16 %v3647, %v3624
      %v4522 = vpack.c.b16 %v3648, %v3625
      %v4523 = vpack.c.b16 %v3649, %v3626
      %v4524 = vpack.c.b16 %v3650, %v3627
      %v4525 = vpack.c.b16 %v3651, %v3628
      %v4526 = vpack.c.b16 %v3652, %v3629
      %v4527 = vpack.c.b16 %v3653, %v3630
      %v4528 = vpack.c.b16 %v3654, %v3631
      %v4529 = vpack.c.b16 %v3655, %v3632
      %v4530 = vpack.c.b16 %v3656, %v3633
      %v4531 = vpack.c.b16 %v3657, %v3634
      %v4532 = vpack.c.b16 %v3658, %v3635
      %v4533 = vpack.c.b16 %v3659, %v3636
      %v4534 = vpack.c.b16 %v3660, %v3637
      %v4535 = vpack.c.b16 %v3661, %v3638
      %v4536 = vpack.c.b16 %v3662, %v3639
      %v4537 = vpack.c.b16 %v3663, %v3640
      %v4538 = vpack.c.b16 %v3664, %v3641
      %v4539 = vpack.c.b16 %v3665, %v3642
      %v4540 = vpack.c.b16 %v3689, %v3666
      %v4541 = vpack.c.b16 %v3690, %v3667
      %v4542 = vpack.c.b16 %v3691, %v3668
      %v4543 = vpack.c.b16 %v3692, %v3669
      %v4544 = vpack.c.b16 %v3693, %v3670
      %v4545 = vpack.c.b16 %v3694, %v3671
      %v4546 = vpack.c.b16 %v3695, %v3672
      %v4547 = vpack.c.b16 %v3696, %v3673
      %v4548 = vpack.c.b16 %v3697, %v3674
      %v4549 = vpack.c.b16 %v3698, %v3675
      %v4550 = vpack.c.b16 %v3699, %v3676
      %v4551 = vpack.c.b16 %v3700, %v3677
      %v4552 = vpack.c.b16 %v3701, %v3678
      %v4553 = vpack.c.b16 %v3702, %v3679
      %v4554 = vpack.c.b16 %v3703, %v3680
      %v4555 = vpack.c.b16 %v3704, %v3681
      %v4556 = vpack.c.b16 %v3705, %v3682
      %v4557 = vpack.c.b16 %v3706, %v3683
      %v4558 = vpack.c.b16 %v3707, %v3684
      %v4559 = vpack.c.b16 %v3708, %v3685
      %v4560 = vpack.c.b16 %v3709, %v3686
      %v4561 = vpack.c.b16 %v3710, %v3687
      %v4562 = vpack.c.b16 %v3711, %v3688
      %vm5391 = vcmask 621568
      %v5393 = vsel %vm5391, %v1108, 0
      %v5396 = vsel %vm5391, %v1113, 0
      %vm5398 = vcmask 1045504
      %v5400 = vsel %vm5398, %v4540, 0
      %v5403 = vsel %vm5398, %v4541, 0
      %v5406 = vsel %vm5398, %v4542, 0
      %v5409 = vsel %vm5398, %v4543, 0
      %v5412 = vsel %vm5398, %v4544, 0
      %v5415 = vsel %vm5398, %v4545, 0
      %v5418 = vsel %vm5398, %v4546, 0
      %v5421 = vsel %vm5398, %v4547, 0
      %v5424 = vsel %vm5398, %v4548, 0
      %v5427 = vsel %vm5398, %v4549, 0
      %v5430 = vsel %vm5398, %v4550, 0
      %v5433 = vsel %vm5398, %v4551, 0
      %v5436 = vsel %vm5398, %v4552, 0
      %v5439 = vsel %vm5398, %v4553, 0
      %v5442 = vsel %vm5398, %v4554, 0
      %v5445 = vsel %vm5398, %v4555, 0
      %v5448 = vsel %vm5398, %v4556, 0
      %v5451 = vsel %vm5398, %v4557, 0
      %v5454 = vsel %vm5398, %v4558, 0
      %v5457 = vsel %vm5398, %v4559, 0
      %v5460 = vsel %vm5398, %v4560, 0
      %v5463 = vsel %vm5398, %v4561, 0
      %v5466 = vsel %vm5398, %v4562, 0
      %5468 = vmatpush.bf16.msra.mxu0 %v3873
      %5469 = vmatpush.bf16.msra.mxu0 %v3850
      %5470 = vmatpush.bf16.msra.mxu0 %v3827
      %5471 = vmatpush.bf16.msra.mxu0 %v3804
      %5472 = vmatpush.bf16.msra.mxu0 %v3781
      %5473 = vmatpush.bf16.msra.mxu0 %v3758
      %5474 = vmatpush.bf16.msra.mxu0 %v3735
      %5475 = vmatpush.bf16.msra.mxu0 %v3712
      %5476 = vmatmul.bf16.gmra.mxu0 %v1104
      %v5477 = vpop.f32.mrf.mxu0
      %v5478 = vadd.f32 0.0, %v5477
      %v5479 = vpop.f32.mrf.mxu0
      %v5480 = vadd.f32 0.0, %v5479
      %5481 = vmatmul.bf16.gmra.mxu0 %v1109
      %v5482 = vpop.f32.mrf.mxu0
      %v5483 = vadd.f32 0.0, %v5482
      %v5484 = vpop.f32.mrf.mxu0
      %v5485 = vadd.f32 0.0, %v5484
      %5486 = vdwg.mxu0
      %5487 = vmatpush.bf16.msra.mxu0 %v4057
      %5488 = vmatpush.bf16.msra.mxu0 %v4034
      %5489 = vmatpush.bf16.msra.mxu0 %v4011
      %5490 = vmatpush.bf16.msra.mxu0 %v3988
      %5491 = vmatpush.bf16.msra.mxu0 %v3965
      %5492 = vmatpush.bf16.msra.mxu0 %v3942
      %5493 = vmatpush.bf16.msra.mxu0 %v3919
      %5494 = vmatpush.bf16.msra.mxu0 %v3896
      %5495 = vmatmul.bf16.gmra.mxu0 %v1105
      %v5496 = vpop.f32.mrf.mxu0
      %v5497 = vadd.f32 %v5478, %v5496
      %v5498 = vpop.f32.mrf.mxu0
      %v5499 = vadd.f32 %v5480, %v5498
      %5500 = vmatmul.bf16.gmra.mxu0 %v1110
      %v5501 = vpop.f32.mrf.mxu0
      %v5502 = vadd.f32 %v5483, %v5501
      %v5503 = vpop.f32.mrf.mxu0
      %v5504 = vadd.f32 %v5485, %v5503
      %5505 = vdwg.mxu0
      %5506 = vmatpush.bf16.msra.mxu0 %v4241
      %5507 = vmatpush.bf16.msra.mxu0 %v4218
      %5508 = vmatpush.bf16.msra.mxu0 %v4195
      %5509 = vmatpush.bf16.msra.mxu0 %v4172
      %5510 = vmatpush.bf16.msra.mxu0 %v4149
      %5511 = vmatpush.bf16.msra.mxu0 %v4126
      %5512 = vmatpush.bf16.msra.mxu0 %v4103
      %5513 = vmatpush.bf16.msra.mxu0 %v4080
      %5514 = vmatmul.bf16.gmra.mxu0 %v1106
      %v5515 = vpop.f32.mrf.mxu0
      %v5516 = vadd.f32 %v5497, %v5515
      %v5517 = vpop.f32.mrf.mxu0
      %v5518 = vadd.f32 %v5499, %v5517
      %5519 = vmatmul.bf16.gmra.mxu0 %v1111
      %v5520 = vpop.f32.mrf.mxu0
      %v5521 = vadd.f32 %v5502, %v5520
      %v5522 = vpop.f32.mrf.mxu0
      %v5523 = vadd.f32 %v5504, %v5522
      %5524 = vdwg.mxu0
      %5525 = vmatpush.bf16.msra.mxu0 %v4425
      %5526 = vmatpush.bf16.msra.mxu0 %v4402
      %5527 = vmatpush.bf16.msra.mxu0 %v4379
      %5528 = vmatpush.bf16.msra.mxu0 %v4356
      %5529 = vmatpush.bf16.msra.mxu0 %v4333
      %5530 = vmatpush.bf16.msra.mxu0 %v4310
      %5531 = vmatpush.bf16.msra.mxu0 %v4287
      %5532 = vmatpush.bf16.msra.mxu0 %v4264
      %5533 = vmatmul.bf16.gmra.mxu0 %v1107
      %v5534 = vpop.f32.mrf.mxu0
      %v5535 = vadd.f32 %v5516, %v5534
      %v5536 = vpop.f32.mrf.mxu0
      %v5537 = vadd.f32 %v5518, %v5536
      %5538 = vmatmul.bf16.gmra.mxu0 %v1112
      %v5539 = vpop.f32.mrf.mxu0
      %v5540 = vadd.f32 %v5521, %v5539
      %v5541 = vpop.f32.mrf.mxu0
      %v5542 = vadd.f32 %v5523, %v5541
      %5543 = vdwg.mxu0
      %5544 = vmatpush.bf16.msra.mxu0 0
      %5545 = vmatpush.bf16.msra.mxu0 0
      %5546 = vmatpush.bf16.msra.mxu0 0
      %5547 = vmatpush.bf16.msra.mxu0 %v5400
      %5548 = vmatpush.bf16.msra.mxu0 %v4517
      %5549 = vmatpush.bf16.msra.mxu0 %v4494
      %5550 = vmatpush.bf16.msra.mxu0 %v4471
      %5551 = vmatpush.bf16.msra.mxu0 %v4448
      %5552 = vmatmul.bf16.gmra.mxu0 %v5393
      %v5553 = vpop.f32.mrf.mxu0
      %v5554 = vadd.f32 %v5535, %v5553
      %v5555 = vpop.f32.mrf.mxu0
      %v5556 = vadd.f32 %v5537, %v5555
      %5557 = vmatmul.bf16.gmra.mxu0 %v5396
      %v5558 = vpop.f32.mrf.mxu0
      %v5559 = vadd.f32 %v5540, %v5558
      %v5560 = vpop.f32.mrf.mxu0
      %v5561 = vadd.f32 %v5542, %v5560
      %5562 = vdwg.mxu0
      %5563 = vmatpush.bf16.msra.mxu0 %v3874
      %5564 = vmatpush.bf16.msra.mxu0 %v3851
      %5565 = vmatpush.bf16.msra.mxu0 %v3828
      %5566 = vmatpush.bf16.msra.mxu0 %v3805
      %5567 = vmatpush.bf16.msra.mxu0 %v3782
      %5568 = vmatpush.bf16.msra.mxu0 %v3759
      %5569 = vmatpush.bf16.msra.mxu0 %v3736
      %5570 = vmatpush.bf16.msra.mxu0 %v3713
      %5571 = vmatmul.bf16.gmra.mxu0 %v1104
      %v5572 = vpop.f32.mrf.mxu0
      %v5573 = vadd.f32 0.0, %v5572
      %v5574 = vpop.f32.mrf.mxu0
      %v5575 = vadd.f32 0.0, %v5574
      %5576 = vmatmul.bf16.gmra.mxu0 %v1109
      %v5577 = vpop.f32.mrf.mxu0
      %v5578 = vadd.f32 0.0, %v5577
      %v5579 = vpop.f32.mrf.mxu0
      %v5580 = vadd.f32 0.0, %v5579
      %5581 = vdwg.mxu0
      %5582 = vmatpush.bf16.msra.mxu0 %v4058
      %5583 = vmatpush.bf16.msra.mxu0 %v4035
      %5584 = vmatpush.bf16.msra.mxu0 %v4012
      %5585 = vmatpush.bf16.msra.mxu0 %v3989
      %5586 = vmatpush.bf16.msra.mxu0 %v3966
      %5587 = vmatpush.bf16.msra.mxu0 %v3943
      %5588 = vmatpush.bf16.msra.mxu0 %v3920
      %5589 = vmatpush.bf16.msra.mxu0 %v3897
      %5590 = vmatmul.bf16.gmra.mxu0 %v1105
      %v5591 = vpop.f32.mrf.mxu0
      %v5592 = vadd.f32 %v5573, %v5591
      %v5593 = vpop.f32.mrf.mxu0
      %v5594 = vadd.f32 %v5575, %v5593
      %5595 = vmatmul.bf16.gmra.mxu0 %v1110
      %v5596 = vpop.f32.mrf.mxu0
      %v5597 = vadd.f32 %v5578, %v5596
      %v5598 = vpop.f32.mrf.mxu0
      %v5599 = vadd.f32 %v5580, %v5598
      %5600 = vdwg.mxu0
      %5601 = vmatpush.bf16.msra.mxu0 %v4242
      %5602 = vmatpush.bf16.msra.mxu0 %v4219
      %5603 = vmatpush.bf16.msra.mxu0 %v4196
      %5604 = vmatpush.bf16.msra.mxu0 %v4173
      %5605 = vmatpush.bf16.msra.mxu0 %v4150
      %5606 = vmatpush.bf16.msra.mxu0 %v4127
      %5607 = vmatpush.bf16.msra.mxu0 %v4104
      %5608 = vmatpush.bf16.msra.mxu0 %v4081
      %5609 = vmatmul.bf16.gmra.mxu0 %v1106
      %v5610 = vpop.f32.mrf.mxu0
      %v5611 = vadd.f32 %v5592, %v5610
      %v5612 = vpop.f32.mrf.mxu0
      %v5613 = vadd.f32 %v5594, %v5612
      %5614 = vmatmul.bf16.gmra.mxu0 %v1111
      %v5615 = vpop.f32.mrf.mxu0
      %v5616 = vadd.f32 %v5597, %v5615
      %v5617 = vpop.f32.mrf.mxu0
      %v5618 = vadd.f32 %v5599, %v5617
      %5619 = vdwg.mxu0
      %5620 = vmatpush.bf16.msra.mxu0 %v4426
      %5621 = vmatpush.bf16.msra.mxu0 %v4403
      %5622 = vmatpush.bf16.msra.mxu0 %v4380
      %5623 = vmatpush.bf16.msra.mxu0 %v4357
      %5624 = vmatpush.bf16.msra.mxu0 %v4334
      %5625 = vmatpush.bf16.msra.mxu0 %v4311
      %5626 = vmatpush.bf16.msra.mxu0 %v4288
      %5627 = vmatpush.bf16.msra.mxu0 %v4265
      %5628 = vmatmul.bf16.gmra.mxu0 %v1107
      %v5629 = vpop.f32.mrf.mxu0
      %v5630 = vadd.f32 %v5611, %v5629
      %v5631 = vpop.f32.mrf.mxu0
      %v5632 = vadd.f32 %v5613, %v5631
      %5633 = vmatmul.bf16.gmra.mxu0 %v1112
      %v5634 = vpop.f32.mrf.mxu0
      %v5635 = vadd.f32 %v5616, %v5634
      %v5636 = vpop.f32.mrf.mxu0
      %v5637 = vadd.f32 %v5618, %v5636
      %5638 = vdwg.mxu0
      %5639 = vmatpush.bf16.msra.mxu0 0
      %5640 = vmatpush.bf16.msra.mxu0 0
      %5641 = vmatpush.bf16.msra.mxu0 0
      %5642 = vmatpush.bf16.msra.mxu0 %v5403
      %5643 = vmatpush.bf16.msra.mxu0 %v4518
      %5644 = vmatpush.bf16.msra.mxu0 %v4495
      %5645 = vmatpush.bf16.msra.mxu0 %v4472
      %5646 = vmatpush.bf16.msra.mxu0 %v4449
      %5647 = vmatmul.bf16.gmra.mxu0 %v5393
      %v5648 = vpop.f32.mrf.mxu0
      %v5649 = vadd.f32 %v5630, %v5648
      %v5650 = vpop.f32.mrf.mxu0
      %v5651 = vadd.f32 %v5632, %v5650
      %5652 = vmatmul.bf16.gmra.mxu0 %v5396
      %v5653 = vpop.f32.mrf.mxu0
      %v5654 = vadd.f32 %v5635, %v5653
      %v5655 = vpop.f32.mrf.mxu0
      %v5656 = vadd.f32 %v5637, %v5655
      %5657 = vdwg.mxu0
      %5658 = vmatpush.bf16.msra.mxu0 %v3875
      %5659 = vmatpush.bf16.msra.mxu0 %v3852
      %5660 = vmatpush.bf16.msra.mxu0 %v3829
      %5661 = vmatpush.bf16.msra.mxu0 %v3806
      %5662 = vmatpush.bf16.msra.mxu0 %v3783
      %5663 = vmatpush.bf16.msra.mxu0 %v3760
      %5664 = vmatpush.bf16.msra.mxu0 %v3737
      %5665 = vmatpush.bf16.msra.mxu0 %v3714
      %5666 = vmatmul.bf16.gmra.mxu0 %v1104
      %v5667 = vpop.f32.mrf.mxu0
      %v5668 = vadd.f32 0.0, %v5667
      %v5669 = vpop.f32.mrf.mxu0
      %v5670 = vadd.f32 0.0, %v5669
      %5671 = vmatmul.bf16.gmra.mxu0 %v1109
      %v5672 = vpop.f32.mrf.mxu0
      %v5673 = vadd.f32 0.0, %v5672
      %v5674 = vpop.f32.mrf.mxu0
      %v5675 = vadd.f32 0.0, %v5674
      %5676 = vdwg.mxu0
      %5677 = vmatpush.bf16.msra.mxu0 %v4059
      %5678 = vmatpush.bf16.msra.mxu0 %v4036
      %5679 = vmatpush.bf16.msra.mxu0 %v4013
      %5680 = vmatpush.bf16.msra.mxu0 %v3990
      %5681 = vmatpush.bf16.msra.mxu0 %v3967
      %5682 = vmatpush.bf16.msra.mxu0 %v3944
      %5683 = vmatpush.bf16.msra.mxu0 %v3921
      %5684 = vmatpush.bf16.msra.mxu0 %v3898
      %5685 = vmatmul.bf16.gmra.mxu0 %v1105
      %v5686 = vpop.f32.mrf.mxu0
      %v5687 = vadd.f32 %v5668, %v5686
      %v5688 = vpop.f32.mrf.mxu0
      %v5689 = vadd.f32 %v5670, %v5688
      %5690 = vmatmul.bf16.gmra.mxu0 %v1110
      %v5691 = vpop.f32.mrf.mxu0
      %v5692 = vadd.f32 %v5673, %v5691
      %v5693 = vpop.f32.mrf.mxu0
      %v5694 = vadd.f32 %v5675, %v5693
      %5695 = vdwg.mxu0
      %5696 = vmatpush.bf16.msra.mxu0 %v4243
      %5697 = vmatpush.bf16.msra.mxu0 %v4220
      %5698 = vmatpush.bf16.msra.mxu0 %v4197
      %5699 = vmatpush.bf16.msra.mxu0 %v4174
      %5700 = vmatpush.bf16.msra.mxu0 %v4151
      %5701 = vmatpush.bf16.msra.mxu0 %v4128
      %5702 = vmatpush.bf16.msra.mxu0 %v4105
      %5703 = vmatpush.bf16.msra.mxu0 %v4082
      %5704 = vmatmul.bf16.gmra.mxu0 %v1106
      %v5705 = vpop.f32.mrf.mxu0
      %v5706 = vadd.f32 %v5687, %v5705
      %v5707 = vpop.f32.mrf.mxu0
      %v5708 = vadd.f32 %v5689, %v5707
      %5709 = vmatmul.bf16.gmra.mxu0 %v1111
      %v5710 = vpop.f32.mrf.mxu0
      %v5711 = vadd.f32 %v5692, %v5710
      %v5712 = vpop.f32.mrf.mxu0
      %v5713 = vadd.f32 %v5694, %v5712
      %5714 = vdwg.mxu0
      %5715 = vmatpush.bf16.msra.mxu0 %v4427
      %5716 = vmatpush.bf16.msra.mxu0 %v4404
      %5717 = vmatpush.bf16.msra.mxu0 %v4381
      %5718 = vmatpush.bf16.msra.mxu0 %v4358
      %5719 = vmatpush.bf16.msra.mxu0 %v4335
      %5720 = vmatpush.bf16.msra.mxu0 %v4312
      %5721 = vmatpush.bf16.msra.mxu0 %v4289
      %5722 = vmatpush.bf16.msra.mxu0 %v4266
      %5723 = vmatmul.bf16.gmra.mxu0 %v1107
      %v5724 = vpop.f32.mrf.mxu0
      %v5725 = vadd.f32 %v5706, %v5724
      %v5726 = vpop.f32.mrf.mxu0
      %v5727 = vadd.f32 %v5708, %v5726
      %5728 = vmatmul.bf16.gmra.mxu0 %v1112
      %v5729 = vpop.f32.mrf.mxu0
      %v5730 = vadd.f32 %v5711, %v5729
      %v5731 = vpop.f32.mrf.mxu0
      %v5732 = vadd.f32 %v5713, %v5731
      %5733 = vdwg.mxu0
      %5734 = vmatpush.bf16.msra.mxu0 0
      %5735 = vmatpush.bf16.msra.mxu0 0
      %5736 = vmatpush.bf16.msra.mxu0 0
      %5737 = vmatpush.bf16.msra.mxu0 %v5406
      %5738 = vmatpush.bf16.msra.mxu0 %v4519
      %5739 = vmatpush.bf16.msra.mxu0 %v4496
      %5740 = vmatpush.bf16.msra.mxu0 %v4473
      %5741 = vmatpush.bf16.msra.mxu0 %v4450
      %5742 = vmatmul.bf16.gmra.mxu0 %v5393
      %v5743 = vpop.f32.mrf.mxu0
      %v5744 = vadd.f32 %v5725, %v5743
      %v5745 = vpop.f32.mrf.mxu0
      %v5746 = vadd.f32 %v5727, %v5745
      %5747 = vmatmul.bf16.gmra.mxu0 %v5396
      %v5748 = vpop.f32.mrf.mxu0
      %v5749 = vadd.f32 %v5730, %v5748
      %v5750 = vpop.f32.mrf.mxu0
      %v5751 = vadd.f32 %v5732, %v5750
      %5752 = vdwg.mxu0
      %5753 = vmatpush.bf16.msra.mxu0 %v3876
      %5754 = vmatpush.bf16.msra.mxu0 %v3853
      %5755 = vmatpush.bf16.msra.mxu0 %v3830
      %5756 = vmatpush.bf16.msra.mxu0 %v3807
      %5757 = vmatpush.bf16.msra.mxu0 %v3784
      %5758 = vmatpush.bf16.msra.mxu0 %v3761
      %5759 = vmatpush.bf16.msra.mxu0 %v3738
      %5760 = vmatpush.bf16.msra.mxu0 %v3715
      %5761 = vmatmul.bf16.gmra.mxu0 %v1104
      %v5762 = vpop.f32.mrf.mxu0
      %v5763 = vadd.f32 0.0, %v5762
      %v5764 = vpop.f32.mrf.mxu0
      %v5765 = vadd.f32 0.0, %v5764
      %5766 = vmatmul.bf16.gmra.mxu0 %v1109
      %v5767 = vpop.f32.mrf.mxu0
      %v5768 = vadd.f32 0.0, %v5767
      %v5769 = vpop.f32.mrf.mxu0
      %v5770 = vadd.f32 0.0, %v5769
      %5771 = vdwg.mxu0
      %5772 = vmatpush.bf16.msra.mxu0 %v4060
      %5773 = vmatpush.bf16.msra.mxu0 %v4037
      %5774 = vmatpush.bf16.msra.mxu0 %v4014
      %5775 = vmatpush.bf16.msra.mxu0 %v3991
      %5776 = vmatpush.bf16.msra.mxu0 %v3968
      %5777 = vmatpush.bf16.msra.mxu0 %v3945
      %5778 = vmatpush.bf16.msra.mxu0 %v3922
      %5779 = vmatpush.bf16.msra.mxu0 %v3899
      %5780 = vmatmul.bf16.gmra.mxu0 %v1105
      %v5781 = vpop.f32.mrf.mxu0
      %v5782 = vadd.f32 %v5763, %v5781
      %v5783 = vpop.f32.mrf.mxu0
      %v5784 = vadd.f32 %v5765, %v5783
      %5785 = vmatmul.bf16.gmra.mxu0 %v1110
      %v5786 = vpop.f32.mrf.mxu0
      %v5787 = vadd.f32 %v5768, %v5786
      %v5788 = vpop.f32.mrf.mxu0
      %v5789 = vadd.f32 %v5770, %v5788
      %5790 = vdwg.mxu0
      %5791 = vmatpush.bf16.msra.mxu0 %v4244
      %5792 = vmatpush.bf16.msra.mxu0 %v4221
      %5793 = vmatpush.bf16.msra.mxu0 %v4198
      %5794 = vmatpush.bf16.msra.mxu0 %v4175
      %5795 = vmatpush.bf16.msra.mxu0 %v4152
      %5796 = vmatpush.bf16.msra.mxu0 %v4129
      %5797 = vmatpush.bf16.msra.mxu0 %v4106
      %5798 = vmatpush.bf16.msra.mxu0 %v4083
      %5799 = vmatmul.bf16.gmra.mxu0 %v1106
      %v5800 = vpop.f32.mrf.mxu0
      %v5801 = vadd.f32 %v5782, %v5800
      %v5802 = vpop.f32.mrf.mxu0
      %v5803 = vadd.f32 %v5784, %v5802
      %5804 = vmatmul.bf16.gmra.mxu0 %v1111
      %v5805 = vpop.f32.mrf.mxu0
      %v5806 = vadd.f32 %v5787, %v5805
      %v5807 = vpop.f32.mrf.mxu0
      %v5808 = vadd.f32 %v5789, %v5807
      %5809 = vdwg.mxu0
      %5810 = vmatpush.bf16.msra.mxu0 %v4428
      %5811 = vmatpush.bf16.msra.mxu0 %v4405
      %5812 = vmatpush.bf16.msra.mxu0 %v4382
      %5813 = vmatpush.bf16.msra.mxu0 %v4359
      %5814 = vmatpush.bf16.msra.mxu0 %v4336
      %5815 = vmatpush.bf16.msra.mxu0 %v4313
      %5816 = vmatpush.bf16.msra.mxu0 %v4290
      %5817 = vmatpush.bf16.msra.mxu0 %v4267
      %5818 = vmatmul.bf16.gmra.mxu0 %v1107
      %v5819 = vpop.f32.mrf.mxu0
      %v5820 = vadd.f32 %v5801, %v5819
      %v5821 = vpop.f32.mrf.mxu0
      %v5822 = vadd.f32 %v5803, %v5821
      %5823 = vmatmul.bf16.gmra.mxu0 %v1112
      %v5824 = vpop.f32.mrf.mxu0
      %v5825 = vadd.f32 %v5806, %v5824
      %v5826 = vpop.f32.mrf.mxu0
      %v5827 = vadd.f32 %v5808, %v5826
      %5828 = vdwg.mxu0
      %5829 = vmatpush.bf16.msra.mxu0 0
      %5830 = vmatpush.bf16.msra.mxu0 0
      %5831 = vmatpush.bf16.msra.mxu0 0
      %5832 = vmatpush.bf16.msra.mxu0 %v5409
      %5833 = vmatpush.bf16.msra.mxu0 %v4520
      %5834 = vmatpush.bf16.msra.mxu0 %v4497
      %5835 = vmatpush.bf16.msra.mxu0 %v4474
      %5836 = vmatpush.bf16.msra.mxu0 %v4451
      %5837 = vmatmul.bf16.gmra.mxu0 %v5393
      %v5838 = vpop.f32.mrf.mxu0
      %v5839 = vadd.f32 %v5820, %v5838
      %v5840 = vpop.f32.mrf.mxu0
      %v5841 = vadd.f32 %v5822, %v5840
      %5842 = vmatmul.bf16.gmra.mxu0 %v5396
      %v5843 = vpop.f32.mrf.mxu0
      %v5844 = vadd.f32 %v5825, %v5843
      %v5845 = vpop.f32.mrf.mxu0
      %v5846 = vadd.f32 %v5827, %v5845
      %5847 = vdwg.mxu0
      %5848 = vmatpush.bf16.msra.mxu0 %v3877
      %5849 = vmatpush.bf16.msra.mxu0 %v3854
      %5850 = vmatpush.bf16.msra.mxu0 %v3831
      %5851 = vmatpush.bf16.msra.mxu0 %v3808
      %5852 = vmatpush.bf16.msra.mxu0 %v3785
      %5853 = vmatpush.bf16.msra.mxu0 %v3762
      %5854 = vmatpush.bf16.msra.mxu0 %v3739
      %5855 = vmatpush.bf16.msra.mxu0 %v3716
      %5856 = vmatmul.bf16.gmra.mxu0 %v1104
      %v5857 = vpop.f32.mrf.mxu0
      %v5858 = vadd.f32 0.0, %v5857
      %v5859 = vpop.f32.mrf.mxu0
      %v5860 = vadd.f32 0.0, %v5859
      %5861 = vmatmul.bf16.gmra.mxu0 %v1109
      %v5862 = vpop.f32.mrf.mxu0
      %v5863 = vadd.f32 0.0, %v5862
      %v5864 = vpop.f32.mrf.mxu0
      %v5865 = vadd.f32 0.0, %v5864
      %5866 = vdwg.mxu0
      %5867 = vmatpush.bf16.msra.mxu0 %v4061
      %5868 = vmatpush.bf16.msra.mxu0 %v4038
      %5869 = vmatpush.bf16.msra.mxu0 %v4015
      %5870 = vmatpush.bf16.msra.mxu0 %v3992
      %5871 = vmatpush.bf16.msra.mxu0 %v3969
      %5872 = vmatpush.bf16.msra.mxu0 %v3946
      %5873 = vmatpush.bf16.msra.mxu0 %v3923
      %5874 = vmatpush.bf16.msra.mxu0 %v3900
      %5875 = vmatmul.bf16.gmra.mxu0 %v1105
      %v5876 = vpop.f32.mrf.mxu0
      %v5877 = vadd.f32 %v5858, %v5876
      %v5878 = vpop.f32.mrf.mxu0
      %v5879 = vadd.f32 %v5860, %v5878
      %5880 = vmatmul.bf16.gmra.mxu0 %v1110
      %v5881 = vpop.f32.mrf.mxu0
      %v5882 = vadd.f32 %v5863, %v5881
      %v5883 = vpop.f32.mrf.mxu0
      %v5884 = vadd.f32 %v5865, %v5883
      %5885 = vdwg.mxu0
      %5886 = vmatpush.bf16.msra.mxu0 %v4245
      %5887 = vmatpush.bf16.msra.mxu0 %v4222
      %5888 = vmatpush.bf16.msra.mxu0 %v4199
      %5889 = vmatpush.bf16.msra.mxu0 %v4176
      %5890 = vmatpush.bf16.msra.mxu0 %v4153
      %5891 = vmatpush.bf16.msra.mxu0 %v4130
      %5892 = vmatpush.bf16.msra.mxu0 %v4107
      %5893 = vmatpush.bf16.msra.mxu0 %v4084
      %5894 = vmatmul.bf16.gmra.mxu0 %v1106
      %v5895 = vpop.f32.mrf.mxu0
      %v5896 = vadd.f32 %v5877, %v5895
      %v5897 = vpop.f32.mrf.mxu0
      %v5898 = vadd.f32 %v5879, %v5897
      %5899 = vmatmul.bf16.gmra.mxu0 %v1111
      %v5900 = vpop.f32.mrf.mxu0
      %v5901 = vadd.f32 %v5882, %v5900
      %v5902 = vpop.f32.mrf.mxu0
      %v5903 = vadd.f32 %v5884, %v5902
      %5904 = vdwg.mxu0
      %5905 = vmatpush.bf16.msra.mxu0 %v4429
      %5906 = vmatpush.bf16.msra.mxu0 %v4406
      %5907 = vmatpush.bf16.msra.mxu0 %v4383
      %5908 = vmatpush.bf16.msra.mxu0 %v4360
      %5909 = vmatpush.bf16.msra.mxu0 %v4337
      %5910 = vmatpush.bf16.msra.mxu0 %v4314
      %5911 = vmatpush.bf16.msra.mxu0 %v4291
      %5912 = vmatpush.bf16.msra.mxu0 %v4268
      %5913 = vmatmul.bf16.gmra.mxu0 %v1107
      %v5914 = vpop.f32.mrf.mxu0
      %v5915 = vadd.f32 %v5896, %v5914
      %v5916 = vpop.f32.mrf.mxu0
      %v5917 = vadd.f32 %v5898, %v5916
      %5918 = vmatmul.bf16.gmra.mxu0 %v1112
      %v5919 = vpop.f32.mrf.mxu0
      %v5920 = vadd.f32 %v5901, %v5919
      %v5921 = vpop.f32.mrf.mxu0
      %v5922 = vadd.f32 %v5903, %v5921
      %5923 = vdwg.mxu0
      %5924 = vmatpush.bf16.msra.mxu0 0
      %5925 = vmatpush.bf16.msra.mxu0 0
      %5926 = vmatpush.bf16.msra.mxu0 0
      %5927 = vmatpush.bf16.msra.mxu0 %v5412
      %5928 = vmatpush.bf16.msra.mxu0 %v4521
      %5929 = vmatpush.bf16.msra.mxu0 %v4498
      %5930 = vmatpush.bf16.msra.mxu0 %v4475
      %5931 = vmatpush.bf16.msra.mxu0 %v4452
      %5932 = vmatmul.bf16.gmra.mxu0 %v5393
      %v5933 = vpop.f32.mrf.mxu0
      %v5934 = vadd.f32 %v5915, %v5933
      %v5935 = vpop.f32.mrf.mxu0
      %v5936 = vadd.f32 %v5917, %v5935
      %5937 = vmatmul.bf16.gmra.mxu0 %v5396
      %v5938 = vpop.f32.mrf.mxu0
      %v5939 = vadd.f32 %v5920, %v5938
      %v5940 = vpop.f32.mrf.mxu0
      %v5941 = vadd.f32 %v5922, %v5940
      %5942 = vdwg.mxu0
      %5943 = vmatpush.bf16.msra.mxu0 %v3878
      %5944 = vmatpush.bf16.msra.mxu0 %v3855
      %5945 = vmatpush.bf16.msra.mxu0 %v3832
      %5946 = vmatpush.bf16.msra.mxu0 %v3809
      %5947 = vmatpush.bf16.msra.mxu0 %v3786
      %5948 = vmatpush.bf16.msra.mxu0 %v3763
      %5949 = vmatpush.bf16.msra.mxu0 %v3740
      %5950 = vmatpush.bf16.msra.mxu0 %v3717
      %5951 = vmatmul.bf16.gmra.mxu0 %v1104
      %v5952 = vpop.f32.mrf.mxu0
      %v5953 = vadd.f32 0.0, %v5952
      %v5954 = vpop.f32.mrf.mxu0
      %v5955 = vadd.f32 0.0, %v5954
      %5956 = vmatmul.bf16.gmra.mxu0 %v1109
      %v5957 = vpop.f32.mrf.mxu0
      %v5958 = vadd.f32 0.0, %v5957
      %v5959 = vpop.f32.mrf.mxu0
      %v5960 = vadd.f32 0.0, %v5959
      %5961 = vdwg.mxu0
      %5962 = vmatpush.bf16.msra.mxu0 %v4062
      %5963 = vmatpush.bf16.msra.mxu0 %v4039
      %5964 = vmatpush.bf16.msra.mxu0 %v4016
      %5965 = vmatpush.bf16.msra.mxu0 %v3993
      %5966 = vmatpush.bf16.msra.mxu0 %v3970
      %5967 = vmatpush.bf16.msra.mxu0 %v3947
      %5968 = vmatpush.bf16.msra.mxu0 %v3924
      %5969 = vmatpush.bf16.msra.mxu0 %v3901
      %5970 = vmatmul.bf16.gmra.mxu0 %v1105
      %v5971 = vpop.f32.mrf.mxu0
      %v5972 = vadd.f32 %v5953, %v5971
      %v5973 = vpop.f32.mrf.mxu0
      %v5974 = vadd.f32 %v5955, %v5973
      %5975 = vmatmul.bf16.gmra.mxu0 %v1110
      %v5976 = vpop.f32.mrf.mxu0
      %v5977 = vadd.f32 %v5958, %v5976
      %v5978 = vpop.f32.mrf.mxu0
      %v5979 = vadd.f32 %v5960, %v5978
      %5980 = vdwg.mxu0
      %5981 = vmatpush.bf16.msra.mxu0 %v4246
      %5982 = vmatpush.bf16.msra.mxu0 %v4223
      %5983 = vmatpush.bf16.msra.mxu0 %v4200
      %5984 = vmatpush.bf16.msra.mxu0 %v4177
      %5985 = vmatpush.bf16.msra.mxu0 %v4154
      %5986 = vmatpush.bf16.msra.mxu0 %v4131
      %5987 = vmatpush.bf16.msra.mxu0 %v4108
      %5988 = vmatpush.bf16.msra.mxu0 %v4085
      %5989 = vmatmul.bf16.gmra.mxu0 %v1106
      %v5990 = vpop.f32.mrf.mxu0
      %v5991 = vadd.f32 %v5972, %v5990
      %v5992 = vpop.f32.mrf.mxu0
      %v5993 = vadd.f32 %v5974, %v5992
      %5994 = vmatmul.bf16.gmra.mxu0 %v1111
      %v5995 = vpop.f32.mrf.mxu0
      %v5996 = vadd.f32 %v5977, %v5995
      %v5997 = vpop.f32.mrf.mxu0
      %v5998 = vadd.f32 %v5979, %v5997
      %5999 = vdwg.mxu0
      %6000 = vmatpush.bf16.msra.mxu0 %v4430
      %6001 = vmatpush.bf16.msra.mxu0 %v4407
      %6002 = vmatpush.bf16.msra.mxu0 %v4384
      %6003 = vmatpush.bf16.msra.mxu0 %v4361
      %6004 = vmatpush.bf16.msra.mxu0 %v4338
      %6005 = vmatpush.bf16.msra.mxu0 %v4315
      %6006 = vmatpush.bf16.msra.mxu0 %v4292
      %6007 = vmatpush.bf16.msra.mxu0 %v4269
      %6008 = vmatmul.bf16.gmra.mxu0 %v1107
      %v6009 = vpop.f32.mrf.mxu0
      %v6010 = vadd.f32 %v5991, %v6009
      %v6011 = vpop.f32.mrf.mxu0
      %v6012 = vadd.f32 %v5993, %v6011
      %6013 = vmatmul.bf16.gmra.mxu0 %v1112
      %v6014 = vpop.f32.mrf.mxu0
      %v6015 = vadd.f32 %v5996, %v6014
      %v6016 = vpop.f32.mrf.mxu0
      %v6017 = vadd.f32 %v5998, %v6016
      %6018 = vdwg.mxu0
      %6019 = vmatpush.bf16.msra.mxu0 0
      %6020 = vmatpush.bf16.msra.mxu0 0
      %6021 = vmatpush.bf16.msra.mxu0 0
      %6022 = vmatpush.bf16.msra.mxu0 %v5415
      %6023 = vmatpush.bf16.msra.mxu0 %v4522
      %6024 = vmatpush.bf16.msra.mxu0 %v4499
      %6025 = vmatpush.bf16.msra.mxu0 %v4476
      %6026 = vmatpush.bf16.msra.mxu0 %v4453
      %6027 = vmatmul.bf16.gmra.mxu0 %v5393
      %v6028 = vpop.f32.mrf.mxu0
      %v6029 = vadd.f32 %v6010, %v6028
      %v6030 = vpop.f32.mrf.mxu0
      %v6031 = vadd.f32 %v6012, %v6030
      %6032 = vmatmul.bf16.gmra.mxu0 %v5396
      %v6033 = vpop.f32.mrf.mxu0
      %v6034 = vadd.f32 %v6015, %v6033
      %v6035 = vpop.f32.mrf.mxu0
      %v6036 = vadd.f32 %v6017, %v6035
      %6037 = vdwg.mxu0
      %6038 = vmatpush.bf16.msra.mxu0 %v3879
      %6039 = vmatpush.bf16.msra.mxu0 %v3856
      %6040 = vmatpush.bf16.msra.mxu0 %v3833
      %6041 = vmatpush.bf16.msra.mxu0 %v3810
      %6042 = vmatpush.bf16.msra.mxu0 %v3787
      %6043 = vmatpush.bf16.msra.mxu0 %v3764
      %6044 = vmatpush.bf16.msra.mxu0 %v3741
      %6045 = vmatpush.bf16.msra.mxu0 %v3718
      %6046 = vmatmul.bf16.gmra.mxu0 %v1104
      %v6047 = vpop.f32.mrf.mxu0
      %v6048 = vadd.f32 0.0, %v6047
      %v6049 = vpop.f32.mrf.mxu0
      %v6050 = vadd.f32 0.0, %v6049
      %6051 = vmatmul.bf16.gmra.mxu0 %v1109
      %v6052 = vpop.f32.mrf.mxu0
      %v6053 = vadd.f32 0.0, %v6052
      %v6054 = vpop.f32.mrf.mxu0
      %v6055 = vadd.f32 0.0, %v6054
      %6056 = vdwg.mxu0
      %6057 = vmatpush.bf16.msra.mxu0 %v4063
      %6058 = vmatpush.bf16.msra.mxu0 %v4040
      %6059 = vmatpush.bf16.msra.mxu0 %v4017
      %6060 = vmatpush.bf16.msra.mxu0 %v3994
      %6061 = vmatpush.bf16.msra.mxu0 %v3971
      %6062 = vmatpush.bf16.msra.mxu0 %v3948
      %6063 = vmatpush.bf16.msra.mxu0 %v3925
      %6064 = vmatpush.bf16.msra.mxu0 %v3902
      %6065 = vmatmul.bf16.gmra.mxu0 %v1105
      %v6066 = vpop.f32.mrf.mxu0
      %v6067 = vadd.f32 %v6048, %v6066
      %v6068 = vpop.f32.mrf.mxu0
      %v6069 = vadd.f32 %v6050, %v6068
      %6070 = vmatmul.bf16.gmra.mxu0 %v1110
      %v6071 = vpop.f32.mrf.mxu0
      %v6072 = vadd.f32 %v6053, %v6071
      %v6073 = vpop.f32.mrf.mxu0
      %v6074 = vadd.f32 %v6055, %v6073
      %6075 = vdwg.mxu0
      %6076 = vmatpush.bf16.msra.mxu0 %v4247
      %6077 = vmatpush.bf16.msra.mxu0 %v4224
      %6078 = vmatpush.bf16.msra.mxu0 %v4201
      %6079 = vmatpush.bf16.msra.mxu0 %v4178
      %6080 = vmatpush.bf16.msra.mxu0 %v4155
      %6081 = vmatpush.bf16.msra.mxu0 %v4132
      %6082 = vmatpush.bf16.msra.mxu0 %v4109
      %6083 = vmatpush.bf16.msra.mxu0 %v4086
      %6084 = vmatmul.bf16.gmra.mxu0 %v1106
      %v6085 = vpop.f32.mrf.mxu0
      %v6086 = vadd.f32 %v6067, %v6085
      %v6087 = vpop.f32.mrf.mxu0
      %v6088 = vadd.f32 %v6069, %v6087
      %6089 = vmatmul.bf16.gmra.mxu0 %v1111
      %v6090 = vpop.f32.mrf.mxu0
      %v6091 = vadd.f32 %v6072, %v6090
      %v6092 = vpop.f32.mrf.mxu0
      %v6093 = vadd.f32 %v6074, %v6092
      %6094 = vdwg.mxu0
      %6095 = vmatpush.bf16.msra.mxu0 %v4431
      %6096 = vmatpush.bf16.msra.mxu0 %v4408
      %6097 = vmatpush.bf16.msra.mxu0 %v4385
      %6098 = vmatpush.bf16.msra.mxu0 %v4362
      %6099 = vmatpush.bf16.msra.mxu0 %v4339
      %6100 = vmatpush.bf16.msra.mxu0 %v4316
      %6101 = vmatpush.bf16.msra.mxu0 %v4293
      %6102 = vmatpush.bf16.msra.mxu0 %v4270
      %6103 = vmatmul.bf16.gmra.mxu0 %v1107
      %v6104 = vpop.f32.mrf.mxu0
      %v6105 = vadd.f32 %v6086, %v6104
      %v6106 = vpop.f32.mrf.mxu0
      %v6107 = vadd.f32 %v6088, %v6106
      %6108 = vmatmul.bf16.gmra.mxu0 %v1112
      %v6109 = vpop.f32.mrf.mxu0
      %v6110 = vadd.f32 %v6091, %v6109
      %v6111 = vpop.f32.mrf.mxu0
      %v6112 = vadd.f32 %v6093, %v6111
      %6113 = vdwg.mxu0
      %6114 = vmatpush.bf16.msra.mxu0 0
      %6115 = vmatpush.bf16.msra.mxu0 0
      %6116 = vmatpush.bf16.msra.mxu0 0
      %6117 = vmatpush.bf16.msra.mxu0 %v5418
      %6118 = vmatpush.bf16.msra.mxu0 %v4523
      %6119 = vmatpush.bf16.msra.mxu0 %v4500
      %6120 = vmatpush.bf16.msra.mxu0 %v4477
      %6121 = vmatpush.bf16.msra.mxu0 %v4454
      %6122 = vmatmul.bf16.gmra.mxu0 %v5393
      %v6123 = vpop.f32.mrf.mxu0
      %v6124 = vadd.f32 %v6105, %v6123
      %v6125 = vpop.f32.mrf.mxu0
      %v6126 = vadd.f32 %v6107, %v6125
      %6127 = vmatmul.bf16.gmra.mxu0 %v5396
      %v6128 = vpop.f32.mrf.mxu0
      %v6129 = vadd.f32 %v6110, %v6128
      %v6130 = vpop.f32.mrf.mxu0
      %v6131 = vadd.f32 %v6112, %v6130
      %6132 = vdwg.mxu0
      %6133 = vmatpush.bf16.msra.mxu0 %v3880
      %6134 = vmatpush.bf16.msra.mxu0 %v3857
      %6135 = vmatpush.bf16.msra.mxu0 %v3834
      %6136 = vmatpush.bf16.msra.mxu0 %v3811
      %6137 = vmatpush.bf16.msra.mxu0 %v3788
      %6138 = vmatpush.bf16.msra.mxu0 %v3765
      %6139 = vmatpush.bf16.msra.mxu0 %v3742
      %6140 = vmatpush.bf16.msra.mxu0 %v3719
      %6141 = vmatmul.bf16.gmra.mxu0 %v1104
      %v6142 = vpop.f32.mrf.mxu0
      %v6143 = vadd.f32 0.0, %v6142
      %v6144 = vpop.f32.mrf.mxu0
      %v6145 = vadd.f32 0.0, %v6144
      %6146 = vmatmul.bf16.gmra.mxu0 %v1109
      %v6147 = vpop.f32.mrf.mxu0
      %v6148 = vadd.f32 0.0, %v6147
      %v6149 = vpop.f32.mrf.mxu0
      %v6150 = vadd.f32 0.0, %v6149
      %6151 = vdwg.mxu0
      %6152 = vmatpush.bf16.msra.mxu0 %v4064
      %6153 = vmatpush.bf16.msra.mxu0 %v4041
      %6154 = vmatpush.bf16.msra.mxu0 %v4018
      %6155 = vmatpush.bf16.msra.mxu0 %v3995
      %6156 = vmatpush.bf16.msra.mxu0 %v3972
      %6157 = vmatpush.bf16.msra.mxu0 %v3949
      %6158 = vmatpush.bf16.msra.mxu0 %v3926
      %6159 = vmatpush.bf16.msra.mxu0 %v3903
      %6160 = vmatmul.bf16.gmra.mxu0 %v1105
      %v6161 = vpop.f32.mrf.mxu0
      %v6162 = vadd.f32 %v6143, %v6161
      %v6163 = vpop.f32.mrf.mxu0
      %v6164 = vadd.f32 %v6145, %v6163
      %6165 = vmatmul.bf16.gmra.mxu0 %v1110
      %v6166 = vpop.f32.mrf.mxu0
      %v6167 = vadd.f32 %v6148, %v6166
      %v6168 = vpop.f32.mrf.mxu0
      %v6169 = vadd.f32 %v6150, %v6168
      %6170 = vdwg.mxu0
      %6171 = vmatpush.bf16.msra.mxu0 %v4248
      %6172 = vmatpush.bf16.msra.mxu0 %v4225
      %6173 = vmatpush.bf16.msra.mxu0 %v4202
      %6174 = vmatpush.bf16.msra.mxu0 %v4179
      %6175 = vmatpush.bf16.msra.mxu0 %v4156
      %6176 = vmatpush.bf16.msra.mxu0 %v4133
      %6177 = vmatpush.bf16.msra.mxu0 %v4110
      %6178 = vmatpush.bf16.msra.mxu0 %v4087
      %6179 = vmatmul.bf16.gmra.mxu0 %v1106
      %v6180 = vpop.f32.mrf.mxu0
      %v6181 = vadd.f32 %v6162, %v6180
      %v6182 = vpop.f32.mrf.mxu0
      %v6183 = vadd.f32 %v6164, %v6182
      %6184 = vmatmul.bf16.gmra.mxu0 %v1111
      %v6185 = vpop.f32.mrf.mxu0
      %v6186 = vadd.f32 %v6167, %v6185
      %v6187 = vpop.f32.mrf.mxu0
      %v6188 = vadd.f32 %v6169, %v6187
      %6189 = vdwg.mxu0
      %6190 = vmatpush.bf16.msra.mxu0 %v4432
      %6191 = vmatpush.bf16.msra.mxu0 %v4409
      %6192 = vmatpush.bf16.msra.mxu0 %v4386
      %6193 = vmatpush.bf16.msra.mxu0 %v4363
      %6194 = vmatpush.bf16.msra.mxu0 %v4340
      %6195 = vmatpush.bf16.msra.mxu0 %v4317
      %6196 = vmatpush.bf16.msra.mxu0 %v4294
      %6197 = vmatpush.bf16.msra.mxu0 %v4271
      %6198 = vmatmul.bf16.gmra.mxu0 %v1107
      %v6199 = vpop.f32.mrf.mxu0
      %v6200 = vadd.f32 %v6181, %v6199
      %v6201 = vpop.f32.mrf.mxu0
      %v6202 = vadd.f32 %v6183, %v6201
      %6203 = vmatmul.bf16.gmra.mxu0 %v1112
      %v6204 = vpop.f32.mrf.mxu0
      %v6205 = vadd.f32 %v6186, %v6204
      %v6206 = vpop.f32.mrf.mxu0
      %v6207 = vadd.f32 %v6188, %v6206
      %6208 = vdwg.mxu0
      %6209 = vmatpush.bf16.msra.mxu0 0
      %6210 = vmatpush.bf16.msra.mxu0 0
      %6211 = vmatpush.bf16.msra.mxu0 0
      %6212 = vmatpush.bf16.msra.mxu0 %v5421
      %6213 = vmatpush.bf16.msra.mxu0 %v4524
      %6214 = vmatpush.bf16.msra.mxu0 %v4501
      %6215 = vmatpush.bf16.msra.mxu0 %v4478
      %6216 = vmatpush.bf16.msra.mxu0 %v4455
      %6217 = vmatmul.bf16.gmra.mxu0 %v5393
      %v6218 = vpop.f32.mrf.mxu0
      %v6219 = vadd.f32 %v6200, %v6218
      %v6220 = vpop.f32.mrf.mxu0
      %v6221 = vadd.f32 %v6202, %v6220
      %6222 = vmatmul.bf16.gmra.mxu0 %v5396
      %v6223 = vpop.f32.mrf.mxu0
      %v6224 = vadd.f32 %v6205, %v6223
      %v6225 = vpop.f32.mrf.mxu0
      %v6226 = vadd.f32 %v6207, %v6225
      %6227 = vdwg.mxu0
      %6228 = vmatpush.bf16.msra.mxu0 %v3881
      %6229 = vmatpush.bf16.msra.mxu0 %v3858
      %6230 = vmatpush.bf16.msra.mxu0 %v3835
      %6231 = vmatpush.bf16.msra.mxu0 %v3812
      %6232 = vmatpush.bf16.msra.mxu0 %v3789
      %6233 = vmatpush.bf16.msra.mxu0 %v3766
      %6234 = vmatpush.bf16.msra.mxu0 %v3743
      %6235 = vmatpush.bf16.msra.mxu0 %v3720
      %6236 = vmatmul.bf16.gmra.mxu0 %v1104
      %v6237 = vpop.f32.mrf.mxu0
      %v6238 = vadd.f32 0.0, %v6237
      %v6239 = vpop.f32.mrf.mxu0
      %v6240 = vadd.f32 0.0, %v6239
      %6241 = vmatmul.bf16.gmra.mxu0 %v1109
      %v6242 = vpop.f32.mrf.mxu0
      %v6243 = vadd.f32 0.0, %v6242
      %v6244 = vpop.f32.mrf.mxu0
      %v6245 = vadd.f32 0.0, %v6244
      %6246 = vdwg.mxu0
      %6247 = vmatpush.bf16.msra.mxu0 %v4065
      %6248 = vmatpush.bf16.msra.mxu0 %v4042
      %6249 = vmatpush.bf16.msra.mxu0 %v4019
      %6250 = vmatpush.bf16.msra.mxu0 %v3996
      %6251 = vmatpush.bf16.msra.mxu0 %v3973
      %6252 = vmatpush.bf16.msra.mxu0 %v3950
      %6253 = vmatpush.bf16.msra.mxu0 %v3927
      %6254 = vmatpush.bf16.msra.mxu0 %v3904
      %6255 = vmatmul.bf16.gmra.mxu0 %v1105
      %v6256 = vpop.f32.mrf.mxu0
      %v6257 = vadd.f32 %v6238, %v6256
      %v6258 = vpop.f32.mrf.mxu0
      %v6259 = vadd.f32 %v6240, %v6258
      %6260 = vmatmul.bf16.gmra.mxu0 %v1110
      %v6261 = vpop.f32.mrf.mxu0
      %v6262 = vadd.f32 %v6243, %v6261
      %v6263 = vpop.f32.mrf.mxu0
      %v6264 = vadd.f32 %v6245, %v6263
      %6265 = vdwg.mxu0
      %6266 = vmatpush.bf16.msra.mxu0 %v4249
      %6267 = vmatpush.bf16.msra.mxu0 %v4226
      %6268 = vmatpush.bf16.msra.mxu0 %v4203
      %6269 = vmatpush.bf16.msra.mxu0 %v4180
      %6270 = vmatpush.bf16.msra.mxu0 %v4157
      %6271 = vmatpush.bf16.msra.mxu0 %v4134
      %6272 = vmatpush.bf16.msra.mxu0 %v4111
      %6273 = vmatpush.bf16.msra.mxu0 %v4088
      %6274 = vmatmul.bf16.gmra.mxu0 %v1106
      %v6275 = vpop.f32.mrf.mxu0
      %v6276 = vadd.f32 %v6257, %v6275
      %v6277 = vpop.f32.mrf.mxu0
      %v6278 = vadd.f32 %v6259, %v6277
      %6279 = vmatmul.bf16.gmra.mxu0 %v1111
      %v6280 = vpop.f32.mrf.mxu0
      %v6281 = vadd.f32 %v6262, %v6280
      %v6282 = vpop.f32.mrf.mxu0
      %v6283 = vadd.f32 %v6264, %v6282
      %6284 = vdwg.mxu0
      %6285 = vmatpush.bf16.msra.mxu0 %v4433
      %6286 = vmatpush.bf16.msra.mxu0 %v4410
      %6287 = vmatpush.bf16.msra.mxu0 %v4387
      %6288 = vmatpush.bf16.msra.mxu0 %v4364
      %6289 = vmatpush.bf16.msra.mxu0 %v4341
      %6290 = vmatpush.bf16.msra.mxu0 %v4318
      %6291 = vmatpush.bf16.msra.mxu0 %v4295
      %6292 = vmatpush.bf16.msra.mxu0 %v4272
      %6293 = vmatmul.bf16.gmra.mxu0 %v1107
      %v6294 = vpop.f32.mrf.mxu0
      %v6295 = vadd.f32 %v6276, %v6294
      %v6296 = vpop.f32.mrf.mxu0
      %v6297 = vadd.f32 %v6278, %v6296
      %6298 = vmatmul.bf16.gmra.mxu0 %v1112
      %v6299 = vpop.f32.mrf.mxu0
      %v6300 = vadd.f32 %v6281, %v6299
      %v6301 = vpop.f32.mrf.mxu0
      %v6302 = vadd.f32 %v6283, %v6301
      %6303 = vdwg.mxu0
      %6304 = vmatpush.bf16.msra.mxu0 0
      %6305 = vmatpush.bf16.msra.mxu0 0
      %6306 = vmatpush.bf16.msra.mxu0 0
      %6307 = vmatpush.bf16.msra.mxu0 %v5424
      %6308 = vmatpush.bf16.msra.mxu0 %v4525
      %6309 = vmatpush.bf16.msra.mxu0 %v4502
      %6310 = vmatpush.bf16.msra.mxu0 %v4479
      %6311 = vmatpush.bf16.msra.mxu0 %v4456
      %6312 = vmatmul.bf16.gmra.mxu0 %v5393
      %v6313 = vpop.f32.mrf.mxu0
      %v6314 = vadd.f32 %v6295, %v6313
      %v6315 = vpop.f32.mrf.mxu0
      %v6316 = vadd.f32 %v6297, %v6315
      %6317 = vmatmul.bf16.gmra.mxu0 %v5396
      %v6318 = vpop.f32.mrf.mxu0
      %v6319 = vadd.f32 %v6300, %v6318
      %v6320 = vpop.f32.mrf.mxu0
      %v6321 = vadd.f32 %v6302, %v6320
      %6322 = vdwg.mxu0
      %6323 = vmatpush.bf16.msra.mxu0 %v3882
      %6324 = vmatpush.bf16.msra.mxu0 %v3859
      %6325 = vmatpush.bf16.msra.mxu0 %v3836
      %6326 = vmatpush.bf16.msra.mxu0 %v3813
      %6327 = vmatpush.bf16.msra.mxu0 %v3790
      %6328 = vmatpush.bf16.msra.mxu0 %v3767
      %6329 = vmatpush.bf16.msra.mxu0 %v3744
      %6330 = vmatpush.bf16.msra.mxu0 %v3721
      %6331 = vmatmul.bf16.gmra.mxu0 %v1104
      %v6332 = vpop.f32.mrf.mxu0
      %v6333 = vadd.f32 0.0, %v6332
      %v6334 = vpop.f32.mrf.mxu0
      %v6335 = vadd.f32 0.0, %v6334
      %6336 = vmatmul.bf16.gmra.mxu0 %v1109
      %v6337 = vpop.f32.mrf.mxu0
      %v6338 = vadd.f32 0.0, %v6337
      %v6339 = vpop.f32.mrf.mxu0
      %v6340 = vadd.f32 0.0, %v6339
      %6341 = vdwg.mxu0
      %6342 = vmatpush.bf16.msra.mxu0 %v4066
      %6343 = vmatpush.bf16.msra.mxu0 %v4043
      %6344 = vmatpush.bf16.msra.mxu0 %v4020
      %6345 = vmatpush.bf16.msra.mxu0 %v3997
      %6346 = vmatpush.bf16.msra.mxu0 %v3974
      %6347 = vmatpush.bf16.msra.mxu0 %v3951
      %6348 = vmatpush.bf16.msra.mxu0 %v3928
      %6349 = vmatpush.bf16.msra.mxu0 %v3905
      %6350 = vmatmul.bf16.gmra.mxu0 %v1105
      %v6351 = vpop.f32.mrf.mxu0
      %v6352 = vadd.f32 %v6333, %v6351
      %v6353 = vpop.f32.mrf.mxu0
      %v6354 = vadd.f32 %v6335, %v6353
      %6355 = vmatmul.bf16.gmra.mxu0 %v1110
      %v6356 = vpop.f32.mrf.mxu0
      %v6357 = vadd.f32 %v6338, %v6356
      %v6358 = vpop.f32.mrf.mxu0
      %v6359 = vadd.f32 %v6340, %v6358
      %6360 = vdwg.mxu0
      %6361 = vmatpush.bf16.msra.mxu0 %v4250
      %6362 = vmatpush.bf16.msra.mxu0 %v4227
      %6363 = vmatpush.bf16.msra.mxu0 %v4204
      %6364 = vmatpush.bf16.msra.mxu0 %v4181
      %6365 = vmatpush.bf16.msra.mxu0 %v4158
      %6366 = vmatpush.bf16.msra.mxu0 %v4135
      %6367 = vmatpush.bf16.msra.mxu0 %v4112
      %6368 = vmatpush.bf16.msra.mxu0 %v4089
      %6369 = vmatmul.bf16.gmra.mxu0 %v1106
      %v6370 = vpop.f32.mrf.mxu0
      %v6371 = vadd.f32 %v6352, %v6370
      %v6372 = vpop.f32.mrf.mxu0
      %v6373 = vadd.f32 %v6354, %v6372
      %6374 = vmatmul.bf16.gmra.mxu0 %v1111
      %v6375 = vpop.f32.mrf.mxu0
      %v6376 = vadd.f32 %v6357, %v6375
      %v6377 = vpop.f32.mrf.mxu0
      %v6378 = vadd.f32 %v6359, %v6377
      %6379 = vdwg.mxu0
      %6380 = vmatpush.bf16.msra.mxu0 %v4434
      %6381 = vmatpush.bf16.msra.mxu0 %v4411
      %6382 = vmatpush.bf16.msra.mxu0 %v4388
      %6383 = vmatpush.bf16.msra.mxu0 %v4365
      %6384 = vmatpush.bf16.msra.mxu0 %v4342
      %6385 = vmatpush.bf16.msra.mxu0 %v4319
      %6386 = vmatpush.bf16.msra.mxu0 %v4296
      %6387 = vmatpush.bf16.msra.mxu0 %v4273
      %6388 = vmatmul.bf16.gmra.mxu0 %v1107
      %v6389 = vpop.f32.mrf.mxu0
      %v6390 = vadd.f32 %v6371, %v6389
      %v6391 = vpop.f32.mrf.mxu0
      %v6392 = vadd.f32 %v6373, %v6391
      %6393 = vmatmul.bf16.gmra.mxu0 %v1112
      %v6394 = vpop.f32.mrf.mxu0
      %v6395 = vadd.f32 %v6376, %v6394
      %v6396 = vpop.f32.mrf.mxu0
      %v6397 = vadd.f32 %v6378, %v6396
      %6398 = vdwg.mxu0
      %6399 = vmatpush.bf16.msra.mxu0 0
      %6400 = vmatpush.bf16.msra.mxu0 0
      %6401 = vmatpush.bf16.msra.mxu0 0
      %6402 = vmatpush.bf16.msra.mxu0 %v5427
      %6403 = vmatpush.bf16.msra.mxu0 %v4526
      %6404 = vmatpush.bf16.msra.mxu0 %v4503
      %6405 = vmatpush.bf16.msra.mxu0 %v4480
      %6406 = vmatpush.bf16.msra.mxu0 %v4457
      %6407 = vmatmul.bf16.gmra.mxu0 %v5393
      %v6408 = vpop.f32.mrf.mxu0
      %v6409 = vadd.f32 %v6390, %v6408
      %v6410 = vpop.f32.mrf.mxu0
      %v6411 = vadd.f32 %v6392, %v6410
      %6412 = vmatmul.bf16.gmra.mxu0 %v5396
      %v6413 = vpop.f32.mrf.mxu0
      %v6414 = vadd.f32 %v6395, %v6413
      %v6415 = vpop.f32.mrf.mxu0
      %v6416 = vadd.f32 %v6397, %v6415
      %6417 = vdwg.mxu0
      %6418 = vmatpush.bf16.msra.mxu0 %v3883
      %6419 = vmatpush.bf16.msra.mxu0 %v3860
      %6420 = vmatpush.bf16.msra.mxu0 %v3837
      %6421 = vmatpush.bf16.msra.mxu0 %v3814
      %6422 = vmatpush.bf16.msra.mxu0 %v3791
      %6423 = vmatpush.bf16.msra.mxu0 %v3768
      %6424 = vmatpush.bf16.msra.mxu0 %v3745
      %6425 = vmatpush.bf16.msra.mxu0 %v3722
      %6426 = vmatmul.bf16.gmra.mxu0 %v1104
      %v6427 = vpop.f32.mrf.mxu0
      %v6428 = vadd.f32 0.0, %v6427
      %v6429 = vpop.f32.mrf.mxu0
      %v6430 = vadd.f32 0.0, %v6429
      %6431 = vmatmul.bf16.gmra.mxu0 %v1109
      %v6432 = vpop.f32.mrf.mxu0
      %v6433 = vadd.f32 0.0, %v6432
      %v6434 = vpop.f32.mrf.mxu0
      %v6435 = vadd.f32 0.0, %v6434
      %6436 = vdwg.mxu0
      %6437 = vmatpush.bf16.msra.mxu0 %v4067
      %6438 = vmatpush.bf16.msra.mxu0 %v4044
      %6439 = vmatpush.bf16.msra.mxu0 %v4021
      %6440 = vmatpush.bf16.msra.mxu0 %v3998
      %6441 = vmatpush.bf16.msra.mxu0 %v3975
      %6442 = vmatpush.bf16.msra.mxu0 %v3952
      %6443 = vmatpush.bf16.msra.mxu0 %v3929
      %6444 = vmatpush.bf16.msra.mxu0 %v3906
      %6445 = vmatmul.bf16.gmra.mxu0 %v1105
      %v6446 = vpop.f32.mrf.mxu0
      %v6447 = vadd.f32 %v6428, %v6446
      %v6448 = vpop.f32.mrf.mxu0
      %v6449 = vadd.f32 %v6430, %v6448
      %6450 = vmatmul.bf16.gmra.mxu0 %v1110
      %v6451 = vpop.f32.mrf.mxu0
      %v6452 = vadd.f32 %v6433, %v6451
      %v6453 = vpop.f32.mrf.mxu0
      %v6454 = vadd.f32 %v6435, %v6453
      %6455 = vdwg.mxu0
      %6456 = vmatpush.bf16.msra.mxu0 %v4251
      %6457 = vmatpush.bf16.msra.mxu0 %v4228
      %6458 = vmatpush.bf16.msra.mxu0 %v4205
      %6459 = vmatpush.bf16.msra.mxu0 %v4182
      %6460 = vmatpush.bf16.msra.mxu0 %v4159
      %6461 = vmatpush.bf16.msra.mxu0 %v4136
      %6462 = vmatpush.bf16.msra.mxu0 %v4113
      %6463 = vmatpush.bf16.msra.mxu0 %v4090
      %6464 = vmatmul.bf16.gmra.mxu0 %v1106
      %v6465 = vpop.f32.mrf.mxu0
      %v6466 = vadd.f32 %v6447, %v6465
      %v6467 = vpop.f32.mrf.mxu0
      %v6468 = vadd.f32 %v6449, %v6467
      %6469 = vmatmul.bf16.gmra.mxu0 %v1111
      %v6470 = vpop.f32.mrf.mxu0
      %v6471 = vadd.f32 %v6452, %v6470
      %v6472 = vpop.f32.mrf.mxu0
      %v6473 = vadd.f32 %v6454, %v6472
      %6474 = vdwg.mxu0
      %6475 = vmatpush.bf16.msra.mxu0 %v4435
      %6476 = vmatpush.bf16.msra.mxu0 %v4412
      %6477 = vmatpush.bf16.msra.mxu0 %v4389
      %6478 = vmatpush.bf16.msra.mxu0 %v4366
      %6479 = vmatpush.bf16.msra.mxu0 %v4343
      %6480 = vmatpush.bf16.msra.mxu0 %v4320
      %6481 = vmatpush.bf16.msra.mxu0 %v4297
      %6482 = vmatpush.bf16.msra.mxu0 %v4274
      %6483 = vmatmul.bf16.gmra.mxu0 %v1107
      %v6484 = vpop.f32.mrf.mxu0
      %v6485 = vadd.f32 %v6466, %v6484
      %v6486 = vpop.f32.mrf.mxu0
      %v6487 = vadd.f32 %v6468, %v6486
      %6488 = vmatmul.bf16.gmra.mxu0 %v1112
      %v6489 = vpop.f32.mrf.mxu0
      %v6490 = vadd.f32 %v6471, %v6489
      %v6491 = vpop.f32.mrf.mxu0
      %v6492 = vadd.f32 %v6473, %v6491
      %6493 = vdwg.mxu0
      %6494 = vmatpush.bf16.msra.mxu0 0
      %6495 = vmatpush.bf16.msra.mxu0 0
      %6496 = vmatpush.bf16.msra.mxu0 0
      %6497 = vmatpush.bf16.msra.mxu0 %v5430
      %6498 = vmatpush.bf16.msra.mxu0 %v4527
      %6499 = vmatpush.bf16.msra.mxu0 %v4504
      %6500 = vmatpush.bf16.msra.mxu0 %v4481
      %6501 = vmatpush.bf16.msra.mxu0 %v4458
      %6502 = vmatmul.bf16.gmra.mxu0 %v5393
      %v6503 = vpop.f32.mrf.mxu0
      %v6504 = vadd.f32 %v6485, %v6503
      %v6505 = vpop.f32.mrf.mxu0
      %v6506 = vadd.f32 %v6487, %v6505
      %6507 = vmatmul.bf16.gmra.mxu0 %v5396
      %v6508 = vpop.f32.mrf.mxu0
      %v6509 = vadd.f32 %v6490, %v6508
      %v6510 = vpop.f32.mrf.mxu0
      %v6511 = vadd.f32 %v6492, %v6510
      %6512 = vdwg.mxu0
      %6513 = vmatpush.bf16.msra.mxu0 %v3884
      %6514 = vmatpush.bf16.msra.mxu0 %v3861
      %6515 = vmatpush.bf16.msra.mxu0 %v3838
      %6516 = vmatpush.bf16.msra.mxu0 %v3815
      %6517 = vmatpush.bf16.msra.mxu0 %v3792
      %6518 = vmatpush.bf16.msra.mxu0 %v3769
      %6519 = vmatpush.bf16.msra.mxu0 %v3746
      %6520 = vmatpush.bf16.msra.mxu0 %v3723
      %6521 = vmatmul.bf16.gmra.mxu0 %v1104
      %v6522 = vpop.f32.mrf.mxu0
      %v6523 = vadd.f32 0.0, %v6522
      %v6524 = vpop.f32.mrf.mxu0
      %v6525 = vadd.f32 0.0, %v6524
      %6526 = vmatmul.bf16.gmra.mxu0 %v1109
      %v6527 = vpop.f32.mrf.mxu0
      %v6528 = vadd.f32 0.0, %v6527
      %v6529 = vpop.f32.mrf.mxu0
      %v6530 = vadd.f32 0.0, %v6529
      %6531 = vdwg.mxu0
      %6532 = vmatpush.bf16.msra.mxu0 %v4068
      %6533 = vmatpush.bf16.msra.mxu0 %v4045
      %6534 = vmatpush.bf16.msra.mxu0 %v4022
      %6535 = vmatpush.bf16.msra.mxu0 %v3999
      %6536 = vmatpush.bf16.msra.mxu0 %v3976
      %6537 = vmatpush.bf16.msra.mxu0 %v3953
      %6538 = vmatpush.bf16.msra.mxu0 %v3930
      %6539 = vmatpush.bf16.msra.mxu0 %v3907
      %6540 = vmatmul.bf16.gmra.mxu0 %v1105
      %v6541 = vpop.f32.mrf.mxu0
      %v6542 = vadd.f32 %v6523, %v6541
      %v6543 = vpop.f32.mrf.mxu0
      %v6544 = vadd.f32 %v6525, %v6543
      %6545 = vmatmul.bf16.gmra.mxu0 %v1110
      %v6546 = vpop.f32.mrf.mxu0
      %v6547 = vadd.f32 %v6528, %v6546
      %v6548 = vpop.f32.mrf.mxu0
      %v6549 = vadd.f32 %v6530, %v6548
      %6550 = vdwg.mxu0
      %6551 = vmatpush.bf16.msra.mxu0 %v4252
      %6552 = vmatpush.bf16.msra.mxu0 %v4229
      %6553 = vmatpush.bf16.msra.mxu0 %v4206
      %6554 = vmatpush.bf16.msra.mxu0 %v4183
      %6555 = vmatpush.bf16.msra.mxu0 %v4160
      %6556 = vmatpush.bf16.msra.mxu0 %v4137
      %6557 = vmatpush.bf16.msra.mxu0 %v4114
      %6558 = vmatpush.bf16.msra.mxu0 %v4091
      %6559 = vmatmul.bf16.gmra.mxu0 %v1106
      %v6560 = vpop.f32.mrf.mxu0
      %v6561 = vadd.f32 %v6542, %v6560
      %v6562 = vpop.f32.mrf.mxu0
      %v6563 = vadd.f32 %v6544, %v6562
      %6564 = vmatmul.bf16.gmra.mxu0 %v1111
      %v6565 = vpop.f32.mrf.mxu0
      %v6566 = vadd.f32 %v6547, %v6565
      %v6567 = vpop.f32.mrf.mxu0
      %v6568 = vadd.f32 %v6549, %v6567
      %6569 = vdwg.mxu0
      %6570 = vmatpush.bf16.msra.mxu0 %v4436
      %6571 = vmatpush.bf16.msra.mxu0 %v4413
      %6572 = vmatpush.bf16.msra.mxu0 %v4390
      %6573 = vmatpush.bf16.msra.mxu0 %v4367
      %6574 = vmatpush.bf16.msra.mxu0 %v4344
      %6575 = vmatpush.bf16.msra.mxu0 %v4321
      %6576 = vmatpush.bf16.msra.mxu0 %v4298
      %6577 = vmatpush.bf16.msra.mxu0 %v4275
      %6578 = vmatmul.bf16.gmra.mxu0 %v1107
      %v6579 = vpop.f32.mrf.mxu0
      %v6580 = vadd.f32 %v6561, %v6579
      %v6581 = vpop.f32.mrf.mxu0
      %v6582 = vadd.f32 %v6563, %v6581
      %6583 = vmatmul.bf16.gmra.mxu0 %v1112
      %v6584 = vpop.f32.mrf.mxu0
      %v6585 = vadd.f32 %v6566, %v6584
      %v6586 = vpop.f32.mrf.mxu0
      %v6587 = vadd.f32 %v6568, %v6586
      %6588 = vdwg.mxu0
      %6589 = vmatpush.bf16.msra.mxu0 0
      %6590 = vmatpush.bf16.msra.mxu0 0
      %6591 = vmatpush.bf16.msra.mxu0 0
      %6592 = vmatpush.bf16.msra.mxu0 %v5433
      %6593 = vmatpush.bf16.msra.mxu0 %v4528
      %6594 = vmatpush.bf16.msra.mxu0 %v4505
      %6595 = vmatpush.bf16.msra.mxu0 %v4482
      %6596 = vmatpush.bf16.msra.mxu0 %v4459
      %6597 = vmatmul.bf16.gmra.mxu0 %v5393
      %v6598 = vpop.f32.mrf.mxu0
      %v6599 = vadd.f32 %v6580, %v6598
      %v6600 = vpop.f32.mrf.mxu0
      %v6601 = vadd.f32 %v6582, %v6600
      %6602 = vmatmul.bf16.gmra.mxu0 %v5396
      %v6603 = vpop.f32.mrf.mxu0
      %v6604 = vadd.f32 %v6585, %v6603
      %v6605 = vpop.f32.mrf.mxu0
      %v6606 = vadd.f32 %v6587, %v6605
      %6607 = vdwg.mxu0
      %6608 = vmatpush.bf16.msra.mxu0 %v3885
      %6609 = vmatpush.bf16.msra.mxu0 %v3862
      %6610 = vmatpush.bf16.msra.mxu0 %v3839
      %6611 = vmatpush.bf16.msra.mxu0 %v3816
      %6612 = vmatpush.bf16.msra.mxu0 %v3793
      %6613 = vmatpush.bf16.msra.mxu0 %v3770
      %6614 = vmatpush.bf16.msra.mxu0 %v3747
      %6615 = vmatpush.bf16.msra.mxu0 %v3724
      %6616 = vmatmul.bf16.gmra.mxu0 %v1104
      %v6617 = vpop.f32.mrf.mxu0
      %v6618 = vadd.f32 0.0, %v6617
      %v6619 = vpop.f32.mrf.mxu0
      %v6620 = vadd.f32 0.0, %v6619
      %6621 = vmatmul.bf16.gmra.mxu0 %v1109
      %v6622 = vpop.f32.mrf.mxu0
      %v6623 = vadd.f32 0.0, %v6622
      %v6624 = vpop.f32.mrf.mxu0
      %v6625 = vadd.f32 0.0, %v6624
      %6626 = vdwg.mxu0
      %6627 = vmatpush.bf16.msra.mxu0 %v4069
      %6628 = vmatpush.bf16.msra.mxu0 %v4046
      %6629 = vmatpush.bf16.msra.mxu0 %v4023
      %6630 = vmatpush.bf16.msra.mxu0 %v4000
      %6631 = vmatpush.bf16.msra.mxu0 %v3977
      %6632 = vmatpush.bf16.msra.mxu0 %v3954
      %6633 = vmatpush.bf16.msra.mxu0 %v3931
      %6634 = vmatpush.bf16.msra.mxu0 %v3908
      %6635 = vmatmul.bf16.gmra.mxu0 %v1105
      %v6636 = vpop.f32.mrf.mxu0
      %v6637 = vadd.f32 %v6618, %v6636
      %v6638 = vpop.f32.mrf.mxu0
      %v6639 = vadd.f32 %v6620, %v6638
      %6640 = vmatmul.bf16.gmra.mxu0 %v1110
      %v6641 = vpop.f32.mrf.mxu0
      %v6642 = vadd.f32 %v6623, %v6641
      %v6643 = vpop.f32.mrf.mxu0
      %v6644 = vadd.f32 %v6625, %v6643
      %6645 = vdwg.mxu0
      %6646 = vmatpush.bf16.msra.mxu0 %v4253
      %6647 = vmatpush.bf16.msra.mxu0 %v4230
      %6648 = vmatpush.bf16.msra.mxu0 %v4207
      %6649 = vmatpush.bf16.msra.mxu0 %v4184
      %6650 = vmatpush.bf16.msra.mxu0 %v4161
      %6651 = vmatpush.bf16.msra.mxu0 %v4138
      %6652 = vmatpush.bf16.msra.mxu0 %v4115
      %6653 = vmatpush.bf16.msra.mxu0 %v4092
      %6654 = vmatmul.bf16.gmra.mxu0 %v1106
      %v6655 = vpop.f32.mrf.mxu0
      %v6656 = vadd.f32 %v6637, %v6655
      %v6657 = vpop.f32.mrf.mxu0
      %v6658 = vadd.f32 %v6639, %v6657
      %6659 = vmatmul.bf16.gmra.mxu0 %v1111
      %v6660 = vpop.f32.mrf.mxu0
      %v6661 = vadd.f32 %v6642, %v6660
      %v6662 = vpop.f32.mrf.mxu0
      %v6663 = vadd.f32 %v6644, %v6662
      %6664 = vdwg.mxu0
      %6665 = vmatpush.bf16.msra.mxu0 %v4437
      %6666 = vmatpush.bf16.msra.mxu0 %v4414
      %6667 = vmatpush.bf16.msra.mxu0 %v4391
      %6668 = vmatpush.bf16.msra.mxu0 %v4368
      %6669 = vmatpush.bf16.msra.mxu0 %v4345
      %6670 = vmatpush.bf16.msra.mxu0 %v4322
      %6671 = vmatpush.bf16.msra.mxu0 %v4299
      %6672 = vmatpush.bf16.msra.mxu0 %v4276
      %6673 = vmatmul.bf16.gmra.mxu0 %v1107
      %v6674 = vpop.f32.mrf.mxu0
      %v6675 = vadd.f32 %v6656, %v6674
      %v6676 = vpop.f32.mrf.mxu0
      %v6677 = vadd.f32 %v6658, %v6676
      %6678 = vmatmul.bf16.gmra.mxu0 %v1112
      %v6679 = vpop.f32.mrf.mxu0
      %v6680 = vadd.f32 %v6661, %v6679
      %v6681 = vpop.f32.mrf.mxu0
      %v6682 = vadd.f32 %v6663, %v6681
      %6683 = vdwg.mxu0
      %6684 = vmatpush.bf16.msra.mxu0 0
      %6685 = vmatpush.bf16.msra.mxu0 0
      %6686 = vmatpush.bf16.msra.mxu0 0
      %6687 = vmatpush.bf16.msra.mxu0 %v5436
      %6688 = vmatpush.bf16.msra.mxu0 %v4529
      %6689 = vmatpush.bf16.msra.mxu0 %v4506
      %6690 = vmatpush.bf16.msra.mxu0 %v4483
      %6691 = vmatpush.bf16.msra.mxu0 %v4460
      %6692 = vmatmul.bf16.gmra.mxu0 %v5393
      %v6693 = vpop.f32.mrf.mxu0
      %v6694 = vadd.f32 %v6675, %v6693
      %v6695 = vpop.f32.mrf.mxu0
      %v6696 = vadd.f32 %v6677, %v6695
      %6697 = vmatmul.bf16.gmra.mxu0 %v5396
      %v6698 = vpop.f32.mrf.mxu0
      %v6699 = vadd.f32 %v6680, %v6698
      %v6700 = vpop.f32.mrf.mxu0
      %v6701 = vadd.f32 %v6682, %v6700
      %6702 = vdwg.mxu0
      %6703 = vmatpush.bf16.msra.mxu0 %v3886
      %6704 = vmatpush.bf16.msra.mxu0 %v3863
      %6705 = vmatpush.bf16.msra.mxu0 %v3840
      %6706 = vmatpush.bf16.msra.mxu0 %v3817
      %6707 = vmatpush.bf16.msra.mxu0 %v3794
      %6708 = vmatpush.bf16.msra.mxu0 %v3771
      %6709 = vmatpush.bf16.msra.mxu0 %v3748
      %6710 = vmatpush.bf16.msra.mxu0 %v3725
      %6711 = vmatmul.bf16.gmra.mxu0 %v1104
      %v6712 = vpop.f32.mrf.mxu0
      %v6713 = vadd.f32 0.0, %v6712
      %v6714 = vpop.f32.mrf.mxu0
      %v6715 = vadd.f32 0.0, %v6714
      %6716 = vmatmul.bf16.gmra.mxu0 %v1109
      %v6717 = vpop.f32.mrf.mxu0
      %v6718 = vadd.f32 0.0, %v6717
      %v6719 = vpop.f32.mrf.mxu0
      %v6720 = vadd.f32 0.0, %v6719
      %6721 = vdwg.mxu0
      %6722 = vmatpush.bf16.msra.mxu0 %v4070
      %6723 = vmatpush.bf16.msra.mxu0 %v4047
      %6724 = vmatpush.bf16.msra.mxu0 %v4024
      %6725 = vmatpush.bf16.msra.mxu0 %v4001
      %6726 = vmatpush.bf16.msra.mxu0 %v3978
      %6727 = vmatpush.bf16.msra.mxu0 %v3955
      %6728 = vmatpush.bf16.msra.mxu0 %v3932
      %6729 = vmatpush.bf16.msra.mxu0 %v3909
      %6730 = vmatmul.bf16.gmra.mxu0 %v1105
      %v6731 = vpop.f32.mrf.mxu0
      %v6732 = vadd.f32 %v6713, %v6731
      %v6733 = vpop.f32.mrf.mxu0
      %v6734 = vadd.f32 %v6715, %v6733
      %6735 = vmatmul.bf16.gmra.mxu0 %v1110
      %v6736 = vpop.f32.mrf.mxu0
      %v6737 = vadd.f32 %v6718, %v6736
      %v6738 = vpop.f32.mrf.mxu0
      %v6739 = vadd.f32 %v6720, %v6738
      %6740 = vdwg.mxu0
      %6741 = vmatpush.bf16.msra.mxu0 %v4254
      %6742 = vmatpush.bf16.msra.mxu0 %v4231
      %6743 = vmatpush.bf16.msra.mxu0 %v4208
      %6744 = vmatpush.bf16.msra.mxu0 %v4185
      %6745 = vmatpush.bf16.msra.mxu0 %v4162
      %6746 = vmatpush.bf16.msra.mxu0 %v4139
      %6747 = vmatpush.bf16.msra.mxu0 %v4116
      %6748 = vmatpush.bf16.msra.mxu0 %v4093
      %6749 = vmatmul.bf16.gmra.mxu0 %v1106
      %v6750 = vpop.f32.mrf.mxu0
      %v6751 = vadd.f32 %v6732, %v6750
      %v6752 = vpop.f32.mrf.mxu0
      %v6753 = vadd.f32 %v6734, %v6752
      %6754 = vmatmul.bf16.gmra.mxu0 %v1111
      %v6755 = vpop.f32.mrf.mxu0
      %v6756 = vadd.f32 %v6737, %v6755
      %v6757 = vpop.f32.mrf.mxu0
      %v6758 = vadd.f32 %v6739, %v6757
      %6759 = vdwg.mxu0
      %6760 = vmatpush.bf16.msra.mxu0 %v4438
      %6761 = vmatpush.bf16.msra.mxu0 %v4415
      %6762 = vmatpush.bf16.msra.mxu0 %v4392
      %6763 = vmatpush.bf16.msra.mxu0 %v4369
      %6764 = vmatpush.bf16.msra.mxu0 %v4346
      %6765 = vmatpush.bf16.msra.mxu0 %v4323
      %6766 = vmatpush.bf16.msra.mxu0 %v4300
      %6767 = vmatpush.bf16.msra.mxu0 %v4277
      %6768 = vmatmul.bf16.gmra.mxu0 %v1107
      %v6769 = vpop.f32.mrf.mxu0
      %v6770 = vadd.f32 %v6751, %v6769
      %v6771 = vpop.f32.mrf.mxu0
      %v6772 = vadd.f32 %v6753, %v6771
      %6773 = vmatmul.bf16.gmra.mxu0 %v1112
      %v6774 = vpop.f32.mrf.mxu0
      %v6775 = vadd.f32 %v6756, %v6774
      %v6776 = vpop.f32.mrf.mxu0
      %v6777 = vadd.f32 %v6758, %v6776
      %6778 = vdwg.mxu0
      %6779 = vmatpush.bf16.msra.mxu0 0
      %6780 = vmatpush.bf16.msra.mxu0 0
      %6781 = vmatpush.bf16.msra.mxu0 0
      %6782 = vmatpush.bf16.msra.mxu0 %v5439
      %6783 = vmatpush.bf16.msra.mxu0 %v4530
      %6784 = vmatpush.bf16.msra.mxu0 %v4507
      %6785 = vmatpush.bf16.msra.mxu0 %v4484
      %6786 = vmatpush.bf16.msra.mxu0 %v4461
      %6787 = vmatmul.bf16.gmra.mxu0 %v5393
      %v6788 = vpop.f32.mrf.mxu0
      %v6789 = vadd.f32 %v6770, %v6788
      %v6790 = vpop.f32.mrf.mxu0
      %v6791 = vadd.f32 %v6772, %v6790
      %6792 = vmatmul.bf16.gmra.mxu0 %v5396
      %v6793 = vpop.f32.mrf.mxu0
      %v6794 = vadd.f32 %v6775, %v6793
      %v6795 = vpop.f32.mrf.mxu0
      %v6796 = vadd.f32 %v6777, %v6795
      %6797 = vdwg.mxu0
      %6798 = vmatpush.bf16.msra.mxu0 %v3887
      %6799 = vmatpush.bf16.msra.mxu0 %v3864
      %6800 = vmatpush.bf16.msra.mxu0 %v3841
      %6801 = vmatpush.bf16.msra.mxu0 %v3818
      %6802 = vmatpush.bf16.msra.mxu0 %v3795
      %6803 = vmatpush.bf16.msra.mxu0 %v3772
      %6804 = vmatpush.bf16.msra.mxu0 %v3749
      %6805 = vmatpush.bf16.msra.mxu0 %v3726
      %6806 = vmatmul.bf16.gmra.mxu0 %v1104
      %v6807 = vpop.f32.mrf.mxu0
      %v6808 = vadd.f32 0.0, %v6807
      %v6809 = vpop.f32.mrf.mxu0
      %v6810 = vadd.f32 0.0, %v6809
      %6811 = vmatmul.bf16.gmra.mxu0 %v1109
      %v6812 = vpop.f32.mrf.mxu0
      %v6813 = vadd.f32 0.0, %v6812
      %v6814 = vpop.f32.mrf.mxu0
      %v6815 = vadd.f32 0.0, %v6814
      %6816 = vdwg.mxu0
      %6817 = vmatpush.bf16.msra.mxu0 %v4071
      %6818 = vmatpush.bf16.msra.mxu0 %v4048
      %6819 = vmatpush.bf16.msra.mxu0 %v4025
      %6820 = vmatpush.bf16.msra.mxu0 %v4002
      %6821 = vmatpush.bf16.msra.mxu0 %v3979
      %6822 = vmatpush.bf16.msra.mxu0 %v3956
      %6823 = vmatpush.bf16.msra.mxu0 %v3933
      %6824 = vmatpush.bf16.msra.mxu0 %v3910
      %6825 = vmatmul.bf16.gmra.mxu0 %v1105
      %v6826 = vpop.f32.mrf.mxu0
      %v6827 = vadd.f32 %v6808, %v6826
      %v6828 = vpop.f32.mrf.mxu0
      %v6829 = vadd.f32 %v6810, %v6828
      %6830 = vmatmul.bf16.gmra.mxu0 %v1110
      %v6831 = vpop.f32.mrf.mxu0
      %v6832 = vadd.f32 %v6813, %v6831
      %v6833 = vpop.f32.mrf.mxu0
      %v6834 = vadd.f32 %v6815, %v6833
      %6835 = vdwg.mxu0
      %6836 = vmatpush.bf16.msra.mxu0 %v4255
      %6837 = vmatpush.bf16.msra.mxu0 %v4232
      %6838 = vmatpush.bf16.msra.mxu0 %v4209
      %6839 = vmatpush.bf16.msra.mxu0 %v4186
      %6840 = vmatpush.bf16.msra.mxu0 %v4163
      %6841 = vmatpush.bf16.msra.mxu0 %v4140
      %6842 = vmatpush.bf16.msra.mxu0 %v4117
      %6843 = vmatpush.bf16.msra.mxu0 %v4094
      %6844 = vmatmul.bf16.gmra.mxu0 %v1106
      %v6845 = vpop.f32.mrf.mxu0
      %v6846 = vadd.f32 %v6827, %v6845
      %v6847 = vpop.f32.mrf.mxu0
      %v6848 = vadd.f32 %v6829, %v6847
      %6849 = vmatmul.bf16.gmra.mxu0 %v1111
      %v6850 = vpop.f32.mrf.mxu0
      %v6851 = vadd.f32 %v6832, %v6850
      %v6852 = vpop.f32.mrf.mxu0
      %v6853 = vadd.f32 %v6834, %v6852
      %6854 = vdwg.mxu0
      %6855 = vmatpush.bf16.msra.mxu0 %v4439
      %6856 = vmatpush.bf16.msra.mxu0 %v4416
      %6857 = vmatpush.bf16.msra.mxu0 %v4393
      %6858 = vmatpush.bf16.msra.mxu0 %v4370
      %6859 = vmatpush.bf16.msra.mxu0 %v4347
      %6860 = vmatpush.bf16.msra.mxu0 %v4324
      %6861 = vmatpush.bf16.msra.mxu0 %v4301
      %6862 = vmatpush.bf16.msra.mxu0 %v4278
      %6863 = vmatmul.bf16.gmra.mxu0 %v1107
      %v6864 = vpop.f32.mrf.mxu0
      %v6865 = vadd.f32 %v6846, %v6864
      %v6866 = vpop.f32.mrf.mxu0
      %v6867 = vadd.f32 %v6848, %v6866
      %6868 = vmatmul.bf16.gmra.mxu0 %v1112
      %v6869 = vpop.f32.mrf.mxu0
      %v6870 = vadd.f32 %v6851, %v6869
      %v6871 = vpop.f32.mrf.mxu0
      %v6872 = vadd.f32 %v6853, %v6871
      %6873 = vdwg.mxu0
      %6874 = vmatpush.bf16.msra.mxu0 0
      %6875 = vmatpush.bf16.msra.mxu0 0
      %6876 = vmatpush.bf16.msra.mxu0 0
      %6877 = vmatpush.bf16.msra.mxu0 %v5442
      %6878 = vmatpush.bf16.msra.mxu0 %v4531
      %6879 = vmatpush.bf16.msra.mxu0 %v4508
      %6880 = vmatpush.bf16.msra.mxu0 %v4485
      %6881 = vmatpush.bf16.msra.mxu0 %v4462
      %6882 = vmatmul.bf16.gmra.mxu0 %v5393
      %v6883 = vpop.f32.mrf.mxu0
      %v6884 = vadd.f32 %v6865, %v6883
      %v6885 = vpop.f32.mrf.mxu0
      %v6886 = vadd.f32 %v6867, %v6885
      %6887 = vmatmul.bf16.gmra.mxu0 %v5396
      %v6888 = vpop.f32.mrf.mxu0
      %v6889 = vadd.f32 %v6870, %v6888
      %v6890 = vpop.f32.mrf.mxu0
      %v6891 = vadd.f32 %v6872, %v6890
      %6892 = vdwg.mxu0
      %6893 = vmatpush.bf16.msra.mxu0 %v3888
      %6894 = vmatpush.bf16.msra.mxu0 %v3865
      %6895 = vmatpush.bf16.msra.mxu0 %v3842
      %6896 = vmatpush.bf16.msra.mxu0 %v3819
      %6897 = vmatpush.bf16.msra.mxu0 %v3796
      %6898 = vmatpush.bf16.msra.mxu0 %v3773
      %6899 = vmatpush.bf16.msra.mxu0 %v3750
      %6900 = vmatpush.bf16.msra.mxu0 %v3727
      %6901 = vmatmul.bf16.gmra.mxu0 %v1104
      %v6902 = vpop.f32.mrf.mxu0
      %v6903 = vadd.f32 0.0, %v6902
      %v6904 = vpop.f32.mrf.mxu0
      %v6905 = vadd.f32 0.0, %v6904
      %6906 = vmatmul.bf16.gmra.mxu0 %v1109
      %v6907 = vpop.f32.mrf.mxu0
      %v6908 = vadd.f32 0.0, %v6907
      %v6909 = vpop.f32.mrf.mxu0
      %v6910 = vadd.f32 0.0, %v6909
      %6911 = vdwg.mxu0
      %6912 = vmatpush.bf16.msra.mxu0 %v4072
      %6913 = vmatpush.bf16.msra.mxu0 %v4049
      %6914 = vmatpush.bf16.msra.mxu0 %v4026
      %6915 = vmatpush.bf16.msra.mxu0 %v4003
      %6916 = vmatpush.bf16.msra.mxu0 %v3980
      %6917 = vmatpush.bf16.msra.mxu0 %v3957
      %6918 = vmatpush.bf16.msra.mxu0 %v3934
      %6919 = vmatpush.bf16.msra.mxu0 %v3911
      %6920 = vmatmul.bf16.gmra.mxu0 %v1105
      %v6921 = vpop.f32.mrf.mxu0
      %v6922 = vadd.f32 %v6903, %v6921
      %v6923 = vpop.f32.mrf.mxu0
      %v6924 = vadd.f32 %v6905, %v6923
      %6925 = vmatmul.bf16.gmra.mxu0 %v1110
      %v6926 = vpop.f32.mrf.mxu0
      %v6927 = vadd.f32 %v6908, %v6926
      %v6928 = vpop.f32.mrf.mxu0
      %v6929 = vadd.f32 %v6910, %v6928
      %6930 = vdwg.mxu0
      %6931 = vmatpush.bf16.msra.mxu0 %v4256
      %6932 = vmatpush.bf16.msra.mxu0 %v4233
      %6933 = vmatpush.bf16.msra.mxu0 %v4210
      %6934 = vmatpush.bf16.msra.mxu0 %v4187
      %6935 = vmatpush.bf16.msra.mxu0 %v4164
      %6936 = vmatpush.bf16.msra.mxu0 %v4141
      %6937 = vmatpush.bf16.msra.mxu0 %v4118
      %6938 = vmatpush.bf16.msra.mxu0 %v4095
      %6939 = vmatmul.bf16.gmra.mxu0 %v1106
      %v6940 = vpop.f32.mrf.mxu0
      %v6941 = vadd.f32 %v6922, %v6940
      %v6942 = vpop.f32.mrf.mxu0
      %v6943 = vadd.f32 %v6924, %v6942
      %6944 = vmatmul.bf16.gmra.mxu0 %v1111
      %v6945 = vpop.f32.mrf.mxu0
      %v6946 = vadd.f32 %v6927, %v6945
      %v6947 = vpop.f32.mrf.mxu0
      %v6948 = vadd.f32 %v6929, %v6947
      %6949 = vdwg.mxu0
      %6950 = vmatpush.bf16.msra.mxu0 %v4440
      %6951 = vmatpush.bf16.msra.mxu0 %v4417
      %6952 = vmatpush.bf16.msra.mxu0 %v4394
      %6953 = vmatpush.bf16.msra.mxu0 %v4371
      %6954 = vmatpush.bf16.msra.mxu0 %v4348
      %6955 = vmatpush.bf16.msra.mxu0 %v4325
      %6956 = vmatpush.bf16.msra.mxu0 %v4302
      %6957 = vmatpush.bf16.msra.mxu0 %v4279
      %6958 = vmatmul.bf16.gmra.mxu0 %v1107
      %v6959 = vpop.f32.mrf.mxu0
      %v6960 = vadd.f32 %v6941, %v6959
      %v6961 = vpop.f32.mrf.mxu0
      %v6962 = vadd.f32 %v6943, %v6961
      %6963 = vmatmul.bf16.gmra.mxu0 %v1112
      %v6964 = vpop.f32.mrf.mxu0
      %v6965 = vadd.f32 %v6946, %v6964
      %v6966 = vpop.f32.mrf.mxu0
      %v6967 = vadd.f32 %v6948, %v6966
      %6968 = vdwg.mxu0
      %6969 = vmatpush.bf16.msra.mxu0 0
      %6970 = vmatpush.bf16.msra.mxu0 0
      %6971 = vmatpush.bf16.msra.mxu0 0
      %6972 = vmatpush.bf16.msra.mxu0 %v5445
      %6973 = vmatpush.bf16.msra.mxu0 %v4532
      %6974 = vmatpush.bf16.msra.mxu0 %v4509
      %6975 = vmatpush.bf16.msra.mxu0 %v4486
      %6976 = vmatpush.bf16.msra.mxu0 %v4463
      %6977 = vmatmul.bf16.gmra.mxu0 %v5393
      %v6978 = vpop.f32.mrf.mxu0
      %v6979 = vadd.f32 %v6960, %v6978
      %v6980 = vpop.f32.mrf.mxu0
      %v6981 = vadd.f32 %v6962, %v6980
      %6982 = vmatmul.bf16.gmra.mxu0 %v5396
      %v6983 = vpop.f32.mrf.mxu0
      %v6984 = vadd.f32 %v6965, %v6983
      %v6985 = vpop.f32.mrf.mxu0
      %v6986 = vadd.f32 %v6967, %v6985
      %6987 = vdwg.mxu0
      %6988 = vmatpush.bf16.msra.mxu0 %v3889
      %6989 = vmatpush.bf16.msra.mxu0 %v3866
      %6990 = vmatpush.bf16.msra.mxu0 %v3843
      %6991 = vmatpush.bf16.msra.mxu0 %v3820
      %6992 = vmatpush.bf16.msra.mxu0 %v3797
      %6993 = vmatpush.bf16.msra.mxu0 %v3774
      %6994 = vmatpush.bf16.msra.mxu0 %v3751
      %6995 = vmatpush.bf16.msra.mxu0 %v3728
      %6996 = vmatmul.bf16.gmra.mxu0 %v1104
      %v6997 = vpop.f32.mrf.mxu0
      %v6998 = vadd.f32 0.0, %v6997
      %v6999 = vpop.f32.mrf.mxu0
      %v7000 = vadd.f32 0.0, %v6999
      %7001 = vmatmul.bf16.gmra.mxu0 %v1109
      %v7002 = vpop.f32.mrf.mxu0
      %v7003 = vadd.f32 0.0, %v7002
      %v7004 = vpop.f32.mrf.mxu0
      %v7005 = vadd.f32 0.0, %v7004
      %7006 = vdwg.mxu0
      %7007 = vmatpush.bf16.msra.mxu0 %v4073
      %7008 = vmatpush.bf16.msra.mxu0 %v4050
      %7009 = vmatpush.bf16.msra.mxu0 %v4027
      %7010 = vmatpush.bf16.msra.mxu0 %v4004
      %7011 = vmatpush.bf16.msra.mxu0 %v3981
      %7012 = vmatpush.bf16.msra.mxu0 %v3958
      %7013 = vmatpush.bf16.msra.mxu0 %v3935
      %7014 = vmatpush.bf16.msra.mxu0 %v3912
      %7015 = vmatmul.bf16.gmra.mxu0 %v1105
      %v7016 = vpop.f32.mrf.mxu0
      %v7017 = vadd.f32 %v6998, %v7016
      %v7018 = vpop.f32.mrf.mxu0
      %v7019 = vadd.f32 %v7000, %v7018
      %7020 = vmatmul.bf16.gmra.mxu0 %v1110
      %v7021 = vpop.f32.mrf.mxu0
      %v7022 = vadd.f32 %v7003, %v7021
      %v7023 = vpop.f32.mrf.mxu0
      %v7024 = vadd.f32 %v7005, %v7023
      %7025 = vdwg.mxu0
      %7026 = vmatpush.bf16.msra.mxu0 %v4257
      %7027 = vmatpush.bf16.msra.mxu0 %v4234
      %7028 = vmatpush.bf16.msra.mxu0 %v4211
      %7029 = vmatpush.bf16.msra.mxu0 %v4188
      %7030 = vmatpush.bf16.msra.mxu0 %v4165
      %7031 = vmatpush.bf16.msra.mxu0 %v4142
      %7032 = vmatpush.bf16.msra.mxu0 %v4119
      %7033 = vmatpush.bf16.msra.mxu0 %v4096
      %7034 = vmatmul.bf16.gmra.mxu0 %v1106
      %v7035 = vpop.f32.mrf.mxu0
      %v7036 = vadd.f32 %v7017, %v7035
      %v7037 = vpop.f32.mrf.mxu0
      %v7038 = vadd.f32 %v7019, %v7037
      %7039 = vmatmul.bf16.gmra.mxu0 %v1111
      %v7040 = vpop.f32.mrf.mxu0
      %v7041 = vadd.f32 %v7022, %v7040
      %v7042 = vpop.f32.mrf.mxu0
      %v7043 = vadd.f32 %v7024, %v7042
      %7044 = vdwg.mxu0
      %7045 = vmatpush.bf16.msra.mxu0 %v4441
      %7046 = vmatpush.bf16.msra.mxu0 %v4418
      %7047 = vmatpush.bf16.msra.mxu0 %v4395
      %7048 = vmatpush.bf16.msra.mxu0 %v4372
      %7049 = vmatpush.bf16.msra.mxu0 %v4349
      %7050 = vmatpush.bf16.msra.mxu0 %v4326
      %7051 = vmatpush.bf16.msra.mxu0 %v4303
      %7052 = vmatpush.bf16.msra.mxu0 %v4280
      %7053 = vmatmul.bf16.gmra.mxu0 %v1107
      %v7054 = vpop.f32.mrf.mxu0
      %v7055 = vadd.f32 %v7036, %v7054
      %v7056 = vpop.f32.mrf.mxu0
      %v7057 = vadd.f32 %v7038, %v7056
      %7058 = vmatmul.bf16.gmra.mxu0 %v1112
      %v7059 = vpop.f32.mrf.mxu0
      %v7060 = vadd.f32 %v7041, %v7059
      %v7061 = vpop.f32.mrf.mxu0
      %v7062 = vadd.f32 %v7043, %v7061
      %7063 = vdwg.mxu0
      %7064 = vmatpush.bf16.msra.mxu0 0
      %7065 = vmatpush.bf16.msra.mxu0 0
      %7066 = vmatpush.bf16.msra.mxu0 0
      %7067 = vmatpush.bf16.msra.mxu0 %v5448
      %7068 = vmatpush.bf16.msra.mxu0 %v4533
      %7069 = vmatpush.bf16.msra.mxu0 %v4510
      %7070 = vmatpush.bf16.msra.mxu0 %v4487
      %7071 = vmatpush.bf16.msra.mxu0 %v4464
      %7072 = vmatmul.bf16.gmra.mxu0 %v5393
      %v7073 = vpop.f32.mrf.mxu0
      %v7074 = vadd.f32 %v7055, %v7073
      %v7075 = vpop.f32.mrf.mxu0
      %v7076 = vadd.f32 %v7057, %v7075
      %7077 = vmatmul.bf16.gmra.mxu0 %v5396
      %v7078 = vpop.f32.mrf.mxu0
      %v7079 = vadd.f32 %v7060, %v7078
      %v7080 = vpop.f32.mrf.mxu0
      %v7081 = vadd.f32 %v7062, %v7080
      %7082 = vdwg.mxu0
      %7083 = vmatpush.bf16.msra.mxu0 %v3890
      %7084 = vmatpush.bf16.msra.mxu0 %v3867
      %7085 = vmatpush.bf16.msra.mxu0 %v3844
      %7086 = vmatpush.bf16.msra.mxu0 %v3821
      %7087 = vmatpush.bf16.msra.mxu0 %v3798
      %7088 = vmatpush.bf16.msra.mxu0 %v3775
      %7089 = vmatpush.bf16.msra.mxu0 %v3752
      %7090 = vmatpush.bf16.msra.mxu0 %v3729
      %7091 = vmatmul.bf16.gmra.mxu0 %v1104
      %v7092 = vpop.f32.mrf.mxu0
      %v7093 = vadd.f32 0.0, %v7092
      %v7094 = vpop.f32.mrf.mxu0
      %v7095 = vadd.f32 0.0, %v7094
      %7096 = vmatmul.bf16.gmra.mxu0 %v1109
      %v7097 = vpop.f32.mrf.mxu0
      %v7098 = vadd.f32 0.0, %v7097
      %v7099 = vpop.f32.mrf.mxu0
      %v7100 = vadd.f32 0.0, %v7099
      %7101 = vdwg.mxu0
      %7102 = vmatpush.bf16.msra.mxu0 %v4074
      %7103 = vmatpush.bf16.msra.mxu0 %v4051
      %7104 = vmatpush.bf16.msra.mxu0 %v4028
      %7105 = vmatpush.bf16.msra.mxu0 %v4005
      %7106 = vmatpush.bf16.msra.mxu0 %v3982
      %7107 = vmatpush.bf16.msra.mxu0 %v3959
      %7108 = vmatpush.bf16.msra.mxu0 %v3936
      %7109 = vmatpush.bf16.msra.mxu0 %v3913
      %7110 = vmatmul.bf16.gmra.mxu0 %v1105
      %v7111 = vpop.f32.mrf.mxu0
      %v7112 = vadd.f32 %v7093, %v7111
      %v7113 = vpop.f32.mrf.mxu0
      %v7114 = vadd.f32 %v7095, %v7113
      %7115 = vmatmul.bf16.gmra.mxu0 %v1110
      %v7116 = vpop.f32.mrf.mxu0
      %v7117 = vadd.f32 %v7098, %v7116
      %v7118 = vpop.f32.mrf.mxu0
      %v7119 = vadd.f32 %v7100, %v7118
      %7120 = vdwg.mxu0
      %7121 = vmatpush.bf16.msra.mxu0 %v4258
      %7122 = vmatpush.bf16.msra.mxu0 %v4235
      %7123 = vmatpush.bf16.msra.mxu0 %v4212
      %7124 = vmatpush.bf16.msra.mxu0 %v4189
      %7125 = vmatpush.bf16.msra.mxu0 %v4166
      %7126 = vmatpush.bf16.msra.mxu0 %v4143
      %7127 = vmatpush.bf16.msra.mxu0 %v4120
      %7128 = vmatpush.bf16.msra.mxu0 %v4097
      %7129 = vmatmul.bf16.gmra.mxu0 %v1106
      %v7130 = vpop.f32.mrf.mxu0
      %v7131 = vadd.f32 %v7112, %v7130
      %v7132 = vpop.f32.mrf.mxu0
      %v7133 = vadd.f32 %v7114, %v7132
      %7134 = vmatmul.bf16.gmra.mxu0 %v1111
      %v7135 = vpop.f32.mrf.mxu0
      %v7136 = vadd.f32 %v7117, %v7135
      %v7137 = vpop.f32.mrf.mxu0
      %v7138 = vadd.f32 %v7119, %v7137
      %7139 = vdwg.mxu0
      %7140 = vmatpush.bf16.msra.mxu0 %v4442
      %7141 = vmatpush.bf16.msra.mxu0 %v4419
      %7142 = vmatpush.bf16.msra.mxu0 %v4396
      %7143 = vmatpush.bf16.msra.mxu0 %v4373
      %7144 = vmatpush.bf16.msra.mxu0 %v4350
      %7145 = vmatpush.bf16.msra.mxu0 %v4327
      %7146 = vmatpush.bf16.msra.mxu0 %v4304
      %7147 = vmatpush.bf16.msra.mxu0 %v4281
      %7148 = vmatmul.bf16.gmra.mxu0 %v1107
      %v7149 = vpop.f32.mrf.mxu0
      %v7150 = vadd.f32 %v7131, %v7149
      %v7151 = vpop.f32.mrf.mxu0
      %v7152 = vadd.f32 %v7133, %v7151
      %7153 = vmatmul.bf16.gmra.mxu0 %v1112
      %v7154 = vpop.f32.mrf.mxu0
      %v7155 = vadd.f32 %v7136, %v7154
      %v7156 = vpop.f32.mrf.mxu0
      %v7157 = vadd.f32 %v7138, %v7156
      %7158 = vdwg.mxu0
      %7159 = vmatpush.bf16.msra.mxu0 0
      %7160 = vmatpush.bf16.msra.mxu0 0
      %7161 = vmatpush.bf16.msra.mxu0 0
      %7162 = vmatpush.bf16.msra.mxu0 %v5451
      %7163 = vmatpush.bf16.msra.mxu0 %v4534
      %7164 = vmatpush.bf16.msra.mxu0 %v4511
      %7165 = vmatpush.bf16.msra.mxu0 %v4488
      %7166 = vmatpush.bf16.msra.mxu0 %v4465
      %7167 = vmatmul.bf16.gmra.mxu0 %v5393
      %v7168 = vpop.f32.mrf.mxu0
      %v7169 = vadd.f32 %v7150, %v7168
      %v7170 = vpop.f32.mrf.mxu0
      %v7171 = vadd.f32 %v7152, %v7170
      %7172 = vmatmul.bf16.gmra.mxu0 %v5396
      %v7173 = vpop.f32.mrf.mxu0
      %v7174 = vadd.f32 %v7155, %v7173
      %v7175 = vpop.f32.mrf.mxu0
      %v7176 = vadd.f32 %v7157, %v7175
      %7177 = vdwg.mxu0
      %7178 = vmatpush.bf16.msra.mxu0 %v3891
      %7179 = vmatpush.bf16.msra.mxu0 %v3868
      %7180 = vmatpush.bf16.msra.mxu0 %v3845
      %7181 = vmatpush.bf16.msra.mxu0 %v3822
      %7182 = vmatpush.bf16.msra.mxu0 %v3799
      %7183 = vmatpush.bf16.msra.mxu0 %v3776
      %7184 = vmatpush.bf16.msra.mxu0 %v3753
      %7185 = vmatpush.bf16.msra.mxu0 %v3730
      %7186 = vmatmul.bf16.gmra.mxu0 %v1104
      %v7187 = vpop.f32.mrf.mxu0
      %v7188 = vadd.f32 0.0, %v7187
      %v7189 = vpop.f32.mrf.mxu0
      %v7190 = vadd.f32 0.0, %v7189
      %7191 = vmatmul.bf16.gmra.mxu0 %v1109
      %v7192 = vpop.f32.mrf.mxu0
      %v7193 = vadd.f32 0.0, %v7192
      %v7194 = vpop.f32.mrf.mxu0
      %v7195 = vadd.f32 0.0, %v7194
      %7196 = vdwg.mxu0
      %7197 = vmatpush.bf16.msra.mxu0 %v4075
      %7198 = vmatpush.bf16.msra.mxu0 %v4052
      %7199 = vmatpush.bf16.msra.mxu0 %v4029
      %7200 = vmatpush.bf16.msra.mxu0 %v4006
      %7201 = vmatpush.bf16.msra.mxu0 %v3983
      %7202 = vmatpush.bf16.msra.mxu0 %v3960
      %7203 = vmatpush.bf16.msra.mxu0 %v3937
      %7204 = vmatpush.bf16.msra.mxu0 %v3914
      %7205 = vmatmul.bf16.gmra.mxu0 %v1105
      %v7206 = vpop.f32.mrf.mxu0
      %v7207 = vadd.f32 %v7188, %v7206
      %v7208 = vpop.f32.mrf.mxu0
      %v7209 = vadd.f32 %v7190, %v7208
      %7210 = vmatmul.bf16.gmra.mxu0 %v1110
      %v7211 = vpop.f32.mrf.mxu0
      %v7212 = vadd.f32 %v7193, %v7211
      %v7213 = vpop.f32.mrf.mxu0
      %v7214 = vadd.f32 %v7195, %v7213
      %7215 = vdwg.mxu0
      %7216 = vmatpush.bf16.msra.mxu0 %v4259
      %7217 = vmatpush.bf16.msra.mxu0 %v4236
      %7218 = vmatpush.bf16.msra.mxu0 %v4213
      %7219 = vmatpush.bf16.msra.mxu0 %v4190
      %7220 = vmatpush.bf16.msra.mxu0 %v4167
      %7221 = vmatpush.bf16.msra.mxu0 %v4144
      %7222 = vmatpush.bf16.msra.mxu0 %v4121
      %7223 = vmatpush.bf16.msra.mxu0 %v4098
      %7224 = vmatmul.bf16.gmra.mxu0 %v1106
      %v7225 = vpop.f32.mrf.mxu0
      %v7226 = vadd.f32 %v7207, %v7225
      %v7227 = vpop.f32.mrf.mxu0
      %v7228 = vadd.f32 %v7209, %v7227
      %7229 = vmatmul.bf16.gmra.mxu0 %v1111
      %v7230 = vpop.f32.mrf.mxu0
      %v7231 = vadd.f32 %v7212, %v7230
      %v7232 = vpop.f32.mrf.mxu0
      %v7233 = vadd.f32 %v7214, %v7232
      %7234 = vdwg.mxu0
      %7235 = vmatpush.bf16.msra.mxu0 %v4443
      %7236 = vmatpush.bf16.msra.mxu0 %v4420
      %7237 = vmatpush.bf16.msra.mxu0 %v4397
      %7238 = vmatpush.bf16.msra.mxu0 %v4374
      %7239 = vmatpush.bf16.msra.mxu0 %v4351
      %7240 = vmatpush.bf16.msra.mxu0 %v4328
      %7241 = vmatpush.bf16.msra.mxu0 %v4305
      %7242 = vmatpush.bf16.msra.mxu0 %v4282
      %7243 = vmatmul.bf16.gmra.mxu0 %v1107
      %v7244 = vpop.f32.mrf.mxu0
      %v7245 = vadd.f32 %v7226, %v7244
      %v7246 = vpop.f32.mrf.mxu0
      %v7247 = vadd.f32 %v7228, %v7246
      %7248 = vmatmul.bf16.gmra.mxu0 %v1112
      %v7249 = vpop.f32.mrf.mxu0
      %v7250 = vadd.f32 %v7231, %v7249
      %v7251 = vpop.f32.mrf.mxu0
      %v7252 = vadd.f32 %v7233, %v7251
      %7253 = vdwg.mxu0
      %7254 = vmatpush.bf16.msra.mxu0 0
      %7255 = vmatpush.bf16.msra.mxu0 0
      %7256 = vmatpush.bf16.msra.mxu0 0
      %7257 = vmatpush.bf16.msra.mxu0 %v5454
      %7258 = vmatpush.bf16.msra.mxu0 %v4535
      %7259 = vmatpush.bf16.msra.mxu0 %v4512
      %7260 = vmatpush.bf16.msra.mxu0 %v4489
      %7261 = vmatpush.bf16.msra.mxu0 %v4466
      %7262 = vmatmul.bf16.gmra.mxu0 %v5393
      %v7263 = vpop.f32.mrf.mxu0
      %v7264 = vadd.f32 %v7245, %v7263
      %v7265 = vpop.f32.mrf.mxu0
      %v7266 = vadd.f32 %v7247, %v7265
      %7267 = vmatmul.bf16.gmra.mxu0 %v5396
      %v7268 = vpop.f32.mrf.mxu0
      %v7269 = vadd.f32 %v7250, %v7268
      %v7270 = vpop.f32.mrf.mxu0
      %v7271 = vadd.f32 %v7252, %v7270
      %7272 = vdwg.mxu0
      %7273 = vmatpush.bf16.msra.mxu0 %v3892
      %7274 = vmatpush.bf16.msra.mxu0 %v3869
      %7275 = vmatpush.bf16.msra.mxu0 %v3846
      %7276 = vmatpush.bf16.msra.mxu0 %v3823
      %7277 = vmatpush.bf16.msra.mxu0 %v3800
      %7278 = vmatpush.bf16.msra.mxu0 %v3777
      %7279 = vmatpush.bf16.msra.mxu0 %v3754
      %7280 = vmatpush.bf16.msra.mxu0 %v3731
      %7281 = vmatmul.bf16.gmra.mxu0 %v1104
      %v7282 = vpop.f32.mrf.mxu0
      %v7283 = vadd.f32 0.0, %v7282
      %v7284 = vpop.f32.mrf.mxu0
      %v7285 = vadd.f32 0.0, %v7284
      %7286 = vmatmul.bf16.gmra.mxu0 %v1109
      %v7287 = vpop.f32.mrf.mxu0
      %v7288 = vadd.f32 0.0, %v7287
      %v7289 = vpop.f32.mrf.mxu0
      %v7290 = vadd.f32 0.0, %v7289
      %7291 = vdwg.mxu0
      %7292 = vmatpush.bf16.msra.mxu0 %v4076
      %7293 = vmatpush.bf16.msra.mxu0 %v4053
      %7294 = vmatpush.bf16.msra.mxu0 %v4030
      %7295 = vmatpush.bf16.msra.mxu0 %v4007
      %7296 = vmatpush.bf16.msra.mxu0 %v3984
      %7297 = vmatpush.bf16.msra.mxu0 %v3961
      %7298 = vmatpush.bf16.msra.mxu0 %v3938
      %7299 = vmatpush.bf16.msra.mxu0 %v3915
      %7300 = vmatmul.bf16.gmra.mxu0 %v1105
      %v7301 = vpop.f32.mrf.mxu0
      %v7302 = vadd.f32 %v7283, %v7301
      %v7303 = vpop.f32.mrf.mxu0
      %v7304 = vadd.f32 %v7285, %v7303
      %7305 = vmatmul.bf16.gmra.mxu0 %v1110
      %v7306 = vpop.f32.mrf.mxu0
      %v7307 = vadd.f32 %v7288, %v7306
      %v7308 = vpop.f32.mrf.mxu0
      %v7309 = vadd.f32 %v7290, %v7308
      %7310 = vdwg.mxu0
      %7311 = vmatpush.bf16.msra.mxu0 %v4260
      %7312 = vmatpush.bf16.msra.mxu0 %v4237
      %7313 = vmatpush.bf16.msra.mxu0 %v4214
      %7314 = vmatpush.bf16.msra.mxu0 %v4191
      %7315 = vmatpush.bf16.msra.mxu0 %v4168
      %7316 = vmatpush.bf16.msra.mxu0 %v4145
      %7317 = vmatpush.bf16.msra.mxu0 %v4122
      %7318 = vmatpush.bf16.msra.mxu0 %v4099
      %7319 = vmatmul.bf16.gmra.mxu0 %v1106
      %v7320 = vpop.f32.mrf.mxu0
      %v7321 = vadd.f32 %v7302, %v7320
      %v7322 = vpop.f32.mrf.mxu0
      %v7323 = vadd.f32 %v7304, %v7322
      %7324 = vmatmul.bf16.gmra.mxu0 %v1111
      %v7325 = vpop.f32.mrf.mxu0
      %v7326 = vadd.f32 %v7307, %v7325
      %v7327 = vpop.f32.mrf.mxu0
      %v7328 = vadd.f32 %v7309, %v7327
      %7329 = vdwg.mxu0
      %7330 = vmatpush.bf16.msra.mxu0 %v4444
      %7331 = vmatpush.bf16.msra.mxu0 %v4421
      %7332 = vmatpush.bf16.msra.mxu0 %v4398
      %7333 = vmatpush.bf16.msra.mxu0 %v4375
      %7334 = vmatpush.bf16.msra.mxu0 %v4352
      %7335 = vmatpush.bf16.msra.mxu0 %v4329
      %7336 = vmatpush.bf16.msra.mxu0 %v4306
      %7337 = vmatpush.bf16.msra.mxu0 %v4283
      %7338 = vmatmul.bf16.gmra.mxu0 %v1107
      %v7339 = vpop.f32.mrf.mxu0
      %v7340 = vadd.f32 %v7321, %v7339
      %v7341 = vpop.f32.mrf.mxu0
      %v7342 = vadd.f32 %v7323, %v7341
      %7343 = vmatmul.bf16.gmra.mxu0 %v1112
      %v7344 = vpop.f32.mrf.mxu0
      %v7345 = vadd.f32 %v7326, %v7344
      %v7346 = vpop.f32.mrf.mxu0
      %v7347 = vadd.f32 %v7328, %v7346
      %7348 = vdwg.mxu0
      %7349 = vmatpush.bf16.msra.mxu0 0
      %7350 = vmatpush.bf16.msra.mxu0 0
      %7351 = vmatpush.bf16.msra.mxu0 0
      %7352 = vmatpush.bf16.msra.mxu0 %v5457
      %7353 = vmatpush.bf16.msra.mxu0 %v4536
      %7354 = vmatpush.bf16.msra.mxu0 %v4513
      %7355 = vmatpush.bf16.msra.mxu0 %v4490
      %7356 = vmatpush.bf16.msra.mxu0 %v4467
      %7357 = vmatmul.bf16.gmra.mxu0 %v5393
      %v7358 = vpop.f32.mrf.mxu0
      %v7359 = vadd.f32 %v7340, %v7358
      %v7360 = vpop.f32.mrf.mxu0
      %v7361 = vadd.f32 %v7342, %v7360
      %7362 = vmatmul.bf16.gmra.mxu0 %v5396
      %v7363 = vpop.f32.mrf.mxu0
      %v7364 = vadd.f32 %v7345, %v7363
      %v7365 = vpop.f32.mrf.mxu0
      %v7366 = vadd.f32 %v7347, %v7365
      %7367 = vdwg.mxu0
      %7368 = vmatpush.bf16.msra.mxu0 %v3893
      %7369 = vmatpush.bf16.msra.mxu0 %v3870
      %7370 = vmatpush.bf16.msra.mxu0 %v3847
      %7371 = vmatpush.bf16.msra.mxu0 %v3824
      %7372 = vmatpush.bf16.msra.mxu0 %v3801
      %7373 = vmatpush.bf16.msra.mxu0 %v3778
      %7374 = vmatpush.bf16.msra.mxu0 %v3755
      %7375 = vmatpush.bf16.msra.mxu0 %v3732
      %7376 = vmatmul.bf16.gmra.mxu0 %v1104
      %v7377 = vpop.f32.mrf.mxu0
      %v7378 = vadd.f32 0.0, %v7377
      %v7379 = vpop.f32.mrf.mxu0
      %v7380 = vadd.f32 0.0, %v7379
      %7381 = vmatmul.bf16.gmra.mxu0 %v1109
      %v7382 = vpop.f32.mrf.mxu0
      %v7383 = vadd.f32 0.0, %v7382
      %v7384 = vpop.f32.mrf.mxu0
      %v7385 = vadd.f32 0.0, %v7384
      %7386 = vdwg.mxu0
      %7387 = vmatpush.bf16.msra.mxu0 %v4077
      %7388 = vmatpush.bf16.msra.mxu0 %v4054
      %7389 = vmatpush.bf16.msra.mxu0 %v4031
      %7390 = vmatpush.bf16.msra.mxu0 %v4008
      %7391 = vmatpush.bf16.msra.mxu0 %v3985
      %7392 = vmatpush.bf16.msra.mxu0 %v3962
      %7393 = vmatpush.bf16.msra.mxu0 %v3939
      %7394 = vmatpush.bf16.msra.mxu0 %v3916
      %7395 = vmatmul.bf16.gmra.mxu0 %v1105
      %v7396 = vpop.f32.mrf.mxu0
      %v7397 = vadd.f32 %v7378, %v7396
      %v7398 = vpop.f32.mrf.mxu0
      %v7399 = vadd.f32 %v7380, %v7398
      %7400 = vmatmul.bf16.gmra.mxu0 %v1110
      %v7401 = vpop.f32.mrf.mxu0
      %v7402 = vadd.f32 %v7383, %v7401
      %v7403 = vpop.f32.mrf.mxu0
      %v7404 = vadd.f32 %v7385, %v7403
      %7405 = vdwg.mxu0
      %7406 = vmatpush.bf16.msra.mxu0 %v4261
      %7407 = vmatpush.bf16.msra.mxu0 %v4238
      %7408 = vmatpush.bf16.msra.mxu0 %v4215
      %7409 = vmatpush.bf16.msra.mxu0 %v4192
      %7410 = vmatpush.bf16.msra.mxu0 %v4169
      %7411 = vmatpush.bf16.msra.mxu0 %v4146
      %7412 = vmatpush.bf16.msra.mxu0 %v4123
      %7413 = vmatpush.bf16.msra.mxu0 %v4100
      %7414 = vmatmul.bf16.gmra.mxu0 %v1106
      %v7415 = vpop.f32.mrf.mxu0
      %v7416 = vadd.f32 %v7397, %v7415
      %v7417 = vpop.f32.mrf.mxu0
      %v7418 = vadd.f32 %v7399, %v7417
      %7419 = vmatmul.bf16.gmra.mxu0 %v1111
      %v7420 = vpop.f32.mrf.mxu0
      %v7421 = vadd.f32 %v7402, %v7420
      %v7422 = vpop.f32.mrf.mxu0
      %v7423 = vadd.f32 %v7404, %v7422
      %7424 = vdwg.mxu0
      %7425 = vmatpush.bf16.msra.mxu0 %v4445
      %7426 = vmatpush.bf16.msra.mxu0 %v4422
      %7427 = vmatpush.bf16.msra.mxu0 %v4399
      %7428 = vmatpush.bf16.msra.mxu0 %v4376
      %7429 = vmatpush.bf16.msra.mxu0 %v4353
      %7430 = vmatpush.bf16.msra.mxu0 %v4330
      %7431 = vmatpush.bf16.msra.mxu0 %v4307
      %7432 = vmatpush.bf16.msra.mxu0 %v4284
      %7433 = vmatmul.bf16.gmra.mxu0 %v1107
      %v7434 = vpop.f32.mrf.mxu0
      %v7435 = vadd.f32 %v7416, %v7434
      %v7436 = vpop.f32.mrf.mxu0
      %v7437 = vadd.f32 %v7418, %v7436
      %7438 = vmatmul.bf16.gmra.mxu0 %v1112
      %v7439 = vpop.f32.mrf.mxu0
      %v7440 = vadd.f32 %v7421, %v7439
      %v7441 = vpop.f32.mrf.mxu0
      %v7442 = vadd.f32 %v7423, %v7441
      %7443 = vdwg.mxu0
      %7444 = vmatpush.bf16.msra.mxu0 0
      %7445 = vmatpush.bf16.msra.mxu0 0
      %7446 = vmatpush.bf16.msra.mxu0 0
      %7447 = vmatpush.bf16.msra.mxu0 %v5460
      %7448 = vmatpush.bf16.msra.mxu0 %v4537
      %7449 = vmatpush.bf16.msra.mxu0 %v4514
      %7450 = vmatpush.bf16.msra.mxu0 %v4491
      %7451 = vmatpush.bf16.msra.mxu0 %v4468
      %7452 = vmatmul.bf16.gmra.mxu0 %v5393
      %v7453 = vpop.f32.mrf.mxu0
      %v7454 = vadd.f32 %v7435, %v7453
      %v7455 = vpop.f32.mrf.mxu0
      %v7456 = vadd.f32 %v7437, %v7455
      %7457 = vmatmul.bf16.gmra.mxu0 %v5396
      %v7458 = vpop.f32.mrf.mxu0
      %v7459 = vadd.f32 %v7440, %v7458
      %v7460 = vpop.f32.mrf.mxu0
      %v7461 = vadd.f32 %v7442, %v7460
      %7462 = vdwg.mxu0
      %7463 = vmatpush.bf16.msra.mxu0 %v3894
      %7464 = vmatpush.bf16.msra.mxu0 %v3871
      %7465 = vmatpush.bf16.msra.mxu0 %v3848
      %7466 = vmatpush.bf16.msra.mxu0 %v3825
      %7467 = vmatpush.bf16.msra.mxu0 %v3802
      %7468 = vmatpush.bf16.msra.mxu0 %v3779
      %7469 = vmatpush.bf16.msra.mxu0 %v3756
      %7470 = vmatpush.bf16.msra.mxu0 %v3733
      %7471 = vmatmul.bf16.gmra.mxu0 %v1104
      %v7472 = vpop.f32.mrf.mxu0
      %v7473 = vadd.f32 0.0, %v7472
      %v7474 = vpop.f32.mrf.mxu0
      %v7475 = vadd.f32 0.0, %v7474
      %7476 = vmatmul.bf16.gmra.mxu0 %v1109
      %v7477 = vpop.f32.mrf.mxu0
      %v7478 = vadd.f32 0.0, %v7477
      %v7479 = vpop.f32.mrf.mxu0
      %v7480 = vadd.f32 0.0, %v7479
      %7481 = vdwg.mxu0
      %7482 = vmatpush.bf16.msra.mxu0 %v4078
      %7483 = vmatpush.bf16.msra.mxu0 %v4055
      %7484 = vmatpush.bf16.msra.mxu0 %v4032
      %7485 = vmatpush.bf16.msra.mxu0 %v4009
      %7486 = vmatpush.bf16.msra.mxu0 %v3986
      %7487 = vmatpush.bf16.msra.mxu0 %v3963
      %7488 = vmatpush.bf16.msra.mxu0 %v3940
      %7489 = vmatpush.bf16.msra.mxu0 %v3917
      %7490 = vmatmul.bf16.gmra.mxu0 %v1105
      %v7491 = vpop.f32.mrf.mxu0
      %v7492 = vadd.f32 %v7473, %v7491
      %v7493 = vpop.f32.mrf.mxu0
      %v7494 = vadd.f32 %v7475, %v7493
      %7495 = vmatmul.bf16.gmra.mxu0 %v1110
      %v7496 = vpop.f32.mrf.mxu0
      %v7497 = vadd.f32 %v7478, %v7496
      %v7498 = vpop.f32.mrf.mxu0
      %v7499 = vadd.f32 %v7480, %v7498
      %7500 = vdwg.mxu0
      %7501 = vmatpush.bf16.msra.mxu0 %v4262
      %7502 = vmatpush.bf16.msra.mxu0 %v4239
      %7503 = vmatpush.bf16.msra.mxu0 %v4216
      %7504 = vmatpush.bf16.msra.mxu0 %v4193
      %7505 = vmatpush.bf16.msra.mxu0 %v4170
      %7506 = vmatpush.bf16.msra.mxu0 %v4147
      %7507 = vmatpush.bf16.msra.mxu0 %v4124
      %7508 = vmatpush.bf16.msra.mxu0 %v4101
      %7509 = vmatmul.bf16.gmra.mxu0 %v1106
      %v7510 = vpop.f32.mrf.mxu0
      %v7511 = vadd.f32 %v7492, %v7510
      %v7512 = vpop.f32.mrf.mxu0
      %v7513 = vadd.f32 %v7494, %v7512
      %7514 = vmatmul.bf16.gmra.mxu0 %v1111
      %v7515 = vpop.f32.mrf.mxu0
      %v7516 = vadd.f32 %v7497, %v7515
      %v7517 = vpop.f32.mrf.mxu0
      %v7518 = vadd.f32 %v7499, %v7517
      %7519 = vdwg.mxu0
      %7520 = vmatpush.bf16.msra.mxu0 %v4446
      %7521 = vmatpush.bf16.msra.mxu0 %v4423
      %7522 = vmatpush.bf16.msra.mxu0 %v4400
      %7523 = vmatpush.bf16.msra.mxu0 %v4377
      %7524 = vmatpush.bf16.msra.mxu0 %v4354
      %7525 = vmatpush.bf16.msra.mxu0 %v4331
      %7526 = vmatpush.bf16.msra.mxu0 %v4308
      %7527 = vmatpush.bf16.msra.mxu0 %v4285
      %7528 = vmatmul.bf16.gmra.mxu0 %v1107
      %v7529 = vpop.f32.mrf.mxu0
      %v7530 = vadd.f32 %v7511, %v7529
      %v7531 = vpop.f32.mrf.mxu0
      %v7532 = vadd.f32 %v7513, %v7531
      %7533 = vmatmul.bf16.gmra.mxu0 %v1112
      %v7534 = vpop.f32.mrf.mxu0
      %v7535 = vadd.f32 %v7516, %v7534
      %v7536 = vpop.f32.mrf.mxu0
      %v7537 = vadd.f32 %v7518, %v7536
      %7538 = vdwg.mxu0
      %7539 = vmatpush.bf16.msra.mxu0 0
      %7540 = vmatpush.bf16.msra.mxu0 0
      %7541 = vmatpush.bf16.msra.mxu0 0
      %7542 = vmatpush.bf16.msra.mxu0 %v5463
      %7543 = vmatpush.bf16.msra.mxu0 %v4538
      %7544 = vmatpush.bf16.msra.mxu0 %v4515
      %7545 = vmatpush.bf16.msra.mxu0 %v4492
      %7546 = vmatpush.bf16.msra.mxu0 %v4469
      %7547 = vmatmul.bf16.gmra.mxu0 %v5393
      %v7548 = vpop.f32.mrf.mxu0
      %v7549 = vadd.f32 %v7530, %v7548
      %v7550 = vpop.f32.mrf.mxu0
      %v7551 = vadd.f32 %v7532, %v7550
      %7552 = vmatmul.bf16.gmra.mxu0 %v5396
      %v7553 = vpop.f32.mrf.mxu0
      %v7554 = vadd.f32 %v7535, %v7553
      %v7555 = vpop.f32.mrf.mxu0
      %v7556 = vadd.f32 %v7537, %v7555
      %7557 = vdwg.mxu0
      %7558 = vmatpush.bf16.msra.mxu0 %v3895
      %7559 = vmatpush.bf16.msra.mxu0 %v3872
      %7560 = vmatpush.bf16.msra.mxu0 %v3849
      %7561 = vmatpush.bf16.msra.mxu0 %v3826
      %7562 = vmatpush.bf16.msra.mxu0 %v3803
      %7563 = vmatpush.bf16.msra.mxu0 %v3780
      %7564 = vmatpush.bf16.msra.mxu0 %v3757
      %7565 = vmatpush.bf16.msra.mxu0 %v3734
      %7566 = vmatmul.bf16.gmra.mxu0 %v1104
      %v7567 = vpop.f32.mrf.mxu0
      %v7568 = vadd.f32 0.0, %v7567
      %v7569 = vpop.f32.mrf.mxu0
      %v7570 = vadd.f32 0.0, %v7569
      %7571 = vmatmul.bf16.gmra.mxu0 %v1109
      %v7572 = vpop.f32.mrf.mxu0
      %v7573 = vadd.f32 0.0, %v7572
      %v7574 = vpop.f32.mrf.mxu0
      %v7575 = vadd.f32 0.0, %v7574
      %7576 = vdwg.mxu0
      %7577 = vmatpush.bf16.msra.mxu0 %v4079
      %7578 = vmatpush.bf16.msra.mxu0 %v4056
      %7579 = vmatpush.bf16.msra.mxu0 %v4033
      %7580 = vmatpush.bf16.msra.mxu0 %v4010
      %7581 = vmatpush.bf16.msra.mxu0 %v3987
      %7582 = vmatpush.bf16.msra.mxu0 %v3964
      %7583 = vmatpush.bf16.msra.mxu0 %v3941
      %7584 = vmatpush.bf16.msra.mxu0 %v3918
      %7585 = vmatmul.bf16.gmra.mxu0 %v1105
      %v7586 = vpop.f32.mrf.mxu0
      %v7587 = vadd.f32 %v7568, %v7586
      %v7588 = vpop.f32.mrf.mxu0
      %v7589 = vadd.f32 %v7570, %v7588
      %7590 = vmatmul.bf16.gmra.mxu0 %v1110
      %v7591 = vpop.f32.mrf.mxu0
      %v7592 = vadd.f32 %v7573, %v7591
      %v7593 = vpop.f32.mrf.mxu0
      %v7594 = vadd.f32 %v7575, %v7593
      %7595 = vdwg.mxu0
      %7596 = vmatpush.bf16.msra.mxu0 %v4263
      %7597 = vmatpush.bf16.msra.mxu0 %v4240
      %7598 = vmatpush.bf16.msra.mxu0 %v4217
      %7599 = vmatpush.bf16.msra.mxu0 %v4194
      %7600 = vmatpush.bf16.msra.mxu0 %v4171
      %7601 = vmatpush.bf16.msra.mxu0 %v4148
      %7602 = vmatpush.bf16.msra.mxu0 %v4125
      %7603 = vmatpush.bf16.msra.mxu0 %v4102
      %7604 = vmatmul.bf16.gmra.mxu0 %v1106
      %v7605 = vpop.f32.mrf.mxu0
      %v7606 = vadd.f32 %v7587, %v7605
      %v7607 = vpop.f32.mrf.mxu0
      %v7608 = vadd.f32 %v7589, %v7607
      %7609 = vmatmul.bf16.gmra.mxu0 %v1111
      %v7610 = vpop.f32.mrf.mxu0
      %v7611 = vadd.f32 %v7592, %v7610
      %v7612 = vpop.f32.mrf.mxu0
      %v7613 = vadd.f32 %v7594, %v7612
      %7614 = vdwg.mxu0
      %7615 = vmatpush.bf16.msra.mxu0 %v4447
      %7616 = vmatpush.bf16.msra.mxu0 %v4424
      %7617 = vmatpush.bf16.msra.mxu0 %v4401
      %7618 = vmatpush.bf16.msra.mxu0 %v4378
      %7619 = vmatpush.bf16.msra.mxu0 %v4355
      %7620 = vmatpush.bf16.msra.mxu0 %v4332
      %7621 = vmatpush.bf16.msra.mxu0 %v4309
      %7622 = vmatpush.bf16.msra.mxu0 %v4286
      %7623 = vmatmul.bf16.gmra.mxu0 %v1107
      %v7624 = vpop.f32.mrf.mxu0
      %v7625 = vadd.f32 %v7606, %v7624
      %v7626 = vpop.f32.mrf.mxu0
      %v7627 = vadd.f32 %v7608, %v7626
      %7628 = vmatmul.bf16.gmra.mxu0 %v1112
      %v7629 = vpop.f32.mrf.mxu0
      %v7630 = vadd.f32 %v7611, %v7629
      %v7631 = vpop.f32.mrf.mxu0
      %v7632 = vadd.f32 %v7613, %v7631
      %7633 = vdwg.mxu0
      %7634 = vmatpush.bf16.msra.mxu0 0
      %7635 = vmatpush.bf16.msra.mxu0 0
      %7636 = vmatpush.bf16.msra.mxu0 0
      %7637 = vmatpush.bf16.msra.mxu0 %v5466
      %7638 = vmatpush.bf16.msra.mxu0 %v4539
      %7639 = vmatpush.bf16.msra.mxu0 %v4516
      %7640 = vmatpush.bf16.msra.mxu0 %v4493
      %7641 = vmatpush.bf16.msra.mxu0 %v4470
      %7642 = vmatmul.bf16.gmra.mxu0 %v5393
      %v7643 = vpop.f32.mrf.mxu0
      %v7644 = vadd.f32 %v7625, %v7643
      %v7645 = vpop.f32.mrf.mxu0
      %v7646 = vadd.f32 %v7627, %v7645
      %7647 = vmatmul.bf16.gmra.mxu0 %v5396
      %v7648 = vpop.f32.mrf.mxu0
      %v7649 = vadd.f32 %v7630, %v7648
      %v7650 = vpop.f32.mrf.mxu0
      %v7651 = vadd.f32 %v7632, %v7650
      %7652 = vdwg.mxu0
      %v7653 = vmax.f32 %v5554, %v5556
      %v7654 = vmax.f32 %v5649, %v5651
      %v7655 = vmax.f32 %v5744, %v5746
      %v7656 = vmax.f32 %v5839, %v5841
      %v7657 = vmax.f32 %v5934, %v5936
      %v7658 = vmax.f32 %v6029, %v6031
      %v7659 = vmax.f32 %v6124, %v6126
      %v7660 = vmax.f32 %v6219, %v6221
      %v7661 = vmax.f32 %v6314, %v6316
      %v7662 = vmax.f32 %v6409, %v6411
      %v7663 = vmax.f32 %v6504, %v6506
      %v7664 = vmax.f32 %v6599, %v6601
      %v7665 = vmax.f32 %v6694, %v6696
      %v7666 = vmax.f32 %v6789, %v6791
      %v7667 = vmax.f32 %v6884, %v6886
      %v7668 = vmax.f32 %v6979, %v6981
      %v7669 = vmax.f32 %v7074, %v7076
      %v7670 = vmax.f32 %v7169, %v7171
      %v7671 = vmax.f32 %v7264, %v7266
      %v7672 = vmax.f32 %v7359, %v7361
      %v7673 = vmax.f32 %v7454, %v7456
      %v7674 = vmax.f32 %v7549, %v7551
      %v7675 = vmax.f32 %v7644, %v7646
      %v7676 = vmax.f32 %v5559, %v5561
      %v7677 = vmax.f32 %v5654, %v5656
      %v7678 = vmax.f32 %v5749, %v5751
      %v7679 = vmax.f32 %v5844, %v5846
      %v7680 = vmax.f32 %v5939, %v5941
      %v7681 = vmax.f32 %v6034, %v6036
      %v7682 = vmax.f32 %v6129, %v6131
      %v7683 = vmax.f32 %v6224, %v6226
      %v7684 = vmax.f32 %v6319, %v6321
      %v7685 = vmax.f32 %v6414, %v6416
      %v7686 = vmax.f32 %v6509, %v6511
      %v7687 = vmax.f32 %v6604, %v6606
      %v7688 = vmax.f32 %v6699, %v6701
      %v7689 = vmax.f32 %v6794, %v6796
      %v7690 = vmax.f32 %v6889, %v6891
      %v7691 = vmax.f32 %v6984, %v6986
      %v7692 = vmax.f32 %v7079, %v7081
      %v7693 = vmax.f32 %v7174, %v7176
      %v7694 = vmax.f32 %v7269, %v7271
      %v7695 = vmax.f32 %v7364, %v7366
      %v7696 = vmax.f32 %v7459, %v7461
      %v7697 = vmax.f32 %v7554, %v7556
      %v7698 = vmax.f32 %v7649, %v7651
      %v7699 = vmax.f32 %v7653, %v7676
      %v7700 = vmax.f32 %v7654, %v7677
      %v7701 = vmax.f32 %v7655, %v7678
      %v7702 = vmax.f32 %v7656, %v7679
      %v7703 = vmax.f32 %v7657, %v7680
      %v7704 = vmax.f32 %v7658, %v7681
      %v7705 = vmax.f32 %v7659, %v7682
      %v7706 = vmax.f32 %v7660, %v7683
      %v7707 = vmax.f32 %v7661, %v7684
      %v7708 = vmax.f32 %v7662, %v7685
      %v7709 = vmax.f32 %v7663, %v7686
      %v7710 = vmax.f32 %v7664, %v7687
      %v7711 = vmax.f32 %v7665, %v7688
      %v7712 = vmax.f32 %v7666, %v7689
      %v7713 = vmax.f32 %v7667, %v7690
      %v7714 = vmax.f32 %v7668, %v7691
      %v7715 = vmax.f32 %v7669, %v7692
      %v7716 = vmax.f32 %v7670, %v7693
      %v7717 = vmax.f32 %v7671, %v7694
      %v7718 = vmax.f32 %v7672, %v7695
      %v7719 = vmax.f32 %v7673, %v7696
      %v7720 = vmax.f32 %v7674, %v7697
      %v7721 = vmax.f32 %v7675, %v7698
      %v7722 = vld [vmem:[%s2] sm:$0xff]
      %7724 = vset.pattern.permute.xlu0 0
      %7725 = vperm.xlu0 %7724, %v7722
      %v7726 = vpop.permute.xlu0 %7725
      %v7728 = vadd.f32 %v7699, %v7726
      %v7729 = vadd.f32 %v7700, %v7726
      %v7730 = vadd.f32 %v7701, %v7726
      %v7731 = vadd.f32 %v7702, %v7726
      %v7732 = vadd.f32 %v7703, %v7726
      %v7733 = vadd.f32 %v7704, %v7726
      %v7734 = vadd.f32 %v7705, %v7726
      %v7735 = vadd.f32 %v7706, %v7726
      %v7736 = vadd.f32 %v7707, %v7726
      %v7737 = vadd.f32 %v7708, %v7726
      %v7738 = vadd.f32 %v7709, %v7726
      %v7739 = vadd.f32 %v7710, %v7726
      %v7740 = vadd.f32 %v7711, %v7726
      %v7741 = vadd.f32 %v7712, %v7726
      %v7742 = vadd.f32 %v7713, %v7726
      %v7743 = vadd.f32 %v7714, %v7726
      %v7744 = vadd.f32 %v7715, %v7726
      %v7745 = vadd.f32 %v7716, %v7726
      %v7746 = vadd.f32 %v7717, %v7726
      %v7747 = vadd.f32 %v7718, %v7726
      %v7748 = vadd.f32 %v7719, %v7726
      %v7749 = vadd.f32 %v7720, %v7726
      %v7750 = vadd.f32 %v7721, %v7726
      %v7751 = vmax.f32 %v7728, 0.0
      %v7752 = vmax.f32 %v7729, 0.0
      %v7753 = vmax.f32 %v7730, 0.0
      %v7754 = vmax.f32 %v7731, 0.0
      %v7755 = vmax.f32 %v7732, 0.0
      %v7756 = vmax.f32 %v7733, 0.0
      %v7757 = vmax.f32 %v7734, 0.0
      %v7758 = vmax.f32 %v7735, 0.0
      %v7759 = vmax.f32 %v7736, 0.0
      %v7760 = vmax.f32 %v7737, 0.0
      %v7761 = vmax.f32 %v7738, 0.0
      %v7762 = vmax.f32 %v7739, 0.0
      %v7763 = vmax.f32 %v7740, 0.0
      %v7764 = vmax.f32 %v7741, 0.0
      %v7765 = vmax.f32 %v7742, 0.0
      %v7766 = vmax.f32 %v7743, 0.0
      %v7767 = vmax.f32 %v7744, 0.0
      %v7768 = vmax.f32 %v7745, 0.0
      %v7769 = vmax.f32 %v7746, 0.0
      %v7770 = vmax.f32 %v7747, 0.0
      %v7771 = vmax.f32 %v7748, 0.0
      %v7772 = vmax.f32 %v7749, 0.0
      %v7773 = vmax.f32 %v7750, 0.0
      %v7774 = vpack.c.bf16 %v7752, %v7751
      %v7775 = vpack.c.bf16 %v7754, %v7753
      %v7776 = vpack.c.bf16 %v7756, %v7755
      %v7777 = vpack.c.bf16 %v7758, %v7757
      %v7778 = vpack.c.bf16 %v7760, %v7759
      %v7779 = vpack.c.bf16 %v7762, %v7761
      %v7780 = vpack.c.bf16 %v7764, %v7763
      %v7781 = vpack.c.bf16 %v7766, %v7765
      %v7782 = vpack.c.bf16 %v7768, %v7767
      %v7783 = vpack.c.bf16 %v7770, %v7769
      %v7784 = vpack.c.bf16 %v7772, %v7771
      %v7785 = vpack.c.bf16 %v7773, %v7773
      %7786 = vst [vmem:[%s170] sm:$0x77] %v7774
      %7787 = vst [vmem:[%s170 + $0x8] sm:$0x77] %v7775
      %7788 = vst [vmem:[%s170 + $0x10] sm:$0x77] %v7776
      %7789 = vst [vmem:[%s170 + $0x18] sm:$0x77] %v7777
      %7790 = vst [vmem:[%s170 + $0x20] sm:$0x77] %v7778
      %7791 = vst [vmem:[%s170 + $0x28] sm:$0x77] %v7779
      %7792 = vst [vmem:[%s170 + $0x30] sm:$0x77] %v7780
      %7793 = vst [vmem:[%s170 + $0x38] sm:$0x77] %v7781
      %7794 = vst [vmem:[%s170 + $0x40] sm:$0x77] %v7782
      %7795 = vst [vmem:[%s170 + $0x48] sm:$0x77] %v7783
      %7796 = vst [vmem:[%s170 + $0x50] sm:$0x77] %v7784
      %vm7797 = vcmask 526336
      %7798 = vst.msk [vmem:[%s170 + $0x58] sm:$0x7] %vm7797, %v7785
      %p7799 = scmp.lt.s32.totalorder %s14, 1
      %s7800 = scalar_select %p7799, %s14, 1
      %s7801 = smul.addr %s7800, 23
      %s7802 = smul.addr %s7801, 4
      %s7803 = scalar_lea.vmem %s3, %s7802
      // Predicated region
      $region33: #{lenet_forward.2} parent=31 // pred_check
        %p7804 = pneg %p100
      $region34: #{lenet_forward.2} parent=31 // pred_check_branch
        %7806 = sbr.rel (%p7804) target = $region36
      $region35: #{lenet_forward.2} parent=31 // pred_region
        _
      $region36: #{lenet_forward.2} parent=31 // pred_fallthru
        _
    $region32: #{lenet_forward.2} parent=5 // pred_fallthru
      _
    %p7807 = scmp.le.s32.totalorder 2, %s9
    // Predicated region
    $region37: #{lenet_forward.2} parent=5 // pred_check
      %p7808 = pneg %p7807
    $region38: #{lenet_forward.2} parent=5 // pred_check_branch
      %7810 = sbr.rel (%p7808) target = $region40
    $region39: #{lenet_forward.2} parent=5 // pred_region
      %s7811 = ssub.s32 %s9, 2
      // Predicated region
      $region41: #{lenet_forward.2} parent=39 // pred_check
        %p7812 = pneg %p106
      $region42: #{lenet_forward.2} parent=39 // pred_check_branch
        %7814 = sbr.rel (%p7812) target = $region44
      $region43: #{lenet_forward.2} parent=39 // pred_region
        %p7815 = scmp.lt.s32.totalorder %s15, 1
        %s7816 = scalar_select %p7815, %s15, 1
        %s7817 = smul.addr %s7816, 23
        %s7818 = smul.addr %s7817, 4
        %s7819 = scalar_lea.vmem %s3, %s7818
      $region44: #{lenet_forward.2} parent=39 // pred_fallthru
        _
    $region40: #{lenet_forward.2} parent=5 // pred_fallthru
      _
  $region6: #{lenet_forward.2} parent=0 // loop_footer
    %s13 = sadd.s32 1, %s9
  $region7: #{lenet_forward.2} parent=0 // loop_footer_branch
    %8 = sbr.rel target = $region3
  $region8: #{lenet_forward.2} parent=0 // loop_exit
    _

// kernel: lenet_forward.3
$region0: #{lenet_forward.3}
  #allocation0 [shape = 'u32[]', space=smem, size = 0x4, offset = 0x4, fixed_abs, tag = 'smem constant byte address 0x4 - core index']
  #allocation1 [shape = 'u32[72,128]{1,0:T(1,128)}', space=vmem, size = 0x9000, scoped, tag = 'internal scratch']
  #allocation2 [shape = 'bf16[2,12,160]{2,1,0:T(8,128)(2,1)}', space=vmem, size = 0x4000, scoped, tag = 'scratch operand']
  %s0 = inlined_call_operand.vmem [shape: bf16[2,294,160], index: 0, kind: input, shape index: {}]
  %s1 = inlined_call_operand.vmem [shape: bf16[64,294], index: 1, kind: input, shape index: {}]
  %s2 = inlined_call_operand.vmem [shape: f32[12,1], index: 2, kind: input, shape index: {}]
  %s3 = inlined_call_operand.vmem [shape: bf16[12,160,256], index: 3, kind: input, shape index: {}]
  %s4 = inlined_call_operand.vmem [shape: f32[1,256], index: 4, kind: input, shape index: {}]
  %s5 = inlined_call_operand.vmem [shape: bf16[256,128], index: 5, kind: input, shape index: {}]
  %s6 = inlined_call_operand.vmem [shape: f32[1,128], index: 6, kind: input, shape index: {}]
  %s7 = inlined_call_operand.vmem [shape: bf16[128,2], index: 7, kind: input, shape index: {}]
  %s8 = inlined_call_operand.vmem [shape: f32[1,2], index: 8, kind: input, shape index: {}]
  %s9 = inlined_call_operand.hbm [shape: f32[2,2], index: 9, kind: output, shape index: {}]
  %s10 = sld [smem:[#allocation0]]
  $region46: #{lenet_forward.3} parent=0
    _
  %s12 = ssub.s32 1, %s10
  %s13 = scalar_select 0, %s12, %s10
  $region1: #{lenet_forward.3} parent=0
    #allocation3 [shape = 'u8[1024]{0}', space=vmem, size = 0x400, scoped, tag = 'output window, operand 0, single buffered']
    #allocation4 [shape = 's32[1]{0}', space=sflag, size = 0x4, scoped, tag = 'scoped memory for lenet_forward.3']
    %14 = vsyncpa [#allocation4], 0
    // Predicated region
    $region2: #{lenet_forward.3} parent=1 // pred_check
      _
    $region3: #{lenet_forward.3} parent=1 // pred_check_branch
      %16 = sbr.rel (0) target = $region5
    $region4: #{lenet_forward.3} parent=1 // pred_region
      _
    $region5: #{lenet_forward.3} parent=1 // pred_fallthru
      _
    // Predicated region
    $region6: #{lenet_forward.3} parent=1 // pred_check
      _
    $region7: #{lenet_forward.3} parent=1 // pred_check_branch
      %18 = sbr.rel (0) target = $region9
    $region8: #{lenet_forward.3} parent=1 // pred_region
      _
    $region9: #{lenet_forward.3} parent=1 // pred_fallthru
      _
    // Predicated region
    $region10: #{lenet_forward.3} parent=1 // pred_check
      _
    $region11: #{lenet_forward.3} parent=1 // pred_check_branch
      %20 = sbr.rel (0) target = $region13
    $region12: #{lenet_forward.3} parent=1 // pred_region
      _
    $region13: #{lenet_forward.3} parent=1 // pred_fallthru
      _
    // Predicated region
    $region14: #{lenet_forward.3} parent=1 // pred_check
      _
    $region15: #{lenet_forward.3} parent=1 // pred_check_branch
      %22 = sbr.rel (0) target = $region17
    $region16: #{lenet_forward.3} parent=1 // pred_region
      _
    $region17: #{lenet_forward.3} parent=1 // pred_fallthru
      _
    // Predicated region
    $region18: #{lenet_forward.3} parent=1 // pred_check
      _
    $region19: #{lenet_forward.3} parent=1 // pred_check_branch
      %24 = sbr.rel (0) target = $region21
    $region20: #{lenet_forward.3} parent=1 // pred_region
      _
    $region21: #{lenet_forward.3} parent=1 // pred_fallthru
      _
    // Predicated region
    $region22: #{lenet_forward.3} parent=1 // pred_check
      _
    $region23: #{lenet_forward.3} parent=1 // pred_check_branch
      %26 = sbr.rel (0) target = $region25
    $region24: #{lenet_forward.3} parent=1 // pred_region
      _
    $region25: #{lenet_forward.3} parent=1 // pred_fallthru
      _
    // Predicated region
    $region26: #{lenet_forward.3} parent=1 // pred_check
      _
    $region27: #{lenet_forward.3} parent=1 // pred_check_branch
      %28 = sbr.rel (0) target = $region29
    $region28: #{lenet_forward.3} parent=1 // pred_region
      _
    $region29: #{lenet_forward.3} parent=1 // pred_fallthru
      _
    // Predicated region
    $region30: #{lenet_forward.3} parent=1 // pred_check
      _
    $region31: #{lenet_forward.3} parent=1 // pred_check_branch
      %30 = sbr.rel (0) target = $region33
    $region32: #{lenet_forward.3} parent=1 // pred_region
      _
    $region33: #{lenet_forward.3} parent=1 // pred_fallthru
      _
    // Predicated region
    $region34: #{lenet_forward.3} parent=1 // pred_check
      _
    $region35: #{lenet_forward.3} parent=1 // pred_check_branch
      %32 = sbr.rel (0) target = $region37
    $region36: #{lenet_forward.3} parent=1 // pred_region
      _
    $region37: #{lenet_forward.3} parent=1 // pred_fallthru
      _
    %v34 = vld [vmem:[%s1] sm:$0xff]
    %v35 = vld [vmem:[%s1 + $0x8] sm:$0xf]
    %v36 = vld [vmem:[%s1 + $0xc] sm:$0xff]
    %v37 = vld [vmem:[%s1 + $0x14] sm:$0xf]
    %v38 = vld [vmem:[%s1 + $0x18] sm:$0xff]
    %v39 = vld [vmem:[%s1 + $0x20] sm:$0xf]
    %v40 = vld [vmem:[%s1 + $0x24] sm:$0xff]
    %v41 = vld [vmem:[%s1 + $0x2c] sm:$0xf]
    %v42 = vld [vmem:[%s1 + $0x30] sm:$0xff]
    %v43 = vld [vmem:[%s1 + $0x38] sm:$0xf]
    %v44 = vld [vmem:[%s1 + $0x3c] sm:$0xff]
    %v45 = vld [vmem:[%s1 + $0x44] sm:$0xf]
    %v46 = vld [vmem:[%s1 + $0x48] sm:$0xff]
    %v47 = vld [vmem:[%s1 + $0x50] sm:$0xf]
    %v48 = vld [vmem:[%s1 + $0x54] sm:$0xff]
    %v49 = vld [vmem:[%s1 + $0x5c] sm:$0xf]
    %v50 = vld [vmem:[%s0] sm:$0xff]
    %v51 = vld [vmem:[%s0 + $0x8] sm:$0xff]
    %v52 = vld [vmem:[%s0 + $0x10] sm:$0xff]
    %v53 = vld [vmem:[%s0 + $0x18] sm:$0xff]
    %v54 = vld [vmem:[%s0 + $0x20] sm:$0xff]
    %v55 = vld [vmem:[%s0 + $0x28] sm:$0xff]
    %v56 = vld [vmem:[%s0 + $0x30] sm:$0xff]
    %v57 = vld [vmem:[%s0 + $0x38] sm:$0xff]
    %v58 = vld [vmem:[%s0 + $0x40] sm:$0xff]
    %v59 = vld [vmem:[%s0 + $0x48] sm:$0xff]
    %v60 = vld [vmem:[%s0 + $0x50] sm:$0xff]
    %v61 = vld [vmem:[%s0 + $0x58] sm:$0xff]
    %v62 = vld [vmem:[%s0 + $0x60] sm:$0xff]
    %v63 = vld [vmem:[%s0 + $0x68] sm:$0xff]
    %v64 = vld [vmem:[%s0 + $0x70] sm:$0xff]
    %v65 = vld [vmem:[%s0 + $0x78] sm:$0xff]
    %v66 = vld [vmem:[%s0 + $0x80] sm:$0xff]
    %v67 = vld [vmem:[%s0 + $0x88] sm:$0xff]
    %v68 = vld [vmem:[%s0 + $0x90] sm:$0xff]
    %v69 = vld [vmem:[%s0 + $0x98] sm:$0xff]
    %v70 = vld [vmem:[%s0 + $0xa0] sm:$0xff]
    %v71 = vld [vmem:[%s0 + $0xa8] sm:$0xff]
    %v72 = vld [vmem:[%s0 + $0xb0] sm:$0xff]
    %v73 = vld [vmem:[%s0 + $0xb8] sm:$0xff]
    %v74 = vld [vmem:[%s0 + $0xc0] sm:$0xff]
    %v75 = vld [vmem:[%s0 + $0xc8] sm:$0xff]
    %v76 = vld [vmem:[%s0 + $0xd0] sm:$0xff]
    %v77 = vld [vmem:[%s0 + $0xd8] sm:$0xff]
    %v78 = vld [vmem:[%s0 + $0xe0] sm:$0xff]
    %v79 = vld [vmem:[%s0 + $0xe8] sm:$0xff]
    %v80 = vld [vmem:[%s0 + $0xf0] sm:$0xff]
    %v81 = vld [vmem:[%s0 + $0xf8] sm:$0xff]
    %v82 = vld [vmem:[%s0 + $0x100] sm:$0xff]
    %v83 = vld [vmem:[%s0 + $0x108] sm:$0xff]
    %v84 = vld [vmem:[%s0 + $0x110] sm:$0xff]
    %v85 = vld [vmem:[%s0 + $0x118] sm:$0xff]
    %v86 = vld [vmem:[%s0 + $0x120] sm:$0x77]
    %v103 = vunpack.c.l.b16 %v34
    %v104 = vunpack.c.h.b16 %v34
    %v105 = vunpack.c.l.b16 %v35
    %v106 = vunpack.c.l.b16 %v36
    %v107 = vunpack.c.h.b16 %v36
    %v108 = vunpack.c.l.b16 %v37
    %v109 = vunpack.c.l.b16 %v38
    %v110 = vunpack.c.h.b16 %v38
    %v111 = vunpack.c.l.b16 %v39
    %v112 = vunpack.c.l.b16 %v40
    %v113 = vunpack.c.h.b16 %v40
    %v114 = vunpack.c.l.b16 %v41
    %v115 = vunpack.c.l.b16 %v42
    %v116 = vunpack.c.h.b16 %v42
    %v117 = vunpack.c.l.b16 %v43
    %v118 = vunpack.c.l.b16 %v44
    %v119 = vunpack.c.h.b16 %v44
    %v120 = vunpack.c.l.b16 %v45
    %v121 = vunpack.c.l.b16 %v46
    %v122 = vunpack.c.h.b16 %v46
    %v123 = vunpack.c.l.b16 %v47
    %v124 = vunpack.c.l.b16 %v48
    %v125 = vunpack.c.h.b16 %v48
    %v126 = vunpack.c.l.b16 %v49
    %v127 = vpack.c.b16 %v106, %v103
    %v128 = vpack.c.b16 %v107, %v104
    %v129 = vpack.c.b16 %v108, %v105
    %v130 = vpack.c.b16 %v112, %v109
    %v131 = vpack.c.b16 %v113, %v110
    %v132 = vpack.c.b16 %v114, %v111
    %v133 = vpack.c.b16 %v118, %v115
    %v134 = vpack.c.b16 %v119, %v116
    %v135 = vpack.c.b16 %v120, %v117
    %v136 = vpack.c.b16 %v124, %v121
    %v137 = vpack.c.b16 %v125, %v122
    %v138 = vpack.c.b16 %v126, %v123
    %v184 = vunpack.c.l.b16 %v50
    %v185 = vunpack.c.h.b16 %v50
    %v186 = vunpack.c.l.b16 %v51
    %v187 = vunpack.c.h.b16 %v51
    %v188 = vunpack.c.l.b16 %v52
    %v189 = vunpack.c.h.b16 %v52
    %v190 = vunpack.c.l.b16 %v53
    %v191 = vunpack.c.h.b16 %v53
    %v192 = vunpack.c.l.b16 %v54
    %v193 = vunpack.c.h.b16 %v54
    %v194 = vunpack.c.l.b16 %v55
    %v195 = vunpack.c.h.b16 %v55
    %v196 = vunpack.c.l.b16 %v56
    %v197 = vunpack.c.h.b16 %v56
    %v198 = vunpack.c.l.b16 %v57
    %v199 = vunpack.c.h.b16 %v57
    %v200 = vunpack.c.l.b16 %v58
    %v201 = vunpack.c.h.b16 %v58
    %v202 = vunpack.c.l.b16 %v59
    %v203 = vunpack.c.h.b16 %v59
    %v204 = vunpack.c.l.b16 %v60
    %v205 = vunpack.c.h.b16 %v60
    %v206 = vunpack.c.l.b16 %v61
    %v207 = vunpack.c.h.b16 %v61
    %v208 = vunpack.c.l.b16 %v62
    %v209 = vunpack.c.h.b16 %v62
    %v210 = vunpack.c.l.b16 %v63
    %v211 = vunpack.c.h.b16 %v63
    %v212 = vunpack.c.l.b16 %v64
    %v213 = vunpack.c.h.b16 %v64
    %v214 = vunpack.c.l.b16 %v65
    %v215 = vunpack.c.h.b16 %v65
    %v216 = vunpack.c.l.b16 %v66
    %v217 = vunpack.c.h.b16 %v66
    %v218 = vunpack.c.l.b16 %v67
    %v219 = vunpack.c.h.b16 %v67
    %v220 = vunpack.c.l.b16 %v68
    %v221 = vunpack.c.h.b16 %v68
    %v222 = vunpack.c.l.b16 %v69
    %v223 = vunpack.c.h.b16 %v69
    %v224 = vunpack.c.l.b16 %v70
    %v225 = vunpack.c.h.b16 %v70
    %v226 = vunpack.c.l.b16 %v71
    %v227 = vunpack.c.h.b16 %v71
    %v228 = vunpack.c.l.b16 %v72
    %v229 = vunpack.c.h.b16 %v72
    %v230 = vunpack.c.l.b16 %v73
    %v231 = vunpack.c.h.b16 %v73
    %v232 = vunpack.c.l.b16 %v74
    %v233 = vunpack.c.h.b16 %v74
    %v234 = vunpack.c.l.b16 %v75
    %v235 = vunpack.c.h.b16 %v75
    %v236 = vunpack.c.l.b16 %v76
    %v237 = vunpack.c.h.b16 %v76
    %v238 = vunpack.c.l.b16 %v77
    %v239 = vunpack.c.h.b16 %v77
    %v240 = vunpack.c.l.b16 %v78
    %v241 = vunpack.c.h.b16 %v78
    %v242 = vunpack.c.l.b16 %v79
    %v243 = vunpack.c.h.b16 %v79
    %v244 = vunpack.c.l.b16 %v80
    %v245 = vunpack.c.h.b16 %v80
    %v246 = vunpack.c.l.b16 %v81
    %v247 = vunpack.c.h.b16 %v81
    %v248 = vunpack.c.l.b16 %v82
    %v249 = vunpack.c.h.b16 %v82
    %v250 = vunpack.c.l.b16 %v83
    %v251 = vunpack.c.h.b16 %v83
    %v252 = vunpack.c.l.b16 %v84
    %v253 = vunpack.c.h.b16 %v84
    %v254 = vunpack.c.l.b16 %v85
    %v255 = vunpack.c.h.b16 %v85
    %v256 = vunpack.c.l.b16 %v86
    %v257 = vunpack.c.h.b16 %v86
    %v258 = vpack.c.b16 %v186, %v184
    %v259 = vpack.c.b16 %v187, %v185
    %v260 = vpack.c.b16 %v190, %v188
    %v261 = vpack.c.b16 %v191, %v189
    %v262 = vpack.c.b16 %v194, %v192
    %v263 = vpack.c.b16 %v195, %v193
    %v264 = vpack.c.b16 %v198, %v196
    %v265 = vpack.c.b16 %v199, %v197
    %v266 = vpack.c.b16 %v202, %v200
    %v267 = vpack.c.b16 %v203, %v201
    %v268 = vpack.c.b16 %v206, %v204
    %v269 = vpack.c.b16 %v207, %v205
    %v270 = vpack.c.b16 %v210, %v208
    %v271 = vpack.c.b16 %v211, %v209
    %v272 = vpack.c.b16 %v214, %v212
    %v273 = vpack.c.b16 %v215, %v213
    %v274 = vpack.c.b16 %v218, %v216
    %v275 = vpack.c.b16 %v219, %v217
    %v276 = vpack.c.b16 %v222, %v220
    %v277 = vpack.c.b16 %v223, %v221
    %v278 = vpack.c.b16 %v226, %v224
    %v279 = vpack.c.b16 %v227, %v225
    %v280 = vpack.c.b16 %v230, %v228
    %v281 = vpack.c.b16 %v231, %v229
    %v282 = vpack.c.b16 %v234, %v232
    %v283 = vpack.c.b16 %v235, %v233
    %v284 = vpack.c.b16 %v238, %v236
    %v285 = vpack.c.b16 %v239, %v237
    %v286 = vpack.c.b16 %v242, %v240
    %v287 = vpack.c.b16 %v243, %v241
    %v288 = vpack.c.b16 %v246, %v244
    %v289 = vpack.c.b16 %v247, %v245
    %v290 = vpack.c.b16 %v250, %v248
    %v291 = vpack.c.b16 %v251, %v249
    %v292 = vpack.c.b16 %v254, %v252
    %v293 = vpack.c.b16 %v255, %v253
    %v294 = vpack.c.b16 %v256, %v256
    %v295 = vpack.c.b16 %v257, %v257
    %vm332 = vcmask 310272
    %v334 = vsel %vm332, %v129, 0
    %v337 = vsel %vm332, %v132, 0
    %v340 = vsel %vm332, %v135, 0
    %v343 = vsel %vm332, %v138, 0
    %vm345 = vcmask 1042432
    %v347 = vsel %vm345, %v294, 0
    %v350 = vsel %vm345, %v295, 0
    %352 = vmatpush.bf16.msra.mxu0 %v272
    %353 = vmatpush.bf16.msra.mxu0 %v270
    %354 = vmatpush.bf16.msra.mxu0 %v268
    %355 = vmatpush.bf16.msra.mxu0 %v266
    %356 = vmatpush.bf16.msra.mxu0 %v264
    %357 = vmatpush.bf16.msra.mxu0 %v262
    %358 = vmatpush.bf16.msra.mxu0 %v260
    %359 = vmatpush.bf16.msra.mxu0 %v258
    %360 = vmatmul.bf16.gmra.mxu0 %v127
    %v361 = vpop.f32.mrf.mxu0
    %v362 = vadd.f32 0.0, %v361
    %v363 = vpop.f32.mrf.mxu0
    %v364 = vadd.f32 0.0, %v363
    %365 = vmatmul.bf16.gmra.mxu0 %v130
    %v366 = vpop.f32.mrf.mxu0
    %v367 = vadd.f32 0.0, %v366
    %v368 = vpop.f32.mrf.mxu0
    %v369 = vadd.f32 0.0, %v368
    %370 = vmatmul.bf16.gmra.mxu0 %v133
    %v371 = vpop.f32.mrf.mxu0
    %v372 = vadd.f32 0.0, %v371
    %v373 = vpop.f32.mrf.mxu0
    %v374 = vadd.f32 0.0, %v373
    %375 = vmatmul.bf16.gmra.mxu0 %v136
    %v376 = vpop.f32.mrf.mxu0
    %v377 = vadd.f32 0.0, %v376
    %v378 = vpop.f32.mrf.mxu0
    %v379 = vadd.f32 0.0, %v378
    %380 = vdwg.mxu0
    %381 = vmatpush.bf16.msra.mxu0 %v288
    %382 = vmatpush.bf16.msra.mxu0 %v286
    %383 = vmatpush.bf16.msra.mxu0 %v284
    %384 = vmatpush.bf16.msra.mxu0 %v282
    %385 = vmatpush.bf16.msra.mxu0 %v280
    %386 = vmatpush.bf16.msra.mxu0 %v278
    %387 = vmatpush.bf16.msra.mxu0 %v276
    %388 = vmatpush.bf16.msra.mxu0 %v274
    %389 = vmatmul.bf16.gmra.mxu0 %v128
    %v390 = vpop.f32.mrf.mxu0
    %v391 = vadd.f32 %v362, %v390
    %v392 = vpop.f32.mrf.mxu0
    %v393 = vadd.f32 %v364, %v392
    %394 = vmatmul.bf16.gmra.mxu0 %v131
    %v395 = vpop.f32.mrf.mxu0
    %v396 = vadd.f32 %v367, %v395
    %v397 = vpop.f32.mrf.mxu0
    %v398 = vadd.f32 %v369, %v397
    %399 = vmatmul.bf16.gmra.mxu0 %v134
    %v400 = vpop.f32.mrf.mxu0
    %v401 = vadd.f32 %v372, %v400
    %v402 = vpop.f32.mrf.mxu0
    %v403 = vadd.f32 %v374, %v402
    %404 = vmatmul.bf16.gmra.mxu0 %v137
    %v405 = vpop.f32.mrf.mxu0
    %v406 = vadd.f32 %v377, %v405
    %v407 = vpop.f32.mrf.mxu0
    %v408 = vadd.f32 %v379, %v407
    %409 = vdwg.mxu0
    %410 = vmatpush.bf16.msra.mxu0 0
    %411 = vmatpush.bf16.msra.mxu0 0
    %412 = vmatpush.bf16.msra.mxu0 0
    %413 = vmatpush.bf16.msra.mxu0 0
    %414 = vmatpush.bf16.msra.mxu0 0
    %415 = vmatpush.bf16.msra.mxu0 %v347
    %416 = vmatpush.bf16.msra.mxu0 %v292
    %417 = vmatpush.bf16.msra.mxu0 %v290
    %418 = vmatmul.bf16.gmra.mxu0 %v334
    %v419 = vpop.f32.mrf.mxu0
    %v420 = vadd.f32 %v391, %v419
    %v421 = vpop.f32.mrf.mxu0
    %v422 = vadd.f32 %v393, %v421
    %423 = vmatmul.bf16.gmra.mxu0 %v337
    %v424 = vpop.f32.mrf.mxu0
    %v425 = vadd.f32 %v396, %v424
    %v426 = vpop.f32.mrf.mxu0
    %v427 = vadd.f32 %v398, %v426
    %428 = vmatmul.bf16.gmra.mxu0 %v340
    %v429 = vpop.f32.mrf.mxu0
    %v430 = vadd.f32 %v401, %v429
    %v431 = vpop.f32.mrf.mxu0
    %v432 = vadd.f32 %v403, %v431
    %433 = vmatmul.bf16.gmra.mxu0 %v343
    %v434 = vpop.f32.mrf.mxu0
    %v435 = vadd.f32 %v406, %v434
    %v436 = vpop.f32.mrf.mxu0
    %v437 = vadd.f32 %v408, %v436
    %438 = vdwg.mxu0
    %439 = vmatpush.bf16.msra.mxu0 %v273
    %440 = vmatpush.bf16.msra.mxu0 %v271
    %441 = vmatpush.bf16.msra.mxu0 %v269
    %442 = vmatpush.bf16.msra.mxu0 %v267
    %443 = vmatpush.bf16.msra.mxu0 %v265
    %444 = vmatpush.bf16.msra.mxu0 %v263
    %445 = vmatpush.bf16.msra.mxu0 %v261
    %446 = vmatpush.bf16.msra.mxu0 %v259
    %447 = vmatmul.bf16.gmra.mxu0 %v127
    %v448 = vpop.f32.mrf.mxu0
    %v449 = vadd.f32 0.0, %v448
    %v450 = vpop.f32.mrf.mxu0
    %v451 = vadd.f32 0.0, %v450
    %452 = vmatmul.bf16.gmra.mxu0 %v130
    %v453 = vpop.f32.mrf.mxu0
    %v454 = vadd.f32 0.0, %v453
    %v455 = vpop.f32.mrf.mxu0
    %v456 = vadd.f32 0.0, %v455
    %457 = vmatmul.bf16.gmra.mxu0 %v133
    %v458 = vpop.f32.mrf.mxu0
    %v459 = vadd.f32 0.0, %v458
    %v460 = vpop.f32.mrf.mxu0
    %v461 = vadd.f32 0.0, %v460
    %462 = vmatmul.bf16.gmra.mxu0 %v136
    %v463 = vpop.f32.mrf.mxu0
    %v464 = vadd.f32 0.0, %v463
    %v465 = vpop.f32.mrf.mxu0
    %v466 = vadd.f32 0.0, %v465
    %467 = vdwg.mxu0
    %468 = vmatpush.bf16.msra.mxu0 %v289
    %469 = vmatpush.bf16.msra.mxu0 %v287
    %470 = vmatpush.bf16.msra.mxu0 %v285
    %471 = vmatpush.bf16.msra.mxu0 %v283
    %472 = vmatpush.bf16.msra.mxu0 %v281
    %473 = vmatpush.bf16.msra.mxu0 %v279
    %474 = vmatpush.bf16.msra.mxu0 %v277
    %475 = vmatpush.bf16.msra.mxu0 %v275
    %476 = vmatmul.bf16.gmra.mxu0 %v128
    %v477 = vpop.f32.mrf.mxu0
    %v478 = vadd.f32 %v449, %v477
    %v479 = vpop.f32.mrf.mxu0
    %v480 = vadd.f32 %v451, %v479
    %481 = vmatmul.bf16.gmra.mxu0 %v131
    %v482 = vpop.f32.mrf.mxu0
    %v483 = vadd.f32 %v454, %v482
    %v484 = vpop.f32.mrf.mxu0
    %v485 = vadd.f32 %v456, %v484
    %486 = vmatmul.bf16.gmra.mxu0 %v134
    %v487 = vpop.f32.mrf.mxu0
    %v488 = vadd.f32 %v459, %v487
    %v489 = vpop.f32.mrf.mxu0
    %v490 = vadd.f32 %v461, %v489
    %491 = vmatmul.bf16.gmra.mxu0 %v137
    %v492 = vpop.f32.mrf.mxu0
    %v493 = vadd.f32 %v464, %v492
    %v494 = vpop.f32.mrf.mxu0
    %v495 = vadd.f32 %v466, %v494
    %496 = vdwg.mxu0
    %497 = vmatpush.bf16.msra.mxu0 0
    %498 = vmatpush.bf16.msra.mxu0 0
    %499 = vmatpush.bf16.msra.mxu0 0
    %500 = vmatpush.bf16.msra.mxu0 0
    %501 = vmatpush.bf16.msra.mxu0 0
    %502 = vmatpush.bf16.msra.mxu0 %v350
    %503 = vmatpush.bf16.msra.mxu0 %v293
    %504 = vmatpush.bf16.msra.mxu0 %v291
    %505 = vmatmul.bf16.gmra.mxu0 %v334
    %v506 = vpop.f32.mrf.mxu0
    %v507 = vadd.f32 %v478, %v506
    %v508 = vpop.f32.mrf.mxu0
    %v509 = vadd.f32 %v480, %v508
    %510 = vmatmul.bf16.gmra.mxu0 %v337
    %v511 = vpop.f32.mrf.mxu0
    %v512 = vadd.f32 %v483, %v511
    %v513 = vpop.f32.mrf.mxu0
    %v514 = vadd.f32 %v485, %v513
    %515 = vmatmul.bf16.gmra.mxu0 %v340
    %v516 = vpop.f32.mrf.mxu0
    %v517 = vadd.f32 %v488, %v516
    %v518 = vpop.f32.mrf.mxu0
    %v519 = vadd.f32 %v490, %v518
    %520 = vmatmul.bf16.gmra.mxu0 %v343
    %v521 = vpop.f32.mrf.mxu0
    %v522 = vadd.f32 %v493, %v521
    %v523 = vpop.f32.mrf.mxu0
    %v524 = vadd.f32 %v495, %v523
    %525 = vdwg.mxu0
    %v526 = vmax.f32 %v420, %v425
    %v527 = vmax.f32 %v507, %v512
    %v528 = vmax.f32 %v422, %v427
    %v529 = vmax.f32 %v509, %v514
    %v530 = vmax.f32 %v430, %v435
    %v531 = vmax.f32 %v517, %v522
    %v532 = vmax.f32 %v432, %v437
    %v533 = vmax.f32 %v519, %v524
    %v534 = vmax.f32 %v526, %v530
    %v535 = vmax.f32 %v527, %v531
    %v536 = vmax.f32 %v528, %v532
    %v537 = vmax.f32 %v529, %v533
    %v538 = vld [vmem:[%s2] sm:$0xff]
    %v539 = vld [vmem:[%s2 + $0x8] sm:$0xf]
    %541 = vset.pattern.permute.xlu0 0
    %542 = vperm.xlu0 %541, %v538
    %v543 = vpop.permute.xlu0 %542
    %546 = vset.pattern.permute.xlu0 0
    %547 = vperm.xlu0 %546, %v539
    %v548 = vpop.permute.xlu0 %547
    %v550 = vadd.f32 %v534, %v543
    %v551 = vadd.f32 %v535, %v543
    %v552 = vadd.f32 %v536, %v548
    %v553 = vadd.f32 %v537, %v548
    %v554 = vmax.f32 %v550, 0.0
    %v555 = vmax.f32 %v551, 0.0
    %v556 = vmax.f32 %v552, 0.0
    %v557 = vmax.f32 %v553, 0.0
    %v558 = vpack.c.bf16 %v555, %v554
    %v559 = vpack.c.bf16 %v557, %v556
    %vm560 = vcmask 1043456
    %vm561 = vcmask 261124
    %vm562 = vmor %vm561, %vm560
    %563 = vst.msk [vmem:[#allocation2] sm:$0xff] %vm562, %v558
    %vm564 = vcmask 1041408
    %vm565 = vcmask 259076
    %vm566 = vmor %vm565, %vm564
    %567 = vst.msk [vmem:[#allocation2 + $0x8] sm:$0x33] %vm566, %v559
    %s568 = scalar_lea.vmem %s0, 296
    %v569 = vld [vmem:[%s568] sm:$0xff]
    %v570 = vld [vmem:[%s568 + $0x8] sm:$0xff]
    %v571 = vld [vmem:[%s568 + $0x10] sm:$0xff]
    %v572 = vld [vmem:[%s568 + $0x18] sm:$0xff]
    %v573 = vld [vmem:[%s568 + $0x20] sm:$0xff]
    %v574 = vld [vmem:[%s568 + $0x28] sm:$0xff]
    %v575 = vld [vmem:[%s568 + $0x30] sm:$0xff]
    %v576 = vld [vmem:[%s568 + $0x38] sm:$0xff]
    %v577 = vld [vmem:[%s568 + $0x40] sm:$0xff]
    %v578 = vld [vmem:[%s568 + $0x48] sm:$0xff]
    %v579 = vld [vmem:[%s568 + $0x50] sm:$0xff]
    %v580 = vld [vmem:[%s568 + $0x58] sm:$0xff]
    %v581 = vld [vmem:[%s568 + $0x60] sm:$0xff]
    %v582 = vld [vmem:[%s568 + $0x68] sm:$0xff]
    %v583 = vld [vmem:[%s568 + $0x70] sm:$0xff]
    %v584 = vld [vmem:[%s568 + $0x78] sm:$0xff]
    %v585 = vld [vmem:[%s568 + $0x80] sm:$0xff]
    %v586 = vld [vmem:[%s568 + $0x88] sm:$0xff]
    %v587 = vld [vmem:[%s568 + $0x90] sm:$0xff]
    %v588 = vld [vmem:[%s568 + $0x98] sm:$0xff]
    %v589 = vld [vmem:[%s568 + $0xa0] sm:$0xff]
    %v590 = vld [vmem:[%s568 + $0xa8] sm:$0xff]
    %v591 = vld [vmem:[%s568 + $0xb0] sm:$0xff]
    %v592 = vld [vmem:[%s568 + $0xb8] sm:$0xff]
    %v593 = vld [vmem:[%s568 + $0xc0] sm:$0xff]
    %v594 = vld [vmem:[%s568 + $0xc8] sm:$0xff]
    %v595 = vld [vmem:[%s568 + $0xd0] sm:$0xff]
    %v596 = vld [vmem:[%s568 + $0xd8] sm:$0xff]
    %v597 = vld [vmem:[%s568 + $0xe0] sm:$0xff]
    %v598 = vld [vmem:[%s568 + $0xe8] sm:$0xff]
    %v599 = vld [vmem:[%s568 + $0xf0] sm:$0xff]
    %v600 = vld [vmem:[%s568 + $0xf8] sm:$0xff]
    %v601 = vld [vmem:[%s568 + $0x100] sm:$0xff]
    %v602 = vld [vmem:[%s568 + $0x108] sm:$0xff]
    %v603 = vld [vmem:[%s568 + $0x110] sm:$0xff]
    %v604 = vld [vmem:[%s568 + $0x118] sm:$0xff]
    %v605 = vld [vmem:[%s568 + $0x120] sm:$0x77]
    %v643 = vunpack.c.l.b16 %v569
    %v644 = vunpack.c.h.b16 %v569
    %v645 = vunpack.c.l.b16 %v570
    %v646 = vunpack.c.h.b16 %v570
    %v647 = vunpack.c.l.b16 %v571
    %v648 = vunpack.c.h.b16 %v571
    %v649 = vunpack.c.l.b16 %v572
    %v650 = vunpack.c.h.b16 %v572
    %v651 = vunpack.c.l.b16 %v573
    %v652 = vunpack.c.h.b16 %v573
    %v653 = vunpack.c.l.b16 %v574
    %v654 = vunpack.c.h.b16 %v574
    %v655 = vunpack.c.l.b16 %v575
    %v656 = vunpack.c.h.b16 %v575
    %v657 = vunpack.c.l.b16 %v576
    %v658 = vunpack.c.h.b16 %v576
    %v659 = vunpack.c.l.b16 %v577
    %v660 = vunpack.c.h.b16 %v577
    %v661 = vunpack.c.l.b16 %v578
    %v662 = vunpack.c.h.b16 %v578
    %v663 = vunpack.c.l.b16 %v579
    %v664 = vunpack.c.h.b16 %v579
    %v665 = vunpack.c.l.b16 %v580
    %v666 = vunpack.c.h.b16 %v580
    %v667 = vunpack.c.l.b16 %v581
    %v668 = vunpack.c.h.b16 %v581
    %v669 = vunpack.c.l.b16 %v582
    %v670 = vunpack.c.h.b16 %v582
    %v671 = vunpack.c.l.b16 %v583
    %v672 = vunpack.c.h.b16 %v583
    %v673 = vunpack.c.l.b16 %v584
    %v674 = vunpack.c.h.b16 %v584
    %v675 = vunpack.c.l.b16 %v585
    %v676 = vunpack.c.h.b16 %v585
    %v677 = vunpack.c.l.b16 %v586
    %v678 = vunpack.c.h.b16 %v586
    %v679 = vunpack.c.l.b16 %v587
    %v680 = vunpack.c.h.b16 %v587
    %v681 = vunpack.c.l.b16 %v588
    %v682 = vunpack.c.h.b16 %v588
    %v683 = vunpack.c.l.b16 %v589
    %v684 = vunpack.c.h.b16 %v589
    %v685 = vunpack.c.l.b16 %v590
    %v686 = vunpack.c.h.b16 %v590
    %v687 = vunpack.c.l.b16 %v591
    %v688 = vunpack.c.h.b16 %v591
    %v689 = vunpack.c.l.b16 %v592
    %v690 = vunpack.c.h.b16 %v592
    %v691 = vunpack.c.l.b16 %v593
    %v692 = vunpack.c.h.b16 %v593
    %v693 = vunpack.c.l.b16 %v594
    %v694 = vunpack.c.h.b16 %v594
    %v695 = vunpack.c.l.b16 %v595
    %v696 = vunpack.c.h.b16 %v595
    %v697 = vunpack.c.l.b16 %v596
    %v698 = vunpack.c.h.b16 %v596
    %v699 = vunpack.c.l.b16 %v597
    %v700 = vunpack.c.h.b16 %v597
    %v701 = vunpack.c.l.b16 %v598
    %v702 = vunpack.c.h.b16 %v598
    %v703 = vunpack.c.l.b16 %v599
    %v704 = vunpack.c.h.b16 %v599
    %v705 = vunpack.c.l.b16 %v600
    %v706 = vunpack.c.h.b16 %v600
    %v707 = vunpack.c.l.b16 %v601
    %v708 = vunpack.c.h.b16 %v601
    %v709 = vunpack.c.l.b16 %v602
    %v710 = vunpack.c.h.b16 %v602
    %v711 = vunpack.c.l.b16 %v603
    %v712 = vunpack.c.h.b16 %v603
    %v713 = vunpack.c.l.b16 %v604
    %v714 = vunpack.c.h.b16 %v604
    %v715 = vunpack.c.l.b16 %v605
    %v716 = vunpack.c.h.b16 %v605
    %v717 = vpack.c.b16 %v645, %v643
    %v718 = vpack.c.b16 %v646, %v644
    %v719 = vpack.c.b16 %v649, %v647
    %v720 = vpack.c.b16 %v650, %v648
    %v721 = vpack.c.b16 %v653, %v651
    %v722 = vpack.c.b16 %v654, %v652
    %v723 = vpack.c.b16 %v657, %v655
    %v724 = vpack.c.b16 %v658, %v656
    %v725 = vpack.c.b16 %v661, %v659
    %v726 = vpack.c.b16 %v662, %v660
    %v727 = vpack.c.b16 %v665, %v663
    %v728 = vpack.c.b16 %v666, %v664
    %v729 = vpack.c.b16 %v669, %v667
    %v730 = vpack.c.b16 %v670, %v668
    %v731 = vpack.c.b16 %v673, %v671
    %v732 = vpack.c.b16 %v674, %v672
    %v733 = vpack.c.b16 %v677, %v675
    %v734 = vpack.c.b16 %v678, %v676
    %v735 = vpack.c.b16 %v681, %v679
    %v736 = vpack.c.b16 %v682, %v680
    %v737 = vpack.c.b16 %v685, %v683
    %v738 = vpack.c.b16 %v686, %v684
    %v739 = vpack.c.b16 %v689, %v687
    %v740 = vpack.c.b16 %v690, %v688
    %v741 = vpack.c.b16 %v693, %v691
    %v742 = vpack.c.b16 %v694, %v692
    %v743 = vpack.c.b16 %v697, %v695
    %v744 = vpack.c.b16 %v698, %v696
    %v745 = vpack.c.b16 %v701, %v699
    %v746 = vpack.c.b16 %v702, %v700
    %v747 = vpack.c.b16 %v705, %v703
    %v748 = vpack.c.b16 %v706, %v704
    %v749 = vpack.c.b16 %v709, %v707
    %v750 = vpack.c.b16 %v710, %v708
    %v751 = vpack.c.b16 %v713, %v711
    %v752 = vpack.c.b16 %v714, %v712
    %v753 = vpack.c.b16 %v715, %v715
    %v754 = vpack.c.b16 %v716, %v716
    %v792 = vsel %vm345, %v753, 0
    %v795 = vsel %vm345, %v754, 0
    %797 = vmatpush.bf16.msra.mxu0 %v731
    %798 = vmatpush.bf16.msra.mxu0 %v729
    %799 = vmatpush.bf16.msra.mxu0 %v727
    %800 = vmatpush.bf16.msra.mxu0 %v725
    %801 = vmatpush.bf16.msra.mxu0 %v723
    %802 = vmatpush.bf16.msra.mxu0 %v721
    %803 = vmatpush.bf16.msra.mxu0 %v719
    %804 = vmatpush.bf16.msra.mxu0 %v717
    %805 = vmatmul.bf16.gmra.mxu0 %v127
    %v806 = vpop.f32.mrf.mxu0
    %v807 = vadd.f32 0.0, %v806
    %v808 = vpop.f32.mrf.mxu0
    %v809 = vadd.f32 0.0, %v808
    %810 = vmatmul.bf16.gmra.mxu0 %v130
    %v811 = vpop.f32.mrf.mxu0
    %v812 = vadd.f32 0.0, %v811
    %v813 = vpop.f32.mrf.mxu0
    %v814 = vadd.f32 0.0, %v813
    %815 = vmatmul.bf16.gmra.mxu0 %v133
    %v816 = vpop.f32.mrf.mxu0
    %v817 = vadd.f32 0.0, %v816
    %v818 = vpop.f32.mrf.mxu0
    %v819 = vadd.f32 0.0, %v818
    %820 = vmatmul.bf16.gmra.mxu0 %v136
    %v821 = vpop.f32.mrf.mxu0
    %v822 = vadd.f32 0.0, %v821
    %v823 = vpop.f32.mrf.mxu0
    %v824 = vadd.f32 0.0, %v823
    %825 = vdwg.mxu0
    %826 = vmatpush.bf16.msra.mxu0 %v747
    %827 = vmatpush.bf16.msra.mxu0 %v745
    %828 = vmatpush.bf16.msra.mxu0 %v743
    %829 = vmatpush.bf16.msra.mxu0 %v741
    %830 = vmatpush.bf16.msra.mxu0 %v739
    %831 = vmatpush.bf16.msra.mxu0 %v737
    %832 = vmatpush.bf16.msra.mxu0 %v735
    %833 = vmatpush.bf16.msra.mxu0 %v733
    %834 = vmatmul.bf16.gmra.mxu0 %v128
    %v835 = vpop.f32.mrf.mxu0
    %v836 = vadd.f32 %v807, %v835
    %v837 = vpop.f32.mrf.mxu0
    %v838 = vadd.f32 %v809, %v837
    %839 = vmatmul.bf16.gmra.mxu0 %v131
    %v840 = vpop.f32.mrf.mxu0
    %v841 = vadd.f32 %v812, %v840
    %v842 = vpop.f32.mrf.mxu0
    %v843 = vadd.f32 %v814, %v842
    %844 = vmatmul.bf16.gmra.mxu0 %v134
    %v845 = vpop.f32.mrf.mxu0
    %v846 = vadd.f32 %v817, %v845
    %v847 = vpop.f32.mrf.mxu0
    %v848 = vadd.f32 %v819, %v847
    %849 = vmatmul.bf16.gmra.mxu0 %v137
    %v850 = vpop.f32.mrf.mxu0
    %v851 = vadd.f32 %v822, %v850
    %v852 = vpop.f32.mrf.mxu0
    %v853 = vadd.f32 %v824, %v852
    %854 = vdwg.mxu0
    %855 = vmatpush.bf16.msra.mxu0 0
    %856 = vmatpush.bf16.msra.mxu0 0
    %857 = vmatpush.bf16.msra.mxu0 0
    %858 = vmatpush.bf16.msra.mxu0 0
    %859 = vmatpush.bf16.msra.mxu0 0
    %860 = vmatpush.bf16.msra.mxu0 %v792
    %861 = vmatpush.bf16.msra.mxu0 %v751
    %862 = vmatpush.bf16.msra.mxu0 %v749
    %863 = vmatmul.bf16.gmra.mxu0 %v334
    %v864 = vpop.f32.mrf.mxu0
    %v865 = vadd.f32 %v836, %v864
    %v866 = vpop.f32.mrf.mxu0
    %v867 = vadd.f32 %v838, %v866
    %868 = vmatmul.bf16.gmra.mxu0 %v337
    %v869 = vpop.f32.mrf.mxu0
    %v870 = vadd.f32 %v841, %v869
    %v871 = vpop.f32.mrf.mxu0
    %v872 = vadd.f32 %v843, %v871
    %873 = vmatmul.bf16.gmra.mxu0 %v340
    %v874 = vpop.f32.mrf.mxu0
    %v875 = vadd.f32 %v846, %v874
    %v876 = vpop.f32.mrf.mxu0
    %v877 = vadd.f32 %v848, %v876
    %878 = vmatmul.bf16.gmra.mxu0 %v343
    %v879 = vpop.f32.mrf.mxu0
    %v880 = vadd.f32 %v851, %v879
    %v881 = vpop.f32.mrf.mxu0
    %v882 = vadd.f32 %v853, %v881
    %883 = vdwg.mxu0
    %884 = vmatpush.bf16.msra.mxu0 %v732
    %885 = vmatpush.bf16.msra.mxu0 %v730
    %886 = vmatpush.bf16.msra.mxu0 %v728
    %887 = vmatpush.bf16.msra.mxu0 %v726
    %888 = vmatpush.bf16.msra.mxu0 %v724
    %889 = vmatpush.bf16.msra.mxu0 %v722
    %890 = vmatpush.bf16.msra.mxu0 %v720
    %891 = vmatpush.bf16.msra.mxu0 %v718
    %892 = vmatmul.bf16.gmra.mxu0 %v127
    %v893 = vpop.f32.mrf.mxu0
    %v894 = vadd.f32 0.0, %v893
    %v895 = vpop.f32.mrf.mxu0
    %v896 = vadd.f32 0.0, %v895
    %897 = vmatmul.bf16.gmra.mxu0 %v130
    %v898 = vpop.f32.mrf.mxu0
    %v899 = vadd.f32 0.0, %v898
    %v900 = vpop.f32.mrf.mxu0
    %v901 = vadd.f32 0.0, %v900
    %902 = vmatmul.bf16.gmra.mxu0 %v133
    %v903 = vpop.f32.mrf.mxu0
    %v904 = vadd.f32 0.0, %v903
    %v905 = vpop.f32.mrf.mxu0
    %v906 = vadd.f32 0.0, %v905
    %907 = vmatmul.bf16.gmra.mxu0 %v136
    %v908 = vpop.f32.mrf.mxu0
    %v909 = vadd.f32 0.0, %v908
    %v910 = vpop.f32.mrf.mxu0
    %v911 = vadd.f32 0.0, %v910
    %912 = vdwg.mxu0
    %913 = vmatpush.bf16.msra.mxu0 %v748
    %914 = vmatpush.bf16.msra.mxu0 %v746
    %915 = vmatpush.bf16.msra.mxu0 %v744
    %916 = vmatpush.bf16.msra.mxu0 %v742
    %917 = vmatpush.bf16.msra.mxu0 %v740
    %918 = vmatpush.bf16.msra.mxu0 %v738
    %919 = vmatpush.bf16.msra.mxu0 %v736
    %920 = vmatpush.bf16.msra.mxu0 %v734
    %921 = vmatmul.bf16.gmra.mxu0 %v128
    %v922 = vpop.f32.mrf.mxu0
    %v923 = vadd.f32 %v894, %v922
    %v924 = vpop.f32.mrf.mxu0
    %v925 = vadd.f32 %v896, %v924
    %926 = vmatmul.bf16.gmra.mxu0 %v131
    %v927 = vpop.f32.mrf.mxu0
    %v928 = vadd.f32 %v899, %v927
    %v929 = vpop.f32.mrf.mxu0
    %v930 = vadd.f32 %v901, %v929
    %931 = vmatmul.bf16.gmra.mxu0 %v134
    %v932 = vpop.f32.mrf.mxu0
    %v933 = vadd.f32 %v904, %v932
    %v934 = vpop.f32.mrf.mxu0
    %v935 = vadd.f32 %v906, %v934
    %936 = vmatmul.bf16.gmra.mxu0 %v137
    %v937 = vpop.f32.mrf.mxu0
    %v938 = vadd.f32 %v909, %v937
    %v939 = vpop.f32.mrf.mxu0
    %v940 = vadd.f32 %v911, %v939
    %941 = vdwg.mxu0
    %942 = vmatpush.bf16.msra.mxu0 0
    %943 = vmatpush.bf16.msra.mxu0 0
    %944 = vmatpush.bf16.msra.mxu0 0
    %945 = vmatpush.bf16.msra.mxu0 0
    %946 = vmatpush.bf16.msra.mxu0 0
    %947 = vmatpush.bf16.msra.mxu0 %v795
    %948 = vmatpush.bf16.msra.mxu0 %v752
    %949 = vmatpush.bf16.msra.mxu0 %v750
    %950 = vmatmul.bf16.gmra.mxu0 %v334
    %v951 = vpop.f32.mrf.mxu0
    %v952 = vadd.f32 %v923, %v951
    %v953 = vpop.f32.mrf.mxu0
    %v954 = vadd.f32 %v925, %v953
    %955 = vmatmul.bf16.gmra.mxu0 %v337
    %v956 = vpop.f32.mrf.mxu0
    %v957 = vadd.f32 %v928, %v956
    %v958 = vpop.f32.mrf.mxu0
    %v959 = vadd.f32 %v930, %v958
    %960 = vmatmul.bf16.gmra.mxu0 %v340
    %v961 = vpop.f32.mrf.mxu0
    %v962 = vadd.f32 %v933, %v961
    %v963 = vpop.f32.mrf.mxu0
    %v964 = vadd.f32 %v935, %v963
    %965 = vmatmul.bf16.gmra.mxu0 %v343
    %v966 = vpop.f32.mrf.mxu0
    %v967 = vadd.f32 %v938, %v966
    %v968 = vpop.f32.mrf.mxu0
    %v969 = vadd.f32 %v940, %v968
    %970 = vdwg.mxu0
    %v971 = vmax.f32 %v865, %v870
    %v972 = vmax.f32 %v952, %v957
    %v973 = vmax.f32 %v867, %v872
    %v974 = vmax.f32 %v954, %v959
    %v975 = vmax.f32 %v875, %v880
    %v976 = vmax.f32 %v962, %v967
    %v977 = vmax.f32 %v877, %v882
    %v978 = vmax.f32 %v964, %v969
    %v979 = vmax.f32 %v971, %v975
    %v980 = vmax.f32 %v972, %v976
    %v981 = vmax.f32 %v973, %v977
    %v982 = vmax.f32 %v974, %v978
    %v983 = vld [vmem:[%s2] sm:$0xff]
    %v984 = vld [vmem:[%s2 + $0x8] sm:$0xf]
    %986 = vset.pattern.permute.xlu0 0
    %987 = vperm.xlu0 %986, %v983
    %v988 = vpop.permute.xlu0 %987
    %991 = vset.pattern.permute.xlu0 0
    %992 = vperm.xlu0 %991, %v984
    %v993 = vpop.permute.xlu0 %992
    %v995 = vadd.f32 %v979, %v988
    %v996 = vadd.f32 %v980, %v988
    %v997 = vadd.f32 %v981, %v993
    %v998 = vadd.f32 %v982, %v993
    %v999 = vmax.f32 %v995, 0.0
    %v1000 = vmax.f32 %v996, 0.0
    %v1001 = vmax.f32 %v997, 0.0
    %v1002 = vmax.f32 %v998, 0.0
    %v1003 = vpack.c.bf16 %v1000, %v999
    %v1004 = vpack.c.bf16 %v1002, %v1001
    %s1005 = scalar_lea.vmem [#allocation2], 16
    %1006 = vst.msk [vmem:[%s1005] sm:$0xff] %vm562, %v1003
    %1007 = vst.msk [vmem:[%s1005 + $0x8] sm:$0x33] %vm566, %v1004
    %v1008 = vld [vmem:[#allocation2] sm:$0xff]
    %v1009 = vld [vmem:[#allocation2 + $0x8] sm:$0x33]
    %v1010 = vld [vmem:[#allocation2 + $0x10] sm:$0xff]
    %v1011 = vld [vmem:[#allocation2 + $0x18] sm:$0x33]
    %v1012 = vld [vmem:[%s3] sm:$0xff]
    %v1013 = vld [vmem:[%s3 + $0x8] sm:$0xff]
    %v1014 = vld [vmem:[%s3 + $0x10] sm:$0xff]
    %v1015 = vld [vmem:[%s3 + $0x18] sm:$0xff]
    %v1016 = vld [vmem:[%s3 + $0x20] sm:$0xff]
    %v1017 = vld [vmem:[%s3 + $0x28] sm:$0xff]
    %v1018 = vld [vmem:[%s3 + $0x30] sm:$0xff]
    %v1019 = vld [vmem:[%s3 + $0x38] sm:$0xff]
    %v1020 = vld [vmem:[%s3 + $0x40] sm:$0xff]
    %v1021 = vld [vmem:[%s3 + $0x48] sm:$0xff]
    %v1022 = vld [vmem:[%s3 + $0x50] sm:$0xff]
    %v1023 = vld [vmem:[%s3 + $0x58] sm:$0xff]
    %v1024 = vld [vmem:[%s3 + $0x60] sm:$0xff]
    %v1025 = vld [vmem:[%s3 + $0x68] sm:$0xff]
    %v1026 = vld [vmem:[%s3 + $0x70] sm:$0xff]
    %v1027 = vld [vmem:[%s3 + $0x78] sm:$0xff]
    %v1028 = vld [vmem:[%s3 + $0x80] sm:$0xff]
    %v1029 = vld [vmem:[%s3 + $0x88] sm:$0xff]
    %v1030 = vld [vmem:[%s3 + $0x90] sm:$0xff]
    %v1031 = vld [vmem:[%s3 + $0x98] sm:$0xff]
    %s1032 = scalar_lea.vmem %s3, 160
    %v1033 = vld [vmem:[%s1032] sm:$0xff]
    %v1034 = vld [vmem:[%s1032 + $0x8] sm:$0xff]
    %v1035 = vld [vmem:[%s1032 + $0x10] sm:$0xff]
    %v1036 = vld [vmem:[%s1032 + $0x18] sm:$0xff]
    %v1037 = vld [vmem:[%s1032 + $0x20] sm:$0xff]
    %v1038 = vld [vmem:[%s1032 + $0x28] sm:$0xff]
    %v1039 = vld [vmem:[%s1032 + $0x30] sm:$0xff]
    %v1040 = vld [vmem:[%s1032 + $0x38] sm:$0xff]
    %v1041 = vld [vmem:[%s1032 + $0x40] sm:$0xff]
    %v1042 = vld [vmem:[%s1032 + $0x48] sm:$0xff]
    %v1043 = vld [vmem:[%s1032 + $0x50] sm:$0xff]
    %v1044 = vld [vmem:[%s1032 + $0x58] sm:$0xff]
    %v1045 = vld [vmem:[%s1032 + $0x60] sm:$0xff]
    %v1046 = vld [vmem:[%s1032 + $0x68] sm:$0xff]
    %v1047 = vld [vmem:[%s1032 + $0x70] sm:$0xff]
    %v1048 = vld [vmem:[%s1032 + $0x78] sm:$0xff]
    %v1049 = vld [vmem:[%s1032 + $0x80] sm:$0xff]
    %v1050 = vld [vmem:[%s1032 + $0x88] sm:$0xff]
    %v1051 = vld [vmem:[%s1032 + $0x90] sm:$0xff]
    %v1052 = vld [vmem:[%s1032 + $0x98] sm:$0xff]
    %v1055 = vunpack.c.l.b16 %v1008
    %v1056 = vunpack.c.h.b16 %v1008
    %v1057 = vunpack.c.l.b16 %v1010
    %v1058 = vunpack.c.h.b16 %v1010
    %v1059 = vpack.c.b16 %v1055, %v1055
    %v1060 = vpack.c.b16 %v1056, %v1056
    %v1061 = vpack.c.b16 %v1057, %v1057
    %v1062 = vpack.c.b16 %v1058, %v1058
    %v1063 = vunpack.c.l.b16 %v1059
    %v1064 = vunpack.c.l.b16 %v1060
    %v1065 = vunpack.c.l.b16 %v1061
    %v1066 = vunpack.c.l.b16 %v1062
    %v1067 = vrot.slane %v1063, 1
    %vm1068 = vcmask 1041409
    %v1069 = vsel %vm1068, %v1065, %v1067
    %v1070 = vrot.slane %v1064, 1
    %v1071 = vsel %vm1068, %v1066, %v1070
    %v1072 = vpack.c.b16 %v1069, %v1069
    %v1073 = vpack.c.b16 %v1071, %v1071
    %v1095 = vunpack.c.l.b16 %v1033
    %v1096 = vunpack.c.h.b16 %v1033
    %v1097 = vunpack.c.l.b16 %v1034
    %v1098 = vunpack.c.h.b16 %v1034
    %v1099 = vunpack.c.l.b16 %v1035
    %v1100 = vunpack.c.h.b16 %v1035
    %v1101 = vunpack.c.l.b16 %v1036
    %v1102 = vunpack.c.h.b16 %v1036
    %v1103 = vunpack.c.l.b16 %v1037
    %v1104 = vunpack.c.h.b16 %v1037
    %v1105 = vunpack.c.l.b16 %v1038
    %v1106 = vunpack.c.h.b16 %v1038
    %v1107 = vunpack.c.l.b16 %v1039
    %v1108 = vunpack.c.h.b16 %v1039
    %v1109 = vunpack.c.l.b16 %v1040
    %v1110 = vunpack.c.h.b16 %v1040
    %v1111 = vunpack.c.l.b16 %v1041
    %v1112 = vunpack.c.h.b16 %v1041
    %v1113 = vunpack.c.l.b16 %v1042
    %v1114 = vunpack.c.h.b16 %v1042
    %v1115 = vunpack.c.l.b16 %v1043
    %v1116 = vunpack.c.h.b16 %v1043
    %v1117 = vunpack.c.l.b16 %v1044
    %v1118 = vunpack.c.h.b16 %v1044
    %v1119 = vunpack.c.l.b16 %v1045
    %v1120 = vunpack.c.h.b16 %v1045
    %v1121 = vunpack.c.l.b16 %v1046
    %v1122 = vunpack.c.h.b16 %v1046
    %v1123 = vunpack.c.l.b16 %v1047
    %v1124 = vunpack.c.h.b16 %v1047
    %v1125 = vunpack.c.l.b16 %v1048
    %v1126 = vunpack.c.h.b16 %v1048
    %v1127 = vunpack.c.l.b16 %v1049
    %v1128 = vunpack.c.h.b16 %v1049
    %v1129 = vunpack.c.l.b16 %v1050
    %v1130 = vunpack.c.h.b16 %v1050
    %v1131 = vunpack.c.l.b16 %v1051
    %v1132 = vunpack.c.h.b16 %v1051
    %v1133 = vunpack.c.l.b16 %v1052
    %v1134 = vunpack.c.h.b16 %v1052
    %v1135 = vpack.c.b16 %v1097, %v1095
    %v1136 = vpack.c.b16 %v1098, %v1096
    %v1137 = vpack.c.b16 %v1101, %v1099
    %v1138 = vpack.c.b16 %v1102, %v1100
    %v1139 = vpack.c.b16 %v1105, %v1103
    %v1140 = vpack.c.b16 %v1106, %v1104
    %v1141 = vpack.c.b16 %v1109, %v1107
    %v1142 = vpack.c.b16 %v1110, %v1108
    %v1143 = vpack.c.b16 %v1113, %v1111
    %v1144 = vpack.c.b16 %v1114, %v1112
    %v1145 = vpack.c.b16 %v1117, %v1115
    %v1146 = vpack.c.b16 %v1118, %v1116
    %v1147 = vpack.c.b16 %v1121, %v1119
    %v1148 = vpack.c.b16 %v1122, %v1120
    %v1149 = vpack.c.b16 %v1125, %v1123
    %v1150 = vpack.c.b16 %v1126, %v1124
    %v1151 = vpack.c.b16 %v1129, %v1127
    %v1152 = vpack.c.b16 %v1130, %v1128
    %v1153 = vpack.c.b16 %v1133, %v1131
    %v1154 = vpack.c.b16 %v1134, %v1132
    %vm1175 = vcmask 261120
    %v1177 = vsel %vm1175, %v1073, 0
    %1179 = vmatpush.bf16.msra.mxu0 %v1149
    %1180 = vmatpush.bf16.msra.mxu0 %v1147
    %1181 = vmatpush.bf16.msra.mxu0 %v1145
    %1182 = vmatpush.bf16.msra.mxu0 %v1143
    %1183 = vmatpush.bf16.msra.mxu0 %v1141
    %1184 = vmatpush.bf16.msra.mxu0 %v1139
    %1185 = vmatpush.bf16.msra.mxu0 %v1137
    %1186 = vmatpush.bf16.msra.mxu0 %v1135
    %1187 = vmatmul.bf16.gmra.mxu0 %v1072
    %v1188 = vpop.f32.mrf.mxu0
    %v1189 = vadd.f32 0.0, %v1188
    %v1190 = vpop.f32.mrf.mxu0
    %1191 = vdwg.mxu0
    %1192 = vmatpush.bf16.msra.mxu0 0
    %1193 = vmatpush.bf16.msra.mxu0 0
    %1194 = vmatpush.bf16.msra.mxu0 0
    %1195 = vmatpush.bf16.msra.mxu0 0
    %1196 = vmatpush.bf16.msra.mxu0 0
    %1197 = vmatpush.bf16.msra.mxu0 0
    %1198 = vmatpush.bf16.msra.mxu0 %v1153
    %1199 = vmatpush.bf16.msra.mxu0 %v1151
    %1200 = vmatmul.bf16.gmra.mxu0 %v1177
    %v1201 = vpop.f32.mrf.mxu0
    %v1202 = vadd.f32 %v1189, %v1201
    %v1203 = vpop.f32.mrf.mxu0
    %1204 = vdwg.mxu0
    %1205 = vmatpush.bf16.msra.mxu0 %v1150
    %1206 = vmatpush.bf16.msra.mxu0 %v1148
    %1207 = vmatpush.bf16.msra.mxu0 %v1146
    %1208 = vmatpush.bf16.msra.mxu0 %v1144
    %1209 = vmatpush.bf16.msra.mxu0 %v1142
    %1210 = vmatpush.bf16.msra.mxu0 %v1140
    %1211 = vmatpush.bf16.msra.mxu0 %v1138
    %1212 = vmatpush.bf16.msra.mxu0 %v1136
    %1213 = vmatmul.bf16.gmra.mxu0 %v1072
    %v1214 = vpop.f32.mrf.mxu0
    %v1215 = vadd.f32 0.0, %v1214
    %v1216 = vpop.f32.mrf.mxu0
    %1217 = vdwg.mxu0
    %1218 = vmatpush.bf16.msra.mxu0 0
    %1219 = vmatpush.bf16.msra.mxu0 0
    %1220 = vmatpush.bf16.msra.mxu0 0
    %1221 = vmatpush.bf16.msra.mxu0 0
    %1222 = vmatpush.bf16.msra.mxu0 0
    %1223 = vmatpush.bf16.msra.mxu0 0
    %1224 = vmatpush.bf16.msra.mxu0 %v1154
    %1225 = vmatpush.bf16.msra.mxu0 %v1152
    %1226 = vmatmul.bf16.gmra.mxu0 %v1177
    %v1227 = vpop.f32.mrf.mxu0
    %v1228 = vadd.f32 %v1215, %v1227
    %v1229 = vpop.f32.mrf.mxu0
    %1230 = vdwg.mxu0
    %v1231 = vrot.slane %v1065, 7
    %v1232 = vsel %vm1068, %v1231, %v1063
    %v1233 = vrot.slane %v1066, 7
    %v1234 = vsel %vm1068, %v1233, %v1064
    %v1235 = vpack.c.b16 %v1232, %v1232
    %v1236 = vpack.c.b16 %v1234, %v1234
    %v1258 = vunpack.c.l.b16 %v1012
    %v1259 = vunpack.c.h.b16 %v1012
    %v1260 = vunpack.c.l.b16 %v1013
    %v1261 = vunpack.c.h.b16 %v1013
    %v1262 = vunpack.c.l.b16 %v1014
    %v1263 = vunpack.c.h.b16 %v1014
    %v1264 = vunpack.c.l.b16 %v1015
    %v1265 = vunpack.c.h.b16 %v1015
    %v1266 = vunpack.c.l.b16 %v1016
    %v1267 = vunpack.c.h.b16 %v1016
    %v1268 = vunpack.c.l.b16 %v1017
    %v1269 = vunpack.c.h.b16 %v1017
    %v1270 = vunpack.c.l.b16 %v1018
    %v1271 = vunpack.c.h.b16 %v1018
    %v1272 = vunpack.c.l.b16 %v1019
    %v1273 = vunpack.c.h.b16 %v1019
    %v1274 = vunpack.c.l.b16 %v1020
    %v1275 = vunpack.c.h.b16 %v1020
    %v1276 = vunpack.c.l.b16 %v1021
    %v1277 = vunpack.c.h.b16 %v1021
    %v1278 = vunpack.c.l.b16 %v1022
    %v1279 = vunpack.c.h.b16 %v1022
    %v1280 = vunpack.c.l.b16 %v1023
    %v1281 = vunpack.c.h.b16 %v1023
    %v1282 = vunpack.c.l.b16 %v1024
    %v1283 = vunpack.c.h.b16 %v1024
    %v1284 = vunpack.c.l.b16 %v1025
    %v1285 = vunpack.c.h.b16 %v1025
    %v1286 = vunpack.c.l.b16 %v1026
    %v1287 = vunpack.c.h.b16 %v1026
    %v1288 = vunpack.c.l.b16 %v1027
    %v1289 = vunpack.c.h.b16 %v1027
    %v1290 = vunpack.c.l.b16 %v1028
    %v1291 = vunpack.c.h.b16 %v1028
    %v1292 = vunpack.c.l.b16 %v1029
    %v1293 = vunpack.c.h.b16 %v1029
    %v1294 = vunpack.c.l.b16 %v1030
    %v1295 = vunpack.c.h.b16 %v1030
    %v1296 = vunpack.c.l.b16 %v1031
    %v1297 = vunpack.c.h.b16 %v1031
    %v1298 = vpack.c.b16 %v1260, %v1258
    %v1299 = vpack.c.b16 %v1261, %v1259
    %v1300 = vpack.c.b16 %v1264, %v1262
    %v1301 = vpack.c.b16 %v1265, %v1263
    %v1302 = vpack.c.b16 %v1268, %v1266
    %v1303 = vpack.c.b16 %v1269, %v1267
    %v1304 = vpack.c.b16 %v1272, %v1270
    %v1305 = vpack.c.b16 %v1273, %v1271
    %v1306 = vpack.c.b16 %v1276, %v1274
    %v1307 = vpack.c.b16 %v1277, %v1275
    %v1308 = vpack.c.b16 %v1280, %v1278
    %v1309 = vpack.c.b16 %v1281, %v1279
    %v1310 = vpack.c.b16 %v1284, %v1282
    %v1311 = vpack.c.b16 %v1285, %v1283
    %v1312 = vpack.c.b16 %v1288, %v1286
    %v1313 = vpack.c.b16 %v1289, %v1287
    %v1314 = vpack.c.b16 %v1292, %v1290
    %v1315 = vpack.c.b16 %v1293, %v1291
    %v1316 = vpack.c.b16 %v1296, %v1294
    %v1317 = vpack.c.b16 %v1297, %v1295
    %v1339 = vsel %vm1175, %v1236, 0
    %1341 = vmatpush.bf16.msra.mxu0 %v1312
    %1342 = vmatpush.bf16.msra.mxu0 %v1310
    %1343 = vmatpush.bf16.msra.mxu0 %v1308
    %1344 = vmatpush.bf16.msra.mxu0 %v1306
    %1345 = vmatpush.bf16.msra.mxu0 %v1304
    %1346 = vmatpush.bf16.msra.mxu0 %v1302
    %1347 = vmatpush.bf16.msra.mxu0 %v1300
    %1348 = vmatpush.bf16.msra.mxu0 %v1298
    %1349 = vmatmul.bf16.gmra.mxu0 %v1235
    %v1350 = vpop.f32.mrf.mxu0
    %v1351 = vadd.f32 %v1202, %v1350
    %v1352 = vpop.f32.mrf.mxu0
    %1353 = vdwg.mxu0
    %1354 = vmatpush.bf16.msra.mxu0 0
    %1355 = vmatpush.bf16.msra.mxu0 0
    %1356 = vmatpush.bf16.msra.mxu0 0
    %1357 = vmatpush.bf16.msra.mxu0 0
    %1358 = vmatpush.bf16.msra.mxu0 0
    %1359 = vmatpush.bf16.msra.mxu0 0
    %1360 = vmatpush.bf16.msra.mxu0 %v1316
    %1361 = vmatpush.bf16.msra.mxu0 %v1314
    %1362 = vmatmul.bf16.gmra.mxu0 %v1339
    %v1363 = vpop.f32.mrf.mxu0
    %v1364 = vadd.f32 %v1351, %v1363
    %v1365 = vpop.f32.mrf.mxu0
    %1366 = vdwg.mxu0
    %1367 = vmatpush.bf16.msra.mxu0 %v1313
    %1368 = vmatpush.bf16.msra.mxu0 %v1311
    %1369 = vmatpush.bf16.msra.mxu0 %v1309
    %1370 = vmatpush.bf16.msra.mxu0 %v1307
    %1371 = vmatpush.bf16.msra.mxu0 %v1305
    %1372 = vmatpush.bf16.msra.mxu0 %v1303
    %1373 = vmatpush.bf16.msra.mxu0 %v1301
    %1374 = vmatpush.bf16.msra.mxu0 %v1299
    %1375 = vmatmul.bf16.gmra.mxu0 %v1235
    %v1376 = vpop.f32.mrf.mxu0
    %v1377 = vadd.f32 %v1228, %v1376
    %v1378 = vpop.f32.mrf.mxu0
    %1379 = vdwg.mxu0
    %1380 = vmatpush.bf16.msra.mxu0 0
    %1381 = vmatpush.bf16.msra.mxu0 0
    %1382 = vmatpush.bf16.msra.mxu0 0
    %1383 = vmatpush.bf16.msra.mxu0 0
    %1384 = vmatpush.bf16.msra.mxu0 0
    %1385 = vmatpush.bf16.msra.mxu0 0
    %1386 = vmatpush.bf16.msra.mxu0 %v1317
    %1387 = vmatpush.bf16.msra.mxu0 %v1315
    %1388 = vmatmul.bf16.gmra.mxu0 %v1339
    %v1389 = vpop.f32.mrf.mxu0
    %v1390 = vadd.f32 %v1377, %v1389
    %v1391 = vpop.f32.mrf.mxu0
    %1392 = vdwg.mxu0
    %s1393 = scalar_lea.vmem %s3, 320
    %v1394 = vld [vmem:[%s1393] sm:$0xff]
    %v1395 = vld [vmem:[%s1393 + $0x8] sm:$0xff]
    %v1396 = vld [vmem:[%s1393 + $0x10] sm:$0xff]
    %v1397 = vld [vmem:[%s1393 + $0x18] sm:$0xff]
    %v1398 = vld [vmem:[%s1393 + $0x20] sm:$0xff]
    %v1399 = vld [vmem:[%s1393 + $0x28] sm:$0xff]
    %v1400 = vld [vmem:[%s1393 + $0x30] sm:$0xff]
    %v1401 = vld [vmem:[%s1393 + $0x38] sm:$0xff]
    %v1402 = vld [vmem:[%s1393 + $0x40] sm:$0xff]
    %v1403 = vld [vmem:[%s1393 + $0x48] sm:$0xff]
    %v1404 = vld [vmem:[%s1393 + $0x50] sm:$0xff]
    %v1405 = vld [vmem:[%s1393 + $0x58] sm:$0xff]
    %v1406 = vld [vmem:[%s1393 + $0x60] sm:$0xff]
    %v1407 = vld [vmem:[%s1393 + $0x68] sm:$0xff]
    %v1408 = vld [vmem:[%s1393 + $0x70] sm:$0xff]
    %v1409 = vld [vmem:[%s1393 + $0x78] sm:$0xff]
    %v1410 = vld [vmem:[%s1393 + $0x80] sm:$0xff]
    %v1411 = vld [vmem:[%s1393 + $0x88] sm:$0xff]
    %v1412 = vld [vmem:[%s1393 + $0x90] sm:$0xff]
    %v1413 = vld [vmem:[%s1393 + $0x98] sm:$0xff]
    %v1414 = vrot.slane %v1063, 2
    %v1415 = vrot.slane %v1065, 1
    %v1416 = vsel %vm1068, %v1415, %v1414
    %v1417 = vrot.slane %v1064, 2
    %v1418 = vrot.slane %v1066, 1
    %v1419 = vsel %vm1068, %v1418, %v1417
    %v1420 = vpack.c.b16 %v1416, %v1416
    %v1421 = vpack.c.b16 %v1419, %v1419
    %v1443 = vunpack.c.l.b16 %v1394
    %v1444 = vunpack.c.h.b16 %v1394
    %v1445 = vunpack.c.l.b16 %v1395
    %v1446 = vunpack.c.h.b16 %v1395
    %v1447 = vunpack.c.l.b16 %v1396
    %v1448 = vunpack.c.h.b16 %v1396
    %v1449 = vunpack.c.l.b16 %v1397
    %v1450 = vunpack.c.h.b16 %v1397
    %v1451 = vunpack.c.l.b16 %v1398
    %v1452 = vunpack.c.h.b16 %v1398
    %v1453 = vunpack.c.l.b16 %v1399
    %v1454 = vunpack.c.h.b16 %v1399
    %v1455 = vunpack.c.l.b16 %v1400
    %v1456 = vunpack.c.h.b16 %v1400
    %v1457 = vunpack.c.l.b16 %v1401
    %v1458 = vunpack.c.h.b16 %v1401
    %v1459 = vunpack.c.l.b16 %v1402
    %v1460 = vunpack.c.h.b16 %v1402
    %v1461 = vunpack.c.l.b16 %v1403
    %v1462 = vunpack.c.h.b16 %v1403
    %v1463 = vunpack.c.l.b16 %v1404
    %v1464 = vunpack.c.h.b16 %v1404
    %v1465 = vunpack.c.l.b16 %v1405
    %v1466 = vunpack.c.h.b16 %v1405
    %v1467 = vunpack.c.l.b16 %v1406
    %v1468 = vunpack.c.h.b16 %v1406
    %v1469 = vunpack.c.l.b16 %v1407
    %v1470 = vunpack.c.h.b16 %v1407
    %v1471 = vunpack.c.l.b16 %v1408
    %v1472 = vunpack.c.h.b16 %v1408
    %v1473 = vunpack.c.l.b16 %v1409
    %v1474 = vunpack.c.h.b16 %v1409
    %v1475 = vunpack.c.l.b16 %v1410
    %v1476 = vunpack.c.h.b16 %v1410
    %v1477 = vunpack.c.l.b16 %v1411
    %v1478 = vunpack.c.h.b16 %v1411
    %v1479 = vunpack.c.l.b16 %v1412
    %v1480 = vunpack.c.h.b16 %v1412
    %v1481 = vunpack.c.l.b16 %v1413
    %v1482 = vunpack.c.h.b16 %v1413
    %v1483 = vpack.c.b16 %v1445, %v1443
    %v1484 = vpack.c.b16 %v1446, %v1444
    %v1485 = vpack.c.b16 %v1449, %v1447
    %v1486 = vpack.c.b16 %v1450, %v1448
    %v1487 = vpack.c.b16 %v1453, %v1451
    %v1488 = vpack.c.b16 %v1454, %v1452
    %v1489 = vpack.c.b16 %v1457, %v1455
    %v1490 = vpack.c.b16 %v1458, %v1456
    %v1491 = vpack.c.b16 %v1461, %v1459
    %v1492 = vpack.c.b16 %v1462, %v1460
    %v1493 = vpack.c.b16 %v1465, %v1463
    %v1494 = vpack.c.b16 %v1466, %v1464
    %v1495 = vpack.c.b16 %v1469, %v1467
    %v1496 = vpack.c.b16 %v1470, %v1468
    %v1497 = vpack.c.b16 %v1473, %v1471
    %v1498 = vpack.c.b16 %v1474, %v1472
    %v1499 = vpack.c.b16 %v1477, %v1475
    %v1500 = vpack.c.b16 %v1478, %v1476
    %v1501 = vpack.c.b16 %v1481, %v1479
    %v1502 = vpack.c.b16 %v1482, %v1480
    %v1524 = vsel %vm1175, %v1421, 0
    %1526 = vmatpush.bf16.msra.mxu0 %v1497
    %1527 = vmatpush.bf16.msra.mxu0 %v1495
    %1528 = vmatpush.bf16.msra.mxu0 %v1493
    %1529 = vmatpush.bf16.msra.mxu0 %v1491
    %1530 = vmatpush.bf16.msra.mxu0 %v1489
    %1531 = vmatpush.bf16.msra.mxu0 %v1487
    %1532 = vmatpush.bf16.msra.mxu0 %v1485
    %1533 = vmatpush.bf16.msra.mxu0 %v1483
    %1534 = vmatmul.bf16.gmra.mxu0 %v1420
    %v1535 = vpop.f32.mrf.mxu0
    %v1536 = vadd.f32 0.0, %v1535
    %v1537 = vpop.f32.mrf.mxu0
    %1538 = vdwg.mxu0
    %1539 = vmatpush.bf16.msra.mxu0 0
    %1540 = vmatpush.bf16.msra.mxu0 0
    %1541 = vmatpush.bf16.msra.mxu0 0
    %1542 = vmatpush.bf16.msra.mxu0 0
    %1543 = vmatpush.bf16.msra.mxu0 0
    %1544 = vmatpush.bf16.msra.mxu0 0
    %1545 = vmatpush.bf16.msra.mxu0 %v1501
    %1546 = vmatpush.bf16.msra.mxu0 %v1499
    %1547 = vmatmul.bf16.gmra.mxu0 %v1524
    %v1548 = vpop.f32.mrf.mxu0
    %v1549 = vadd.f32 %v1536, %v1548
    %v1550 = vpop.f32.mrf.mxu0
    %1551 = vdwg.mxu0
    %1552 = vmatpush.bf16.msra.mxu0 %v1498
    %1553 = vmatpush.bf16.msra.mxu0 %v1496
    %1554 = vmatpush.bf16.msra.mxu0 %v1494
    %1555 = vmatpush.bf16.msra.mxu0 %v1492
    %1556 = vmatpush.bf16.msra.mxu0 %v1490
    %1557 = vmatpush.bf16.msra.mxu0 %v1488
    %1558 = vmatpush.bf16.msra.mxu0 %v1486
    %1559 = vmatpush.bf16.msra.mxu0 %v1484
    %1560 = vmatmul.bf16.gmra.mxu0 %v1420
    %v1561 = vpop.f32.mrf.mxu0
    %v1562 = vadd.f32 0.0, %v1561
    %v1563 = vpop.f32.mrf.mxu0
    %1564 = vdwg.mxu0
    %1565 = vmatpush.bf16.msra.mxu0 0
    %1566 = vmatpush.bf16.msra.mxu0 0
    %1567 = vmatpush.bf16.msra.mxu0 0
    %1568 = vmatpush.bf16.msra.mxu0 0
    %1569 = vmatpush.bf16.msra.mxu0 0
    %1570 = vmatpush.bf16.msra.mxu0 0
    %1571 = vmatpush.bf16.msra.mxu0 %v1502
    %1572 = vmatpush.bf16.msra.mxu0 %v1500
    %1573 = vmatmul.bf16.gmra.mxu0 %v1524
    %v1574 = vpop.f32.mrf.mxu0
    %v1575 = vadd.f32 %v1562, %v1574
    %v1576 = vpop.f32.mrf.mxu0
    %1577 = vdwg.mxu0
    %v1578 = vadd.f32 %v1364, %v1549
    %v1579 = vadd.f32 %v1390, %v1575
    %s1580 = scalar_lea.vmem %s3, 480
    %v1581 = vld [vmem:[%s1580] sm:$0xff]
    %v1582 = vld [vmem:[%s1580 + $0x8] sm:$0xff]
    %v1583 = vld [vmem:[%s1580 + $0x10] sm:$0xff]
    %v1584 = vld [vmem:[%s1580 + $0x18] sm:$0xff]
    %v1585 = vld [vmem:[%s1580 + $0x20] sm:$0xff]
    %v1586 = vld [vmem:[%s1580 + $0x28] sm:$0xff]
    %v1587 = vld [vmem:[%s1580 + $0x30] sm:$0xff]
    %v1588 = vld [vmem:[%s1580 + $0x38] sm:$0xff]
    %v1589 = vld [vmem:[%s1580 + $0x40] sm:$0xff]
    %v1590 = vld [vmem:[%s1580 + $0x48] sm:$0xff]
    %v1591 = vld [vmem:[%s1580 + $0x50] sm:$0xff]
    %v1592 = vld [vmem:[%s1580 + $0x58] sm:$0xff]
    %v1593 = vld [vmem:[%s1580 + $0x60] sm:$0xff]
    %v1594 = vld [vmem:[%s1580 + $0x68] sm:$0xff]
    %v1595 = vld [vmem:[%s1580 + $0x70] sm:$0xff]
    %v1596 = vld [vmem:[%s1580 + $0x78] sm:$0xff]
    %v1597 = vld [vmem:[%s1580 + $0x80] sm:$0xff]
    %v1598 = vld [vmem:[%s1580 + $0x88] sm:$0xff]
    %v1599 = vld [vmem:[%s1580 + $0x90] sm:$0xff]
    %v1600 = vld [vmem:[%s1580 + $0x98] sm:$0xff]
    %v1601 = vrot.slane %v1063, 3
    %v1602 = vrot.slane %v1065, 2
    %v1603 = vsel %vm1068, %v1602, %v1601
    %v1604 = vrot.slane %v1064, 3
    %v1605 = vrot.slane %v1066, 2
    %v1606 = vsel %vm1068, %v1605, %v1604
    %v1607 = vpack.c.b16 %v1603, %v1603
    %v1608 = vpack.c.b16 %v1606, %v1606
    %v1630 = vunpack.c.l.b16 %v1581
    %v1631 = vunpack.c.h.b16 %v1581
    %v1632 = vunpack.c.l.b16 %v1582
    %v1633 = vunpack.c.h.b16 %v1582
    %v1634 = vunpack.c.l.b16 %v1583
    %v1635 = vunpack.c.h.b16 %v1583
    %v1636 = vunpack.c.l.b16 %v1584
    %v1637 = vunpack.c.h.b16 %v1584
    %v1638 = vunpack.c.l.b16 %v1585
    %v1639 = vunpack.c.h.b16 %v1585
    %v1640 = vunpack.c.l.b16 %v1586
    %v1641 = vunpack.c.h.b16 %v1586
    %v1642 = vunpack.c.l.b16 %v1587
    %v1643 = vunpack.c.h.b16 %v1587
    %v1644 = vunpack.c.l.b16 %v1588
    %v1645 = vunpack.c.h.b16 %v1588
    %v1646 = vunpack.c.l.b16 %v1589
    %v1647 = vunpack.c.h.b16 %v1589
    %v1648 = vunpack.c.l.b16 %v1590
    %v1649 = vunpack.c.h.b16 %v1590
    %v1650 = vunpack.c.l.b16 %v1591
    %v1651 = vunpack.c.h.b16 %v1591
    %v1652 = vunpack.c.l.b16 %v1592
    %v1653 = vunpack.c.h.b16 %v1592
    %v1654 = vunpack.c.l.b16 %v1593
    %v1655 = vunpack.c.h.b16 %v1593
    %v1656 = vunpack.c.l.b16 %v1594
    %v1657 = vunpack.c.h.b16 %v1594
    %v1658 = vunpack.c.l.b16 %v1595
    %v1659 = vunpack.c.h.b16 %v1595
    %v1660 = vunpack.c.l.b16 %v1596
    %v1661 = vunpack.c.h.b16 %v1596
    %v1662 = vunpack.c.l.b16 %v1597
    %v1663 = vunpack.c.h.b16 %v1597
    %v1664 = vunpack.c.l.b16 %v1598
    %v1665 = vunpack.c.h.b16 %v1598
    %v1666 = vunpack.c.l.b16 %v1599
    %v1667 = vunpack.c.h.b16 %v1599
    %v1668 = vunpack.c.l.b16 %v1600
    %v1669 = vunpack.c.h.b16 %v1600
    %v1670 = vpack.c.b16 %v1632, %v1630
    %v1671 = vpack.c.b16 %v1633, %v1631
    %v1672 = vpack.c.b16 %v1636, %v1634
    %v1673 = vpack.c.b16 %v1637, %v1635
    %v1674 = vpack.c.b16 %v1640, %v1638
    %v1675 = vpack.c.b16 %v1641, %v1639
    %v1676 = vpack.c.b16 %v1644, %v1642
    %v1677 = vpack.c.b16 %v1645, %v1643
    %v1678 = vpack.c.b16 %v1648, %v1646
    %v1679 = vpack.c.b16 %v1649, %v1647
    %v1680 = vpack.c.b16 %v1652, %v1650
    %v1681 = vpack.c.b16 %v1653, %v1651
    %v1682 = vpack.c.b16 %v1656, %v1654
    %v1683 = vpack.c.b16 %v1657, %v1655
    %v1684 = vpack.c.b16 %v1660, %v1658
    %v1685 = vpack.c.b16 %v1661, %v1659
    %v1686 = vpack.c.b16 %v1664, %v1662
    %v1687 = vpack.c.b16 %v1665, %v1663
    %v1688 = vpack.c.b16 %v1668, %v1666
    %v1689 = vpack.c.b16 %v1669, %v1667
    %v1711 = vsel %vm1175, %v1608, 0
    %1713 = vmatpush.bf16.msra.mxu0 %v1684
    %1714 = vmatpush.bf16.msra.mxu0 %v1682
    %1715 = vmatpush.bf16.msra.mxu0 %v1680
    %1716 = vmatpush.bf16.msra.mxu0 %v1678
    %1717 = vmatpush.bf16.msra.mxu0 %v1676
    %1718 = vmatpush.bf16.msra.mxu0 %v1674
    %1719 = vmatpush.bf16.msra.mxu0 %v1672
    %1720 = vmatpush.bf16.msra.mxu0 %v1670
    %1721 = vmatmul.bf16.gmra.mxu0 %v1607
    %v1722 = vpop.f32.mrf.mxu0
    %v1723 = vadd.f32 0.0, %v1722
    %v1724 = vpop.f32.mrf.mxu0
    %1725 = vdwg.mxu0
    %1726 = vmatpush.bf16.msra.mxu0 0
    %1727 = vmatpush.bf16.msra.mxu0 0
    %1728 = vmatpush.bf16.msra.mxu0 0
    %1729 = vmatpush.bf16.msra.mxu0 0
    %1730 = vmatpush.bf16.msra.mxu0 0
    %1731 = vmatpush.bf16.msra.mxu0 0
    %1732 = vmatpush.bf16.msra.mxu0 %v1688
    %1733 = vmatpush.bf16.msra.mxu0 %v1686
    %1734 = vmatmul.bf16.gmra.mxu0 %v1711
    %v1735 = vpop.f32.mrf.mxu0
    %v1736 = vadd.f32 %v1723, %v1735
    %v1737 = vpop.f32.mrf.mxu0
    %1738 = vdwg.mxu0
    %1739 = vmatpush.bf16.msra.mxu0 %v1685
    %1740 = vmatpush.bf16.msra.mxu0 %v1683
    %1741 = vmatpush.bf16.msra.mxu0 %v1681
    %1742 = vmatpush.bf16.msra.mxu0 %v1679
    %1743 = vmatpush.bf16.msra.mxu0 %v1677
    %1744 = vmatpush.bf16.msra.mxu0 %v1675
    %1745 = vmatpush.bf16.msra.mxu0 %v1673
    %1746 = vmatpush.bf16.msra.mxu0 %v1671
    %1747 = vmatmul.bf16.gmra.mxu0 %v1607
    %v1748 = vpop.f32.mrf.mxu0
    %v1749 = vadd.f32 0.0, %v1748
    %v1750 = vpop.f32.mrf.mxu0
    %1751 = vdwg.mxu0
    %1752 = vmatpush.bf16.msra.mxu0 0
    %1753 = vmatpush.bf16.msra.mxu0 0
    %1754 = vmatpush.bf16.msra.mxu0 0
    %1755 = vmatpush.bf16.msra.mxu0 0
    %1756 = vmatpush.bf16.msra.mxu0 0
    %1757 = vmatpush.bf16.msra.mxu0 0
    %1758 = vmatpush.bf16.msra.mxu0 %v1689
    %1759 = vmatpush.bf16.msra.mxu0 %v1687
    %1760 = vmatmul.bf16.gmra.mxu0 %v1711
    %v1761 = vpop.f32.mrf.mxu0
    %v1762 = vadd.f32 %v1749, %v1761
    %v1763 = vpop.f32.mrf.mxu0
    %1764 = vdwg.mxu0
    %v1765 = vadd.f32 %v1578, %v1736
    %v1766 = vadd.f32 %v1579, %v1762
    %s1767 = scalar_lea.vmem %s3, 640
    %v1768 = vld [vmem:[%s1767] sm:$0xff]
    %v1769 = vld [vmem:[%s1767 + $0x8] sm:$0xff]
    %v1770 = vld [vmem:[%s1767 + $0x10] sm:$0xff]
    %v1771 = vld [vmem:[%s1767 + $0x18] sm:$0xff]
    %v1772 = vld [vmem:[%s1767 + $0x20] sm:$0xff]
    %v1773 = vld [vmem:[%s1767 + $0x28] sm:$0xff]
    %v1774 = vld [vmem:[%s1767 + $0x30] sm:$0xff]
    %v1775 = vld [vmem:[%s1767 + $0x38] sm:$0xff]
    %v1776 = vld [vmem:[%s1767 + $0x40] sm:$0xff]
    %v1777 = vld [vmem:[%s1767 + $0x48] sm:$0xff]
    %v1778 = vld [vmem:[%s1767 + $0x50] sm:$0xff]
    %v1779 = vld [vmem:[%s1767 + $0x58] sm:$0xff]
    %v1780 = vld [vmem:[%s1767 + $0x60] sm:$0xff]
    %v1781 = vld [vmem:[%s1767 + $0x68] sm:$0xff]
    %v1782 = vld [vmem:[%s1767 + $0x70] sm:$0xff]
    %v1783 = vld [vmem:[%s1767 + $0x78] sm:$0xff]
    %v1784 = vld [vmem:[%s1767 + $0x80] sm:$0xff]
    %v1785 = vld [vmem:[%s1767 + $0x88] sm:$0xff]
    %v1786 = vld [vmem:[%s1767 + $0x90] sm:$0xff]
    %v1787 = vld [vmem:[%s1767 + $0x98] sm:$0xff]
    %v1788 = vrot.slane %v1063, 4
    %v1789 = vrot.slane %v1065, 3
    %v1790 = vsel %vm1068, %v1789, %v1788
    %v1791 = vrot.slane %v1064, 4
    %v1792 = vrot.slane %v1066, 3
    %v1793 = vsel %vm1068, %v1792, %v1791
    %v1794 = vpack.c.b16 %v1790, %v1790
    %v1795 = vpack.c.b16 %v1793, %v1793
    %v1817 = vunpack.c.l.b16 %v1768
    %v1818 = vunpack.c.h.b16 %v1768
    %v1819 = vunpack.c.l.b16 %v1769
    %v1820 = vunpack.c.h.b16 %v1769
    %v1821 = vunpack.c.l.b16 %v1770
    %v1822 = vunpack.c.h.b16 %v1770
    %v1823 = vunpack.c.l.b16 %v1771
    %v1824 = vunpack.c.h.b16 %v1771
    %v1825 = vunpack.c.l.b16 %v1772
    %v1826 = vunpack.c.h.b16 %v1772
    %v1827 = vunpack.c.l.b16 %v1773
    %v1828 = vunpack.c.h.b16 %v1773
    %v1829 = vunpack.c.l.b16 %v1774
    %v1830 = vunpack.c.h.b16 %v1774
    %v1831 = vunpack.c.l.b16 %v1775
    %v1832 = vunpack.c.h.b16 %v1775
    %v1833 = vunpack.c.l.b16 %v1776
    %v1834 = vunpack.c.h.b16 %v1776
    %v1835 = vunpack.c.l.b16 %v1777
    %v1836 = vunpack.c.h.b16 %v1777
    %v1837 = vunpack.c.l.b16 %v1778
    %v1838 = vunpack.c.h.b16 %v1778
    %v1839 = vunpack.c.l.b16 %v1779
    %v1840 = vunpack.c.h.b16 %v1779
    %v1841 = vunpack.c.l.b16 %v1780
    %v1842 = vunpack.c.h.b16 %v1780
    %v1843 = vunpack.c.l.b16 %v1781
    %v1844 = vunpack.c.h.b16 %v1781
    %v1845 = vunpack.c.l.b16 %v1782
    %v1846 = vunpack.c.h.b16 %v1782
    %v1847 = vunpack.c.l.b16 %v1783
    %v1848 = vunpack.c.h.b16 %v1783
    %v1849 = vunpack.c.l.b16 %v1784
    %v1850 = vunpack.c.h.b16 %v1784
    %v1851 = vunpack.c.l.b16 %v1785
    %v1852 = vunpack.c.h.b16 %v1785
    %v1853 = vunpack.c.l.b16 %v1786
    %v1854 = vunpack.c.h.b16 %v1786
    %v1855 = vunpack.c.l.b16 %v1787
    %v1856 = vunpack.c.h.b16 %v1787
    %v1857 = vpack.c.b16 %v1819, %v1817
    %v1858 = vpack.c.b16 %v1820, %v1818
    %v1859 = vpack.c.b16 %v1823, %v1821
    %v1860 = vpack.c.b16 %v1824, %v1822
    %v1861 = vpack.c.b16 %v1827, %v1825
    %v1862 = vpack.c.b16 %v1828, %v1826
    %v1863 = vpack.c.b16 %v1831, %v1829
    %v1864 = vpack.c.b16 %v1832, %v1830
    %v1865 = vpack.c.b16 %v1835, %v1833
    %v1866 = vpack.c.b16 %v1836, %v1834
    %v1867 = vpack.c.b16 %v1839, %v1837
    %v1868 = vpack.c.b16 %v1840, %v1838
    %v1869 = vpack.c.b16 %v1843, %v1841
    %v1870 = vpack.c.b16 %v1844, %v1842
    %v1871 = vpack.c.b16 %v1847, %v1845
    %v1872 = vpack.c.b16 %v1848, %v1846
    %v1873 = vpack.c.b16 %v1851, %v1849
    %v1874 = vpack.c.b16 %v1852, %v1850
    %v1875 = vpack.c.b16 %v1855, %v1853
    %v1876 = vpack.c.b16 %v1856, %v1854
    %v1898 = vsel %vm1175, %v1795, 0
    %1900 = vmatpush.bf16.msra.mxu0 %v1871
    %1901 = vmatpush.bf16.msra.mxu0 %v1869
    %1902 = vmatpush.bf16.msra.mxu0 %v1867
    %1903 = vmatpush.bf16.msra.mxu0 %v1865
    %1904 = vmatpush.bf16.msra.mxu0 %v1863
    %1905 = vmatpush.bf16.msra.mxu0 %v1861
    %1906 = vmatpush.bf16.msra.mxu0 %v1859
    %1907 = vmatpush.bf16.msra.mxu0 %v1857
    %1908 = vmatmul.bf16.gmra.mxu0 %v1794
    %v1909 = vpop.f32.mrf.mxu0
    %v1910 = vadd.f32 0.0, %v1909
    %v1911 = vpop.f32.mrf.mxu0
    %1912 = vdwg.mxu0
    %1913 = vmatpush.bf16.msra.mxu0 0
    %1914 = vmatpush.bf16.msra.mxu0 0
    %1915 = vmatpush.bf16.msra.mxu0 0
    %1916 = vmatpush.bf16.msra.mxu0 0
    %1917 = vmatpush.bf16.msra.mxu0 0
    %1918 = vmatpush.bf16.msra.mxu0 0
    %1919 = vmatpush.bf16.msra.mxu0 %v1875
    %1920 = vmatpush.bf16.msra.mxu0 %v1873
    %1921 = vmatmul.bf16.gmra.mxu0 %v1898
    %v1922 = vpop.f32.mrf.mxu0
    %v1923 = vadd.f32 %v1910, %v1922
    %v1924 = vpop.f32.mrf.mxu0
    %1925 = vdwg.mxu0
    %1926 = vmatpush.bf16.msra.mxu0 %v1872
    %1927 = vmatpush.bf16.msra.mxu0 %v1870
    %1928 = vmatpush.bf16.msra.mxu0 %v1868
    %1929 = vmatpush.bf16.msra.mxu0 %v1866
    %1930 = vmatpush.bf16.msra.mxu0 %v1864
    %1931 = vmatpush.bf16.msra.mxu0 %v1862
    %1932 = vmatpush.bf16.msra.mxu0 %v1860
    %1933 = vmatpush.bf16.msra.mxu0 %v1858
    %1934 = vmatmul.bf16.gmra.mxu0 %v1794
    %v1935 = vpop.f32.mrf.mxu0
    %v1936 = vadd.f32 0.0, %v1935
    %v1937 = vpop.f32.mrf.mxu0
    %1938 = vdwg.mxu0
    %1939 = vmatpush.bf16.msra.mxu0 0
    %1940 = vmatpush.bf16.msra.mxu0 0
    %1941 = vmatpush.bf16.msra.mxu0 0
    %1942 = vmatpush.bf16.msra.mxu0 0
    %1943 = vmatpush.bf16.msra.mxu0 0
    %1944 = vmatpush.bf16.msra.mxu0 0
    %1945 = vmatpush.bf16.msra.mxu0 %v1876
    %1946 = vmatpush.bf16.msra.mxu0 %v1874
    %1947 = vmatmul.bf16.gmra.mxu0 %v1898
    %v1948 = vpop.f32.mrf.mxu0
    %v1949 = vadd.f32 %v1936, %v1948
    %v1950 = vpop.f32.mrf.mxu0
    %1951 = vdwg.mxu0
    %v1952 = vadd.f32 %v1765, %v1923
    %v1953 = vadd.f32 %v1766, %v1949
    %s1954 = scalar_lea.vmem %s3, 800
    %v1955 = vld [vmem:[%s1954] sm:$0xff]
    %v1956 = vld [vmem:[%s1954 + $0x8] sm:$0xff]
    %v1957 = vld [vmem:[%s1954 + $0x10] sm:$0xff]
    %v1958 = vld [vmem:[%s1954 + $0x18] sm:$0xff]
    %v1959 = vld [vmem:[%s1954 + $0x20] sm:$0xff]
    %v1960 = vld [vmem:[%s1954 + $0x28] sm:$0xff]
    %v1961 = vld [vmem:[%s1954 + $0x30] sm:$0xff]
    %v1962 = vld [vmem:[%s1954 + $0x38] sm:$0xff]
    %v1963 = vld [vmem:[%s1954 + $0x40] sm:$0xff]
    %v1964 = vld [vmem:[%s1954 + $0x48] sm:$0xff]
    %v1965 = vld [vmem:[%s1954 + $0x50] sm:$0xff]
    %v1966 = vld [vmem:[%s1954 + $0x58] sm:$0xff]
    %v1967 = vld [vmem:[%s1954 + $0x60] sm:$0xff]
    %v1968 = vld [vmem:[%s1954 + $0x68] sm:$0xff]
    %v1969 = vld [vmem:[%s1954 + $0x70] sm:$0xff]
    %v1970 = vld [vmem:[%s1954 + $0x78] sm:$0xff]
    %v1971 = vld [vmem:[%s1954 + $0x80] sm:$0xff]
    %v1972 = vld [vmem:[%s1954 + $0x88] sm:$0xff]
    %v1973 = vld [vmem:[%s1954 + $0x90] sm:$0xff]
    %v1974 = vld [vmem:[%s1954 + $0x98] sm:$0xff]
    %v1975 = vrot.slane %v1063, 5
    %v1976 = vrot.slane %v1065, 4
    %v1977 = vsel %vm1068, %v1976, %v1975
    %v1978 = vrot.slane %v1064, 5
    %v1979 = vrot.slane %v1066, 4
    %v1980 = vsel %vm1068, %v1979, %v1978
    %v1981 = vpack.c.b16 %v1977, %v1977
    %v1982 = vpack.c.b16 %v1980, %v1980
    %v2004 = vunpack.c.l.b16 %v1955
    %v2005 = vunpack.c.h.b16 %v1955
    %v2006 = vunpack.c.l.b16 %v1956
    %v2007 = vunpack.c.h.b16 %v1956
    %v2008 = vunpack.c.l.b16 %v1957
    %v2009 = vunpack.c.h.b16 %v1957
    %v2010 = vunpack.c.l.b16 %v1958
    %v2011 = vunpack.c.h.b16 %v1958
    %v2012 = vunpack.c.l.b16 %v1959
    %v2013 = vunpack.c.h.b16 %v1959
    %v2014 = vunpack.c.l.b16 %v1960
    %v2015 = vunpack.c.h.b16 %v1960
    %v2016 = vunpack.c.l.b16 %v1961
    %v2017 = vunpack.c.h.b16 %v1961
    %v2018 = vunpack.c.l.b16 %v1962
    %v2019 = vunpack.c.h.b16 %v1962
    %v2020 = vunpack.c.l.b16 %v1963
    %v2021 = vunpack.c.h.b16 %v1963
    %v2022 = vunpack.c.l.b16 %v1964
    %v2023 = vunpack.c.h.b16 %v1964
    %v2024 = vunpack.c.l.b16 %v1965
    %v2025 = vunpack.c.h.b16 %v1965
    %v2026 = vunpack.c.l.b16 %v1966
    %v2027 = vunpack.c.h.b16 %v1966
    %v2028 = vunpack.c.l.b16 %v1967
    %v2029 = vunpack.c.h.b16 %v1967
    %v2030 = vunpack.c.l.b16 %v1968
    %v2031 = vunpack.c.h.b16 %v1968
    %v2032 = vunpack.c.l.b16 %v1969
    %v2033 = vunpack.c.h.b16 %v1969
    %v2034 = vunpack.c.l.b16 %v1970
    %v2035 = vunpack.c.h.b16 %v1970
    %v2036 = vunpack.c.l.b16 %v1971
    %v2037 = vunpack.c.h.b16 %v1971
    %v2038 = vunpack.c.l.b16 %v1972
    %v2039 = vunpack.c.h.b16 %v1972
    %v2040 = vunpack.c.l.b16 %v1973
    %v2041 = vunpack.c.h.b16 %v1973
    %v2042 = vunpack.c.l.b16 %v1974
    %v2043 = vunpack.c.h.b16 %v1974
    %v2044 = vpack.c.b16 %v2006, %v2004
    %v2045 = vpack.c.b16 %v2007, %v2005
    %v2046 = vpack.c.b16 %v2010, %v2008
    %v2047 = vpack.c.b16 %v2011, %v2009
    %v2048 = vpack.c.b16 %v2014, %v2012
    %v2049 = vpack.c.b16 %v2015, %v2013
    %v2050 = vpack.c.b16 %v2018, %v2016
    %v2051 = vpack.c.b16 %v2019, %v2017
    %v2052 = vpack.c.b16 %v2022, %v2020
    %v2053 = vpack.c.b16 %v2023, %v2021
    %v2054 = vpack.c.b16 %v2026, %v2024
    %v2055 = vpack.c.b16 %v2027, %v2025
    %v2056 = vpack.c.b16 %v2030, %v2028
    %v2057 = vpack.c.b16 %v2031, %v2029
    %v2058 = vpack.c.b16 %v2034, %v2032
    %v2059 = vpack.c.b16 %v2035, %v2033
    %v2060 = vpack.c.b16 %v2038, %v2036
    %v2061 = vpack.c.b16 %v2039, %v2037
    %v2062 = vpack.c.b16 %v2042, %v2040
    %v2063 = vpack.c.b16 %v2043, %v2041
    %v2085 = vsel %vm1175, %v1982, 0
    %2087 = vmatpush.bf16.msra.mxu0 %v2058
    %2088 = vmatpush.bf16.msra.mxu0 %v2056
    %2089 = vmatpush.bf16.msra.mxu0 %v2054
    %2090 = vmatpush.bf16.msra.mxu0 %v2052
    %2091 = vmatpush.bf16.msra.mxu0 %v2050
    %2092 = vmatpush.bf16.msra.mxu0 %v2048
    %2093 = vmatpush.bf16.msra.mxu0 %v2046
    %2094 = vmatpush.bf16.msra.mxu0 %v2044
    %2095 = vmatmul.bf16.gmra.mxu0 %v1981
    %v2096 = vpop.f32.mrf.mxu0
    %v2097 = vadd.f32 0.0, %v2096
    %v2098 = vpop.f32.mrf.mxu0
    %2099 = vdwg.mxu0
    %2100 = vmatpush.bf16.msra.mxu0 0
    %2101 = vmatpush.bf16.msra.mxu0 0
    %2102 = vmatpush.bf16.msra.mxu0 0
    %2103 = vmatpush.bf16.msra.mxu0 0
    %2104 = vmatpush.bf16.msra.mxu0 0
    %2105 = vmatpush.bf16.msra.mxu0 0
    %2106 = vmatpush.bf16.msra.mxu0 %v2062
    %2107 = vmatpush.bf16.msra.mxu0 %v2060
    %2108 = vmatmul.bf16.gmra.mxu0 %v2085
    %v2109 = vpop.f32.mrf.mxu0
    %v2110 = vadd.f32 %v2097, %v2109
    %v2111 = vpop.f32.mrf.mxu0
    %2112 = vdwg.mxu0
    %2113 = vmatpush.bf16.msra.mxu0 %v2059
    %2114 = vmatpush.bf16.msra.mxu0 %v2057
    %2115 = vmatpush.bf16.msra.mxu0 %v2055
    %2116 = vmatpush.bf16.msra.mxu0 %v2053
    %2117 = vmatpush.bf16.msra.mxu0 %v2051
    %2118 = vmatpush.bf16.msra.mxu0 %v2049
    %2119 = vmatpush.bf16.msra.mxu0 %v2047
    %2120 = vmatpush.bf16.msra.mxu0 %v2045
    %2121 = vmatmul.bf16.gmra.mxu0 %v1981
    %v2122 = vpop.f32.mrf.mxu0
    %v2123 = vadd.f32 0.0, %v2122
    %v2124 = vpop.f32.mrf.mxu0
    %2125 = vdwg.mxu0
    %2126 = vmatpush.bf16.msra.mxu0 0
    %2127 = vmatpush.bf16.msra.mxu0 0
    %2128 = vmatpush.bf16.msra.mxu0 0
    %2129 = vmatpush.bf16.msra.mxu0 0
    %2130 = vmatpush.bf16.msra.mxu0 0
    %2131 = vmatpush.bf16.msra.mxu0 0
    %2132 = vmatpush.bf16.msra.mxu0 %v2063
    %2133 = vmatpush.bf16.msra.mxu0 %v2061
    %2134 = vmatmul.bf16.gmra.mxu0 %v2085
    %v2135 = vpop.f32.mrf.mxu0
    %v2136 = vadd.f32 %v2123, %v2135
    %v2137 = vpop.f32.mrf.mxu0
    %2138 = vdwg.mxu0
    %v2139 = vadd.f32 %v1952, %v2110
    %v2140 = vadd.f32 %v1953, %v2136
    %s2141 = scalar_lea.vmem %s3, 960
    %v2142 = vld [vmem:[%s2141] sm:$0xff]
    %v2143 = vld [vmem:[%s2141 + $0x8] sm:$0xff]
    %v2144 = vld [vmem:[%s2141 + $0x10] sm:$0xff]
    %v2145 = vld [vmem:[%s2141 + $0x18] sm:$0xff]
    %v2146 = vld [vmem:[%s2141 + $0x20] sm:$0xff]
    %v2147 = vld [vmem:[%s2141 + $0x28] sm:$0xff]
    %v2148 = vld [vmem:[%s2141 + $0x30] sm:$0xff]
    %v2149 = vld [vmem:[%s2141 + $0x38] sm:$0xff]
    %v2150 = vld [vmem:[%s2141 + $0x40] sm:$0xff]
    %v2151 = vld [vmem:[%s2141 + $0x48] sm:$0xff]
    %v2152 = vld [vmem:[%s2141 + $0x50] sm:$0xff]
    %v2153 = vld [vmem:[%s2141 + $0x58] sm:$0xff]
    %v2154 = vld [vmem:[%s2141 + $0x60] sm:$0xff]
    %v2155 = vld [vmem:[%s2141 + $0x68] sm:$0xff]
    %v2156 = vld [vmem:[%s2141 + $0x70] sm:$0xff]
    %v2157 = vld [vmem:[%s2141 + $0x78] sm:$0xff]
    %v2158 = vld [vmem:[%s2141 + $0x80] sm:$0xff]
    %v2159 = vld [vmem:[%s2141 + $0x88] sm:$0xff]
    %v2160 = vld [vmem:[%s2141 + $0x90] sm:$0xff]
    %v2161 = vld [vmem:[%s2141 + $0x98] sm:$0xff]
    %v2162 = vrot.slane %v1063, 6
    %v2163 = vrot.slane %v1065, 5
    %v2164 = vsel %vm1068, %v2163, %v2162
    %v2165 = vrot.slane %v1064, 6
    %v2166 = vrot.slane %v1066, 5
    %v2167 = vsel %vm1068, %v2166, %v2165
    %v2168 = vpack.c.b16 %v2164, %v2164
    %v2169 = vpack.c.b16 %v2167, %v2167
    %v2191 = vunpack.c.l.b16 %v2142
    %v2192 = vunpack.c.h.b16 %v2142
    %v2193 = vunpack.c.l.b16 %v2143
    %v2194 = vunpack.c.h.b16 %v2143
    %v2195 = vunpack.c.l.b16 %v2144
    %v2196 = vunpack.c.h.b16 %v2144
    %v2197 = vunpack.c.l.b16 %v2145
    %v2198 = vunpack.c.h.b16 %v2145
    %v2199 = vunpack.c.l.b16 %v2146
    %v2200 = vunpack.c.h.b16 %v2146
    %v2201 = vunpack.c.l.b16 %v2147
    %v2202 = vunpack.c.h.b16 %v2147
    %v2203 = vunpack.c.l.b16 %v2148
    %v2204 = vunpack.c.h.b16 %v2148
    %v2205 = vunpack.c.l.b16 %v2149
    %v2206 = vunpack.c.h.b16 %v2149
    %v2207 = vunpack.c.l.b16 %v2150
    %v2208 = vunpack.c.h.b16 %v2150
    %v2209 = vunpack.c.l.b16 %v2151
    %v2210 = vunpack.c.h.b16 %v2151
    %v2211 = vunpack.c.l.b16 %v2152
    %v2212 = vunpack.c.h.b16 %v2152
    %v2213 = vunpack.c.l.b16 %v2153
    %v2214 = vunpack.c.h.b16 %v2153
    %v2215 = vunpack.c.l.b16 %v2154
    %v2216 = vunpack.c.h.b16 %v2154
    %v2217 = vunpack.c.l.b16 %v2155
    %v2218 = vunpack.c.h.b16 %v2155
    %v2219 = vunpack.c.l.b16 %v2156
    %v2220 = vunpack.c.h.b16 %v2156
    %v2221 = vunpack.c.l.b16 %v2157
    %v2222 = vunpack.c.h.b16 %v2157
    %v2223 = vunpack.c.l.b16 %v2158
    %v2224 = vunpack.c.h.b16 %v2158
    %v2225 = vunpack.c.l.b16 %v2159
    %v2226 = vunpack.c.h.b16 %v2159
    %v2227 = vunpack.c.l.b16 %v2160
    %v2228 = vunpack.c.h.b16 %v2160
    %v2229 = vunpack.c.l.b16 %v2161
    %v2230 = vunpack.c.h.b16 %v2161
    %v2231 = vpack.c.b16 %v2193, %v2191
    %v2232 = vpack.c.b16 %v2194, %v2192
    %v2233 = vpack.c.b16 %v2197, %v2195
    %v2234 = vpack.c.b16 %v2198, %v2196
    %v2235 = vpack.c.b16 %v2201, %v2199
    %v2236 = vpack.c.b16 %v2202, %v2200
    %v2237 = vpack.c.b16 %v2205, %v2203
    %v2238 = vpack.c.b16 %v2206, %v2204
    %v2239 = vpack.c.b16 %v2209, %v2207
    %v2240 = vpack.c.b16 %v2210, %v2208
    %v2241 = vpack.c.b16 %v2213, %v2211
    %v2242 = vpack.c.b16 %v2214, %v2212
    %v2243 = vpack.c.b16 %v2217, %v2215
    %v2244 = vpack.c.b16 %v2218, %v2216
    %v2245 = vpack.c.b16 %v2221, %v2219
    %v2246 = vpack.c.b16 %v2222, %v2220
    %v2247 = vpack.c.b16 %v2225, %v2223
    %v2248 = vpack.c.b16 %v2226, %v2224
    %v2249 = vpack.c.b16 %v2229, %v2227
    %v2250 = vpack.c.b16 %v2230, %v2228
    %v2272 = vsel %vm1175, %v2169, 0
    %2274 = vmatpush.bf16.msra.mxu0 %v2245
    %2275 = vmatpush.bf16.msra.mxu0 %v2243
    %2276 = vmatpush.bf16.msra.mxu0 %v2241
    %2277 = vmatpush.bf16.msra.mxu0 %v2239
    %2278 = vmatpush.bf16.msra.mxu0 %v2237
    %2279 = vmatpush.bf16.msra.mxu0 %v2235
    %2280 = vmatpush.bf16.msra.mxu0 %v2233
    %2281 = vmatpush.bf16.msra.mxu0 %v2231
    %2282 = vmatmul.bf16.gmra.mxu0 %v2168
    %v2283 = vpop.f32.mrf.mxu0
    %v2284 = vadd.f32 0.0, %v2283
    %v2285 = vpop.f32.mrf.mxu0
    %2286 = vdwg.mxu0
    %2287 = vmatpush.bf16.msra.mxu0 0
    %2288 = vmatpush.bf16.msra.mxu0 0
    %2289 = vmatpush.bf16.msra.mxu0 0
    %2290 = vmatpush.bf16.msra.mxu0 0
    %2291 = vmatpush.bf16.msra.mxu0 0
    %2292 = vmatpush.bf16.msra.mxu0 0
    %2293 = vmatpush.bf16.msra.mxu0 %v2249
    %2294 = vmatpush.bf16.msra.mxu0 %v2247
    %2295 = vmatmul.bf16.gmra.mxu0 %v2272
    %v2296 = vpop.f32.mrf.mxu0
    %v2297 = vadd.f32 %v2284, %v2296
    %v2298 = vpop.f32.mrf.mxu0
    %2299 = vdwg.mxu0
    %2300 = vmatpush.bf16.msra.mxu0 %v2246
    %2301 = vmatpush.bf16.msra.mxu0 %v2244
    %2302 = vmatpush.bf16.msra.mxu0 %v2242
    %2303 = vmatpush.bf16.msra.mxu0 %v2240
    %2304 = vmatpush.bf16.msra.mxu0 %v2238
    %2305 = vmatpush.bf16.msra.mxu0 %v2236
    %2306 = vmatpush.bf16.msra.mxu0 %v2234
    %2307 = vmatpush.bf16.msra.mxu0 %v2232
    %2308 = vmatmul.bf16.gmra.mxu0 %v2168
    %v2309 = vpop.f32.mrf.mxu0
    %v2310 = vadd.f32 0.0, %v2309
    %v2311 = vpop.f32.mrf.mxu0
    %2312 = vdwg.mxu0
    %2313 = vmatpush.bf16.msra.mxu0 0
    %2314 = vmatpush.bf16.msra.mxu0 0
    %2315 = vmatpush.bf16.msra.mxu0 0
    %2316 = vmatpush.bf16.msra.mxu0 0
    %2317 = vmatpush.bf16.msra.mxu0 0
    %2318 = vmatpush.bf16.msra.mxu0 0
    %2319 = vmatpush.bf16.msra.mxu0 %v2250
    %2320 = vmatpush.bf16.msra.mxu0 %v2248
    %2321 = vmatmul.bf16.gmra.mxu0 %v2272
    %v2322 = vpop.f32.mrf.mxu0
    %v2323 = vadd.f32 %v2310, %v2322
    %v2324 = vpop.f32.mrf.mxu0
    %2325 = vdwg.mxu0
    %v2326 = vadd.f32 %v2139, %v2297
    %v2327 = vadd.f32 %v2140, %v2323
    %s2328 = scalar_lea.vmem %s3, 1120
    %v2329 = vld [vmem:[%s2328] sm:$0xff]
    %v2330 = vld [vmem:[%s2328 + $0x8] sm:$0xff]
    %v2331 = vld [vmem:[%s2328 + $0x10] sm:$0xff]
    %v2332 = vld [vmem:[%s2328 + $0x18] sm:$0xff]
    %v2333 = vld [vmem:[%s2328 + $0x20] sm:$0xff]
    %v2334 = vld [vmem:[%s2328 + $0x28] sm:$0xff]
    %v2335 = vld [vmem:[%s2328 + $0x30] sm:$0xff]
    %v2336 = vld [vmem:[%s2328 + $0x38] sm:$0xff]
    %v2337 = vld [vmem:[%s2328 + $0x40] sm:$0xff]
    %v2338 = vld [vmem:[%s2328 + $0x48] sm:$0xff]
    %v2339 = vld [vmem:[%s2328 + $0x50] sm:$0xff]
    %v2340 = vld [vmem:[%s2328 + $0x58] sm:$0xff]
    %v2341 = vld [vmem:[%s2328 + $0x60] sm:$0xff]
    %v2342 = vld [vmem:[%s2328 + $0x68] sm:$0xff]
    %v2343 = vld [vmem:[%s2328 + $0x70] sm:$0xff]
    %v2344 = vld [vmem:[%s2328 + $0x78] sm:$0xff]
    %v2345 = vld [vmem:[%s2328 + $0x80] sm:$0xff]
    %v2346 = vld [vmem:[%s2328 + $0x88] sm:$0xff]
    %v2347 = vld [vmem:[%s2328 + $0x90] sm:$0xff]
    %v2348 = vld [vmem:[%s2328 + $0x98] sm:$0xff]
    %v2349 = vrot.slane %v1063, 7
    %v2350 = vrot.slane %v1065, 6
    %v2351 = vsel %vm1068, %v2350, %v2349
    %v2352 = vrot.slane %v1064, 7
    %v2353 = vrot.slane %v1066, 6
    %v2354 = vsel %vm1068, %v2353, %v2352
    %v2355 = vpack.c.b16 %v2351, %v2351
    %v2356 = vpack.c.b16 %v2354, %v2354
    %v2378 = vunpack.c.l.b16 %v2329
    %v2379 = vunpack.c.h.b16 %v2329
    %v2380 = vunpack.c.l.b16 %v2330
    %v2381 = vunpack.c.h.b16 %v2330
    %v2382 = vunpack.c.l.b16 %v2331
    %v2383 = vunpack.c.h.b16 %v2331
    %v2384 = vunpack.c.l.b16 %v2332
    %v2385 = vunpack.c.h.b16 %v2332
    %v2386 = vunpack.c.l.b16 %v2333
    %v2387 = vunpack.c.h.b16 %v2333
    %v2388 = vunpack.c.l.b16 %v2334
    %v2389 = vunpack.c.h.b16 %v2334
    %v2390 = vunpack.c.l.b16 %v2335
    %v2391 = vunpack.c.h.b16 %v2335
    %v2392 = vunpack.c.l.b16 %v2336
    %v2393 = vunpack.c.h.b16 %v2336
    %v2394 = vunpack.c.l.b16 %v2337
    %v2395 = vunpack.c.h.b16 %v2337
    %v2396 = vunpack.c.l.b16 %v2338
    %v2397 = vunpack.c.h.b16 %v2338
    %v2398 = vunpack.c.l.b16 %v2339
    %v2399 = vunpack.c.h.b16 %v2339
    %v2400 = vunpack.c.l.b16 %v2340
    %v2401 = vunpack.c.h.b16 %v2340
    %v2402 = vunpack.c.l.b16 %v2341
    %v2403 = vunpack.c.h.b16 %v2341
    %v2404 = vunpack.c.l.b16 %v2342
    %v2405 = vunpack.c.h.b16 %v2342
    %v2406 = vunpack.c.l.b16 %v2343
    %v2407 = vunpack.c.h.b16 %v2343
    %v2408 = vunpack.c.l.b16 %v2344
    %v2409 = vunpack.c.h.b16 %v2344
    %v2410 = vunpack.c.l.b16 %v2345
    %v2411 = vunpack.c.h.b16 %v2345
    %v2412 = vunpack.c.l.b16 %v2346
    %v2413 = vunpack.c.h.b16 %v2346
    %v2414 = vunpack.c.l.b16 %v2347
    %v2415 = vunpack.c.h.b16 %v2347
    %v2416 = vunpack.c.l.b16 %v2348
    %v2417 = vunpack.c.h.b16 %v2348
    %v2418 = vpack.c.b16 %v2380, %v2378
    %v2419 = vpack.c.b16 %v2381, %v2379
    %v2420 = vpack.c.b16 %v2384, %v2382
    %v2421 = vpack.c.b16 %v2385, %v2383
    %v2422 = vpack.c.b16 %v2388, %v2386
    %v2423 = vpack.c.b16 %v2389, %v2387
    %v2424 = vpack.c.b16 %v2392, %v2390
    %v2425 = vpack.c.b16 %v2393, %v2391
    %v2426 = vpack.c.b16 %v2396, %v2394
    %v2427 = vpack.c.b16 %v2397, %v2395
    %v2428 = vpack.c.b16 %v2400, %v2398
    %v2429 = vpack.c.b16 %v2401, %v2399
    %v2430 = vpack.c.b16 %v2404, %v2402
    %v2431 = vpack.c.b16 %v2405, %v2403
    %v2432 = vpack.c.b16 %v2408, %v2406
    %v2433 = vpack.c.b16 %v2409, %v2407
    %v2434 = vpack.c.b16 %v2412, %v2410
    %v2435 = vpack.c.b16 %v2413, %v2411
    %v2436 = vpack.c.b16 %v2416, %v2414
    %v2437 = vpack.c.b16 %v2417, %v2415
    %v2459 = vsel %vm1175, %v2356, 0
    %2461 = vmatpush.bf16.msra.mxu0 %v2432
    %2462 = vmatpush.bf16.msra.mxu0 %v2430
    %2463 = vmatpush.bf16.msra.mxu0 %v2428
    %2464 = vmatpush.bf16.msra.mxu0 %v2426
    %2465 = vmatpush.bf16.msra.mxu0 %v2424
    %2466 = vmatpush.bf16.msra.mxu0 %v2422
    %2467 = vmatpush.bf16.msra.mxu0 %v2420
    %2468 = vmatpush.bf16.msra.mxu0 %v2418
    %2469 = vmatmul.bf16.gmra.mxu0 %v2355
    %v2470 = vpop.f32.mrf.mxu0
    %v2471 = vadd.f32 0.0, %v2470
    %v2472 = vpop.f32.mrf.mxu0
    %2473 = vdwg.mxu0
    %2474 = vmatpush.bf16.msra.mxu0 0
    %2475 = vmatpush.bf16.msra.mxu0 0
    %2476 = vmatpush.bf16.msra.mxu0 0
    %2477 = vmatpush.bf16.msra.mxu0 0
    %2478 = vmatpush.bf16.msra.mxu0 0
    %2479 = vmatpush.bf16.msra.mxu0 0
    %2480 = vmatpush.bf16.msra.mxu0 %v2436
    %2481 = vmatpush.bf16.msra.mxu0 %v2434
    %2482 = vmatmul.bf16.gmra.mxu0 %v2459
    %v2483 = vpop.f32.mrf.mxu0
    %v2484 = vadd.f32 %v2471, %v2483
    %v2485 = vpop.f32.mrf.mxu0
    %2486 = vdwg.mxu0
    %2487 = vmatpush.bf16.msra.mxu0 %v2433
    %2488 = vmatpush.bf16.msra.mxu0 %v2431
    %2489 = vmatpush.bf16.msra.mxu0 %v2429
    %2490 = vmatpush.bf16.msra.mxu0 %v2427
    %2491 = vmatpush.bf16.msra.mxu0 %v2425
    %2492 = vmatpush.bf16.msra.mxu0 %v2423
    %2493 = vmatpush.bf16.msra.mxu0 %v2421
    %2494 = vmatpush.bf16.msra.mxu0 %v2419
    %2495 = vmatmul.bf16.gmra.mxu0 %v2355
    %v2496 = vpop.f32.mrf.mxu0
    %v2497 = vadd.f32 0.0, %v2496
    %v2498 = vpop.f32.mrf.mxu0
    %2499 = vdwg.mxu0
    %2500 = vmatpush.bf16.msra.mxu0 0
    %2501 = vmatpush.bf16.msra.mxu0 0
    %2502 = vmatpush.bf16.msra.mxu0 0
    %2503 = vmatpush.bf16.msra.mxu0 0
    %2504 = vmatpush.bf16.msra.mxu0 0
    %2505 = vmatpush.bf16.msra.mxu0 0
    %2506 = vmatpush.bf16.msra.mxu0 %v2437
    %2507 = vmatpush.bf16.msra.mxu0 %v2435
    %2508 = vmatmul.bf16.gmra.mxu0 %v2459
    %v2509 = vpop.f32.mrf.mxu0
    %v2510 = vadd.f32 %v2497, %v2509
    %v2511 = vpop.f32.mrf.mxu0
    %2512 = vdwg.mxu0
    %v2513 = vadd.f32 %v2326, %v2484
    %v2514 = vadd.f32 %v2327, %v2510
    %s2515 = scalar_lea.vmem %s3, 1280
    %v2516 = vld [vmem:[%s2515] sm:$0xff]
    %v2517 = vld [vmem:[%s2515 + $0x8] sm:$0xff]
    %v2518 = vld [vmem:[%s2515 + $0x10] sm:$0xff]
    %v2519 = vld [vmem:[%s2515 + $0x18] sm:$0xff]
    %v2520 = vld [vmem:[%s2515 + $0x20] sm:$0xff]
    %v2521 = vld [vmem:[%s2515 + $0x28] sm:$0xff]
    %v2522 = vld [vmem:[%s2515 + $0x30] sm:$0xff]
    %v2523 = vld [vmem:[%s2515 + $0x38] sm:$0xff]
    %v2524 = vld [vmem:[%s2515 + $0x40] sm:$0xff]
    %v2525 = vld [vmem:[%s2515 + $0x48] sm:$0xff]
    %v2526 = vld [vmem:[%s2515 + $0x50] sm:$0xff]
    %v2527 = vld [vmem:[%s2515 + $0x58] sm:$0xff]
    %v2528 = vld [vmem:[%s2515 + $0x60] sm:$0xff]
    %v2529 = vld [vmem:[%s2515 + $0x68] sm:$0xff]
    %v2530 = vld [vmem:[%s2515 + $0x70] sm:$0xff]
    %v2531 = vld [vmem:[%s2515 + $0x78] sm:$0xff]
    %v2532 = vld [vmem:[%s2515 + $0x80] sm:$0xff]
    %v2533 = vld [vmem:[%s2515 + $0x88] sm:$0xff]
    %v2534 = vld [vmem:[%s2515 + $0x90] sm:$0xff]
    %v2535 = vld [vmem:[%s2515 + $0x98] sm:$0xff]
    %v2538 = vunpack.c.l.b16 %v1009
    %v2539 = vunpack.c.h.b16 %v1009
    %v2540 = vunpack.c.l.b16 %v1011
    %v2541 = vunpack.c.h.b16 %v1011
    %v2542 = vpack.c.b16 %v2538, %v2538
    %v2543 = vpack.c.b16 %v2539, %v2539
    %v2544 = vpack.c.b16 %v2540, %v2540
    %v2545 = vpack.c.b16 %v2541, %v2541
    %v2546 = vunpack.c.l.b16 %v2542
    %v2547 = vunpack.c.l.b16 %v2543
    %v2548 = vunpack.c.l.b16 %v2544
    %v2549 = vunpack.c.l.b16 %v2545
    %v2550 = vrot.slane %v2548, 7
    %v2551 = vsel %vm1068, %v2550, %v2546
    %v2552 = vrot.slane %v2549, 7
    %v2553 = vsel %vm1068, %v2552, %v2547
    %v2554 = vpack.c.b16 %v2551, %v2551
    %v2555 = vpack.c.b16 %v2553, %v2553
    %v2577 = vunpack.c.l.b16 %v2516
    %v2578 = vunpack.c.h.b16 %v2516
    %v2579 = vunpack.c.l.b16 %v2517
    %v2580 = vunpack.c.h.b16 %v2517
    %v2581 = vunpack.c.l.b16 %v2518
    %v2582 = vunpack.c.h.b16 %v2518
    %v2583 = vunpack.c.l.b16 %v2519
    %v2584 = vunpack.c.h.b16 %v2519
    %v2585 = vunpack.c.l.b16 %v2520
    %v2586 = vunpack.c.h.b16 %v2520
    %v2587 = vunpack.c.l.b16 %v2521
    %v2588 = vunpack.c.h.b16 %v2521
    %v2589 = vunpack.c.l.b16 %v2522
    %v2590 = vunpack.c.h.b16 %v2522
    %v2591 = vunpack.c.l.b16 %v2523
    %v2592 = vunpack.c.h.b16 %v2523
    %v2593 = vunpack.c.l.b16 %v2524
    %v2594 = vunpack.c.h.b16 %v2524
    %v2595 = vunpack.c.l.b16 %v2525
    %v2596 = vunpack.c.h.b16 %v2525
    %v2597 = vunpack.c.l.b16 %v2526
    %v2598 = vunpack.c.h.b16 %v2526
    %v2599 = vunpack.c.l.b16 %v2527
    %v2600 = vunpack.c.h.b16 %v2527
    %v2601 = vunpack.c.l.b16 %v2528
    %v2602 = vunpack.c.h.b16 %v2528
    %v2603 = vunpack.c.l.b16 %v2529
    %v2604 = vunpack.c.h.b16 %v2529
    %v2605 = vunpack.c.l.b16 %v2530
    %v2606 = vunpack.c.h.b16 %v2530
    %v2607 = vunpack.c.l.b16 %v2531
    %v2608 = vunpack.c.h.b16 %v2531
    %v2609 = vunpack.c.l.b16 %v2532
    %v2610 = vunpack.c.h.b16 %v2532
    %v2611 = vunpack.c.l.b16 %v2533
    %v2612 = vunpack.c.h.b16 %v2533
    %v2613 = vunpack.c.l.b16 %v2534
    %v2614 = vunpack.c.h.b16 %v2534
    %v2615 = vunpack.c.l.b16 %v2535
    %v2616 = vunpack.c.h.b16 %v2535
    %v2617 = vpack.c.b16 %v2579, %v2577
    %v2618 = vpack.c.b16 %v2580, %v2578
    %v2619 = vpack.c.b16 %v2583, %v2581
    %v2620 = vpack.c.b16 %v2584, %v2582
    %v2621 = vpack.c.b16 %v2587, %v2585
    %v2622 = vpack.c.b16 %v2588, %v2586
    %v2623 = vpack.c.b16 %v2591, %v2589
    %v2624 = vpack.c.b16 %v2592, %v2590
    %v2625 = vpack.c.b16 %v2595, %v2593
    %v2626 = vpack.c.b16 %v2596, %v2594
    %v2627 = vpack.c.b16 %v2599, %v2597
    %v2628 = vpack.c.b16 %v2600, %v2598
    %v2629 = vpack.c.b16 %v2603, %v2601
    %v2630 = vpack.c.b16 %v2604, %v2602
    %v2631 = vpack.c.b16 %v2607, %v2605
    %v2632 = vpack.c.b16 %v2608, %v2606
    %v2633 = vpack.c.b16 %v2611, %v2609
    %v2634 = vpack.c.b16 %v2612, %v2610
    %v2635 = vpack.c.b16 %v2615, %v2613
    %v2636 = vpack.c.b16 %v2616, %v2614
    %v2658 = vsel %vm1175, %v2555, 0
    %2660 = vmatpush.bf16.msra.mxu0 %v2631
    %2661 = vmatpush.bf16.msra.mxu0 %v2629
    %2662 = vmatpush.bf16.msra.mxu0 %v2627
    %2663 = vmatpush.bf16.msra.mxu0 %v2625
    %2664 = vmatpush.bf16.msra.mxu0 %v2623
    %2665 = vmatpush.bf16.msra.mxu0 %v2621
    %2666 = vmatpush.bf16.msra.mxu0 %v2619
    %2667 = vmatpush.bf16.msra.mxu0 %v2617
    %2668 = vmatmul.bf16.gmra.mxu0 %v2554
    %v2669 = vpop.f32.mrf.mxu0
    %v2670 = vadd.f32 0.0, %v2669
    %v2671 = vpop.f32.mrf.mxu0
    %2672 = vdwg.mxu0
    %2673 = vmatpush.bf16.msra.mxu0 0
    %2674 = vmatpush.bf16.msra.mxu0 0
    %2675 = vmatpush.bf16.msra.mxu0 0
    %2676 = vmatpush.bf16.msra.mxu0 0
    %2677 = vmatpush.bf16.msra.mxu0 0
    %2678 = vmatpush.bf16.msra.mxu0 0
    %2679 = vmatpush.bf16.msra.mxu0 %v2635
    %2680 = vmatpush.bf16.msra.mxu0 %v2633
    %2681 = vmatmul.bf16.gmra.mxu0 %v2658
    %v2682 = vpop.f32.mrf.mxu0
    %v2683 = vadd.f32 %v2670, %v2682
    %v2684 = vpop.f32.mrf.mxu0
    %2685 = vdwg.mxu0
    %2686 = vmatpush.bf16.msra.mxu0 %v2632
    %2687 = vmatpush.bf16.msra.mxu0 %v2630
    %2688 = vmatpush.bf16.msra.mxu0 %v2628
    %2689 = vmatpush.bf16.msra.mxu0 %v2626
    %2690 = vmatpush.bf16.msra.mxu0 %v2624
    %2691 = vmatpush.bf16.msra.mxu0 %v2622
    %2692 = vmatpush.bf16.msra.mxu0 %v2620
    %2693 = vmatpush.bf16.msra.mxu0 %v2618
    %2694 = vmatmul.bf16.gmra.mxu0 %v2554
    %v2695 = vpop.f32.mrf.mxu0
    %v2696 = vadd.f32 0.0, %v2695
    %v2697 = vpop.f32.mrf.mxu0
    %2698 = vdwg.mxu0
    %2699 = vmatpush.bf16.msra.mxu0 0
    %2700 = vmatpush.bf16.msra.mxu0 0
    %2701 = vmatpush.bf16.msra.mxu0 0
    %2702 = vmatpush.bf16.msra.mxu0 0
    %2703 = vmatpush.bf16.msra.mxu0 0
    %2704 = vmatpush.bf16.msra.mxu0 0
    %2705 = vmatpush.bf16.msra.mxu0 %v2636
    %2706 = vmatpush.bf16.msra.mxu0 %v2634
    %2707 = vmatmul.bf16.gmra.mxu0 %v2658
    %v2708 = vpop.f32.mrf.mxu0
    %v2709 = vadd.f32 %v2696, %v2708
    %v2710 = vpop.f32.mrf.mxu0
    %2711 = vdwg.mxu0
    %v2712 = vadd.f32 %v2513, %v2683
    %v2713 = vadd.f32 %v2514, %v2709
    %s2714 = scalar_lea.vmem %s3, 1440
    %v2715 = vld [vmem:[%s2714] sm:$0xff]
    %v2716 = vld [vmem:[%s2714 + $0x8] sm:$0xff]
    %v2717 = vld [vmem:[%s2714 + $0x10] sm:$0xff]
    %v2718 = vld [vmem:[%s2714 + $0x18] sm:$0xff]
    %v2719 = vld [vmem:[%s2714 + $0x20] sm:$0xff]
    %v2720 = vld [vmem:[%s2714 + $0x28] sm:$0xff]
    %v2721 = vld [vmem:[%s2714 + $0x30] sm:$0xff]
    %v2722 = vld [vmem:[%s2714 + $0x38] sm:$0xff]
    %v2723 = vld [vmem:[%s2714 + $0x40] sm:$0xff]
    %v2724 = vld [vmem:[%s2714 + $0x48] sm:$0xff]
    %v2725 = vld [vmem:[%s2714 + $0x50] sm:$0xff]
    %v2726 = vld [vmem:[%s2714 + $0x58] sm:$0xff]
    %v2727 = vld [vmem:[%s2714 + $0x60] sm:$0xff]
    %v2728 = vld [vmem:[%s2714 + $0x68] sm:$0xff]
    %v2729 = vld [vmem:[%s2714 + $0x70] sm:$0xff]
    %v2730 = vld [vmem:[%s2714 + $0x78] sm:$0xff]
    %v2731 = vld [vmem:[%s2714 + $0x80] sm:$0xff]
    %v2732 = vld [vmem:[%s2714 + $0x88] sm:$0xff]
    %v2733 = vld [vmem:[%s2714 + $0x90] sm:$0xff]
    %v2734 = vld [vmem:[%s2714 + $0x98] sm:$0xff]
    %v2735 = vrot.slane %v2546, 1
    %v2736 = vsel %vm1068, %v2548, %v2735
    %v2737 = vrot.slane %v2547, 1
    %v2738 = vsel %vm1068, %v2549, %v2737
    %v2739 = vpack.c.b16 %v2736, %v2736
    %v2740 = vpack.c.b16 %v2738, %v2738
    %v2762 = vunpack.c.l.b16 %v2715
    %v2763 = vunpack.c.h.b16 %v2715
    %v2764 = vunpack.c.l.b16 %v2716
    %v2765 = vunpack.c.h.b16 %v2716
    %v2766 = vunpack.c.l.b16 %v2717
    %v2767 = vunpack.c.h.b16 %v2717
    %v2768 = vunpack.c.l.b16 %v2718
    %v2769 = vunpack.c.h.b16 %v2718
    %v2770 = vunpack.c.l.b16 %v2719
    %v2771 = vunpack.c.h.b16 %v2719
    %v2772 = vunpack.c.l.b16 %v2720
    %v2773 = vunpack.c.h.b16 %v2720
    %v2774 = vunpack.c.l.b16 %v2721
    %v2775 = vunpack.c.h.b16 %v2721
    %v2776 = vunpack.c.l.b16 %v2722
    %v2777 = vunpack.c.h.b16 %v2722
    %v2778 = vunpack.c.l.b16 %v2723
    %v2779 = vunpack.c.h.b16 %v2723
    %v2780 = vunpack.c.l.b16 %v2724
    %v2781 = vunpack.c.h.b16 %v2724
    %v2782 = vunpack.c.l.b16 %v2725
    %v2783 = vunpack.c.h.b16 %v2725
    %v2784 = vunpack.c.l.b16 %v2726
    %v2785 = vunpack.c.h.b16 %v2726
    %v2786 = vunpack.c.l.b16 %v2727
    %v2787 = vunpack.c.h.b16 %v2727
    %v2788 = vunpack.c.l.b16 %v2728
    %v2789 = vunpack.c.h.b16 %v2728
    %v2790 = vunpack.c.l.b16 %v2729
    %v2791 = vunpack.c.h.b16 %v2729
    %v2792 = vunpack.c.l.b16 %v2730
    %v2793 = vunpack.c.h.b16 %v2730
    %v2794 = vunpack.c.l.b16 %v2731
    %v2795 = vunpack.c.h.b16 %v2731
    %v2796 = vunpack.c.l.b16 %v2732
    %v2797 = vunpack.c.h.b16 %v2732
    %v2798 = vunpack.c.l.b16 %v2733
    %v2799 = vunpack.c.h.b16 %v2733
    %v2800 = vunpack.c.l.b16 %v2734
    %v2801 = vunpack.c.h.b16 %v2734
    %v2802 = vpack.c.b16 %v2764, %v2762
    %v2803 = vpack.c.b16 %v2765, %v2763
    %v2804 = vpack.c.b16 %v2768, %v2766
    %v2805 = vpack.c.b16 %v2769, %v2767
    %v2806 = vpack.c.b16 %v2772, %v2770
    %v2807 = vpack.c.b16 %v2773, %v2771
    %v2808 = vpack.c.b16 %v2776, %v2774
    %v2809 = vpack.c.b16 %v2777, %v2775
    %v2810 = vpack.c.b16 %v2780, %v2778
    %v2811 = vpack.c.b16 %v2781, %v2779
    %v2812 = vpack.c.b16 %v2784, %v2782
    %v2813 = vpack.c.b16 %v2785, %v2783
    %v2814 = vpack.c.b16 %v2788, %v2786
    %v2815 = vpack.c.b16 %v2789, %v2787
    %v2816 = vpack.c.b16 %v2792, %v2790
    %v2817 = vpack.c.b16 %v2793, %v2791
    %v2818 = vpack.c.b16 %v2796, %v2794
    %v2819 = vpack.c.b16 %v2797, %v2795
    %v2820 = vpack.c.b16 %v2800, %v2798
    %v2821 = vpack.c.b16 %v2801, %v2799
    %v2843 = vsel %vm1175, %v2740, 0
    %2845 = vmatpush.bf16.msra.mxu0 %v2816
    %2846 = vmatpush.bf16.msra.mxu0 %v2814
    %2847 = vmatpush.bf16.msra.mxu0 %v2812
    %2848 = vmatpush.bf16.msra.mxu0 %v2810
    %2849 = vmatpush.bf16.msra.mxu0 %v2808
    %2850 = vmatpush.bf16.msra.mxu0 %v2806
    %2851 = vmatpush.bf16.msra.mxu0 %v2804
    %2852 = vmatpush.bf16.msra.mxu0 %v2802
    %2853 = vmatmul.bf16.gmra.mxu0 %v2739
    %v2854 = vpop.f32.mrf.mxu0
    %v2855 = vadd.f32 0.0, %v2854
    %v2856 = vpop.f32.mrf.mxu0
    %2857 = vdwg.mxu0
    %2858 = vmatpush.bf16.msra.mxu0 0
    %2859 = vmatpush.bf16.msra.mxu0 0
    %2860 = vmatpush.bf16.msra.mxu0 0
    %2861 = vmatpush.bf16.msra.mxu0 0
    %2862 = vmatpush.bf16.msra.mxu0 0
    %2863 = vmatpush.bf16.msra.mxu0 0
    %2864 = vmatpush.bf16.msra.mxu0 %v2820
    %2865 = vmatpush.bf16.msra.mxu0 %v2818
    %2866 = vmatmul.bf16.gmra.mxu0 %v2843
    %v2867 = vpop.f32.mrf.mxu0
    %v2868 = vadd.f32 %v2855, %v2867
    %v2869 = vpop.f32.mrf.mxu0
    %2870 = vdwg.mxu0
    %2871 = vmatpush.bf16.msra.mxu0 %v2817
    %2872 = vmatpush.bf16.msra.mxu0 %v2815
    %2873 = vmatpush.bf16.msra.mxu0 %v2813
    %2874 = vmatpush.bf16.msra.mxu0 %v2811
    %2875 = vmatpush.bf16.msra.mxu0 %v2809
    %2876 = vmatpush.bf16.msra.mxu0 %v2807
    %2877 = vmatpush.bf16.msra.mxu0 %v2805
    %2878 = vmatpush.bf16.msra.mxu0 %v2803
    %2879 = vmatmul.bf16.gmra.mxu0 %v2739
    %v2880 = vpop.f32.mrf.mxu0
    %v2881 = vadd.f32 0.0, %v2880
    %v2882 = vpop.f32.mrf.mxu0
    %2883 = vdwg.mxu0
    %2884 = vmatpush.bf16.msra.mxu0 0
    %2885 = vmatpush.bf16.msra.mxu0 0
    %2886 = vmatpush.bf16.msra.mxu0 0
    %2887 = vmatpush.bf16.msra.mxu0 0
    %2888 = vmatpush.bf16.msra.mxu0 0
    %2889 = vmatpush.bf16.msra.mxu0 0
    %2890 = vmatpush.bf16.msra.mxu0 %v2821
    %2891 = vmatpush.bf16.msra.mxu0 %v2819
    %2892 = vmatmul.bf16.gmra.mxu0 %v2843
    %v2893 = vpop.f32.mrf.mxu0
    %v2894 = vadd.f32 %v2881, %v2893
    %v2895 = vpop.f32.mrf.mxu0
    %2896 = vdwg.mxu0
    %v2897 = vadd.f32 %v2712, %v2868
    %v2898 = vadd.f32 %v2713, %v2894
    %s2899 = scalar_lea.vmem %s3, 1600
    %v2900 = vld [vmem:[%s2899] sm:$0xff]
    %v2901 = vld [vmem:[%s2899 + $0x8] sm:$0xff]
    %v2902 = vld [vmem:[%s2899 + $0x10] sm:$0xff]
    %v2903 = vld [vmem:[%s2899 + $0x18] sm:$0xff]
    %v2904 = vld [vmem:[%s2899 + $0x20] sm:$0xff]
    %v2905 = vld [vmem:[%s2899 + $0x28] sm:$0xff]
    %v2906 = vld [vmem:[%s2899 + $0x30] sm:$0xff]
    %v2907 = vld [vmem:[%s2899 + $0x38] sm:$0xff]
    %v2908 = vld [vmem:[%s2899 + $0x40] sm:$0xff]
    %v2909 = vld [vmem:[%s2899 + $0x48] sm:$0xff]
    %v2910 = vld [vmem:[%s2899 + $0x50] sm:$0xff]
    %v2911 = vld [vmem:[%s2899 + $0x58] sm:$0xff]
    %v2912 = vld [vmem:[%s2899 + $0x60] sm:$0xff]
    %v2913 = vld [vmem:[%s2899 + $0x68] sm:$0xff]
    %v2914 = vld [vmem:[%s2899 + $0x70] sm:$0xff]
    %v2915 = vld [vmem:[%s2899 + $0x78] sm:$0xff]
    %v2916 = vld [vmem:[%s2899 + $0x80] sm:$0xff]
    %v2917 = vld [vmem:[%s2899 + $0x88] sm:$0xff]
    %v2918 = vld [vmem:[%s2899 + $0x90] sm:$0xff]
    %v2919 = vld [vmem:[%s2899 + $0x98] sm:$0xff]
    %v2920 = vrot.slane %v2546, 2
    %v2921 = vrot.slane %v2548, 1
    %v2922 = vsel %vm1068, %v2921, %v2920
    %v2923 = vrot.slane %v2547, 2
    %v2924 = vrot.slane %v2549, 1
    %v2925 = vsel %vm1068, %v2924, %v2923
    %v2926 = vpack.c.b16 %v2922, %v2922
    %v2927 = vpack.c.b16 %v2925, %v2925
    %v2949 = vunpack.c.l.b16 %v2900
    %v2950 = vunpack.c.h.b16 %v2900
    %v2951 = vunpack.c.l.b16 %v2901
    %v2952 = vunpack.c.h.b16 %v2901
    %v2953 = vunpack.c.l.b16 %v2902
    %v2954 = vunpack.c.h.b16 %v2902
    %v2955 = vunpack.c.l.b16 %v2903
    %v2956 = vunpack.c.h.b16 %v2903
    %v2957 = vunpack.c.l.b16 %v2904
    %v2958 = vunpack.c.h.b16 %v2904
    %v2959 = vunpack.c.l.b16 %v2905
    %v2960 = vunpack.c.h.b16 %v2905
    %v2961 = vunpack.c.l.b16 %v2906
    %v2962 = vunpack.c.h.b16 %v2906
    %v2963 = vunpack.c.l.b16 %v2907
    %v2964 = vunpack.c.h.b16 %v2907
    %v2965 = vunpack.c.l.b16 %v2908
    %v2966 = vunpack.c.h.b16 %v2908
    %v2967 = vunpack.c.l.b16 %v2909
    %v2968 = vunpack.c.h.b16 %v2909
    %v2969 = vunpack.c.l.b16 %v2910
    %v2970 = vunpack.c.h.b16 %v2910
    %v2971 = vunpack.c.l.b16 %v2911
    %v2972 = vunpack.c.h.b16 %v2911
    %v2973 = vunpack.c.l.b16 %v2912
    %v2974 = vunpack.c.h.b16 %v2912
    %v2975 = vunpack.c.l.b16 %v2913
    %v2976 = vunpack.c.h.b16 %v2913
    %v2977 = vunpack.c.l.b16 %v2914
    %v2978 = vunpack.c.h.b16 %v2914
    %v2979 = vunpack.c.l.b16 %v2915
    %v2980 = vunpack.c.h.b16 %v2915
    %v2981 = vunpack.c.l.b16 %v2916
    %v2982 = vunpack.c.h.b16 %v2916
    %v2983 = vunpack.c.l.b16 %v2917
    %v2984 = vunpack.c.h.b16 %v2917
    %v2985 = vunpack.c.l.b16 %v2918
    %v2986 = vunpack.c.h.b16 %v2918
    %v2987 = vunpack.c.l.b16 %v2919
    %v2988 = vunpack.c.h.b16 %v2919
    %v2989 = vpack.c.b16 %v2951, %v2949
    %v2990 = vpack.c.b16 %v2952, %v2950
    %v2991 = vpack.c.b16 %v2955, %v2953
    %v2992 = vpack.c.b16 %v2956, %v2954
    %v2993 = vpack.c.b16 %v2959, %v2957
    %v2994 = vpack.c.b16 %v2960, %v2958
    %v2995 = vpack.c.b16 %v2963, %v2961
    %v2996 = vpack.c.b16 %v2964, %v2962
    %v2997 = vpack.c.b16 %v2967, %v2965
    %v2998 = vpack.c.b16 %v2968, %v2966
    %v2999 = vpack.c.b16 %v2971, %v2969
    %v3000 = vpack.c.b16 %v2972, %v2970
    %v3001 = vpack.c.b16 %v2975, %v2973
    %v3002 = vpack.c.b16 %v2976, %v2974
    %v3003 = vpack.c.b16 %v2979, %v2977
    %v3004 = vpack.c.b16 %v2980, %v2978
    %v3005 = vpack.c.b16 %v2983, %v2981
    %v3006 = vpack.c.b16 %v2984, %v2982
    %v3007 = vpack.c.b16 %v2987, %v2985
    %v3008 = vpack.c.b16 %v2988, %v2986
    %v3030 = vsel %vm1175, %v2927, 0
    %3032 = vmatpush.bf16.msra.mxu0 %v3003
    %3033 = vmatpush.bf16.msra.mxu0 %v3001
    %3034 = vmatpush.bf16.msra.mxu0 %v2999
    %3035 = vmatpush.bf16.msra.mxu0 %v2997
    %3036 = vmatpush.bf16.msra.mxu0 %v2995
    %3037 = vmatpush.bf16.msra.mxu0 %v2993
    %3038 = vmatpush.bf16.msra.mxu0 %v2991
    %3039 = vmatpush.bf16.msra.mxu0 %v2989
    %3040 = vmatmul.bf16.gmra.mxu0 %v2926
    %v3041 = vpop.f32.mrf.mxu0
    %v3042 = vadd.f32 0.0, %v3041
    %v3043 = vpop.f32.mrf.mxu0
    %3044 = vdwg.mxu0
    %3045 = vmatpush.bf16.msra.mxu0 0
    %3046 = vmatpush.bf16.msra.mxu0 0
    %3047 = vmatpush.bf16.msra.mxu0 0
    %3048 = vmatpush.bf16.msra.mxu0 0
    %3049 = vmatpush.bf16.msra.mxu0 0
    %3050 = vmatpush.bf16.msra.mxu0 0
    %3051 = vmatpush.bf16.msra.mxu0 %v3007
    %3052 = vmatpush.bf16.msra.mxu0 %v3005
    %3053 = vmatmul.bf16.gmra.mxu0 %v3030
    %v3054 = vpop.f32.mrf.mxu0
    %v3055 = vadd.f32 %v3042, %v3054
    %v3056 = vpop.f32.mrf.mxu0
    %3057 = vdwg.mxu0
    %3058 = vmatpush.bf16.msra.mxu0 %v3004
    %3059 = vmatpush.bf16.msra.mxu0 %v3002
    %3060 = vmatpush.bf16.msra.mxu0 %v3000
    %3061 = vmatpush.bf16.msra.mxu0 %v2998
    %3062 = vmatpush.bf16.msra.mxu0 %v2996
    %3063 = vmatpush.bf16.msra.mxu0 %v2994
    %3064 = vmatpush.bf16.msra.mxu0 %v2992
    %3065 = vmatpush.bf16.msra.mxu0 %v2990
    %3066 = vmatmul.bf16.gmra.mxu0 %v2926
    %v3067 = vpop.f32.mrf.mxu0
    %v3068 = vadd.f32 0.0, %v3067
    %v3069 = vpop.f32.mrf.mxu0
    %3070 = vdwg.mxu0
    %3071 = vmatpush.bf16.msra.mxu0 0
    %3072 = vmatpush.bf16.msra.mxu0 0
    %3073 = vmatpush.bf16.msra.mxu0 0
    %3074 = vmatpush.bf16.msra.mxu0 0
    %3075 = vmatpush.bf16.msra.mxu0 0
    %3076 = vmatpush.bf16.msra.mxu0 0
    %3077 = vmatpush.bf16.msra.mxu0 %v3008
    %3078 = vmatpush.bf16.msra.mxu0 %v3006
    %3079 = vmatmul.bf16.gmra.mxu0 %v3030
    %v3080 = vpop.f32.mrf.mxu0
    %v3081 = vadd.f32 %v3068, %v3080
    %v3082 = vpop.f32.mrf.mxu0
    %3083 = vdwg.mxu0
    %v3084 = vadd.f32 %v2897, %v3055
    %v3085 = vadd.f32 %v2898, %v3081
    %s3086 = scalar_lea.vmem %s3, 1760
    %v3087 = vld [vmem:[%s3086] sm:$0xff]
    %v3088 = vld [vmem:[%s3086 + $0x8] sm:$0xff]
    %v3089 = vld [vmem:[%s3086 + $0x10] sm:$0xff]
    %v3090 = vld [vmem:[%s3086 + $0x18] sm:$0xff]
    %v3091 = vld [vmem:[%s3086 + $0x20] sm:$0xff]
    %v3092 = vld [vmem:[%s3086 + $0x28] sm:$0xff]
    %v3093 = vld [vmem:[%s3086 + $0x30] sm:$0xff]
    %v3094 = vld [vmem:[%s3086 + $0x38] sm:$0xff]
    %v3095 = vld [vmem:[%s3086 + $0x40] sm:$0xff]
    %v3096 = vld [vmem:[%s3086 + $0x48] sm:$0xff]
    %v3097 = vld [vmem:[%s3086 + $0x50] sm:$0xff]
    %v3098 = vld [vmem:[%s3086 + $0x58] sm:$0xff]
    %v3099 = vld [vmem:[%s3086 + $0x60] sm:$0xff]
    %v3100 = vld [vmem:[%s3086 + $0x68] sm:$0xff]
    %v3101 = vld [vmem:[%s3086 + $0x70] sm:$0xff]
    %v3102 = vld [vmem:[%s3086 + $0x78] sm:$0xff]
    %v3103 = vld [vmem:[%s3086 + $0x80] sm:$0xff]
    %v3104 = vld [vmem:[%s3086 + $0x88] sm:$0xff]
    %v3105 = vld [vmem:[%s3086 + $0x90] sm:$0xff]
    %v3106 = vld [vmem:[%s3086 + $0x98] sm:$0xff]
    %v3107 = vrot.slane %v2546, 3
    %v3108 = vrot.slane %v2548, 2
    %v3109 = vsel %vm1068, %v3108, %v3107
    %v3110 = vrot.slane %v2547, 3
    %v3111 = vrot.slane %v2549, 2
    %v3112 = vsel %vm1068, %v3111, %v3110
    %v3113 = vpack.c.b16 %v3109, %v3109
    %v3114 = vpack.c.b16 %v3112, %v3112
    %v3136 = vunpack.c.l.b16 %v3087
    %v3137 = vunpack.c.h.b16 %v3087
    %v3138 = vunpack.c.l.b16 %v3088
    %v3139 = vunpack.c.h.b16 %v3088
    %v3140 = vunpack.c.l.b16 %v3089
    %v3141 = vunpack.c.h.b16 %v3089
    %v3142 = vunpack.c.l.b16 %v3090
    %v3143 = vunpack.c.h.b16 %v3090
    %v3144 = vunpack.c.l.b16 %v3091
    %v3145 = vunpack.c.h.b16 %v3091
    %v3146 = vunpack.c.l.b16 %v3092
    %v3147 = vunpack.c.h.b16 %v3092
    %v3148 = vunpack.c.l.b16 %v3093
    %v3149 = vunpack.c.h.b16 %v3093
    %v3150 = vunpack.c.l.b16 %v3094
    %v3151 = vunpack.c.h.b16 %v3094
    %v3152 = vunpack.c.l.b16 %v3095
    %v3153 = vunpack.c.h.b16 %v3095
    %v3154 = vunpack.c.l.b16 %v3096
    %v3155 = vunpack.c.h.b16 %v3096
    %v3156 = vunpack.c.l.b16 %v3097
    %v3157 = vunpack.c.h.b16 %v3097
    %v3158 = vunpack.c.l.b16 %v3098
    %v3159 = vunpack.c.h.b16 %v3098
    %v3160 = vunpack.c.l.b16 %v3099
    %v3161 = vunpack.c.h.b16 %v3099
    %v3162 = vunpack.c.l.b16 %v3100
    %v3163 = vunpack.c.h.b16 %v3100
    %v3164 = vunpack.c.l.b16 %v3101
    %v3165 = vunpack.c.h.b16 %v3101
    %v3166 = vunpack.c.l.b16 %v3102
    %v3167 = vunpack.c.h.b16 %v3102
    %v3168 = vunpack.c.l.b16 %v3103
    %v3169 = vunpack.c.h.b16 %v3103
    %v3170 = vunpack.c.l.b16 %v3104
    %v3171 = vunpack.c.h.b16 %v3104
    %v3172 = vunpack.c.l.b16 %v3105
    %v3173 = vunpack.c.h.b16 %v3105
    %v3174 = vunpack.c.l.b16 %v3106
    %v3175 = vunpack.c.h.b16 %v3106
    %v3176 = vpack.c.b16 %v3138, %v3136
    %v3177 = vpack.c.b16 %v3139, %v3137
    %v3178 = vpack.c.b16 %v3142, %v3140
    %v3179 = vpack.c.b16 %v3143, %v3141
    %v3180 = vpack.c.b16 %v3146, %v3144
    %v3181 = vpack.c.b16 %v3147, %v3145
    %v3182 = vpack.c.b16 %v3150, %v3148
    %v3183 = vpack.c.b16 %v3151, %v3149
    %v3184 = vpack.c.b16 %v3154, %v3152
    %v3185 = vpack.c.b16 %v3155, %v3153
    %v3186 = vpack.c.b16 %v3158, %v3156
    %v3187 = vpack.c.b16 %v3159, %v3157
    %v3188 = vpack.c.b16 %v3162, %v3160
    %v3189 = vpack.c.b16 %v3163, %v3161
    %v3190 = vpack.c.b16 %v3166, %v3164
    %v3191 = vpack.c.b16 %v3167, %v3165
    %v3192 = vpack.c.b16 %v3170, %v3168
    %v3193 = vpack.c.b16 %v3171, %v3169
    %v3194 = vpack.c.b16 %v3174, %v3172
    %v3195 = vpack.c.b16 %v3175, %v3173
    %v3217 = vsel %vm1175, %v3114, 0
    %3219 = vmatpush.bf16.msra.mxu0 %v3190
    %3220 = vmatpush.bf16.msra.mxu0 %v3188
    %3221 = vmatpush.bf16.msra.mxu0 %v3186
    %3222 = vmatpush.bf16.msra.mxu0 %v3184
    %3223 = vmatpush.bf16.msra.mxu0 %v3182
    %3224 = vmatpush.bf16.msra.mxu0 %v3180
    %3225 = vmatpush.bf16.msra.mxu0 %v3178
    %3226 = vmatpush.bf16.msra.mxu0 %v3176
    %3227 = vmatmul.bf16.gmra.mxu0 %v3113
    %v3228 = vpop.f32.mrf.mxu0
    %v3229 = vadd.f32 0.0, %v3228
    %v3230 = vpop.f32.mrf.mxu0
    %3231 = vdwg.mxu0
    %3232 = vmatpush.bf16.msra.mxu0 0
    %3233 = vmatpush.bf16.msra.mxu0 0
    %3234 = vmatpush.bf16.msra.mxu0 0
    %3235 = vmatpush.bf16.msra.mxu0 0
    %3236 = vmatpush.bf16.msra.mxu0 0
    %3237 = vmatpush.bf16.msra.mxu0 0
    %3238 = vmatpush.bf16.msra.mxu0 %v3194
    %3239 = vmatpush.bf16.msra.mxu0 %v3192
    %3240 = vmatmul.bf16.gmra.mxu0 %v3217
    %v3241 = vpop.f32.mrf.mxu0
    %v3242 = vadd.f32 %v3229, %v3241
    %v3243 = vpop.f32.mrf.mxu0
    %3244 = vdwg.mxu0
    %3245 = vmatpush.bf16.msra.mxu0 %v3191
    %3246 = vmatpush.bf16.msra.mxu0 %v3189
    %3247 = vmatpush.bf16.msra.mxu0 %v3187
    %3248 = vmatpush.bf16.msra.mxu0 %v3185
    %3249 = vmatpush.bf16.msra.mxu0 %v3183
    %3250 = vmatpush.bf16.msra.mxu0 %v3181
    %3251 = vmatpush.bf16.msra.mxu0 %v3179
    %3252 = vmatpush.bf16.msra.mxu0 %v3177
    %3253 = vmatmul.bf16.gmra.mxu0 %v3113
    %v3254 = vpop.f32.mrf.mxu0
    %v3255 = vadd.f32 0.0, %v3254
    %v3256 = vpop.f32.mrf.mxu0
    %3257 = vdwg.mxu0
    %3258 = vmatpush.bf16.msra.mxu0 0
    %3259 = vmatpush.bf16.msra.mxu0 0
    %3260 = vmatpush.bf16.msra.mxu0 0
    %3261 = vmatpush.bf16.msra.mxu0 0
    %3262 = vmatpush.bf16.msra.mxu0 0
    %3263 = vmatpush.bf16.msra.mxu0 0
    %3264 = vmatpush.bf16.msra.mxu0 %v3195
    %3265 = vmatpush.bf16.msra.mxu0 %v3193
    %3266 = vmatmul.bf16.gmra.mxu0 %v3217
    %v3267 = vpop.f32.mrf.mxu0
    %v3268 = vadd.f32 %v3255, %v3267
    %v3269 = vpop.f32.mrf.mxu0
    %3270 = vdwg.mxu0
    %v3271 = vadd.f32 %v3084, %v3242
    %v3272 = vadd.f32 %v3085, %v3268
    %v3273 = vld [vmem:[%s4] sm:$0x3]
    %v3275 = vperm.slane %v3273, 0
    %v3276 = vperm.slane %v3273, 1
    %v3279 = vadd.f32 %v3271, %v3275
    %v3280 = vadd.f32 %v3272, %v3276
    %v3281 = vmax.f32 %v3279, 0.0
    %v3282 = vmax.f32 %v3280, 0.0
    %v3283 = vpack.c.bf16 %v3281, %v3281
    %v3284 = vpack.c.bf16 %v3282, %v3282
    %v3285 = vld [vmem:[%s5] sm:$0xf]
    %v3286 = vld [vmem:[%s5 + $0x4] sm:$0xf]
    %v3287 = vld [vmem:[%s5 + $0x8] sm:$0xf]
    %v3288 = vld [vmem:[%s5 + $0xc] sm:$0xf]
    %v3289 = vld [vmem:[%s5 + $0x10] sm:$0xf]
    %v3290 = vld [vmem:[%s5 + $0x14] sm:$0xf]
    %v3291 = vld [vmem:[%s5 + $0x18] sm:$0xf]
    %v3292 = vld [vmem:[%s5 + $0x1c] sm:$0xf]
    %v3293 = vld [vmem:[%s5 + $0x20] sm:$0xf]
    %v3294 = vld [vmem:[%s5 + $0x24] sm:$0xf]
    %v3295 = vld [vmem:[%s5 + $0x28] sm:$0xf]
    %v3296 = vld [vmem:[%s5 + $0x2c] sm:$0xf]
    %v3297 = vld [vmem:[%s5 + $0x30] sm:$0xf]
    %v3298 = vld [vmem:[%s5 + $0x34] sm:$0xf]
    %v3299 = vld [vmem:[%s5 + $0x38] sm:$0xf]
    %v3300 = vld [vmem:[%s5 + $0x3c] sm:$0xf]
    %v3301 = vld [vmem:[%s5 + $0x40] sm:$0xf]
    %v3302 = vld [vmem:[%s5 + $0x44] sm:$0xf]
    %v3303 = vld [vmem:[%s5 + $0x48] sm:$0xf]
    %v3304 = vld [vmem:[%s5 + $0x4c] sm:$0xf]
    %v3305 = vld [vmem:[%s5 + $0x50] sm:$0xf]
    %v3306 = vld [vmem:[%s5 + $0x54] sm:$0xf]
    %v3307 = vld [vmem:[%s5 + $0x58] sm:$0xf]
    %v3308 = vld [vmem:[%s5 + $0x5c] sm:$0xf]
    %v3309 = vld [vmem:[%s5 + $0x60] sm:$0xf]
    %v3310 = vld [vmem:[%s5 + $0x64] sm:$0xf]
    %v3311 = vld [vmem:[%s5 + $0x68] sm:$0xf]
    %v3312 = vld [vmem:[%s5 + $0x6c] sm:$0xf]
    %v3313 = vld [vmem:[%s5 + $0x70] sm:$0xf]
    %v3314 = vld [vmem:[%s5 + $0x74] sm:$0xf]
    %v3315 = vld [vmem:[%s5 + $0x78] sm:$0xf]
    %v3316 = vld [vmem:[%s5 + $0x7c] sm:$0xf]
    %v3317 = vld [vmem:[%s6] sm:$0x1]
    %v3319 = vperm.slane %v3317, 0
    %v3353 = vunpack.c.l.b16 %v3285
    %v3354 = vunpack.c.l.b16 %v3286
    %v3355 = vunpack.c.l.b16 %v3287
    %v3356 = vunpack.c.l.b16 %v3288
    %v3357 = vunpack.c.l.b16 %v3289
    %v3358 = vunpack.c.l.b16 %v3290
    %v3359 = vunpack.c.l.b16 %v3291
    %v3360 = vunpack.c.l.b16 %v3292
    %v3361 = vunpack.c.l.b16 %v3293
    %v3362 = vunpack.c.l.b16 %v3294
    %v3363 = vunpack.c.l.b16 %v3295
    %v3364 = vunpack.c.l.b16 %v3296
    %v3365 = vunpack.c.l.b16 %v3297
    %v3366 = vunpack.c.l.b16 %v3298
    %v3367 = vunpack.c.l.b16 %v3299
    %v3368 = vunpack.c.l.b16 %v3300
    %v3369 = vunpack.c.l.b16 %v3301
    %v3370 = vunpack.c.l.b16 %v3302
    %v3371 = vunpack.c.l.b16 %v3303
    %v3372 = vunpack.c.l.b16 %v3304
    %v3373 = vunpack.c.l.b16 %v3305
    %v3374 = vunpack.c.l.b16 %v3306
    %v3375 = vunpack.c.l.b16 %v3307
    %v3376 = vunpack.c.l.b16 %v3308
    %v3377 = vunpack.c.l.b16 %v3309
    %v3378 = vunpack.c.l.b16 %v3310
    %v3379 = vunpack.c.l.b16 %v3311
    %v3380 = vunpack.c.l.b16 %v3312
    %v3381 = vunpack.c.l.b16 %v3313
    %v3382 = vunpack.c.l.b16 %v3314
    %v3383 = vunpack.c.l.b16 %v3315
    %v3384 = vunpack.c.l.b16 %v3316
    %v3385 = vpack.c.b16 %v3354, %v3353
    %v3386 = vpack.c.b16 %v3356, %v3355
    %v3387 = vpack.c.b16 %v3358, %v3357
    %v3388 = vpack.c.b16 %v3360, %v3359
    %v3389 = vpack.c.b16 %v3362, %v3361
    %v3390 = vpack.c.b16 %v3364, %v3363
    %v3391 = vpack.c.b16 %v3366, %v3365
    %v3392 = vpack.c.b16 %v3368, %v3367
    %v3393 = vpack.c.b16 %v3370, %v3369
    %v3394 = vpack.c.b16 %v3372, %v3371
    %v3395 = vpack.c.b16 %v3374, %v3373
    %v3396 = vpack.c.b16 %v3376, %v3375
    %v3397 = vpack.c.b16 %v3378, %v3377
    %v3398 = vpack.c.b16 %v3380, %v3379
    %v3399 = vpack.c.b16 %v3382, %v3381
    %v3400 = vpack.c.b16 %v3384, %v3383
    %3417 = vmatpush.bf16.msra.mxu0 %v3392
    %3418 = vmatpush.bf16.msra.mxu0 %v3391
    %3419 = vmatpush.bf16.msra.mxu0 %v3390
    %3420 = vmatpush.bf16.msra.mxu0 %v3389
    %3421 = vmatpush.bf16.msra.mxu0 %v3388
    %3422 = vmatpush.bf16.msra.mxu0 %v3387
    %3423 = vmatpush.bf16.msra.mxu0 %v3386
    %3424 = vmatpush.bf16.msra.mxu0 %v3385
    %3425 = vmatmul.bf16.gmra.mxu0 %v3283
    %v3426 = vpop.f32.mrf.mxu0
    %v3427 = vadd.f32 %v3319, %v3426
    %v3428 = vpop.f32.mrf.mxu0
    %3429 = vdwg.mxu0
    %3430 = vmatpush.bf16.msra.mxu0 %v3400
    %3431 = vmatpush.bf16.msra.mxu0 %v3399
    %3432 = vmatpush.bf16.msra.mxu0 %v3398
    %3433 = vmatpush.bf16.msra.mxu0 %v3397
    %3434 = vmatpush.bf16.msra.mxu0 %v3396
    %3435 = vmatpush.bf16.msra.mxu0 %v3395
    %3436 = vmatpush.bf16.msra.mxu0 %v3394
    %3437 = vmatpush.bf16.msra.mxu0 %v3393
    %3438 = vmatmul.bf16.gmra.mxu0 %v3284
    %v3439 = vpop.f32.mrf.mxu0
    %v3440 = vadd.f32 %v3427, %v3439
    %v3441 = vpop.f32.mrf.mxu0
    %3442 = vdwg.mxu0
    %v3443 = vmax.f32 %v3440, 0.0
    %v3444 = vpack.c.bf16 %v3443, %v3443
    %v3445 = vld [vmem:[%s7] sm:$0xf]
    %v3446 = vld [vmem:[%s7 + $0x4] sm:$0xf]
    %v3447 = vld [vmem:[%s7 + $0x8] sm:$0xf]
    %v3448 = vld [vmem:[%s7 + $0xc] sm:$0xf]
    %v3449 = vld [vmem:[%s7 + $0x10] sm:$0xf]
    %v3450 = vld [vmem:[%s7 + $0x14] sm:$0xf]
    %v3451 = vld [vmem:[%s7 + $0x18] sm:$0xf]
    %v3452 = vld [vmem:[%s7 + $0x1c] sm:$0xf]
    %v3453 = vld [vmem:[%s7 + $0x20] sm:$0xf]
    %v3454 = vld [vmem:[%s7 + $0x24] sm:$0xf]
    %v3455 = vld [vmem:[%s7 + $0x28] sm:$0xf]
    %v3456 = vld [vmem:[%s7 + $0x2c] sm:$0xf]
    %v3457 = vld [vmem:[%s7 + $0x30] sm:$0xf]
    %v3458 = vld [vmem:[%s7 + $0x34] sm:$0xf]
    %v3459 = vld [vmem:[%s7 + $0x38] sm:$0xf]
    %v3460 = vld [vmem:[%s7 + $0x3c] sm:$0xf]
    %v3461 = vld [vmem:[%s8] sm:$0x1]
    %v3463 = vperm.slane %v3461, 0
    %v3481 = vunpack.c.l.b16 %v3445
    %v3482 = vunpack.c.l.b16 %v3446
    %v3483 = vunpack.c.l.b16 %v3447
    %v3484 = vunpack.c.l.b16 %v3448
    %v3485 = vunpack.c.l.b16 %v3449
    %v3486 = vunpack.c.l.b16 %v3450
    %v3487 = vunpack.c.l.b16 %v3451
    %v3488 = vunpack.c.l.b16 %v3452
    %v3489 = vunpack.c.l.b16 %v3453
    %v3490 = vunpack.c.l.b16 %v3454
    %v3491 = vunpack.c.l.b16 %v3455
    %v3492 = vunpack.c.l.b16 %v3456
    %v3493 = vunpack.c.l.b16 %v3457
    %v3494 = vunpack.c.l.b16 %v3458
    %v3495 = vunpack.c.l.b16 %v3459
    %v3496 = vunpack.c.l.b16 %v3460
    %v3497 = vpack.c.b16 %v3482, %v3481
    %v3498 = vpack.c.b16 %v3484, %v3483
    %v3499 = vpack.c.b16 %v3486, %v3485
    %v3500 = vpack.c.b16 %v3488, %v3487
    %v3501 = vpack.c.b16 %v3490, %v3489
    %v3502 = vpack.c.b16 %v3492, %v3491
    %v3503 = vpack.c.b16 %v3494, %v3493
    %v3504 = vpack.c.b16 %v3496, %v3495
    %3513 = vmatpush.bf16.msra.mxu0 %v3504
    %3514 = vmatpush.bf16.msra.mxu0 %v3503
    %3515 = vmatpush.bf16.msra.mxu0 %v3502
    %3516 = vmatpush.bf16.msra.mxu0 %v3501
    %3517 = vmatpush.bf16.msra.mxu0 %v3500
    %3518 = vmatpush.bf16.msra.mxu0 %v3499
    %3519 = vmatpush.bf16.msra.mxu0 %v3498
    %3520 = vmatpush.bf16.msra.mxu0 %v3497
    %3521 = vmatmul.bf16.gmra.mxu0 %v3444
    %v3522 = vpop.f32.mrf.mxu0
    %v3523 = vadd.f32 %v3463, %v3522
    %v3524 = vpop.f32.mrf.mxu0
    %3525 = vdwg.mxu0
    %vm3526 = vcmask 9216
    %3527 = vst.msk [vmem:[#allocation3] sm:$0x3] %vm3526, %v3523
    // Predicated region
    $region38: #{lenet_forward.3} parent=1 // pred_check
      _
    $region39: #{lenet_forward.3} parent=1 // pred_check_branch
      %3529 = sbr.rel (0) target = $region41
    $region40: #{lenet_forward.3} parent=1 // pred_region
      %3531 = vsyncadd [#allocation4], 0
      %s3533 = sshll.u32 [#allocation3], 4
      %s3534 = int_to_ptr.vmem [resolvable:$true] %s3533
      %s3535 = sshll.u32 %s9, 4
      %s3536 = int_to_ptr.hbm [resolvable:$true] %s3535
      %3538 = dma.vmem_to_hbm [thread:$0]  %s3534, 32, %s3536, [#allocation4]
    $region41: #{lenet_forward.3} parent=1 // pred_fallthru
      _
    // Predicated region
    $region42: #{lenet_forward.3} parent=1 // pred_check
      _
    $region43: #{lenet_forward.3} parent=1 // pred_check_branch
      %3540 = sbr.rel (0) target = $region45
    $region44: #{lenet_forward.3} parent=1 // pred_region
      %3542 = dma.done [#allocation4], 32
    $region45: #{lenet_forward.3} parent=1 // pred_fallthru
      _
    %3543 = vsyncpa [#allocation4], 1

</llo_original>
